<compile_context>
chip_gen: v7x
topology: tpu7x:2x2x1
jax: 0.10.0
libtpu: 0.0.40
codegen_flags: <defaults>
</compile_context>

<pallas_src>
import functools

import jax
import jax.numpy as jnp
from jax.experimental import pallas as pl
from jax.experimental.pallas import tpu as pltpu


def _round_up(v, m):
    return ((v + m - 1) // m) * m


def encoder_layer_kernel(
    x_ref,                       # (Bt, Lp, D)  f32
    g1_ref, be1_ref,             # LayerNorm1 gamma/beta          (1, D) f32
    wq_ref, wk_ref, wv_ref,      # in-proj weights W^T (D, D)     bf16 (Wq pre-scaled)
    bq_ref, bk_ref, bv_ref,      # in-proj biases (1, D)          f32  (bq pre-scaled)
    wo_ref, bo_ref,              # out-proj W^T (D, D) bf16, bias (1, D) f32
    g2_ref, be2_ref,             # LayerNorm2 gamma/beta          (1, D) f32
    w1_ref, b1_ref,              # MLP fc1 W^T (D, M) bf16, bias (1, M) f32
    w2_ref, b2_ref,              # MLP fc2 W^T (M, D) bf16, bias (1, D) f32
    out_ref,                     # (Bt, Lp, D)
    *maybe_attw_ref,             # optionally (Bt, Lp, attw_lanes) f32 head-avg attn weights
    heads, with_weights, seq_valid, attw_lanes, lean_attw_store,
):
    Bt, Lp, D = x_ref.shape
    hd = D // heads
    n = Bt * Lp
    eps = 1e-6                                   # nn.LayerNorm(dim, eps=1e-06)

    def layernorm(v, g, b):
        mu = jnp.mean(v, axis=-1, keepdims=True)
        var = jnp.mean((v - mu) ** 2, axis=-1, keepdims=True)
        return (v - mu) * jax.lax.rsqrt(var + eps) * g + b

    # Pack the whole batch tile into one (Bt*Lp, D) slab: fills the MXU M-dim for the
    # LN / QKV / out-proj / MLP matmuls and amortizes the resident weights per step.
    x = x_ref[...].reshape(n, D).astype(jnp.float32)

    # ---- x_ = LayerNorm1(x) ----
    xn = layernorm(x, g1_ref[...], be1_ref[...]).astype(jnp.bfloat16)

    # ---- QKV projections (bf16 operands, f32 accumulation); Wq/bq already scaled ----
    q = jnp.dot(xn, wq_ref[...], preferred_element_type=jnp.float32) + bq_ref[...]
    k = jnp.dot(xn, wk_ref[...], preferred_element_type=jnp.float32) + bk_ref[...]
    v = jnp.dot(xn, wv_ref[...], preferred_element_type=jnp.float32) + bv_ref[...]

    # Key mask for host-side sequence padding (static: only traced when Lp > seq_valid).
    need_mask = seq_valid < Lp
    if need_mask:
        key_mask = jax.lax.broadcasted_iota(jnp.int32, (1, 1, Lp), 2) < seq_valid

    # ---- attention per batch element, batched over heads ----
    # TODO(synk): for long sequences (L >= ~512), switch this segment to flash-style KV
    # tiling (grid axis over KV blocks + online softmax) instead of materializing the
    # (heads, Lp, Lp) scores, and bound live ranges with a fori_loop over Bt.
    mha_rows = []
    attw_rows = []
    for b in range(Bt):
        rows = slice(b * Lp, (b + 1) * Lp)
        qh = q[rows].reshape(Lp, heads, hd).transpose(1, 0, 2).astype(jnp.bfloat16)
        kh = k[rows].reshape(Lp, heads, hd).transpose(1, 0, 2).astype(jnp.bfloat16)
        vh = v[rows].reshape(Lp, heads, hd).transpose(1, 0, 2).astype(jnp.bfloat16)

        s = jnp.einsum("hqd,hkd->hqk", qh, kh,
                       preferred_element_type=jnp.float32)          # (H, Lp, Lp)
        if need_mask:
            s = jnp.where(key_mask, s, -1e30)                       # mask padded keys
        s = s - jnp.max(s, axis=-1, keepdims=True)
        e = jnp.exp(s)
        inv_den = pl.reciprocal(jnp.sum(e, axis=-1, keepdims=True), approx=True)
        p = e * inv_den                                             # softmax, f32

        o = jnp.einsum("hqk,hkd->hqd", p.astype(jnp.bfloat16), vh,
                       preferred_element_type=jnp.float32)          # (H, Lp, hd)
        mha_rows.append(o.transpose(1, 0, 2).reshape(Lp, D))
        if with_weights:
            attw_rows.append(jnp.mean(p, axis=0))                   # (Lp, Lp)

    attn_cat = jnp.concatenate(mha_rows, axis=0).astype(jnp.bfloat16)   # (n, D)
    mha = jnp.dot(attn_cat, wo_ref[...],
                  preferred_element_type=jnp.float32) + bo_ref[...]

    # ---- residual 1 ----
    x1 = x + mha

    # ---- x = LayerNorm2(x_) ; out = x_ + MLP(x) ----
    xn2 = layernorm(x1, g2_ref[...], be2_ref[...]).astype(jnp.bfloat16)
    h1 = jnp.dot(xn2, w1_ref[...], preferred_element_type=jnp.float32) + b1_ref[...]
    # exact GELU (erf-based), matching nn.GELU() default (approximate='none')
    h1 = 0.5 * h1 * (1.0 + jax.lax.erf(h1 * 0.7071067811865476))
    m = jnp.dot(h1.astype(jnp.bfloat16), w2_ref[...],
                preferred_element_type=jnp.float32) + b2_ref[...]

    out_ref[...] = (x1 + m).reshape(Bt, Lp, D).astype(out_ref.dtype)

    # ---- head-averaged attention weights (optional output, lane-dense slab) ----
    if with_weights:
        attw_ref = maybe_attw_ref[0]
        w_all = jnp.stack(attw_rows, axis=0).astype(attw_ref.dtype)   # (Bt, Lp, Lp)
        if attw_lanes == Lp:
            attw_ref[...] = w_all
        elif lean_attw_store:
            # Partial store of the valid lanes only (no zero-pad copy); the padded
            # lanes are undefined and stripped by the wrapper.
            attw_ref[:, :, :Lp] = w_all
        else:
            pad = jnp.zeros((Bt, Lp, attw_lanes - Lp), attw_ref.dtype)
            attw_ref[...] = jnp.concatenate([w_all, pad], axis=-1)


def prepare_params(params, *, heads):
    """One-time host-side prep: fold 1/sqrt(head_dim) into the Q projection (in f32)
    and store the matmul weights in bf16 (MXU-native). Biases / LN params stay f32."""
    dim = params["wq_t"].shape[0]
    scale = 1.0 / float((dim // heads) ** 0.5)
    p = dict(params)
    p["wq_t"] = params["wq_t"] * scale
    p["bq"] = params["bq"] * scale
    for name in ("wq_t", "wk_t", "wv_t", "wo_t", "w1", "w2"):
        p[name] = p[name].astype(jnp.bfloat16)
    return p


def _vmem_capacity_bytes():
    try:
        return int(pltpu.get_tpu_info().vmem_capacity_bytes)
    except Exception:
        return 64 * 1024 * 1024      # conservative: v7x has 64 MiB per TensorCore


def _vmem_need_bytes(bt, lp, d, m, heads, with_weights, attw_lanes, out_itemsize):
    """Rough per-step VMEM estimate used to auto-size the batch tile."""
    n = bt * lp
    weights = (4 * d * d + 2 * d * m) * 2            # bf16 weights, single-buffered
    consts = (10 * d + m) * 4                        # biases + LN params (f32)
    io = (n * d * 4 + n * d * out_itemsize) * 2      # x in / y out, double-buffered
    if with_weights:
        io += bt * lp * attw_lanes * 4 * 2
    inter = (n * d * 4 * 8                           # f32 activations / residuals
             + n * m * 4 * 2                         # MLP hidden + GELU temp
             + heads * lp * lp * 4 * 3               # s / e / p for one batch element
             + n * d * 2 * 3)                        # bf16 copies for MXU operands
    return int((weights + consts + io + inter) * 1.2)


def transformer_encoder_layer(x, params, *, heads, with_weights=True,
                              batch_tile=None, out_dtype=jnp.float32):
    B, L, D = x.shape
    M = params["w1"].shape[1]
    out_itemsize = jnp.dtype(out_dtype).itemsize

    # ---- host-side padding: sequence to a multiple of 8 (sublane), lane-dense attw ----
    Lp = _round_up(L, 8)
    attw_lanes = _round_up(Lp, 128) if with_weights else 0

    # ---- per-generation VMEM budget and batch-tile selection ----
    vmem_limit = int(_vmem_capacity_bytes() * 0.9)
    if batch_tile is None:
        batch_tile = 8
        while batch_tile > 1 and _vmem_need_bytes(
                min(batch_tile, B), Lp, D, M, heads, with_weights,
                attw_lanes, out_itemsize) > vmem_limit:
            batch_tile //= 2
    Bt = max(1, min(batch_tile, B))
    Bp = _round_up(B, Bt)
    # NOTE(v7x): keep Bp // Bt even where possible so both TensorCores stay busy.

    if (Bp, Lp) != (B, L):
        x = jnp.pad(x, ((0, Bp - B), (0, Lp - L), (0, 0)))

    flops = 2 * Bp * Lp * (4 * D * D + 2 * Lp * D + 2 * D * M)
    transcendentals = Bp * Lp * (heads * Lp + M)
    bytes_accessed = (
        Bp * Lp * D * (4 + out_itemsize)              # x in (f32) + y out
        + (4 * D * D + 2 * D * M) * 2                 # bf16 weights
        + (10 * D + M) * 4                            # biases + LN params (f32)
        + (Bp * Lp * attw_lanes * 4 if with_weights else 0))

    def _build(fast):
        if fast:
            # Grid-invariant blocks: single-buffer (index_map never changes).
            def const_spec(shape):
                return pl.BlockSpec(shape, lambda b: (0,) * len(shape),
                                    pipeline_mode=pl.Buffered(1))
        else:
            def const_spec(shape):
                return pl.BlockSpec(shape, lambda b: (0,) * len(shape))

        in_specs = [
            pl.BlockSpec((Bt, Lp, D), lambda b: (b, 0, 0)),   # x
            const_spec((1, D)), const_spec((1, D)),           # ln1 gamma/beta
            const_spec((D, D)), const_spec((D, D)), const_spec((D, D)),  # Wq/Wk/Wv^T
            const_spec((1, D)), const_spec((1, D)), const_spec((1, D)),  # bq/bk/bv
            const_spec((D, D)), const_spec((1, D)),           # Wo^T, bo
            const_spec((1, D)), const_spec((1, D)),           # ln2 gamma/beta
            const_spec((D, M)), const_spec((1, M)),           # W1^T, b1
            const_spec((M, D)), const_spec((1, D)),           # W2^T, b2
        ]
        out_specs = [pl.BlockSpec((Bt, Lp, D), lambda b: (b, 0, 0))]
        out_shape = [jax.ShapeDtypeStruct((Bp, Lp, D), out_dtype)]
        if with_weights:
            out_specs.append(pl.BlockSpec((Bt, Lp, attw_lanes), lambda b: (b, 0, 0)))
            out_shape.append(jax.ShapeDtypeStruct((Bp, Lp, attw_lanes), jnp.float32))

        kernel = functools.partial(
            encoder_layer_kernel, heads=heads, with_weights=with_weights,
            seq_valid=L, attw_lanes=attw_lanes, lean_attw_store=fast)

        return pl.pallas_call(
            kernel,
            out_shape=tuple(out_shape),
            grid_spec=pltpu.PrefetchScalarGridSpec(
                num_scalar_prefetch=0,
                grid=(Bp // Bt,),
                in_specs=in_specs,
                out_specs=tuple(out_specs),
            ),
            compiler_params=pltpu.CompilerParams(
                dimension_semantics=("parallel",),       # batch tiles independent
                vmem_limit_bytes=vmem_limit,             # sized per chip generation
            ),
            cost_estimate=pl.CostEstimate(
                flops=flops,
                transcendentals=transcendentals,
                bytes_accessed=bytes_accessed,
            ),
        )

    args = (
        x,
        params["g1"], params["be1"],
        params["wq_t"], params["wk_t"], params["wv_t"],
        params["bq"], params["bk"], params["bv"],
        params["wo_t"], params["bo"],
        params["g2"], params["be2"],
        params["w1"], params["b1"],
        params["w2"], params["b2"],
    )
    try:
        outs = _build(fast=True)(*args)
    except Exception:
        # Conservative fallback (default double-buffered weights, zero-padded attention
        # weight store) in case Buffered(1) / partial lane stores are unsupported here.
        outs = _build(fast=False)(*args)

    if with_weights:
        y, attw = outs
        return y[:B, :L], attw[:B, :L, :L]       # strip batch/seq/lane padding
    return outs[0][:B, :L]


def init_params(key, dim, heads, mlp_size):
    """Deterministic synthetic parameters (canonical f32, shapes follow the PyTorch module)."""
    ks = jax.random.split(key, 8)
    s = 0.05
    # nn.MultiheadAttention in_proj_weight is (3*dim, dim); Linear applies x @ W^T.
    in_proj_w = s * jax.random.normal(ks[0], (3 * dim, dim), jnp.float32)
    in_proj_b = s * jax.random.normal(ks[1], (3 * dim,), jnp.float32)
    out_proj_w = s * jax.random.normal(ks[2], (dim, dim), jnp.float32)
    out_proj_b = s * jax.random.normal(ks[3], (dim,), jnp.float32)
    fc1_w = s * jax.random.normal(ks[4], (mlp_size, dim), jnp.float32)
    fc1_b = s * jax.random.normal(ks[5], (mlp_size,), jnp.float32)
    fc2_w = s * jax.random.normal(ks[6], (dim, mlp_size), jnp.float32)
    fc2_b = s * jax.random.normal(ks[7], (dim,), jnp.float32)

    wq, wk, wv = in_proj_w[:dim], in_proj_w[dim:2 * dim], in_proj_w[2 * dim:]
    bq, bk, bv = in_proj_b[:dim], in_proj_b[dim:2 * dim], in_proj_b[2 * dim:]

    r = lambda v: v.reshape(1, -1)
    return {
        "g1": jnp.ones((1, dim), jnp.float32), "be1": jnp.zeros((1, dim), jnp.float32),
        "wq_t": wq.T, "wk_t": wk.T, "wv_t": wv.T,
        "bq": r(bq), "bk": r(bk), "bv": r(bv),
        "wo_t": out_proj_w.T, "bo": r(out_proj_b),
        "g2": jnp.ones((1, dim), jnp.float32), "be2": jnp.zeros((1, dim), jnp.float32),
        "w1": fc1_w.T, "b1": r(fc1_b),
        "w2": fc2_w.T, "b2": r(fc2_b),
    }


def reference_forward(x, p, *, heads):
    """Pure-JAX f32 reference matching the PyTorch module (pre-norm, GELU, eps=1e-6)."""
    B, L, D = x.shape
    hd = D // heads
    eps = 1e-6

    def ln(v, g, b):
        mu = v.mean(-1, keepdims=True)
        var = ((v - mu) ** 2).mean(-1, keepdims=True)
        return (v - mu) * jax.lax.rsqrt(var + eps) * g + b

    xn = ln(x, p["g1"], p["be1"])
    q = (xn @ p["wq_t"] + p["bq"]).reshape(B, L, heads, hd).transpose(0, 2, 1, 3)
    k = (xn @ p["wk_t"] + p["bk"]).reshape(B, L, heads, hd).transpose(0, 2, 1, 3)
    v = (xn @ p["wv_t"] + p["bv"]).reshape(B, L, heads, hd).transpose(0, 2, 1, 3)
    s = jnp.einsum("bhqd,bhkd->bhqk", q / jnp.sqrt(float(hd)), k)
    pw = jax.nn.softmax(s, axis=-1)
    o = jnp.einsum("bhqk,bhkd->bhqd", pw, v).transpose(0, 2, 1, 3).reshape(B, L, D)
    x1 = x + o @ p["wo_t"] + p["bo"]
    xn2 = ln(x1, p["g2"], p["be2"])
    h = xn2 @ p["w1"] + p["b1"]
    h = 0.5 * h * (1.0 + jax.lax.erf(h * 0.7071067811865476))
    y = x1 + h @ p["w2"] + p["b2"]
    return y, pw.mean(axis=1)


if __name__ == "__main__":
    # Small ViT-like shapes; L=10 / B=3 deliberately exercise the seq padding + key mask
    # and batch-tile padding paths.
    B, L, D, H, M = 3, 10, 32, 4, 64
    key = jax.random.PRNGKey(0)
    kx, kp = jax.random.split(key)
    x = jax.random.normal(kx, (B, L, D), jnp.float32)
    params_f32 = init_params(kp, D, H, M)
    params = prepare_params(params_f32, heads=H)

    y, attn_weights = transformer_encoder_layer(
        x, params, heads=H, with_weights=True, batch_tile=2)
    jax.block_until_ready((y, attn_weights))

    assert y.shape == (B, L, D)
    assert attn_weights.shape == (B, L, L)

    y_ref, attw_ref = reference_forward(x, params_f32, heads=H)
    assert jnp.allclose(y, y_ref, atol=5e-2, rtol=5e-2), \
        float(jnp.max(jnp.abs(y - y_ref)))
    assert jnp.allclose(attn_weights, attw_ref, atol=5e-2, rtol=5e-2), \
        float(jnp.max(jnp.abs(attn_weights - attw_ref)))

    print("KERNEL_OK")
</pallas_src>

<mosaic_0001>
module attributes {stable_mosaic.version = 11 : i64} {
  func.func @encoder_layer_kernel(%arg0: i32, %arg1: memref<2x16x32xf32, #tpu.memory_space<vmem>>, %arg2: memref<1x32xf32, #tpu.memory_space<vmem>>, %arg3: memref<1x32xf32, #tpu.memory_space<vmem>>, %arg4: memref<32x32xbf16, #tpu.memory_space<vmem>>, %arg5: memref<32x32xbf16, #tpu.memory_space<vmem>>, %arg6: memref<32x32xbf16, #tpu.memory_space<vmem>>, %arg7: memref<1x32xf32, #tpu.memory_space<vmem>>, %arg8: memref<1x32xf32, #tpu.memory_space<vmem>>, %arg9: memref<1x32xf32, #tpu.memory_space<vmem>>, %arg10: memref<32x32xbf16, #tpu.memory_space<vmem>>, %arg11: memref<1x32xf32, #tpu.memory_space<vmem>>, %arg12: memref<1x32xf32, #tpu.memory_space<vmem>>, %arg13: memref<1x32xf32, #tpu.memory_space<vmem>>, %arg14: memref<32x64xbf16, #tpu.memory_space<vmem>>, %arg15: memref<1x64xf32, #tpu.memory_space<vmem>>, %arg16: memref<64x32xbf16, #tpu.memory_space<vmem>>, %arg17: memref<1x32xf32, #tpu.memory_space<vmem>>, %arg18: memref<2x16x32xf32, #tpu.memory_space<vmem>>, %arg19: memref<2x16x128xf32, #tpu.memory_space<vmem>>) attributes {dimension_semantics = [#tpu.dimension_semantics<parallel>], iteration_bounds = array<i64: 2>, scalar_prefetch = 0 : i64, scratch_operands = 0 : i64, tpu.core_type = #tpu.core_type<tc>, window_params = [{transform_indices = @transform_0, window_bounds = array<i64: 2, 16, 32>}, {pipeline_mode = #tpu.pipeline_mode<synchronous>, transform_indices = @transform_1, window_bounds = array<i64: 1, 32>}, {pipeline_mode = #tpu.pipeline_mode<synchronous>, transform_indices = @transform_2, window_bounds = array<i64: 1, 32>}, {pipeline_mode = #tpu.pipeline_mode<synchronous>, transform_indices = @transform_3, window_bounds = array<i64: 32, 32>}, {pipeline_mode = #tpu.pipeline_mode<synchronous>, transform_indices = @transform_4, window_bounds = array<i64: 32, 32>}, {pipeline_mode = #tpu.pipeline_mode<synchronous>, transform_indices = @transform_5, window_bounds = array<i64: 32, 32>}, {pipeline_mode = #tpu.pipeline_mode<synchronous>, transform_indices = @transform_6, window_bounds = array<i64: 1, 32>}, {pipeline_mode = #tpu.pipeline_mode<synchronous>, transform_indices = @transform_7, window_bounds = array<i64: 1, 32>}, {pipeline_mode = #tpu.pipeline_mode<synchronous>, transform_indices = @transform_8, window_bounds = array<i64: 1, 32>}, {pipeline_mode = #tpu.pipeline_mode<synchronous>, transform_indices = @transform_9, window_bounds = array<i64: 32, 32>}, {pipeline_mode = #tpu.pipeline_mode<synchronous>, transform_indices = @transform_10, window_bounds = array<i64: 1, 32>}, {pipeline_mode = #tpu.pipeline_mode<synchronous>, transform_indices = @transform_11, window_bounds = array<i64: 1, 32>}, {pipeline_mode = #tpu.pipeline_mode<synchronous>, transform_indices = @transform_12, window_bounds = array<i64: 1, 32>}, {pipeline_mode = #tpu.pipeline_mode<synchronous>, transform_indices = @transform_13, window_bounds = array<i64: 32, 64>}, {pipeline_mode = #tpu.pipeline_mode<synchronous>, transform_indices = @transform_14, window_bounds = array<i64: 1, 64>}, {pipeline_mode = #tpu.pipeline_mode<synchronous>, transform_indices = @transform_15, window_bounds = array<i64: 64, 32>}, {pipeline_mode = #tpu.pipeline_mode<synchronous>, transform_indices = @transform_16, window_bounds = array<i64: 1, 32>}, {transform_indices = @transform_17, window_bounds = array<i64: 2, 16, 32>}, {transform_indices = @transform_18, window_bounds = array<i64: 2, 16, 128>}]} {
    %c0 = arith.constant 0 : index
    %c0_0 = arith.constant 0 : index
    %c0_1 = arith.constant 0 : index
    %0 = vector.load %arg1[%c0, %c0_0, %c0_1] : memref<2x16x32xf32, #tpu.memory_space<vmem>>, vector<2x16x32xf32>
    %1 = vector.shape_cast %0 : vector<2x16x32xf32> to vector<32x32xf32>
    %c0_2 = arith.constant 0 : index
    %c0_3 = arith.constant 0 : index
    %2 = vector.load %arg2[%c0_2, %c0_3] : memref<1x32xf32, #tpu.memory_space<vmem>>, vector<1x32xf32>
    %c0_4 = arith.constant 0 : index
    %c0_5 = arith.constant 0 : index
    %3 = vector.load %arg3[%c0_4, %c0_5] : memref<1x32xf32, #tpu.memory_space<vmem>>, vector<1x32xf32>
    %cst = arith.constant dense<0.000000e+00> : vector<32xf32>
    %4 = vector.multi_reduction <add>, %1, %cst [1] : vector<32x32xf32> to vector<32xf32>
    %5 = vector.shape_cast %4 : vector<32xf32> to vector<32x1xf32>
    %cst_6 = arith.constant 3.200000e+01 : f32
    %6 = vector.broadcast %cst_6 : f32 to vector<32x1xf32>
    %7 = arith.divf %5, %6 : vector<32x1xf32>
    %8 = vector.broadcast %7 : vector<32x1xf32> to vector<32x32xf32>
    %9 = arith.subf %1, %8 : vector<32x32xf32>
    %10 = arith.mulf %9, %9 : vector<32x32xf32>
    %cst_7 = arith.constant dense<0.000000e+00> : vector<32xf32>
    %11 = vector.multi_reduction <add>, %10, %cst_7 [1] : vector<32x32xf32> to vector<32xf32>
    %12 = vector.shape_cast %11 : vector<32xf32> to vector<32x1xf32>
    %cst_8 = arith.constant 3.200000e+01 : f32
    %13 = vector.broadcast %cst_8 : f32 to vector<32x1xf32>
    %14 = arith.divf %12, %13 : vector<32x1xf32>
    %15 = vector.broadcast %7 : vector<32x1xf32> to vector<32x32xf32>
    %16 = arith.subf %1, %15 : vector<32x32xf32>
    %cst_9 = arith.constant 9.99999997E-7 : f32
    %17 = vector.broadcast %cst_9 : f32 to vector<32x1xf32>
    %18 = arith.addf %14, %17 : vector<32x1xf32>
    %19 = math.rsqrt %18 : vector<32x1xf32>
    %20 = vector.broadcast %19 : vector<32x1xf32> to vector<32x32xf32>
    %21 = arith.mulf %16, %20 : vector<32x32xf32>
    %22 = vector.broadcast %2 : vector<1x32xf32> to vector<32x32xf32>
    %23 = arith.mulf %21, %22 : vector<32x32xf32>
    %24 = vector.broadcast %3 : vector<1x32xf32> to vector<32x32xf32>
    %25 = arith.addf %23, %24 : vector<32x32xf32>
    %26 = arith.truncf %25 : vector<32x32xf32> to vector<32x32xbf16>
    %c0_10 = arith.constant 0 : index
    %c0_11 = arith.constant 0 : index
    %27 = vector.load %arg4[%c0_10, %c0_11] : memref<32x32xbf16, #tpu.memory_space<vmem>>, vector<32x32xbf16>
    %cst_12 = arith.constant dense<0.000000e+00> : vector<32x32xf32>
    %28 = tpu.matmul %26, %27, %cst_12 {dimension_numbers = #tpu.dot_dimension_numbers<[1], [0], [0], [1], [0, 0, 1, 1], [], []>} : vector<32x32xbf16>, vector<32x32xbf16>, vector<32x32xf32> -> vector<32x32xf32>
    %c0_13 = arith.constant 0 : index
    %c0_14 = arith.constant 0 : index
    %29 = vector.load %arg7[%c0_13, %c0_14] : memref<1x32xf32, #tpu.memory_space<vmem>>, vector<1x32xf32>
    %30 = vector.broadcast %29 : vector<1x32xf32> to vector<32x32xf32>
    %31 = arith.addf %28, %30 : vector<32x32xf32>
    %c0_15 = arith.constant 0 : index
    %c0_16 = arith.constant 0 : index
    %32 = vector.load %arg5[%c0_15, %c0_16] : memref<32x32xbf16, #tpu.memory_space<vmem>>, vector<32x32xbf16>
    %cst_17 = arith.constant dense<0.000000e+00> : vector<32x32xf32>
    %33 = tpu.matmul %26, %32, %cst_17 {dimension_numbers = #tpu.dot_dimension_numbers<[1], [0], [0], [1], [0, 0, 1, 1], [], []>} : vector<32x32xbf16>, vector<32x32xbf16>, vector<32x32xf32> -> vector<32x32xf32>
    %c0_18 = arith.constant 0 : index
    %c0_19 = arith.constant 0 : index
    %34 = vector.load %arg8[%c0_18, %c0_19] : memref<1x32xf32, #tpu.memory_space<vmem>>, vector<1x32xf32>
    %35 = vector.broadcast %34 : vector<1x32xf32> to vector<32x32xf32>
    %36 = arith.addf %33, %35 : vector<32x32xf32>
    %c0_20 = arith.constant 0 : index
    %c0_21 = arith.constant 0 : index
    %37 = vector.load %arg6[%c0_20, %c0_21] : memref<32x32xbf16, #tpu.memory_space<vmem>>, vector<32x32xbf16>
    %cst_22 = arith.constant dense<0.000000e+00> : vector<32x32xf32>
    %38 = tpu.matmul %26, %37, %cst_22 {dimension_numbers = #tpu.dot_dimension_numbers<[1], [0], [0], [1], [0, 0, 1, 1], [], []>} : vector<32x32xbf16>, vector<32x32xbf16>, vector<32x32xf32> -> vector<32x32xf32>
    %c0_23 = arith.constant 0 : index
    %c0_24 = arith.constant 0 : index
    %39 = vector.load %arg9[%c0_23, %c0_24] : memref<1x32xf32, #tpu.memory_space<vmem>>, vector<1x32xf32>
    %40 = vector.broadcast %39 : vector<1x32xf32> to vector<32x32xf32>
    %41 = arith.addf %38, %40 : vector<32x32xf32>
    %42 = tpu.iota {dimensions = array<i32: 2>} : vector<1x1x16xi32>
    %c10_i32 = arith.constant 10 : i32
    %43 = vector.broadcast %c10_i32 : i32 to vector<1x1x16xi32>
    %44 = arith.cmpi slt, %42, %43 : vector<1x1x16xi32>
    %45 = vector.extract_strided_slice %31 {offsets = [0, 0], sizes = [16, 32], strides = [1, 1]} : vector<32x32xf32> to vector<16x32xf32>
    %46 = vector.shape_cast %45 : vector<16x32xf32> to vector<16x4x8xf32>
    %47 = tpu.transpose %46, [1, 0, 2] : vector<16x4x8xf32> -> vector<4x16x8xf32>
    %48 = arith.truncf %47 : vector<4x16x8xf32> to vector<4x16x8xbf16>
    %49 = vector.extract_strided_slice %36 {offsets = [0, 0], sizes = [16, 32], strides = [1, 1]} : vector<32x32xf32> to vector<16x32xf32>
    %50 = vector.shape_cast %49 : vector<16x32xf32> to vector<16x4x8xf32>
    %51 = tpu.transpose %50, [1, 0, 2] : vector<16x4x8xf32> -> vector<4x16x8xf32>
    %52 = arith.truncf %51 : vector<4x16x8xf32> to vector<4x16x8xbf16>
    %53 = vector.extract_strided_slice %41 {offsets = [0, 0], sizes = [16, 32], strides = [1, 1]} : vector<32x32xf32> to vector<16x32xf32>
    %54 = vector.shape_cast %53 : vector<16x32xf32> to vector<16x4x8xf32>
    %55 = tpu.transpose %54, [1, 0, 2] : vector<16x4x8xf32> -> vector<4x16x8xf32>
    %56 = arith.truncf %55 : vector<4x16x8xf32> to vector<4x16x8xbf16>
    "tpu.trace_start"() <{level = 10 : i32, message = "hqd,hkd->hqk"}> : () -> ()
    %cst_25 = arith.constant dense<0.000000e+00> : vector<4x16x16xf32>
    %57 = tpu.matmul %48, %52, %cst_25 {dimension_numbers = #tpu.dot_dimension_numbers<[2], [2], [1], [1], [0, 0, 0, 1, 1, 1], [0], [0]>} : vector<4x16x8xbf16>, vector<4x16x8xbf16>, vector<4x16x16xf32> -> vector<4x16x16xf32>
    %cst_26 = arith.constant -1.000000e+30 : f32
    "tpu.trace_stop"() : () -> ()
    %58 = vector.shape_cast %44 : vector<1x1x16xi1> to vector<1x1x16xi1>
    %59 = vector.broadcast %58 : vector<1x1x16xi1> to vector<4x16x16xi1>
    %60 = vector.broadcast %cst_26 : f32 to vector<4x16x16xf32>
    %61 = arith.select %59, %57, %60 : vector<4x16x16xi1>, vector<4x16x16xf32>
    %cst_27 = arith.constant dense<0xFF800000> : vector<4x16xf32>
    %62 = vector.multi_reduction <maximumf>, %61, %cst_27 [2] : vector<4x16x16xf32> to vector<4x16xf32>
    %63 = vector.shape_cast %62 : vector<4x16xf32> to vector<4x16x1xf32>
    %64 = vector.broadcast %63 : vector<4x16x1xf32> to vector<4x16x16xf32>
    %65 = arith.subf %61, %64 : vector<4x16x16xf32>
    %66 = math.exp %65 : vector<4x16x16xf32>
    %cst_28 = arith.constant dense<0.000000e+00> : vector<4x16xf32>
    %67 = vector.multi_reduction <add>, %66, %cst_28 [2] : vector<4x16x16xf32> to vector<4x16xf32>
    %68 = vector.shape_cast %67 : vector<4x16xf32> to vector<4x16x1xf32>
    %69 = tpu.reciprocal %68 {approx = true} : vector<4x16x1xf32> -> vector<4x16x1xf32>
    %70 = vector.broadcast %69 : vector<4x16x1xf32> to vector<4x16x16xf32>
    %71 = arith.mulf %66, %70 : vector<4x16x16xf32>
    %72 = arith.truncf %71 : vector<4x16x16xf32> to vector<4x16x16xbf16>
    "tpu.trace_start"() <{level = 10 : i32, message = "hqk,hkd->hqd"}> : () -> ()
    %cst_29 = arith.constant dense<0.000000e+00> : vector<4x16x8xf32>
    %73 = tpu.matmul %72, %56, %cst_29 {dimension_numbers = #tpu.dot_dimension_numbers<[2], [1], [1], [2], [0, 0, 0, 1, 1, 2], [0], [0]>} : vector<4x16x16xbf16>, vector<4x16x8xbf16>, vector<4x16x8xf32> -> vector<4x16x8xf32>
    "tpu.trace_stop"() : () -> ()
    %74 = tpu.transpose %73, [1, 0, 2] : vector<4x16x8xf32> -> vector<16x4x8xf32>
    %75 = vector.shape_cast %74 : vector<16x4x8xf32> to vector<16x32xf32>
    %cst_30 = arith.constant dense<0.000000e+00> : vector<16x16xf32>
    %76 = vector.multi_reduction <add>, %71, %cst_30 [0] : vector<4x16x16xf32> to vector<16x16xf32>
    %cst_31 = arith.constant 4.000000e+00 : f32
    %77 = vector.broadcast %cst_31 : f32 to vector<16x16xf32>
    %78 = arith.divf %76, %77 : vector<16x16xf32>
    %79 = vector.extract_strided_slice %31 {offsets = [16, 0], sizes = [16, 32], strides = [1, 1]} : vector<32x32xf32> to vector<16x32xf32>
    %80 = vector.shape_cast %79 : vector<16x32xf32> to vector<16x4x8xf32>
    %81 = tpu.transpose %80, [1, 0, 2] : vector<16x4x8xf32> -> vector<4x16x8xf32>
    %82 = arith.truncf %81 : vector<4x16x8xf32> to vector<4x16x8xbf16>
    %83 = vector.extract_strided_slice %36 {offsets = [16, 0], sizes = [16, 32], strides = [1, 1]} : vector<32x32xf32> to vector<16x32xf32>
    %84 = vector.shape_cast %83 : vector<16x32xf32> to vector<16x4x8xf32>
    %85 = tpu.transpose %84, [1, 0, 2] : vector<16x4x8xf32> -> vector<4x16x8xf32>
    %86 = arith.truncf %85 : vector<4x16x8xf32> to vector<4x16x8xbf16>
    %87 = vector.extract_strided_slice %41 {offsets = [16, 0], sizes = [16, 32], strides = [1, 1]} : vector<32x32xf32> to vector<16x32xf32>
    %88 = vector.shape_cast %87 : vector<16x32xf32> to vector<16x4x8xf32>
    %89 = tpu.transpose %88, [1, 0, 2] : vector<16x4x8xf32> -> vector<4x16x8xf32>
    %90 = arith.truncf %89 : vector<4x16x8xf32> to vector<4x16x8xbf16>
    "tpu.trace_start"() <{level = 10 : i32, message = "hqd,hkd->hqk"}> : () -> ()
    %cst_32 = arith.constant dense<0.000000e+00> : vector<4x16x16xf32>
    %91 = tpu.matmul %82, %86, %cst_32 {dimension_numbers = #tpu.dot_dimension_numbers<[2], [2], [1], [1], [0, 0, 0, 1, 1, 1], [0], [0]>} : vector<4x16x8xbf16>, vector<4x16x8xbf16>, vector<4x16x16xf32> -> vector<4x16x16xf32>
    %cst_33 = arith.constant -1.000000e+30 : f32
    "tpu.trace_stop"() : () -> ()
    %92 = vector.shape_cast %44 : vector<1x1x16xi1> to vector<1x1x16xi1>
    %93 = vector.broadcast %92 : vector<1x1x16xi1> to vector<4x16x16xi1>
    %94 = vector.broadcast %cst_33 : f32 to vector<4x16x16xf32>
    %95 = arith.select %93, %91, %94 : vector<4x16x16xi1>, vector<4x16x16xf32>
    %cst_34 = arith.constant dense<0xFF800000> : vector<4x16xf32>
    %96 = vector.multi_reduction <maximumf>, %95, %cst_34 [2] : vector<4x16x16xf32> to vector<4x16xf32>
    %97 = vector.shape_cast %96 : vector<4x16xf32> to vector<4x16x1xf32>
    %98 = vector.broadcast %97 : vector<4x16x1xf32> to vector<4x16x16xf32>
    %99 = arith.subf %95, %98 : vector<4x16x16xf32>
    %100 = math.exp %99 : vector<4x16x16xf32>
    %cst_35 = arith.constant dense<0.000000e+00> : vector<4x16xf32>
    %101 = vector.multi_reduction <add>, %100, %cst_35 [2] : vector<4x16x16xf32> to vector<4x16xf32>
    %102 = vector.shape_cast %101 : vector<4x16xf32> to vector<4x16x1xf32>
    %103 = tpu.reciprocal %102 {approx = true} : vector<4x16x1xf32> -> vector<4x16x1xf32>
    %104 = vector.broadcast %103 : vector<4x16x1xf32> to vector<4x16x16xf32>
    %105 = arith.mulf %100, %104 : vector<4x16x16xf32>
    %106 = arith.truncf %105 : vector<4x16x16xf32> to vector<4x16x16xbf16>
    "tpu.trace_start"() <{level = 10 : i32, message = "hqk,hkd->hqd"}> : () -> ()
    %cst_36 = arith.constant dense<0.000000e+00> : vector<4x16x8xf32>
    %107 = tpu.matmul %106, %90, %cst_36 {dimension_numbers = #tpu.dot_dimension_numbers<[2], [1], [1], [2], [0, 0, 0, 1, 1, 2], [0], [0]>} : vector<4x16x16xbf16>, vector<4x16x8xbf16>, vector<4x16x8xf32> -> vector<4x16x8xf32>
    "tpu.trace_stop"() : () -> ()
    %108 = tpu.transpose %107, [1, 0, 2] : vector<4x16x8xf32> -> vector<16x4x8xf32>
    %109 = vector.shape_cast %108 : vector<16x4x8xf32> to vector<16x32xf32>
    %cst_37 = arith.constant dense<0.000000e+00> : vector<16x16xf32>
    %110 = vector.multi_reduction <add>, %105, %cst_37 [0] : vector<4x16x16xf32> to vector<16x16xf32>
    %cst_38 = arith.constant 4.000000e+00 : f32
    %111 = vector.broadcast %cst_38 : f32 to vector<16x16xf32>
    %112 = arith.divf %110, %111 : vector<16x16xf32>
    %113 = tpu.concatenate %75, %109 in 0 : vector<16x32xf32>, vector<16x32xf32> -> vector<32x32xf32>
    %114 = arith.truncf %113 : vector<32x32xf32> to vector<32x32xbf16>
    %c0_39 = arith.constant 0 : index
    %c0_40 = arith.constant 0 : index
    %115 = vector.load %arg10[%c0_39, %c0_40] : memref<32x32xbf16, #tpu.memory_space<vmem>>, vector<32x32xbf16>
    %cst_41 = arith.constant dense<0.000000e+00> : vector<32x32xf32>
    %116 = tpu.matmul %114, %115, %cst_41 {dimension_numbers = #tpu.dot_dimension_numbers<[1], [0], [0], [1], [0, 0, 1, 1], [], []>} : vector<32x32xbf16>, vector<32x32xbf16>, vector<32x32xf32> -> vector<32x32xf32>
    %c0_42 = arith.constant 0 : index
    %c0_43 = arith.constant 0 : index
    %117 = vector.load %arg11[%c0_42, %c0_43] : memref<1x32xf32, #tpu.memory_space<vmem>>, vector<1x32xf32>
    %118 = vector.broadcast %117 : vector<1x32xf32> to vector<32x32xf32>
    %119 = arith.addf %116, %118 : vector<32x32xf32>
    %120 = arith.addf %1, %119 : vector<32x32xf32>
    %c0_44 = arith.constant 0 : index
    %c0_45 = arith.constant 0 : index
    %121 = vector.load %arg12[%c0_44, %c0_45] : memref<1x32xf32, #tpu.memory_space<vmem>>, vector<1x32xf32>
    %c0_46 = arith.constant 0 : index
    %c0_47 = arith.constant 0 : index
    %122 = vector.load %arg13[%c0_46, %c0_47] : memref<1x32xf32, #tpu.memory_space<vmem>>, vector<1x32xf32>
    %cst_48 = arith.constant dense<0.000000e+00> : vector<32xf32>
    %123 = vector.multi_reduction <add>, %120, %cst_48 [1] : vector<32x32xf32> to vector<32xf32>
    %124 = vector.shape_cast %123 : vector<32xf32> to vector<32x1xf32>
    %cst_49 = arith.constant 3.200000e+01 : f32
    %125 = vector.broadcast %cst_49 : f32 to vector<32x1xf32>
    %126 = arith.divf %124, %125 : vector<32x1xf32>
    %127 = vector.broadcast %126 : vector<32x1xf32> to vector<32x32xf32>
    %128 = arith.subf %120, %127 : vector<32x32xf32>
    %129 = arith.mulf %128, %128 : vector<32x32xf32>
    %cst_50 = arith.constant dense<0.000000e+00> : vector<32xf32>
    %130 = vector.multi_reduction <add>, %129, %cst_50 [1] : vector<32x32xf32> to vector<32xf32>
    %131 = vector.shape_cast %130 : vector<32xf32> to vector<32x1xf32>
    %cst_51 = arith.constant 3.200000e+01 : f32
    %132 = vector.broadcast %cst_51 : f32 to vector<32x1xf32>
    %133 = arith.divf %131, %132 : vector<32x1xf32>
    %134 = vector.broadcast %126 : vector<32x1xf32> to vector<32x32xf32>
    %135 = arith.subf %120, %134 : vector<32x32xf32>
    %cst_52 = arith.constant 9.99999997E-7 : f32
    %136 = vector.broadcast %cst_52 : f32 to vector<32x1xf32>
    %137 = arith.addf %133, %136 : vector<32x1xf32>
    %138 = math.rsqrt %137 : vector<32x1xf32>
    %139 = vector.broadcast %138 : vector<32x1xf32> to vector<32x32xf32>
    %140 = arith.mulf %135, %139 : vector<32x32xf32>
    %141 = vector.broadcast %121 : vector<1x32xf32> to vector<32x32xf32>
    %142 = arith.mulf %140, %141 : vector<32x32xf32>
    %143 = vector.broadcast %122 : vector<1x32xf32> to vector<32x32xf32>
    %144 = arith.addf %142, %143 : vector<32x32xf32>
    %145 = arith.truncf %144 : vector<32x32xf32> to vector<32x32xbf16>
    %c0_53 = arith.constant 0 : index
    %c0_54 = arith.constant 0 : index
    %146 = vector.load %arg14[%c0_53, %c0_54] : memref<32x64xbf16, #tpu.memory_space<vmem>>, vector<32x64xbf16>
    %cst_55 = arith.constant dense<0.000000e+00> : vector<32x64xf32>
    %147 = tpu.matmul %145, %146, %cst_55 {dimension_numbers = #tpu.dot_dimension_numbers<[1], [0], [0], [1], [0, 0, 1, 1], [], []>} : vector<32x32xbf16>, vector<32x64xbf16>, vector<32x64xf32> -> vector<32x64xf32>
    %c0_56 = arith.constant 0 : index
    %c0_57 = arith.constant 0 : index
    %148 = vector.load %arg15[%c0_56, %c0_57] : memref<1x64xf32, #tpu.memory_space<vmem>>, vector<1x64xf32>
    %149 = vector.broadcast %148 : vector<1x64xf32> to vector<32x64xf32>
    %150 = arith.addf %147, %149 : vector<32x64xf32>
    %cst_58 = arith.constant 5.000000e-01 : f32
    %151 = vector.broadcast %cst_58 : f32 to vector<32x64xf32>
    %152 = arith.mulf %151, %150 : vector<32x64xf32>
    %cst_59 = arith.constant 0.707106769 : f32
    %153 = vector.broadcast %cst_59 : f32 to vector<32x64xf32>
    %154 = arith.mulf %150, %153 : vector<32x64xf32>
    %155 = math.erf %154 : vector<32x64xf32>
    %cst_60 = arith.constant 1.000000e+00 : f32
    %156 = vector.broadcast %cst_60 : f32 to vector<32x64xf32>
    %157 = arith.addf %156, %155 : vector<32x64xf32>
    %158 = arith.mulf %152, %157 : vector<32x64xf32>
    %159 = arith.truncf %158 : vector<32x64xf32> to vector<32x64xbf16>
    %c0_61 = arith.constant 0 : index
    %c0_62 = arith.constant 0 : index
    %160 = vector.load %arg16[%c0_61, %c0_62] : memref<64x32xbf16, #tpu.memory_space<vmem>>, vector<64x32xbf16>
    %cst_63 = arith.constant dense<0.000000e+00> : vector<32x32xf32>
    %161 = tpu.matmul %159, %160, %cst_63 {dimension_numbers = #tpu.dot_dimension_numbers<[1], [0], [0], [1], [0, 0, 1, 1], [], []>} : vector<32x64xbf16>, vector<64x32xbf16>, vector<32x32xf32> -> vector<32x32xf32>
    %c0_64 = arith.constant 0 : index
    %c0_65 = arith.constant 0 : index
    %162 = vector.load %arg17[%c0_64, %c0_65] : memref<1x32xf32, #tpu.memory_space<vmem>>, vector<1x32xf32>
    %163 = vector.broadcast %162 : vector<1x32xf32> to vector<32x32xf32>
    %164 = arith.addf %161, %163 : vector<32x32xf32>
    %165 = arith.addf %120, %164 : vector<32x32xf32>
    %166 = vector.shape_cast %165 : vector<32x32xf32> to vector<2x16x32xf32>
    %c0_66 = arith.constant 0 : index
    %c0_67 = arith.constant 0 : index
    %c0_68 = arith.constant 0 : index
    %167 = vector.load %arg18[%c0_66, %c0_67, %c0_68] : memref<2x16x32xf32, #tpu.memory_space<vmem>>, vector<2x16x32xf32>
    tpu.vector_store %arg18[%c0_66, %c0_67, %c0_68], %166 {strides = array<i32>} : memref<2x16x32xf32, #tpu.memory_space<vmem>>, vector<2x16x32xf32>,
    %168 = vector.shape_cast %78 : vector<16x16xf32> to vector<1x16x16xf32>
    %169 = vector.shape_cast %112 : vector<16x16xf32> to vector<1x16x16xf32>
    %170 = tpu.concatenate %168, %169 in 0 : vector<1x16x16xf32>, vector<1x16x16xf32> -> vector<2x16x16xf32>
    %c0_69 = arith.constant 0 : index
    %c0_70 = arith.constant 0 : index
    %c0_71 = arith.constant 0 : index
    %171 = vector.load %arg19[%c0_69, %c0_70, %c0_71] : memref<2x16x128xf32, #tpu.memory_space<vmem>>, vector<2x16x16xf32>
    tpu.vector_store %arg19[%c0_69, %c0_70, %c0_71], %170 {strides = array<i32>} : memref<2x16x128xf32, #tpu.memory_space<vmem>>, vector<2x16x16xf32>,
    return
  }
  func.func @transform_0(%arg0: i32) -> (i32, i32, i32) {
    %c0_i32 = arith.constant 0 : i32
    %c0_i32_0 = arith.constant 0 : i32
    %c0_i32_1 = arith.constant 0 : i32
    return %arg0, %c0_i32, %c0_i32_0 : i32, i32, i32
  }
  func.func @transform_1(%arg0: i32) -> (i32, i32) {
    %c0_i32 = arith.constant 0 : i32
    %c0_i32_0 = arith.constant 0 : i32
    %c0_i32_1 = arith.constant 0 : i32
    return %c0_i32, %c0_i32_0 : i32, i32
  }
  func.func @transform_2(%arg0: i32) -> (i32, i32) {
    %c0_i32 = arith.constant 0 : i32
    %c0_i32_0 = arith.constant 0 : i32
    %c0_i32_1 = arith.constant 0 : i32
    return %c0_i32, %c0_i32_0 : i32, i32
  }
  func.func @transform_3(%arg0: i32) -> (i32, i32) {
    %c0_i32 = arith.constant 0 : i32
    %c0_i32_0 = arith.constant 0 : i32
    %c0_i32_1 = arith.constant 0 : i32
    return %c0_i32, %c0_i32_0 : i32, i32
  }
  func.func @transform_4(%arg0: i32) -> (i32, i32) {
    %c0_i32 = arith.constant 0 : i32
    %c0_i32_0 = arith.constant 0 : i32
    %c0_i32_1 = arith.constant 0 : i32
    return %c0_i32, %c0_i32_0 : i32, i32
  }
  func.func @transform_5(%arg0: i32) -> (i32, i32) {
    %c0_i32 = arith.constant 0 : i32
    %c0_i32_0 = arith.constant 0 : i32
    %c0_i32_1 = arith.constant 0 : i32
    return %c0_i32, %c0_i32_0 : i32, i32
  }
  func.func @transform_6(%arg0: i32) -> (i32, i32) {
    %c0_i32 = arith.constant 0 : i32
    %c0_i32_0 = arith.constant 0 : i32
    %c0_i32_1 = arith.constant 0 : i32
    return %c0_i32, %c0_i32_0 : i32, i32
  }
  func.func @transform_7(%arg0: i32) -> (i32, i32) {
    %c0_i32 = arith.constant 0 : i32
    %c0_i32_0 = arith.constant 0 : i32
    %c0_i32_1 = arith.constant 0 : i32
    return %c0_i32, %c0_i32_0 : i32, i32
  }
  func.func @transform_8(%arg0: i32) -> (i32, i32) {
    %c0_i32 = arith.constant 0 : i32
    %c0_i32_0 = arith.constant 0 : i32
    %c0_i32_1 = arith.constant 0 : i32
    return %c0_i32, %c0_i32_0 : i32, i32
  }
  func.func @transform_9(%arg0: i32) -> (i32, i32) {
    %c0_i32 = arith.constant 0 : i32
    %c0_i32_0 = arith.constant 0 : i32
    %c0_i32_1 = arith.constant 0 : i32
    return %c0_i32, %c0_i32_0 : i32, i32
  }
  func.func @transform_10(%arg0: i32) -> (i32, i32) {
    %c0_i32 = arith.constant 0 : i32
    %c0_i32_0 = arith.constant 0 : i32
    %c0_i32_1 = arith.constant 0 : i32
    return %c0_i32, %c0_i32_0 : i32, i32
  }
  func.func @transform_11(%arg0: i32) -> (i32, i32) {
    %c0_i32 = arith.constant 0 : i32
    %c0_i32_0 = arith.constant 0 : i32
    %c0_i32_1 = arith.constant 0 : i32
    return %c0_i32, %c0_i32_0 : i32, i32
  }
  func.func @transform_12(%arg0: i32) -> (i32, i32) {
    %c0_i32 = arith.constant 0 : i32
    %c0_i32_0 = arith.constant 0 : i32
    %c0_i32_1 = arith.constant 0 : i32
    return %c0_i32, %c0_i32_0 : i32, i32
  }
  func.func @transform_13(%arg0: i32) -> (i32, i32) {
    %c0_i32 = arith.constant 0 : i32
    %c0_i32_0 = arith.constant 0 : i32
    %c0_i32_1 = arith.constant 0 : i32
    return %c0_i32, %c0_i32_0 : i32, i32
  }
  func.func @transform_14(%arg0: i32) -> (i32, i32) {
    %c0_i32 = arith.constant 0 : i32
    %c0_i32_0 = arith.constant 0 : i32
    %c0_i32_1 = arith.constant 0 : i32
    return %c0_i32, %c0_i32_0 : i32, i32
  }
  func.func @transform_15(%arg0: i32) -> (i32, i32) {
    %c0_i32 = arith.constant 0 : i32
    %c0_i32_0 = arith.constant 0 : i32
    %c0_i32_1 = arith.constant 0 : i32
    return %c0_i32, %c0_i32_0 : i32, i32
  }
  func.func @transform_16(%arg0: i32) -> (i32, i32) {
    %c0_i32 = arith.constant 0 : i32
    %c0_i32_0 = arith.constant 0 : i32
    %c0_i32_1 = arith.constant 0 : i32
    return %c0_i32, %c0_i32_0 : i32, i32
  }
  func.func @transform_17(%arg0: i32) -> (i32, i32, i32) {
    %c0_i32 = arith.constant 0 : i32
    %c0_i32_0 = arith.constant 0 : i32
    %c0_i32_1 = arith.constant 0 : i32
    return %arg0, %c0_i32, %c0_i32_0 : i32, i32, i32
  }
  func.func @transform_18(%arg0: i32) -> (i32, i32, i32) {
    %c0_i32 = arith.constant 0 : i32
    %c0_i32_0 = arith.constant 0 : i32
    %c0_i32_1 = arith.constant 0 : i32
    return %arg0, %c0_i32, %c0_i32_0 : i32, i32, i32
  }
}

module attributes {stable_mosaic.version = 11 : i64} {
  func.func @encoder_layer_kernel(%arg0: i32, %arg1: memref<2x16x32xf32, #tpu.memory_space<vmem>>, %arg2: memref<1x32xf32, #tpu.memory_space<vmem>>, %arg3: memref<1x32xf32, #tpu.memory_space<vmem>>, %arg4: memref<32x32xbf16, #tpu.memory_space<vmem>>, %arg5: memref<32x32xbf16, #tpu.memory_space<vmem>>, %arg6: memref<32x32xbf16, #tpu.memory_space<vmem>>, %arg7: memref<1x32xf32, #tpu.memory_space<vmem>>, %arg8: memref<1x32xf32, #tpu.memory_space<vmem>>, %arg9: memref<1x32xf32, #tpu.memory_space<vmem>>, %arg10: memref<32x32xbf16, #tpu.memory_space<vmem>>, %arg11: memref<1x32xf32, #tpu.memory_space<vmem>>, %arg12: memref<1x32xf32, #tpu.memory_space<vmem>>, %arg13: memref<1x32xf32, #tpu.memory_space<vmem>>, %arg14: memref<32x64xbf16, #tpu.memory_space<vmem>>, %arg15: memref<1x64xf32, #tpu.memory_space<vmem>>, %arg16: memref<64x32xbf16, #tpu.memory_space<vmem>>, %arg17: memref<1x32xf32, #tpu.memory_space<vmem>>, %arg18: memref<2x16x32xf32, #tpu.memory_space<vmem>>, %arg19: memref<2x16x128xf32, #tpu.memory_space<vmem>>) attributes {dimension_semantics = [#tpu.dimension_semantics<parallel>], iteration_bounds = array<i64: 2>, scalar_prefetch = 0 : i64, scratch_operands = 0 : i64, tpu.core_type = #tpu.core_type<tc>, window_params = [{transform_indices = @transform_0, window_bounds = array<i64: 2, 16, 32>}, {pipeline_mode = #tpu.pipeline_mode<synchronous>, transform_indices = @transform_1, window_bounds = array<i64: 1, 32>}, {pipeline_mode = #tpu.pipeline_mode<synchronous>, transform_indices = @transform_2, window_bounds = array<i64: 1, 32>}, {pipeline_mode = #tpu.pipeline_mode<synchronous>, transform_indices = @transform_3, window_bounds = array<i64: 32, 32>}, {pipeline_mode = #tpu.pipeline_mode<synchronous>, transform_indices = @transform_4, window_bounds = array<i64: 32, 32>}, {pipeline_mode = #tpu.pipeline_mode<synchronous>, transform_indices = @transform_5, window_bounds = array<i64: 32, 32>}, {pipeline_mode = #tpu.pipeline_mode<synchronous>, transform_indices = @transform_6, window_bounds = array<i64: 1, 32>}, {pipeline_mode = #tpu.pipeline_mode<synchronous>, transform_indices = @transform_7, window_bounds = array<i64: 1, 32>}, {pipeline_mode = #tpu.pipeline_mode<synchronous>, transform_indices = @transform_8, window_bounds = array<i64: 1, 32>}, {pipeline_mode = #tpu.pipeline_mode<synchronous>, transform_indices = @transform_9, window_bounds = array<i64: 32, 32>}, {pipeline_mode = #tpu.pipeline_mode<synchronous>, transform_indices = @transform_10, window_bounds = array<i64: 1, 32>}, {pipeline_mode = #tpu.pipeline_mode<synchronous>, transform_indices = @transform_11, window_bounds = array<i64: 1, 32>}, {pipeline_mode = #tpu.pipeline_mode<synchronous>, transform_indices = @transform_12, window_bounds = array<i64: 1, 32>}, {pipeline_mode = #tpu.pipeline_mode<synchronous>, transform_indices = @transform_13, window_bounds = array<i64: 32, 64>}, {pipeline_mode = #tpu.pipeline_mode<synchronous>, transform_indices = @transform_14, window_bounds = array<i64: 1, 64>}, {pipeline_mode = #tpu.pipeline_mode<synchronous>, transform_indices = @transform_15, window_bounds = array<i64: 64, 32>}, {pipeline_mode = #tpu.pipeline_mode<synchronous>, transform_indices = @transform_16, window_bounds = array<i64: 1, 32>}, {transform_indices = @transform_17, window_bounds = array<i64: 2, 16, 32>}, {transform_indices = @transform_18, window_bounds = array<i64: 2, 16, 128>}]} {
    %c0 = arith.constant 0 : index
    %c0_0 = arith.constant 0 : index
    %c0_1 = arith.constant 0 : index
    %0 = vector.load %arg1[%c0, %c0_0, %c0_1] : memref<2x16x32xf32, #tpu.memory_space<vmem>>, vector<2x16x32xf32>
    %1 = vector.shape_cast %0 : vector<2x16x32xf32> to vector<32x32xf32>
    %c0_2 = arith.constant 0 : index
    %c0_3 = arith.constant 0 : index
    %2 = vector.load %arg2[%c0_2, %c0_3] : memref<1x32xf32, #tpu.memory_space<vmem>>, vector<1x32xf32>
    %c0_4 = arith.constant 0 : index
    %c0_5 = arith.constant 0 : index
    %3 = vector.load %arg3[%c0_4, %c0_5] : memref<1x32xf32, #tpu.memory_space<vmem>>, vector<1x32xf32>
    %cst = arith.constant dense<0.000000e+00> : vector<32xf32>
    %4 = vector.multi_reduction <add>, %1, %cst [1] : vector<32x32xf32> to vector<32xf32>
    %5 = vector.shape_cast %4 : vector<32xf32> to vector<32x1xf32>
    %cst_6 = arith.constant 3.200000e+01 : f32
    %6 = vector.broadcast %cst_6 : f32 to vector<32x1xf32>
    %7 = arith.divf %5, %6 : vector<32x1xf32>
    %8 = vector.broadcast %7 : vector<32x1xf32> to vector<32x32xf32>
    %9 = arith.subf %1, %8 : vector<32x32xf32>
    %10 = arith.mulf %9, %9 : vector<32x32xf32>
    %cst_7 = arith.constant dense<0.000000e+00> : vector<32xf32>
    %11 = vector.multi_reduction <add>, %10, %cst_7 [1] : vector<32x32xf32> to vector<32xf32>
    %12 = vector.shape_cast %11 : vector<32xf32> to vector<32x1xf32>
    %cst_8 = arith.constant 3.200000e+01 : f32
    %13 = vector.broadcast %cst_8 : f32 to vector<32x1xf32>
    %14 = arith.divf %12, %13 : vector<32x1xf32>
    %15 = vector.broadcast %7 : vector<32x1xf32> to vector<32x32xf32>
    %16 = arith.subf %1, %15 : vector<32x32xf32>
    %cst_9 = arith.constant 9.99999997E-7 : f32
    %17 = vector.broadcast %cst_9 : f32 to vector<32x1xf32>
    %18 = arith.addf %14, %17 : vector<32x1xf32>
    %19 = math.rsqrt %18 : vector<32x1xf32>
    %20 = vector.broadcast %19 : vector<32x1xf32> to vector<32x32xf32>
    %21 = arith.mulf %16, %20 : vector<32x32xf32>
    %22 = vector.broadcast %2 : vector<1x32xf32> to vector<32x32xf32>
    %23 = arith.mulf %21, %22 : vector<32x32xf32>
    %24 = vector.broadcast %3 : vector<1x32xf32> to vector<32x32xf32>
    %25 = arith.addf %23, %24 : vector<32x32xf32>
    %26 = arith.truncf %25 : vector<32x32xf32> to vector<32x32xbf16>
    %c0_10 = arith.constant 0 : index
    %c0_11 = arith.constant 0 : index
    %27 = vector.load %arg4[%c0_10, %c0_11] : memref<32x32xbf16, #tpu.memory_space<vmem>>, vector<32x32xbf16>
    %cst_12 = arith.constant dense<0.000000e+00> : vector<32x32xf32>
    %28 = tpu.matmul %26, %27, %cst_12 {dimension_numbers = #tpu.dot_dimension_numbers<[1], [0], [0], [1], [0, 0, 1, 1], [], []>} : vector<32x32xbf16>, vector<32x32xbf16>, vector<32x32xf32> -> vector<32x32xf32>
    %c0_13 = arith.constant 0 : index
    %c0_14 = arith.constant 0 : index
    %29 = vector.load %arg7[%c0_13, %c0_14] : memref<1x32xf32, #tpu.memory_space<vmem>>, vector<1x32xf32>
    %30 = vector.broadcast %29 : vector<1x32xf32> to vector<32x32xf32>
    %31 = arith.addf %28, %30 : vector<32x32xf32>
    %c0_15 = arith.constant 0 : index
    %c0_16 = arith.constant 0 : index
    %32 = vector.load %arg5[%c0_15, %c0_16] : memref<32x32xbf16, #tpu.memory_space<vmem>>, vector<32x32xbf16>
    %cst_17 = arith.constant dense<0.000000e+00> : vector<32x32xf32>
    %33 = tpu.matmul %26, %32, %cst_17 {dimension_numbers = #tpu.dot_dimension_numbers<[1], [0], [0], [1], [0, 0, 1, 1], [], []>} : vector<32x32xbf16>, vector<32x32xbf16>, vector<32x32xf32> -> vector<32x32xf32>
    %c0_18 = arith.constant 0 : index
    %c0_19 = arith.constant 0 : index
    %34 = vector.load %arg8[%c0_18, %c0_19] : memref<1x32xf32, #tpu.memory_space<vmem>>, vector<1x32xf32>
    %35 = vector.broadcast %34 : vector<1x32xf32> to vector<32x32xf32>
    %36 = arith.addf %33, %35 : vector<32x32xf32>
    %c0_20 = arith.constant 0 : index
    %c0_21 = arith.constant 0 : index
    %37 = vector.load %arg6[%c0_20, %c0_21] : memref<32x32xbf16, #tpu.memory_space<vmem>>, vector<32x32xbf16>
    %cst_22 = arith.constant dense<0.000000e+00> : vector<32x32xf32>
    %38 = tpu.matmul %26, %37, %cst_22 {dimension_numbers = #tpu.dot_dimension_numbers<[1], [0], [0], [1], [0, 0, 1, 1], [], []>} : vector<32x32xbf16>, vector<32x32xbf16>, vector<32x32xf32> -> vector<32x32xf32>
    %c0_23 = arith.constant 0 : index
    %c0_24 = arith.constant 0 : index
    %39 = vector.load %arg9[%c0_23, %c0_24] : memref<1x32xf32, #tpu.memory_space<vmem>>, vector<1x32xf32>
    %40 = vector.broadcast %39 : vector<1x32xf32> to vector<32x32xf32>
    %41 = arith.addf %38, %40 : vector<32x32xf32>
    %42 = tpu.iota {dimensions = array<i32: 2>} : vector<1x1x16xi32>
    %c10_i32 = arith.constant 10 : i32
    %43 = vector.broadcast %c10_i32 : i32 to vector<1x1x16xi32>
    %44 = arith.cmpi slt, %42, %43 : vector<1x1x16xi32>
    %45 = vector.extract_strided_slice %31 {offsets = [0, 0], sizes = [16, 32], strides = [1, 1]} : vector<32x32xf32> to vector<16x32xf32>
    %46 = vector.shape_cast %45 : vector<16x32xf32> to vector<16x4x8xf32>
    %47 = tpu.transpose %46, [1, 0, 2] : vector<16x4x8xf32> -> vector<4x16x8xf32>
    %48 = arith.truncf %47 : vector<4x16x8xf32> to vector<4x16x8xbf16>
    %49 = vector.extract_strided_slice %36 {offsets = [0, 0], sizes = [16, 32], strides = [1, 1]} : vector<32x32xf32> to vector<16x32xf32>
    %50 = vector.shape_cast %49 : vector<16x32xf32> to vector<16x4x8xf32>
    %51 = tpu.transpose %50, [1, 0, 2] : vector<16x4x8xf32> -> vector<4x16x8xf32>
    %52 = arith.truncf %51 : vector<4x16x8xf32> to vector<4x16x8xbf16>
    %53 = vector.extract_strided_slice %41 {offsets = [0, 0], sizes = [16, 32], strides = [1, 1]} : vector<32x32xf32> to vector<16x32xf32>
    %54 = vector.shape_cast %53 : vector<16x32xf32> to vector<16x4x8xf32>
    %55 = tpu.transpose %54, [1, 0, 2] : vector<16x4x8xf32> -> vector<4x16x8xf32>
    %56 = arith.truncf %55 : vector<4x16x8xf32> to vector<4x16x8xbf16>
    "tpu.trace_start"() <{level = 10 : i32, message = "hqd,hkd->hqk"}> : () -> ()
    %cst_25 = arith.constant dense<0.000000e+00> : vector<4x16x16xf32>
    %57 = tpu.matmul %48, %52, %cst_25 {dimension_numbers = #tpu.dot_dimension_numbers<[2], [2], [1], [1], [0, 0, 0, 1, 1, 1], [0], [0]>} : vector<4x16x8xbf16>, vector<4x16x8xbf16>, vector<4x16x16xf32> -> vector<4x16x16xf32>
    %cst_26 = arith.constant -1.000000e+30 : f32
    "tpu.trace_stop"() : () -> ()
    %58 = vector.shape_cast %44 : vector<1x1x16xi1> to vector<1x1x16xi1>
    %59 = vector.broadcast %58 : vector<1x1x16xi1> to vector<4x16x16xi1>
    %60 = vector.broadcast %cst_26 : f32 to vector<4x16x16xf32>
    %61 = arith.select %59, %57, %60 : vector<4x16x16xi1>, vector<4x16x16xf32>
    %cst_27 = arith.constant dense<0xFF800000> : vector<4x16xf32>
    %62 = vector.multi_reduction <maximumf>, %61, %cst_27 [2] : vector<4x16x16xf32> to vector<4x16xf32>
    %63 = vector.shape_cast %62 : vector<4x16xf32> to vector<4x16x1xf32>
    %64 = vector.broadcast %63 : vector<4x16x1xf32> to vector<4x16x16xf32>
    %65 = arith.subf %61, %64 : vector<4x16x16xf32>
    %66 = math.exp %65 : vector<4x16x16xf32>
    %cst_28 = arith.constant dense<0.000000e+00> : vector<4x16xf32>
    %67 = vector.multi_reduction <add>, %66, %cst_28 [2] : vector<4x16x16xf32> to vector<4x16xf32>
    %68 = vector.shape_cast %67 : vector<4x16xf32> to vector<4x16x1xf32>
    %69 = tpu.reciprocal %68 {approx = true} : vector<4x16x1xf32> -> vector<4x16x1xf32>
    %70 = vector.broadcast %69 : vector<4x16x1xf32> to vector<4x16x16xf32>
    %71 = arith.mulf %66, %70 : vector<4x16x16xf32>
    %72 = arith.truncf %71 : vector<4x16x16xf32> to vector<4x16x16xbf16>
    "tpu.trace_start"() <{level = 10 : i32, message = "hqk,hkd->hqd"}> : () -> ()
    %cst_29 = arith.constant dense<0.000000e+00> : vector<4x16x8xf32>
    %73 = tpu.matmul %72, %56, %cst_29 {dimension_numbers = #tpu.dot_dimension_numbers<[2], [1], [1], [2], [0, 0, 0, 1, 1, 2], [0], [0]>} : vector<4x16x16xbf16>, vector<4x16x8xbf16>, vector<4x16x8xf32> -> vector<4x16x8xf32>
    "tpu.trace_stop"() : () -> ()
    %74 = tpu.transpose %73, [1, 0, 2] : vector<4x16x8xf32> -> vector<16x4x8xf32>
    %75 = vector.shape_cast %74 : vector<16x4x8xf32> to vector<16x32xf32>
    %cst_30 = arith.constant dense<0.000000e+00> : vector<16x16xf32>
    %76 = vector.multi_reduction <add>, %71, %cst_30 [0] : vector<4x16x16xf32> to vector<16x16xf32>
    %cst_31 = arith.constant 4.000000e+00 : f32
    %77 = vector.broadcast %cst_31 : f32 to vector<16x16xf32>
    %78 = arith.divf %76, %77 : vector<16x16xf32>
    %79 = vector.extract_strided_slice %31 {offsets = [16, 0], sizes = [16, 32], strides = [1, 1]} : vector<32x32xf32> to vector<16x32xf32>
    %80 = vector.shape_cast %79 : vector<16x32xf32> to vector<16x4x8xf32>
    %81 = tpu.transpose %80, [1, 0, 2] : vector<16x4x8xf32> -> vector<4x16x8xf32>
    %82 = arith.truncf %81 : vector<4x16x8xf32> to vector<4x16x8xbf16>
    %83 = vector.extract_strided_slice %36 {offsets = [16, 0], sizes = [16, 32], strides = [1, 1]} : vector<32x32xf32> to vector<16x32xf32>
    %84 = vector.shape_cast %83 : vector<16x32xf32> to vector<16x4x8xf32>
    %85 = tpu.transpose %84, [1, 0, 2] : vector<16x4x8xf32> -> vector<4x16x8xf32>
    %86 = arith.truncf %85 : vector<4x16x8xf32> to vector<4x16x8xbf16>
    %87 = vector.extract_strided_slice %41 {offsets = [16, 0], sizes = [16, 32], strides = [1, 1]} : vector<32x32xf32> to vector<16x32xf32>
    %88 = vector.shape_cast %87 : vector<16x32xf32> to vector<16x4x8xf32>
    %89 = tpu.transpose %88, [1, 0, 2] : vector<16x4x8xf32> -> vector<4x16x8xf32>
    %90 = arith.truncf %89 : vector<4x16x8xf32> to vector<4x16x8xbf16>
    "tpu.trace_start"() <{level = 10 : i32, message = "hqd,hkd->hqk"}> : () -> ()
    %cst_32 = arith.constant dense<0.000000e+00> : vector<4x16x16xf32>
    %91 = tpu.matmul %82, %86, %cst_32 {dimension_numbers = #tpu.dot_dimension_numbers<[2], [2], [1], [1], [0, 0, 0, 1, 1, 1], [0], [0]>} : vector<4x16x8xbf16>, vector<4x16x8xbf16>, vector<4x16x16xf32> -> vector<4x16x16xf32>
    %cst_33 = arith.constant -1.000000e+30 : f32
    "tpu.trace_stop"() : () -> ()
    %92 = vector.shape_cast %44 : vector<1x1x16xi1> to vector<1x1x16xi1>
    %93 = vector.broadcast %92 : vector<1x1x16xi1> to vector<4x16x16xi1>
    %94 = vector.broadcast %cst_33 : f32 to vector<4x16x16xf32>
    %95 = arith.select %93, %91, %94 : vector<4x16x16xi1>, vector<4x16x16xf32>
    %cst_34 = arith.constant dense<0xFF800000> : vector<4x16xf32>
    %96 = vector.multi_reduction <maximumf>, %95, %cst_34 [2] : vector<4x16x16xf32> to vector<4x16xf32>
    %97 = vector.shape_cast %96 : vector<4x16xf32> to vector<4x16x1xf32>
    %98 = vector.broadcast %97 : vector<4x16x1xf32> to vector<4x16x16xf32>
    %99 = arith.subf %95, %98 : vector<4x16x16xf32>
    %100 = math.exp %99 : vector<4x16x16xf32>
    %cst_35 = arith.constant dense<0.000000e+00> : vector<4x16xf32>
    %101 = vector.multi_reduction <add>, %100, %cst_35 [2] : vector<4x16x16xf32> to vector<4x16xf32>
    %102 = vector.shape_cast %101 : vector<4x16xf32> to vector<4x16x1xf32>
    %103 = tpu.reciprocal %102 {approx = true} : vector<4x16x1xf32> -> vector<4x16x1xf32>
    %104 = vector.broadcast %103 : vector<4x16x1xf32> to vector<4x16x16xf32>
    %105 = arith.mulf %100, %104 : vector<4x16x16xf32>
    %106 = arith.truncf %105 : vector<4x16x16xf32> to vector<4x16x16xbf16>
    "tpu.trace_start"() <{level = 10 : i32, message = "hqk,hkd->hqd"}> : () -> ()
    %cst_36 = arith.constant dense<0.000000e+00> : vector<4x16x8xf32>
    %107 = tpu.matmul %106, %90, %cst_36 {dimension_numbers = #tpu.dot_dimension_numbers<[2], [1], [1], [2], [0, 0, 0, 1, 1, 2], [0], [0]>} : vector<4x16x16xbf16>, vector<4x16x8xbf16>, vector<4x16x8xf32> -> vector<4x16x8xf32>
    "tpu.trace_stop"() : () -> ()
    %108 = tpu.transpose %107, [1, 0, 2] : vector<4x16x8xf32> -> vector<16x4x8xf32>
    %109 = vector.shape_cast %108 : vector<16x4x8xf32> to vector<16x32xf32>
    %cst_37 = arith.constant dense<0.000000e+00> : vector<16x16xf32>
    %110 = vector.multi_reduction <add>, %105, %cst_37 [0] : vector<4x16x16xf32> to vector<16x16xf32>
    %cst_38 = arith.constant 4.000000e+00 : f32
    %111 = vector.broadcast %cst_38 : f32 to vector<16x16xf32>
    %112 = arith.divf %110, %111 : vector<16x16xf32>
    %113 = tpu.concatenate %75, %109 in 0 : vector<16x32xf32>, vector<16x32xf32> -> vector<32x32xf32>
    %114 = arith.truncf %113 : vector<32x32xf32> to vector<32x32xbf16>
    %c0_39 = arith.constant 0 : index
    %c0_40 = arith.constant 0 : index
    %115 = vector.load %arg10[%c0_39, %c0_40] : memref<32x32xbf16, #tpu.memory_space<vmem>>, vector<32x32xbf16>
    %cst_41 = arith.constant dense<0.000000e+00> : vector<32x32xf32>
    %116 = tpu.matmul %114, %115, %cst_41 {dimension_numbers = #tpu.dot_dimension_numbers<[1], [0], [0], [1], [0, 0, 1, 1], [], []>} : vector<32x32xbf16>, vector<32x32xbf16>, vector<32x32xf32> -> vector<32x32xf32>
    %c0_42 = arith.constant 0 : index
    %c0_43 = arith.constant 0 : index
    %117 = vector.load %arg11[%c0_42, %c0_43] : memref<1x32xf32, #tpu.memory_space<vmem>>, vector<1x32xf32>
    %118 = vector.broadcast %117 : vector<1x32xf32> to vector<32x32xf32>
    %119 = arith.addf %116, %118 : vector<32x32xf32>
    %120 = arith.addf %1, %119 : vector<32x32xf32>
    %c0_44 = arith.constant 0 : index
    %c0_45 = arith.constant 0 : index
    %121 = vector.load %arg12[%c0_44, %c0_45] : memref<1x32xf32, #tpu.memory_space<vmem>>, vector<1x32xf32>
    %c0_46 = arith.constant 0 : index
    %c0_47 = arith.constant 0 : index
    %122 = vector.load %arg13[%c0_46, %c0_47] : memref<1x32xf32, #tpu.memory_space<vmem>>, vector<1x32xf32>
    %cst_48 = arith.constant dense<0.000000e+00> : vector<32xf32>
    %123 = vector.multi_reduction <add>, %120, %cst_48 [1] : vector<32x32xf32> to vector<32xf32>
    %124 = vector.shape_cast %123 : vector<32xf32> to vector<32x1xf32>
    %cst_49 = arith.constant 3.200000e+01 : f32
    %125 = vector.broadcast %cst_49 : f32 to vector<32x1xf32>
    %126 = arith.divf %124, %125 : vector<32x1xf32>
    %127 = vector.broadcast %126 : vector<32x1xf32> to vector<32x32xf32>
    %128 = arith.subf %120, %127 : vector<32x32xf32>
    %129 = arith.mulf %128, %128 : vector<32x32xf32>
    %cst_50 = arith.constant dense<0.000000e+00> : vector<32xf32>
    %130 = vector.multi_reduction <add>, %129, %cst_50 [1] : vector<32x32xf32> to vector<32xf32>
    %131 = vector.shape_cast %130 : vector<32xf32> to vector<32x1xf32>
    %cst_51 = arith.constant 3.200000e+01 : f32
    %132 = vector.broadcast %cst_51 : f32 to vector<32x1xf32>
    %133 = arith.divf %131, %132 : vector<32x1xf32>
    %134 = vector.broadcast %126 : vector<32x1xf32> to vector<32x32xf32>
    %135 = arith.subf %120, %134 : vector<32x32xf32>
    %cst_52 = arith.constant 9.99999997E-7 : f32
    %136 = vector.broadcast %cst_52 : f32 to vector<32x1xf32>
    %137 = arith.addf %133, %136 : vector<32x1xf32>
    %138 = math.rsqrt %137 : vector<32x1xf32>
    %139 = vector.broadcast %138 : vector<32x1xf32> to vector<32x32xf32>
    %140 = arith.mulf %135, %139 : vector<32x32xf32>
    %141 = vector.broadcast %121 : vector<1x32xf32> to vector<32x32xf32>
    %142 = arith.mulf %140, %141 : vector<32x32xf32>
    %143 = vector.broadcast %122 : vector<1x32xf32> to vector<32x32xf32>
    %144 = arith.addf %142, %143 : vector<32x32xf32>
    %145 = arith.truncf %144 : vector<32x32xf32> to vector<32x32xbf16>
    %c0_53 = arith.constant 0 : index
    %c0_54 = arith.constant 0 : index
    %146 = vector.load %arg14[%c0_53, %c0_54] : memref<32x64xbf16, #tpu.memory_space<vmem>>, vector<32x64xbf16>
    %cst_55 = arith.constant dense<0.000000e+00> : vector<32x64xf32>
    %147 = tpu.matmul %145, %146, %cst_55 {dimension_numbers = #tpu.dot_dimension_numbers<[1], [0], [0], [1], [0, 0, 1, 1], [], []>} : vector<32x32xbf16>, vector<32x64xbf16>, vector<32x64xf32> -> vector<32x64xf32>
    %c0_56 = arith.constant 0 : index
    %c0_57 = arith.constant 0 : index
    %148 = vector.load %arg15[%c0_56, %c0_57] : memref<1x64xf32, #tpu.memory_space<vmem>>, vector<1x64xf32>
    %149 = vector.broadcast %148 : vector<1x64xf32> to vector<32x64xf32>
    %150 = arith.addf %147, %149 : vector<32x64xf32>
    %cst_58 = arith.constant 5.000000e-01 : f32
    %151 = vector.broadcast %cst_58 : f32 to vector<32x64xf32>
    %152 = arith.mulf %151, %150 : vector<32x64xf32>
    %cst_59 = arith.constant 0.707106769 : f32
    %153 = vector.broadcast %cst_59 : f32 to vector<32x64xf32>
    %154 = arith.mulf %150, %153 : vector<32x64xf32>
    %155 = math.erf %154 : vector<32x64xf32>
    %cst_60 = arith.constant 1.000000e+00 : f32
    %156 = vector.broadcast %cst_60 : f32 to vector<32x64xf32>
    %157 = arith.addf %156, %155 : vector<32x64xf32>
    %158 = arith.mulf %152, %157 : vector<32x64xf32>
    %159 = arith.truncf %158 : vector<32x64xf32> to vector<32x64xbf16>
    %c0_61 = arith.constant 0 : index
    %c0_62 = arith.constant 0 : index
    %160 = vector.load %arg16[%c0_61, %c0_62] : memref<64x32xbf16, #tpu.memory_space<vmem>>, vector<64x32xbf16>
    %cst_63 = arith.constant dense<0.000000e+00> : vector<32x32xf32>
    %161 = tpu.matmul %159, %160, %cst_63 {dimension_numbers = #tpu.dot_dimension_numbers<[1], [0], [0], [1], [0, 0, 1, 1], [], []>} : vector<32x64xbf16>, vector<64x32xbf16>, vector<32x32xf32> -> vector<32x32xf32>
    %c0_64 = arith.constant 0 : index
    %c0_65 = arith.constant 0 : index
    %162 = vector.load %arg17[%c0_64, %c0_65] : memref<1x32xf32, #tpu.memory_space<vmem>>, vector<1x32xf32>
    %163 = vector.broadcast %162 : vector<1x32xf32> to vector<32x32xf32>
    %164 = arith.addf %161, %163 : vector<32x32xf32>
    %165 = arith.addf %120, %164 : vector<32x32xf32>
    %166 = vector.shape_cast %165 : vector<32x32xf32> to vector<2x16x32xf32>
    %c0_66 = arith.constant 0 : index
    %c0_67 = arith.constant 0 : index
    %c0_68 = arith.constant 0 : index
    %167 = vector.load %arg18[%c0_66, %c0_67, %c0_68] : memref<2x16x32xf32, #tpu.memory_space<vmem>>, vector<2x16x32xf32>
    tpu.vector_store %arg18[%c0_66, %c0_67, %c0_68], %166 {strides = array<i32>} : memref<2x16x32xf32, #tpu.memory_space<vmem>>, vector<2x16x32xf32>,
    %168 = vector.shape_cast %78 : vector<16x16xf32> to vector<1x16x16xf32>
    %169 = vector.shape_cast %112 : vector<16x16xf32> to vector<1x16x16xf32>
    %170 = tpu.concatenate %168, %169 in 0 : vector<1x16x16xf32>, vector<1x16x16xf32> -> vector<2x16x16xf32>
    %cst_69 = arith.constant 0.000000e+00 : f32
    %171 = vector.broadcast %cst_69 : f32 to vector<2x16x112xf32>
    %172 = tpu.concatenate %170, %171 in 2 : vector<2x16x16xf32>, vector<2x16x112xf32> -> vector<2x16x128xf32>
    %c0_70 = arith.constant 0 : index
    %c0_71 = arith.constant 0 : index
    %c0_72 = arith.constant 0 : index
    %173 = vector.load %arg19[%c0_70, %c0_71, %c0_72] : memref<2x16x128xf32, #tpu.memory_space<vmem>>, vector<2x16x128xf32>
    tpu.vector_store %arg19[%c0_70, %c0_71, %c0_72], %172 {strides = array<i32>} : memref<2x16x128xf32, #tpu.memory_space<vmem>>, vector<2x16x128xf32>,
    return
  }
  func.func @transform_0(%arg0: i32) -> (i32, i32, i32) {
    %c0_i32 = arith.constant 0 : i32
    %c0_i32_0 = arith.constant 0 : i32
    %c0_i32_1 = arith.constant 0 : i32
    return %arg0, %c0_i32, %c0_i32_0 : i32, i32, i32
  }
  func.func @transform_1(%arg0: i32) -> (i32, i32) {
    %c0_i32 = arith.constant 0 : i32
    %c0_i32_0 = arith.constant 0 : i32
    %c0_i32_1 = arith.constant 0 : i32
    return %c0_i32, %c0_i32_0 : i32, i32
  }
  func.func @transform_2(%arg0: i32) -> (i32, i32) {
    %c0_i32 = arith.constant 0 : i32
    %c0_i32_0 = arith.constant 0 : i32
    %c0_i32_1 = arith.constant 0 : i32
    return %c0_i32, %c0_i32_0 : i32, i32
  }
  func.func @transform_3(%arg0: i32) -> (i32, i32) {
    %c0_i32 = arith.constant 0 : i32
    %c0_i32_0 = arith.constant 0 : i32
    %c0_i32_1 = arith.constant 0 : i32
    return %c0_i32, %c0_i32_0 : i32, i32
  }
  func.func @transform_4(%arg0: i32) -> (i32, i32) {
    %c0_i32 = arith.constant 0 : i32
    %c0_i32_0 = arith.constant 0 : i32
    %c0_i32_1 = arith.constant 0 : i32
    return %c0_i32, %c0_i32_0 : i32, i32
  }
  func.func @transform_5(%arg0: i32) -> (i32, i32) {
    %c0_i32 = arith.constant 0 : i32
    %c0_i32_0 = arith.constant 0 : i32
    %c0_i32_1 = arith.constant 0 : i32
    return %c0_i32, %c0_i32_0 : i32, i32
  }
  func.func @transform_6(%arg0: i32) -> (i32, i32) {
    %c0_i32 = arith.constant 0 : i32
    %c0_i32_0 = arith.constant 0 : i32
    %c0_i32_1 = arith.constant 0 : i32
    return %c0_i32, %c0_i32_0 : i32, i32
  }
  func.func @transform_7(%arg0: i32) -> (i32, i32) {
    %c0_i32 = arith.constant 0 : i32
    %c0_i32_0 = arith.constant 0 : i32
    %c0_i32_1 = arith.constant 0 : i32
    return %c0_i32, %c0_i32_0 : i32, i32
  }
  func.func @transform_8(%arg0: i32) -> (i32, i32) {
    %c0_i32 = arith.constant 0 : i32
    %c0_i32_0 = arith.constant 0 : i32
    %c0_i32_1 = arith.constant 0 : i32
    return %c0_i32, %c0_i32_0 : i32, i32
  }
  func.func @transform_9(%arg0: i32) -> (i32, i32) {
    %c0_i32 = arith.constant 0 : i32
    %c0_i32_0 = arith.constant 0 : i32
    %c0_i32_1 = arith.constant 0 : i32
    return %c0_i32, %c0_i32_0 : i32, i32
  }
  func.func @transform_10(%arg0: i32) -> (i32, i32) {
    %c0_i32 = arith.constant 0 : i32
    %c0_i32_0 = arith.constant 0 : i32
    %c0_i32_1 = arith.constant 0 : i32
    return %c0_i32, %c0_i32_0 : i32, i32
  }
  func.func @transform_11(%arg0: i32) -> (i32, i32) {
    %c0_i32 = arith.constant 0 : i32
    %c0_i32_0 = arith.constant 0 : i32
    %c0_i32_1 = arith.constant 0 : i32
    return %c0_i32, %c0_i32_0 : i32, i32
  }
  func.func @transform_12(%arg0: i32) -> (i32, i32) {
    %c0_i32 = arith.constant 0 : i32
    %c0_i32_0 = arith.constant 0 : i32
    %c0_i32_1 = arith.constant 0 : i32
    return %c0_i32, %c0_i32_0 : i32, i32
  }
  func.func @transform_13(%arg0: i32) -> (i32, i32) {
    %c0_i32 = arith.constant 0 : i32
    %c0_i32_0 = arith.constant 0 : i32
    %c0_i32_1 = arith.constant 0 : i32
    return %c0_i32, %c0_i32_0 : i32, i32
  }
  func.func @transform_14(%arg0: i32) -> (i32, i32) {
    %c0_i32 = arith.constant 0 : i32
    %c0_i32_0 = arith.constant 0 : i32
    %c0_i32_1 = arith.constant 0 : i32
    return %c0_i32, %c0_i32_0 : i32, i32
  }
  func.func @transform_15(%arg0: i32) -> (i32, i32) {
    %c0_i32 = arith.constant 0 : i32
    %c0_i32_0 = arith.constant 0 : i32
    %c0_i32_1 = arith.constant 0 : i32
    return %c0_i32, %c0_i32_0 : i32, i32
  }
  func.func @transform_16(%arg0: i32) -> (i32, i32) {
    %c0_i32 = arith.constant 0 : i32
    %c0_i32_0 = arith.constant 0 : i32
    %c0_i32_1 = arith.constant 0 : i32
    return %c0_i32, %c0_i32_0 : i32, i32
  }
  func.func @transform_17(%arg0: i32) -> (i32, i32, i32) {
    %c0_i32 = arith.constant 0 : i32
    %c0_i32_0 = arith.constant 0 : i32
    %c0_i32_1 = arith.constant 0 : i32
    return %arg0, %c0_i32, %c0_i32_0 : i32, i32, i32
  }
  func.func @transform_18(%arg0: i32) -> (i32, i32, i32) {
    %c0_i32 = arith.constant 0 : i32
    %c0_i32_0 = arith.constant 0 : i32
    %c0_i32_1 = arith.constant 0 : i32
    return %arg0, %c0_i32, %c0_i32_0 : i32, i32, i32
  }
}

</mosaic_0001>

<llo_original>
// kernel: tpu_custom_call.1
$region0: #{tpu_custom_call.1}
  #allocation0 [shape = 'u32[]', space=smem, size = 0x4, offset = 0x4, fixed_abs, tag = 'smem constant byte address 0x4 - core index']
  #allocation1 [shape = 'u32[144,128]{1,0:T(1,128)}', space=vmem, size = 0x12000, scoped, tag = 'internal scratch']
  %s0 = inlined_call_operand.hbm [shape: f32[4,16,32], index: 0, kind: input, shape index: {}]
  %s1 = inlined_call_operand.vmem [shape: f32[1,32], index: 1, kind: input, shape index: {}]
  %s2 = inlined_call_operand.hbm [shape: f32[1,32], index: 2, kind: input, shape index: {}]
  %s3 = inlined_call_operand.vmem [shape: bf16[32,32], index: 3, kind: input, shape index: {}]
  %s4 = inlined_call_operand.vmem [shape: bf16[32,32], index: 4, kind: input, shape index: {}]
  %s5 = inlined_call_operand.vmem [shape: bf16[32,32], index: 5, kind: input, shape index: {}]
  %s6 = inlined_call_operand.hbm [shape: f32[1,32], index: 6, kind: input, shape index: {}]
  %s7 = inlined_call_operand.hbm [shape: f32[1,32], index: 7, kind: input, shape index: {}]
  %s8 = inlined_call_operand.hbm [shape: f32[1,32], index: 8, kind: input, shape index: {}]
  %s9 = inlined_call_operand.vmem [shape: bf16[32,32], index: 9, kind: input, shape index: {}]
  %s10 = inlined_call_operand.hbm [shape: f32[1,32], index: 10, kind: input, shape index: {}]
  %s11 = inlined_call_operand.hbm [shape: f32[1,32], index: 11, kind: input, shape index: {}]
  %s12 = inlined_call_operand.hbm [shape: f32[1,32], index: 12, kind: input, shape index: {}]
  %s13 = inlined_call_operand.vmem [shape: bf16[32,64], index: 13, kind: input, shape index: {}]
  %s14 = inlined_call_operand.vmem [shape: f32[1,64], index: 14, kind: input, shape index: {}]
  %s15 = inlined_call_operand.vmem [shape: bf16[64,32], index: 15, kind: input, shape index: {}]
  %s16 = inlined_call_operand.vmem [shape: f32[1,32], index: 16, kind: input, shape index: {}]
  %s17 = inlined_call_operand.hbm [shape: f32[4,16,32], index: 17, kind: output, shape index: {0}]
  %s18 = inlined_call_operand.hbm [shape: f32[4,16,128], index: 18, kind: output, shape index: {1}]
  %19 = xla_tuple %s17, %s18
  %s20 = sld [smem:[#allocation0]]
  $region141: #{tpu_custom_call.1} parent=0
    _
  %s22 = ssub.s32 1, %s20
  %s23 = scalar_select 0, %s22, %s20
  $region1: #{tpu_custom_call.1} parent=0
    #allocation2 [shape = 'u8[32768]{0}', space=vmem, size = 0x8000, scoped, tag = 'input window, operand 0']
    #allocation3 [shape = 's32[2]{0}', space=sflag, size = 0x8, scoped, tag = 'scoped memory for tpu_custom_call.1']
    #allocation4 [shape = 's32[2]{0}', space=sflag, size = 0x8, scoped, tag = 'scoped memory for tpu_custom_call.1']
    #allocation5 [shape = 'u8[512]{0}', space=vmem, size = 0x400, scoped, tag = 'input window, operand 2, single buffered']
    #allocation6 [shape = 's32[1]{0}', space=sflag, size = 0x4, scoped, tag = 'scoped memory for tpu_custom_call.1']
    #allocation7 [shape = 'u8[512]{0}', space=vmem, size = 0x400, scoped, tag = 'input window, operand 6, single buffered']
    #allocation8 [shape = 'u8[512]{0}', space=vmem, size = 0x400, scoped, tag = 'input window, operand 7, single buffered']
    #allocation9 [shape = 's32[1]{0}', space=sflag, size = 0x4, scoped, tag = 'scoped memory for tpu_custom_call.1']
    #allocation10 [shape = 'u8[512]{0}', space=vmem, size = 0x400, scoped, tag = 'input window, operand 8, single buffered']
    #allocation11 [shape = 'u8[512]{0}', space=vmem, size = 0x400, scoped, tag = 'input window, operand 10, single buffered']
    #allocation12 [shape = 's32[1]{0}', space=sflag, size = 0x4, scoped, tag = 'scoped memory for tpu_custom_call.1']
    #allocation13 [shape = 'u8[512]{0}', space=vmem, size = 0x400, scoped, tag = 'input window, operand 11, single buffered']
    #allocation14 [shape = 'u8[512]{0}', space=vmem, size = 0x400, scoped, tag = 'input window, operand 12, single buffered']
    #allocation15 [shape = 's32[1]{0}', space=sflag, size = 0x4, scoped, tag = 'scoped memory for tpu_custom_call.1']
    #allocation16 [shape = 'u8[32768]{0}', space=vmem, size = 0x8000, scoped, tag = 'output window, operand 0']
    #allocation17 [shape = 'u8[32768]{0}', space=vmem, size = 0x8000, scoped, tag = 'output window, operand 1']
    #allocation18 [shape = 's32[2]{0}', space=sflag, size = 0x8, scoped, tag = 'scoped memory for tpu_custom_call.1']
    %24 = vsyncpa [#allocation3], 0
    %s25 = scalar_lea.sflag [#allocation3], 1
    %26 = vsyncpa %s25, 0
    %27 = vsyncpa [#allocation6], 0
    %28 = vsyncpa [#allocation9], 0
    %29 = vsyncpa [#allocation12], 0
    %30 = vsyncpa [#allocation15], 0
    %31 = vsyncpa [#allocation4], 0
    %s32 = scalar_lea.sflag [#allocation4], 1
    %33 = vsyncpa %s32, 0
    %34 = vsyncpa [#allocation18], 0
    %s35 = scalar_lea.sflag [#allocation18], 1
    %36 = vsyncpa %s35, 0
    loop: start=0, step=1, limit=4
    $region2: #{tpu_custom_call.1} parent=1 // loop_pre_header
      _
    $region3: #{tpu_custom_call.1} parent=1 // loop_header
      %s38 = sphi 0, %s42
      %p39 = scmp.ge.s32.totalorder %s38, 4
      %s48 = sphi 0, %s50
      %s51 = sphi 0, %s48
      %s52 = sphi 0, %s51
      %s68 = sphi 0, %s52
      %s72 = sphi 0, %s72
      %s74 = sphi 0, %s72
      %s75 = sphi 0, %s74
      %s89 = sphi 0, %s75
      %s93 = sphi 0, %s93
      %s95 = sphi 0, %s93
      %s96 = sphi 0, %s95
      %s110 = sphi 0, %s96
      %s114 = sphi 0, %s114
      %s116 = sphi 0, %s114
      %s117 = sphi 0, %s116
      %s131 = sphi 0, %s117
      %s135 = sphi 0, %s135
      %s137 = sphi 0, %s135
      %s138 = sphi 0, %s137
      %s152 = sphi 0, %s138
      %s156 = sphi 0, %s156
      %s158 = sphi 0, %s156
      %s159 = sphi 0, %s158
      %s173 = sphi 0, %s159
      %s177 = sphi 0, %s177
      %s179 = sphi 0, %s177
      %s180 = sphi 0, %s179
      %s194 = sphi 0, %s180
      %s198 = sphi 0, %s198
      %s200 = sphi 0, %s198
      %s201 = sphi 0, %s200
      %s215 = sphi 0, %s201
      %s219 = sphi 0, %s219
      %s221 = sphi 0, %s219
      %s222 = sphi 0, %s221
      %s236 = sphi 0, %s222
      %s240 = sphi 0, %s240
      %s242 = sphi 0, %s240
      %s243 = sphi 0, %s242
      %s257 = sphi 0, %s243
      %s261 = sphi 0, %s261
      %s263 = sphi 0, %s261
      %s264 = sphi 0, %s263
      %s278 = sphi 0, %s264
      %s282 = sphi 0, %s282
      %s284 = sphi 0, %s282
      %s285 = sphi 0, %s284
      %s299 = sphi 0, %s285
      %s303 = sphi 0, %s303
      %s305 = sphi 0, %s303
      %s306 = sphi 0, %s305
      %s320 = sphi 0, %s306
      %s324 = sphi 0, %s324
      %s326 = sphi 0, %s324
      %s327 = sphi 0, %s326
      %s341 = sphi 0, %s327
      %s345 = sphi 0, %s345
      %s347 = sphi 0, %s345
      %s348 = sphi 0, %s347
      %s362 = sphi 0, %s348
      %s366 = sphi 0, %s366
      %s368 = sphi 0, %s366
      %s369 = sphi 0, %s368
      %s383 = sphi 0, %s369
      %s387 = sphi 0, %s387
      %s389 = sphi 0, %s387
      %s390 = sphi 0, %s389
      %s404 = sphi 0, %s390
      %s410 = sphi 0, %s412
      %s413 = sphi 0, %s410
      %s414 = sphi 0, %s413
      %s430 = sphi 0, %s414
      %s436 = sphi 0, %s438
      %s439 = sphi 0, %s436
      %s440 = sphi 0, %s439
      %s456 = sphi 0, %s440
    $region4: #{tpu_custom_call.1} parent=1 // loop_header_branch
      %41 = sbr.rel (%p39) target = $region8
    $region5: #{tpu_custom_call.1} parent=1 // loop_body
      %s43 = ssub.s32 %s38, 1
      %s44 = ssub.s32 %s38, 2
      %s45 = sadd.s32 %s38, 1
      %s46 = ssub.s32 %s38, %s45
      %p47 = scmp.eq.s32.totalorder %s46, 0
      %s49 = sadd.s32 %s48, 1
      %s50 = scalar_select %p47, %s48, %s49
      %p53 = pneg %p47
      %p54 = scmp.eq.s32.totalorder %s38, 1
      %p55 = por %p53, %p54
      %p56 = scmp.ne.s32.totalorder %s48, %s51
      %p57 = scmp.eq.s32.totalorder %s38, 0
      %p58 = por %p56, %p57
      %p59 = scmp.ne.s32.totalorder %s48, %s51
      %p60 = scmp.eq.s32.totalorder %s43, 1
      %p61 = por %p59, %p60
      %p62 = scmp.ne.s32.totalorder %s51, %s52
      %p63 = scmp.eq.s32.totalorder %s43, 0
      %p64 = por %p62, %p63
      %p65 = scmp.ne.s32.totalorder %s51, %s52
      %p66 = scmp.eq.s32.totalorder %s44, 1
      %p67 = por %p65, %p66
      %p69 = scmp.ne.s32.totalorder %s52, %s68
      %p70 = scmp.eq.s32.totalorder %s44, 0
      %p71 = por %p69, %p70
      %s73 = sadd.s32 %s72, 1
      %p76 = scmp.eq.s32.totalorder %s38, 1
      %p77 = scmp.ne.s32.totalorder %s72, %s74
      %p78 = scmp.eq.s32.totalorder %s38, 0
      %p79 = por %p77, %p78
      %p80 = scmp.ne.s32.totalorder %s72, %s74
      %p81 = scmp.eq.s32.totalorder %s43, 1
      %p82 = por %p80, %p81
      %p83 = scmp.ne.s32.totalorder %s74, %s75
      %p84 = scmp.eq.s32.totalorder %s43, 0
      %p85 = por %p83, %p84
      %p86 = scmp.ne.s32.totalorder %s74, %s75
      %p87 = scmp.eq.s32.totalorder %s44, 1
      %p88 = por %p86, %p87
      %p90 = scmp.ne.s32.totalorder %s75, %s89
      %p91 = scmp.eq.s32.totalorder %s44, 0
      %p92 = por %p90, %p91
      %s94 = sadd.s32 %s93, 1
      %p97 = scmp.eq.s32.totalorder %s38, 1
      %p98 = scmp.ne.s32.totalorder %s93, %s95
      %p99 = scmp.eq.s32.totalorder %s38, 0
      %p100 = por %p98, %p99
      %p101 = scmp.ne.s32.totalorder %s93, %s95
      %p102 = scmp.eq.s32.totalorder %s43, 1
      %p103 = por %p101, %p102
      %p104 = scmp.ne.s32.totalorder %s95, %s96
      %p105 = scmp.eq.s32.totalorder %s43, 0
      %p106 = por %p104, %p105
      %p107 = scmp.ne.s32.totalorder %s95, %s96
      %p108 = scmp.eq.s32.totalorder %s44, 1
      %p109 = por %p107, %p108
      %p111 = scmp.ne.s32.totalorder %s96, %s110
      %p112 = scmp.eq.s32.totalorder %s44, 0
      %p113 = por %p111, %p112
      %s115 = sadd.s32 %s114, 1
      %p118 = scmp.eq.s32.totalorder %s38, 1
      %p119 = scmp.ne.s32.totalorder %s114, %s116
      %p120 = scmp.eq.s32.totalorder %s38, 0
      %p121 = por %p119, %p120
      %p122 = scmp.ne.s32.totalorder %s114, %s116
      %p123 = scmp.eq.s32.totalorder %s43, 1
      %p124 = por %p122, %p123
      %p125 = scmp.ne.s32.totalorder %s116, %s117
      %p126 = scmp.eq.s32.totalorder %s43, 0
      %p127 = por %p125, %p126
      %p128 = scmp.ne.s32.totalorder %s116, %s117
      %p129 = scmp.eq.s32.totalorder %s44, 1
      %p130 = por %p128, %p129
      %p132 = scmp.ne.s32.totalorder %s117, %s131
      %p133 = scmp.eq.s32.totalorder %s44, 0
      %p134 = por %p132, %p133
      %s136 = sadd.s32 %s135, 1
      %p139 = scmp.eq.s32.totalorder %s38, 1
      %p140 = scmp.ne.s32.totalorder %s135, %s137
      %p141 = scmp.eq.s32.totalorder %s38, 0
      %p142 = por %p140, %p141
      %p143 = scmp.ne.s32.totalorder %s135, %s137
      %p144 = scmp.eq.s32.totalorder %s43, 1
      %p145 = por %p143, %p144
      %p146 = scmp.ne.s32.totalorder %s137, %s138
      %p147 = scmp.eq.s32.totalorder %s43, 0
      %p148 = por %p146, %p147
      %p149 = scmp.ne.s32.totalorder %s137, %s138
      %p150 = scmp.eq.s32.totalorder %s44, 1
      %p151 = por %p149, %p150
      %p153 = scmp.ne.s32.totalorder %s138, %s152
      %p154 = scmp.eq.s32.totalorder %s44, 0
      %p155 = por %p153, %p154
      %s157 = sadd.s32 %s156, 1
      %p160 = scmp.eq.s32.totalorder %s38, 1
      %p161 = scmp.ne.s32.totalorder %s156, %s158
      %p162 = scmp.eq.s32.totalorder %s38, 0
      %p163 = por %p161, %p162
      %p164 = scmp.ne.s32.totalorder %s156, %s158
      %p165 = scmp.eq.s32.totalorder %s43, 1
      %p166 = por %p164, %p165
      %p167 = scmp.ne.s32.totalorder %s158, %s159
      %p168 = scmp.eq.s32.totalorder %s43, 0
      %p169 = por %p167, %p168
      %p170 = scmp.ne.s32.totalorder %s158, %s159
      %p171 = scmp.eq.s32.totalorder %s44, 1
      %p172 = por %p170, %p171
      %p174 = scmp.ne.s32.totalorder %s159, %s173
      %p175 = scmp.eq.s32.totalorder %s44, 0
      %p176 = por %p174, %p175
      %s178 = sadd.s32 %s177, 1
      %p181 = scmp.eq.s32.totalorder %s38, 1
      %p182 = scmp.ne.s32.totalorder %s177, %s179
      %p183 = scmp.eq.s32.totalorder %s38, 0
      %p184 = por %p182, %p183
      %p185 = scmp.ne.s32.totalorder %s177, %s179
      %p186 = scmp.eq.s32.totalorder %s43, 1
      %p187 = por %p185, %p186
      %p188 = scmp.ne.s32.totalorder %s179, %s180
      %p189 = scmp.eq.s32.totalorder %s43, 0
      %p190 = por %p188, %p189
      %p191 = scmp.ne.s32.totalorder %s179, %s180
      %p192 = scmp.eq.s32.totalorder %s44, 1
      %p193 = por %p191, %p192
      %p195 = scmp.ne.s32.totalorder %s180, %s194
      %p196 = scmp.eq.s32.totalorder %s44, 0
      %p197 = por %p195, %p196
      %s199 = sadd.s32 %s198, 1
      %p202 = scmp.eq.s32.totalorder %s38, 1
      %p203 = scmp.ne.s32.totalorder %s198, %s200
      %p204 = scmp.eq.s32.totalorder %s38, 0
      %p205 = por %p203, %p204
      %p206 = scmp.ne.s32.totalorder %s198, %s200
      %p207 = scmp.eq.s32.totalorder %s43, 1
      %p208 = por %p206, %p207
      %p209 = scmp.ne.s32.totalorder %s200, %s201
      %p210 = scmp.eq.s32.totalorder %s43, 0
      %p211 = por %p209, %p210
      %p212 = scmp.ne.s32.totalorder %s200, %s201
      %p213 = scmp.eq.s32.totalorder %s44, 1
      %p214 = por %p212, %p213
      %p216 = scmp.ne.s32.totalorder %s201, %s215
      %p217 = scmp.eq.s32.totalorder %s44, 0
      %p218 = por %p216, %p217
      %s220 = sadd.s32 %s219, 1
      %p223 = scmp.eq.s32.totalorder %s38, 1
      %p224 = scmp.ne.s32.totalorder %s219, %s221
      %p225 = scmp.eq.s32.totalorder %s38, 0
      %p226 = por %p224, %p225
      %p227 = scmp.ne.s32.totalorder %s219, %s221
      %p228 = scmp.eq.s32.totalorder %s43, 1
      %p229 = por %p227, %p228
      %p230 = scmp.ne.s32.totalorder %s221, %s222
      %p231 = scmp.eq.s32.totalorder %s43, 0
      %p232 = por %p230, %p231
      %p233 = scmp.ne.s32.totalorder %s221, %s222
      %p234 = scmp.eq.s32.totalorder %s44, 1
      %p235 = por %p233, %p234
      %p237 = scmp.ne.s32.totalorder %s222, %s236
      %p238 = scmp.eq.s32.totalorder %s44, 0
      %p239 = por %p237, %p238
      %s241 = sadd.s32 %s240, 1
      %p244 = scmp.eq.s32.totalorder %s38, 1
      %p245 = scmp.ne.s32.totalorder %s240, %s242
      %p246 = scmp.eq.s32.totalorder %s38, 0
      %p247 = por %p245, %p246
      %p248 = scmp.ne.s32.totalorder %s240, %s242
      %p249 = scmp.eq.s32.totalorder %s43, 1
      %p250 = por %p248, %p249
      %p251 = scmp.ne.s32.totalorder %s242, %s243
      %p252 = scmp.eq.s32.totalorder %s43, 0
      %p253 = por %p251, %p252
      %p254 = scmp.ne.s32.totalorder %s242, %s243
      %p255 = scmp.eq.s32.totalorder %s44, 1
      %p256 = por %p254, %p255
      %p258 = scmp.ne.s32.totalorder %s243, %s257
      %p259 = scmp.eq.s32.totalorder %s44, 0
      %p260 = por %p258, %p259
      %s262 = sadd.s32 %s261, 1
      %p265 = scmp.eq.s32.totalorder %s38, 1
      %p266 = scmp.ne.s32.totalorder %s261, %s263
      %p267 = scmp.eq.s32.totalorder %s38, 0
      %p268 = por %p266, %p267
      %p269 = scmp.ne.s32.totalorder %s261, %s263
      %p270 = scmp.eq.s32.totalorder %s43, 1
      %p271 = por %p269, %p270
      %p272 = scmp.ne.s32.totalorder %s263, %s264
      %p273 = scmp.eq.s32.totalorder %s43, 0
      %p274 = por %p272, %p273
      %p275 = scmp.ne.s32.totalorder %s263, %s264
      %p276 = scmp.eq.s32.totalorder %s44, 1
      %p277 = por %p275, %p276
      %p279 = scmp.ne.s32.totalorder %s264, %s278
      %p280 = scmp.eq.s32.totalorder %s44, 0
      %p281 = por %p279, %p280
      %s283 = sadd.s32 %s282, 1
      %p286 = scmp.eq.s32.totalorder %s38, 1
      %p287 = scmp.ne.s32.totalorder %s282, %s284
      %p288 = scmp.eq.s32.totalorder %s38, 0
      %p289 = por %p287, %p288
      %p290 = scmp.ne.s32.totalorder %s282, %s284
      %p291 = scmp.eq.s32.totalorder %s43, 1
      %p292 = por %p290, %p291
      %p293 = scmp.ne.s32.totalorder %s284, %s285
      %p294 = scmp.eq.s32.totalorder %s43, 0
      %p295 = por %p293, %p294
      %p296 = scmp.ne.s32.totalorder %s284, %s285
      %p297 = scmp.eq.s32.totalorder %s44, 1
      %p298 = por %p296, %p297
      %p300 = scmp.ne.s32.totalorder %s285, %s299
      %p301 = scmp.eq.s32.totalorder %s44, 0
      %p302 = por %p300, %p301
      %s304 = sadd.s32 %s303, 1
      %p307 = scmp.eq.s32.totalorder %s38, 1
      %p308 = scmp.ne.s32.totalorder %s303, %s305
      %p309 = scmp.eq.s32.totalorder %s38, 0
      %p310 = por %p308, %p309
      %p311 = scmp.ne.s32.totalorder %s303, %s305
      %p312 = scmp.eq.s32.totalorder %s43, 1
      %p313 = por %p311, %p312
      %p314 = scmp.ne.s32.totalorder %s305, %s306
      %p315 = scmp.eq.s32.totalorder %s43, 0
      %p316 = por %p314, %p315
      %p317 = scmp.ne.s32.totalorder %s305, %s306
      %p318 = scmp.eq.s32.totalorder %s44, 1
      %p319 = por %p317, %p318
      %p321 = scmp.ne.s32.totalorder %s306, %s320
      %p322 = scmp.eq.s32.totalorder %s44, 0
      %p323 = por %p321, %p322
      %s325 = sadd.s32 %s324, 1
      %p328 = scmp.eq.s32.totalorder %s38, 1
      %p329 = scmp.ne.s32.totalorder %s324, %s326
      %p330 = scmp.eq.s32.totalorder %s38, 0
      %p331 = por %p329, %p330
      %p332 = scmp.ne.s32.totalorder %s324, %s326
      %p333 = scmp.eq.s32.totalorder %s43, 1
      %p334 = por %p332, %p333
      %p335 = scmp.ne.s32.totalorder %s326, %s327
      %p336 = scmp.eq.s32.totalorder %s43, 0
      %p337 = por %p335, %p336
      %p338 = scmp.ne.s32.totalorder %s326, %s327
      %p339 = scmp.eq.s32.totalorder %s44, 1
      %p340 = por %p338, %p339
      %p342 = scmp.ne.s32.totalorder %s327, %s341
      %p343 = scmp.eq.s32.totalorder %s44, 0
      %p344 = por %p342, %p343
      %s346 = sadd.s32 %s345, 1
      %p349 = scmp.eq.s32.totalorder %s38, 1
      %p350 = scmp.ne.s32.totalorder %s345, %s347
      %p351 = scmp.eq.s32.totalorder %s38, 0
      %p352 = por %p350, %p351
      %p353 = scmp.ne.s32.totalorder %s345, %s347
      %p354 = scmp.eq.s32.totalorder %s43, 1
      %p355 = por %p353, %p354
      %p356 = scmp.ne.s32.totalorder %s347, %s348
      %p357 = scmp.eq.s32.totalorder %s43, 0
      %p358 = por %p356, %p357
      %p359 = scmp.ne.s32.totalorder %s347, %s348
      %p360 = scmp.eq.s32.totalorder %s44, 1
      %p361 = por %p359, %p360
      %p363 = scmp.ne.s32.totalorder %s348, %s362
      %p364 = scmp.eq.s32.totalorder %s44, 0
      %p365 = por %p363, %p364
      %s367 = sadd.s32 %s366, 1
      %p370 = scmp.eq.s32.totalorder %s38, 1
      %p371 = scmp.ne.s32.totalorder %s366, %s368
      %p372 = scmp.eq.s32.totalorder %s38, 0
      %p373 = por %p371, %p372
      %p374 = scmp.ne.s32.totalorder %s366, %s368
      %p375 = scmp.eq.s32.totalorder %s43, 1
      %p376 = por %p374, %p375
      %p377 = scmp.ne.s32.totalorder %s368, %s369
      %p378 = scmp.eq.s32.totalorder %s43, 0
      %p379 = por %p377, %p378
      %p380 = scmp.ne.s32.totalorder %s368, %s369
      %p381 = scmp.eq.s32.totalorder %s44, 1
      %p382 = por %p380, %p381
      %p384 = scmp.ne.s32.totalorder %s369, %s383
      %p385 = scmp.eq.s32.totalorder %s44, 0
      %p386 = por %p384, %p385
      %s388 = sadd.s32 %s387, 1
      %p391 = scmp.eq.s32.totalorder %s38, 1
      %p392 = scmp.ne.s32.totalorder %s387, %s389
      %p393 = scmp.eq.s32.totalorder %s38, 0
      %p394 = por %p392, %p393
      %p395 = scmp.ne.s32.totalorder %s387, %s389
      %p396 = scmp.eq.s32.totalorder %s43, 1
      %p397 = por %p395, %p396
      %p398 = scmp.ne.s32.totalorder %s389, %s390
      %p399 = scmp.eq.s32.totalorder %s43, 0
      %p400 = por %p398, %p399
      %p401 = scmp.ne.s32.totalorder %s389, %s390
      %p402 = scmp.eq.s32.totalorder %s44, 1
      %p403 = por %p401, %p402
      %p405 = scmp.ne.s32.totalorder %s390, %s404
      %p406 = scmp.eq.s32.totalorder %s44, 0
      %p407 = por %p405, %p406
      %s408 = ssub.s32 %s38, %s45
      %p409 = scmp.eq.s32.totalorder %s408, 0
      %s411 = sadd.s32 %s410, 1
      %s412 = scalar_select %p409, %s410, %s411
      %p415 = pneg %p409
      %p416 = scmp.eq.s32.totalorder %s38, 1
      %p417 = por %p415, %p416
      %p418 = scmp.ne.s32.totalorder %s410, %s413
      %p419 = scmp.eq.s32.totalorder %s38, 0
      %p420 = por %p418, %p419
      %p421 = scmp.ne.s32.totalorder %s410, %s413
      %p422 = scmp.eq.s32.totalorder %s43, 1
      %p423 = por %p421, %p422
      %p424 = scmp.ne.s32.totalorder %s413, %s414
      %p425 = scmp.eq.s32.totalorder %s43, 0
      %p426 = por %p424, %p425
      %p427 = scmp.ne.s32.totalorder %s413, %s414
      %p428 = scmp.eq.s32.totalorder %s44, 1
      %p429 = por %p427, %p428
      %p431 = scmp.ne.s32.totalorder %s414, %s430
      %p432 = scmp.eq.s32.totalorder %s44, 0
      %p433 = por %p431, %p432
      %s434 = ssub.s32 %s38, %s45
      %p435 = scmp.eq.s32.totalorder %s434, 0
      %s437 = sadd.s32 %s436, 1
      %s438 = scalar_select %p435, %s436, %s437
      %p441 = pneg %p435
      %p442 = scmp.eq.s32.totalorder %s38, 1
      %p443 = por %p441, %p442
      %p444 = scmp.ne.s32.totalorder %s436, %s439
      %p445 = scmp.eq.s32.totalorder %s38, 0
      %p446 = por %p444, %p445
      %p447 = scmp.ne.s32.totalorder %s436, %s439
      %p448 = scmp.eq.s32.totalorder %s43, 1
      %p449 = por %p447, %p448
      %p450 = scmp.ne.s32.totalorder %s439, %s440
      %p451 = scmp.eq.s32.totalorder %s43, 0
      %p452 = por %p450, %p451
      %p453 = scmp.ne.s32.totalorder %s439, %s440
      %p454 = scmp.eq.s32.totalorder %s44, 1
      %p455 = por %p453, %p454
      %p457 = scmp.ne.s32.totalorder %s440, %s456
      %p458 = scmp.eq.s32.totalorder %s44, 0
      %p459 = por %p457, %p458
      %p460 = scmp.le.s32.totalorder 1, %s38
      %p461 = scmp.lt.s32.totalorder %s38, 3
      %p462 = pnand %p460, %p461
      %p463 = pneg %p462
      // Predicated region
      $region9: #{tpu_custom_call.1} parent=5 // pred_check
        _
      $region10: #{tpu_custom_call.1} parent=5 // pred_check_branch
        %465 = sbr.rel (%p462) target = $region12
      $region11: #{tpu_custom_call.1} parent=5 // pred_region
        %s466 = ssub.s32 %s38, 1
        // Predicated region
        $region13: #{tpu_custom_call.1} parent=11 // pred_check
          %p467 = pneg %p85
        $region14: #{tpu_custom_call.1} parent=11 // pred_check_branch
          %469 = sbr.rel (%p467) target = $region16
        $region15: #{tpu_custom_call.1} parent=11 // pred_region
          _
        $region16: #{tpu_custom_call.1} parent=11 // pred_fallthru
          _
        // Predicated region
        $region17: #{tpu_custom_call.1} parent=11 // pred_check
          %p470 = pneg %p106
        $region18: #{tpu_custom_call.1} parent=11 // pred_check_branch
          %472 = sbr.rel (%p470) target = $region20
        $region19: #{tpu_custom_call.1} parent=11 // pred_region
          %s474 = ssub.s32 16, 16
          %475 = vsyncadd [#allocation6], %s474
          %s477 = sshll.u32 [#allocation5], 4
          %s478 = int_to_ptr.vmem [resolvable:$true] %s477
          %480 = dma.hbm_to_vmem [thread:$0]  %s2, 16, %s478, [#allocation6]
        $region20: #{tpu_custom_call.1} parent=11 // pred_fallthru
          _
        // Predicated region
        $region21: #{tpu_custom_call.1} parent=11 // pred_check
          %p481 = pneg %p127
        $region22: #{tpu_custom_call.1} parent=11 // pred_check_branch
          %483 = sbr.rel (%p481) target = $region24
        $region23: #{tpu_custom_call.1} parent=11 // pred_region
          _
        $region24: #{tpu_custom_call.1} parent=11 // pred_fallthru
          _
        // Predicated region
        $region25: #{tpu_custom_call.1} parent=11 // pred_check
          %p484 = pneg %p148
        $region26: #{tpu_custom_call.1} parent=11 // pred_check_branch
          %486 = sbr.rel (%p484) target = $region28
        $region27: #{tpu_custom_call.1} parent=11 // pred_region
          _
        $region28: #{tpu_custom_call.1} parent=11 // pred_fallthru
          _
        // Predicated region
        $region29: #{tpu_custom_call.1} parent=11 // pred_check
          %p487 = pneg %p169
        $region30: #{tpu_custom_call.1} parent=11 // pred_check_branch
          %489 = sbr.rel (%p487) target = $region32
        $region31: #{tpu_custom_call.1} parent=11 // pred_region
          _
        $region32: #{tpu_custom_call.1} parent=11 // pred_fallthru
          _
        // Predicated region
        $region33: #{tpu_custom_call.1} parent=11 // pred_check
          %p490 = pneg %p190
        $region34: #{tpu_custom_call.1} parent=11 // pred_check_branch
          %492 = sbr.rel (%p490) target = $region36
        $region35: #{tpu_custom_call.1} parent=11 // pred_region
          %s494 = ssub.s32 16, 16
          %495 = vsyncadd [#allocation6], %s494
          %s497 = sshll.u32 [#allocation7], 4
          %s498 = int_to_ptr.vmem [resolvable:$true] %s497
          %500 = dma.hbm_to_vmem [thread:$0]  %s6, 16, %s498, [#allocation6]
        $region36: #{tpu_custom_call.1} parent=11 // pred_fallthru
          _
        // Predicated region
        $region37: #{tpu_custom_call.1} parent=11 // pred_check
          %p501 = pneg %p211
        $region38: #{tpu_custom_call.1} parent=11 // pred_check_branch
          %503 = sbr.rel (%p501) target = $region40
        $region39: #{tpu_custom_call.1} parent=11 // pred_region
          %s505 = ssub.s32 16, 16
          %506 = vsyncadd [#allocation9], %s505
          %s508 = sshll.u32 [#allocation8], 4
          %s509 = int_to_ptr.vmem [resolvable:$true] %s508
          %511 = dma.hbm_to_vmem [thread:$0]  %s7, 16, %s509, [#allocation9]
        $region40: #{tpu_custom_call.1} parent=11 // pred_fallthru
          _
        // Predicated region
        $region41: #{tpu_custom_call.1} parent=11 // pred_check
          %p512 = pneg %p232
        $region42: #{tpu_custom_call.1} parent=11 // pred_check_branch
          %514 = sbr.rel (%p512) target = $region44
        $region43: #{tpu_custom_call.1} parent=11 // pred_region
          %s516 = ssub.s32 16, 16
          %517 = vsyncadd [#allocation9], %s516
          %s519 = sshll.u32 [#allocation10], 4
          %s520 = int_to_ptr.vmem [resolvable:$true] %s519
          %522 = dma.hbm_to_vmem [thread:$0]  %s8, 16, %s520, [#allocation9]
        $region44: #{tpu_custom_call.1} parent=11 // pred_fallthru
          _
        // Predicated region
        $region45: #{tpu_custom_call.1} parent=11 // pred_check
          %p523 = pneg %p253
        $region46: #{tpu_custom_call.1} parent=11 // pred_check_branch
          %525 = sbr.rel (%p523) target = $region48
        $region47: #{tpu_custom_call.1} parent=11 // pred_region
          _
        $region48: #{tpu_custom_call.1} parent=11 // pred_fallthru
          _
        // Predicated region
        $region49: #{tpu_custom_call.1} parent=11 // pred_check
          %p526 = pneg %p274
        $region50: #{tpu_custom_call.1} parent=11 // pred_check_branch
          %528 = sbr.rel (%p526) target = $region52
        $region51: #{tpu_custom_call.1} parent=11 // pred_region
          %s530 = ssub.s32 16, 16
          %531 = vsyncadd [#allocation12], %s530
          %s533 = sshll.u32 [#allocation11], 4
          %s534 = int_to_ptr.vmem [resolvable:$true] %s533
          %536 = dma.hbm_to_vmem [thread:$0]  %s10, 16, %s534, [#allocation12]
        $region52: #{tpu_custom_call.1} parent=11 // pred_fallthru
          _
        // Predicated region
        $region53: #{tpu_custom_call.1} parent=11 // pred_check
          %p537 = pneg %p295
        $region54: #{tpu_custom_call.1} parent=11 // pred_check_branch
          %539 = sbr.rel (%p537) target = $region56
        $region55: #{tpu_custom_call.1} parent=11 // pred_region
          %s541 = ssub.s32 16, 16
          %542 = vsyncadd [#allocation12], %s541
          %s544 = sshll.u32 [#allocation13], 4
          %s545 = int_to_ptr.vmem [resolvable:$true] %s544
          %547 = dma.hbm_to_vmem [thread:$0]  %s11, 16, %s545, [#allocation12]
        $region56: #{tpu_custom_call.1} parent=11 // pred_fallthru
          _
        // Predicated region
        $region57: #{tpu_custom_call.1} parent=11 // pred_check
          %p548 = pneg %p316
        $region58: #{tpu_custom_call.1} parent=11 // pred_check_branch
          %550 = sbr.rel (%p548) target = $region60
        $region59: #{tpu_custom_call.1} parent=11 // pred_region
          %s552 = ssub.s32 16, 16
          %553 = vsyncadd [#allocation15], %s552
          %s555 = sshll.u32 [#allocation14], 4
          %s556 = int_to_ptr.vmem [resolvable:$true] %s555
          %558 = dma.hbm_to_vmem [thread:$0]  %s12, 16, %s556, [#allocation15]
        $region60: #{tpu_custom_call.1} parent=11 // pred_fallthru
          _
        // Predicated region
        $region61: #{tpu_custom_call.1} parent=11 // pred_check
          %p559 = pneg %p337
        $region62: #{tpu_custom_call.1} parent=11 // pred_check_branch
          %561 = sbr.rel (%p559) target = $region64
        $region63: #{tpu_custom_call.1} parent=11 // pred_region
          _
        $region64: #{tpu_custom_call.1} parent=11 // pred_fallthru
          _
        // Predicated region
        $region65: #{tpu_custom_call.1} parent=11 // pred_check
          %p562 = pneg %p358
        $region66: #{tpu_custom_call.1} parent=11 // pred_check_branch
          %564 = sbr.rel (%p562) target = $region68
        $region67: #{tpu_custom_call.1} parent=11 // pred_region
          _
        $region68: #{tpu_custom_call.1} parent=11 // pred_fallthru
          _
        // Predicated region
        $region69: #{tpu_custom_call.1} parent=11 // pred_check
          %p565 = pneg %p379
        $region70: #{tpu_custom_call.1} parent=11 // pred_check_branch
          %567 = sbr.rel (%p565) target = $region72
        $region71: #{tpu_custom_call.1} parent=11 // pred_region
          _
        $region72: #{tpu_custom_call.1} parent=11 // pred_fallthru
          _
        // Predicated region
        $region73: #{tpu_custom_call.1} parent=11 // pred_check
          %p568 = pneg %p400
        $region74: #{tpu_custom_call.1} parent=11 // pred_check_branch
          %570 = sbr.rel (%p568) target = $region76
        $region75: #{tpu_custom_call.1} parent=11 // pred_region
          _
        $region76: #{tpu_custom_call.1} parent=11 // pred_fallthru
          _
      $region12: #{tpu_custom_call.1} parent=5 // pred_fallthru
        _
      %p571 = scmp.lt.s32.totalorder %s38, 2
      // Predicated region
      $region77: #{tpu_custom_call.1} parent=5 // pred_check
        %p572 = pneg %p571
      $region78: #{tpu_custom_call.1} parent=5 // pred_check_branch
        %574 = sbr.rel (%p572) target = $region80
      $region79: #{tpu_custom_call.1} parent=5 // pred_region
        // Predicated region
        $region81: #{tpu_custom_call.1} parent=79 // pred_check
          %p575 = pneg %p58
        $region82: #{tpu_custom_call.1} parent=79 // pred_check_branch
          %577 = sbr.rel (%p575) target = $region84
        $region83: #{tpu_custom_call.1} parent=79 // pred_region
          %s578 = sand.u32 %s48, 1
          %s579 = scalar_lea.sflag [#allocation3], %s578
          %s580 = sand.u32 %s48, 1
          %s581 = smul.addr %s580, 32
          %s582 = scalar_lea.vmem [#allocation2], %s581
          %s583 = smul.u32 2, %s38
          %s585 = ssub.s32 512, 512
          %586 = vsyncadd %s579, %s585
          %s587 = smul.addr %s583, 2
          %s588 = smul.addr %s587, 128
          %s589 = scalar_lea.hbm %s0, %s588
          %s590 = sshll.u32 %s582, 4
          %s591 = int_to_ptr.vmem [resolvable:$true] %s590
          %596 = dma.hbm_to_vmem [thread:$0]  %s589, 512, %s591, %s579, 128, 128, 8
        $region84: #{tpu_custom_call.1} parent=79 // pred_fallthru
          _
      $region80: #{tpu_custom_call.1} parent=5 // pred_fallthru
        _
      %p597 = scmp.le.s32.totalorder 1, %s38
      %p598 = scmp.lt.s32.totalorder %s38, 3
      %p599 = pnand %p597, %p598
      %p600 = pneg %p599
      // Predicated region
      $region85: #{tpu_custom_call.1} parent=5 // pred_check
        _
      $region86: #{tpu_custom_call.1} parent=5 // pred_check_branch
        %602 = sbr.rel (%p599) target = $region88
      $region87: #{tpu_custom_call.1} parent=5 // pred_region
        %s603 = ssub.s32 %s38, 1
        %s604 = sand.u32 %s51, 1
        %s605 = scalar_lea.sflag [#allocation3], %s604
        %s606 = sand.u32 %s51, 1
        %s607 = smul.addr %s606, 32
        %s608 = scalar_lea.vmem [#allocation2], %s607
        // Predicated region
        $region89: #{tpu_custom_call.1} parent=87 // pred_check
          %p609 = pneg %p64
        $region90: #{tpu_custom_call.1} parent=87 // pred_check_branch
          %611 = sbr.rel (%p609) target = $region92
        $region91: #{tpu_custom_call.1} parent=87 // pred_region
          %612 = dma.done %s605, 512
        $region92: #{tpu_custom_call.1} parent=87 // pred_fallthru
          _
        // Predicated region
        $region93: #{tpu_custom_call.1} parent=87 // pred_check
          %p613 = pneg %p106
        $region94: #{tpu_custom_call.1} parent=87 // pred_check_branch
          %615 = sbr.rel (%p613) target = $region96
        $region95: #{tpu_custom_call.1} parent=87 // pred_region
          %616 = dma.done [#allocation6], 16
        $region96: #{tpu_custom_call.1} parent=87 // pred_fallthru
          _
        // Predicated region
        $region97: #{tpu_custom_call.1} parent=87 // pred_check
          %p617 = pneg %p190
        $region98: #{tpu_custom_call.1} parent=87 // pred_check_branch
          %619 = sbr.rel (%p617) target = $region100
        $region99: #{tpu_custom_call.1} parent=87 // pred_region
          %620 = dma.done [#allocation6], 16
        $region100: #{tpu_custom_call.1} parent=87 // pred_fallthru
          _
        // Predicated region
        $region101: #{tpu_custom_call.1} parent=87 // pred_check
          %p621 = pneg %p211
        $region102: #{tpu_custom_call.1} parent=87 // pred_check_branch
          %623 = sbr.rel (%p621) target = $region104
        $region103: #{tpu_custom_call.1} parent=87 // pred_region
          %624 = dma.done [#allocation9], 16
        $region104: #{tpu_custom_call.1} parent=87 // pred_fallthru
          _
        // Predicated region
        $region105: #{tpu_custom_call.1} parent=87 // pred_check
          %p625 = pneg %p232
        $region106: #{tpu_custom_call.1} parent=87 // pred_check_branch
          %627 = sbr.rel (%p625) target = $region108
        $region107: #{tpu_custom_call.1} parent=87 // pred_region
          %628 = dma.done [#allocation9], 16
        $region108: #{tpu_custom_call.1} parent=87 // pred_fallthru
          _
        // Predicated region
        $region109: #{tpu_custom_call.1} parent=87 // pred_check
          %p629 = pneg %p274
        $region110: #{tpu_custom_call.1} parent=87 // pred_check_branch
          %631 = sbr.rel (%p629) target = $region112
        $region111: #{tpu_custom_call.1} parent=87 // pred_region
          %632 = dma.done [#allocation12], 16
        $region112: #{tpu_custom_call.1} parent=87 // pred_fallthru
          _
        // Predicated region
        $region113: #{tpu_custom_call.1} parent=87 // pred_check
          %p633 = pneg %p295
        $region114: #{tpu_custom_call.1} parent=87 // pred_check_branch
          %635 = sbr.rel (%p633) target = $region116
        $region115: #{tpu_custom_call.1} parent=87 // pred_region
          %636 = dma.done [#allocation12], 16
        $region116: #{tpu_custom_call.1} parent=87 // pred_fallthru
          _
        // Predicated region
        $region117: #{tpu_custom_call.1} parent=87 // pred_check
          %p637 = pneg %p316
        $region118: #{tpu_custom_call.1} parent=87 // pred_check_branch
          %639 = sbr.rel (%p637) target = $region120
        $region119: #{tpu_custom_call.1} parent=87 // pred_region
          %640 = dma.done [#allocation15], 16
        $region120: #{tpu_custom_call.1} parent=87 // pred_fallthru
          _
        %s641 = sand.u32 %s51, 1
        %s642 = scalar_lea.sflag [#allocation3], %s641
        %s643 = sand.u32 %s51, 1
        %s644 = smul.addr %s643, 32
        %s645 = scalar_lea.vmem [#allocation2], %s644
        %p646 = pneg %p64
        %p647 = pneg %p61
        %p648 = pneg %p85
        %p649 = pneg %p82
        %p650 = pneg %p106
        %p651 = pneg %p103
        %p652 = pneg %p127
        %p653 = pneg %p124
        %p654 = pneg %p148
        %p655 = pneg %p145
        %p656 = pneg %p169
        %p657 = pneg %p166
        %p658 = pneg %p190
        %p659 = pneg %p187
        %p660 = pneg %p211
        %p661 = pneg %p208
        %p662 = pneg %p232
        %p663 = pneg %p229
        %p664 = pneg %p253
        %p665 = pneg %p250
        %p666 = pneg %p274
        %p667 = pneg %p271
        %p668 = pneg %p295
        %p669 = pneg %p292
        %p670 = pneg %p316
        %p671 = pneg %p313
        %p672 = pneg %p337
        %p673 = pneg %p334
        %p674 = pneg %p358
        %p675 = pneg %p355
        %p676 = pneg %p379
        %p677 = pneg %p376
        %p678 = pneg %p400
        %p679 = pneg %p397
        %p680 = pneg %p426
        %p681 = pneg %p423
        %s682 = sand.u32 %s413, 1
        %s683 = scalar_lea.sflag [#allocation4], %s682
        %s684 = sand.u32 %s413, 1
        %s685 = smul.addr %s684, 32
        %s686 = scalar_lea.vmem [#allocation16], %s685
        %p687 = pneg %p452
        %p688 = pneg %p449
        %s689 = sand.u32 %s439, 1
        %s690 = scalar_lea.sflag [#allocation18], %s689
        %s691 = sand.u32 %s439, 1
        %s692 = smul.addr %s691, 32
        %s693 = scalar_lea.vmem [#allocation17], %s692
        %s694 = smul.u32 2, %s43
        %s695 = smul.u32 2, %s43
        %s696 = smul.u32 2, %s43
        %v698 = vld [vmem:[%s608] sm:$0xff]
        %v699 = vld [vmem:[%s608 + $0x8] sm:$0xff]
        %v700 = vld [vmem:[%s608 + $0x10] sm:$0xff]
        %v701 = vld [vmem:[%s608 + $0x18] sm:$0xff]
        %v702 = vld [vmem:[%s1] sm:$0x1]
        %v703 = vld [vmem:[#allocation5] sm:$0x1]
        %vm704 = vcmask 261120
        %v705 = vsel %vm704, %v698, 0.0
        %706 = vadd.xlane.f32.xlu0 %v705
        %v707 = vpop.xlane.xlu0 %706
        %v708 = vsel %vm704, %v699, 0.0
        %709 = vadd.xlane.f32.xlu0 %v708
        %v710 = vpop.xlane.xlu0 %709
        %v711 = vsel %vm704, %v700, 0.0
        %712 = vadd.xlane.f32.xlu0 %v711
        %v713 = vpop.xlane.xlu0 %712
        %v714 = vsel %vm704, %v701, 0.0
        %715 = vadd.xlane.f32.xlu0 %v714
        %v716 = vpop.xlane.xlu0 %715
        %v717 = vrcp.pop 32.0
        %v718 = vmul.f32 %v707, %v717
        %v719 = vmul.f32 %v710, %v717
        %v720 = vmul.f32 %v713, %v717
        %v721 = vmul.f32 %v716, %v717
        %v722 = vsub.f32 %v698, %v718
        %v723 = vsub.f32 %v699, %v719
        %v724 = vsub.f32 %v700, %v720
        %v725 = vsub.f32 %v701, %v721
        %v726 = vmul.f32 %v722, %v722
        %v727 = vmul.f32 %v723, %v723
        %v728 = vmul.f32 %v724, %v724
        %v729 = vmul.f32 %v725, %v725
        %v730 = vsel %vm704, %v726, 0.0
        %731 = vadd.xlane.f32.xlu0 %v730
        %v732 = vpop.xlane.xlu0 %731
        %v733 = vsel %vm704, %v727, 0.0
        %734 = vadd.xlane.f32.xlu0 %v733
        %v735 = vpop.xlane.xlu0 %734
        %v736 = vsel %vm704, %v728, 0.0
        %737 = vadd.xlane.f32.xlu0 %v736
        %v738 = vpop.xlane.xlu0 %737
        %v739 = vsel %vm704, %v729, 0.0
        %740 = vadd.xlane.f32.xlu0 %v739
        %v741 = vpop.xlane.xlu0 %740
        %v742 = vmul.f32 %v732, %v717
        %v743 = vmul.f32 %v735, %v717
        %v744 = vmul.f32 %v738, %v717
        %v745 = vmul.f32 %v741, %v717
        %v746 = vadd.f32 %v742, 1e-06
        %v747 = vadd.f32 %v743, 1e-06
        %v748 = vadd.f32 %v744, 1e-06
        %v749 = vadd.f32 %v745, 1e-06
        %v750 = vrsqrt.pop %v746
        %v751 = vrsqrt.pop %v747
        %v752 = vrsqrt.pop %v748
        %v753 = vrsqrt.pop %v749
        %v754 = vmul.f32 %v722, %v750
        %v755 = vmul.f32 %v723, %v751
        %v756 = vmul.f32 %v724, %v752
        %v757 = vmul.f32 %v725, %v753
        %v759 = vlaneseq
        %v760 = vshrl.u32 %v759, 7
        %v761 = vsub.s32 0, %v760
        %v762 = vrot.slane %v702, %v761
        %v764 = vmul.f32 %v754, %v762
        %v765 = vmul.f32 %v755, %v762
        %v766 = vmul.f32 %v756, %v762
        %v767 = vmul.f32 %v757, %v762
        %v769 = vlaneseq
        %v770 = vshrl.u32 %v769, 7
        %v771 = vsub.s32 0, %v770
        %v772 = vrot.slane %v703, %v771
        %v774 = vadd.f32 %v764, %v772
        %v775 = vadd.f32 %v765, %v772
        %v776 = vadd.f32 %v766, %v772
        %v777 = vadd.f32 %v767, %v772
        %v778 = vpack.c.bf16 %v775, %v774
        %v779 = vpack.c.bf16 %v777, %v776
        %v780 = vld [vmem:[%s3] sm:$0xf]
        %v781 = vld [vmem:[%s3 + $0x4] sm:$0xf]
        %v782 = vld [vmem:[%s3 + $0x8] sm:$0xf]
        %v783 = vld [vmem:[%s3 + $0xc] sm:$0xf]
        %v784 = vld [vmem:[#allocation7] sm:$0x1]
        %v786 = vlaneseq
        %v787 = vshrl.u32 %v786, 7
        %v788 = vsub.s32 0, %v787
        %v789 = vrot.slane %v784, %v788
        %v795 = vunpack.c.l.b16 %v780
        %v796 = vunpack.c.l.b16 %v781
        %v797 = vunpack.c.l.b16 %v782
        %v798 = vunpack.c.l.b16 %v783
        %v799 = vpack.c.b16 %v796, %v795
        %v800 = vpack.c.b16 %v798, %v797
        %v804 = vsel %vm704, %v778, 0
        %v807 = vsel %vm704, %v779, 0
        %809 = vmatprep.subr.bf16.mxu0 0
        %810 = vmatpush1.bf16.msra.mxu0 %v799
        %811 = vmatprep.subr.bf16.mxu0 0
        %812 = vmatpush1.bf16.msra.mxu0 %v800
        %813 = vmatprep.subr.bf16.mxu0 0
        %814 = vmatpush1.bf16.msra.mxu0 0
        %815 = vmatprep.subr.bf16.mxu0 0
        %816 = vmatpush1.bf16.msra.mxu0 0
        %817 = vmatprep.subr.bf16.mxu0 0
        %818 = vmatpush1.bf16.msra.mxu0 0
        %819 = vmatprep.subr.bf16.mxu0 0
        %820 = vmatpush1.bf16.msra.mxu0 0
        %821 = vmatprep.subr.bf16.mxu0 0
        %822 = vmatpush1.bf16.msra.mxu0 0
        %823 = vmatprep.subr.bf16.mxu0 0
        %824 = vmatpush1.bf16.msra.mxu0 0
        %825 = vmatprep.subr.bf16.mxu0 0
        %826 = vmatpush1.bf16.msra.mxu0 0
        %827 = vmatprep.subr.bf16.mxu0 0
        %828 = vmatpush1.bf16.msra.mxu0 0
        %829 = vmatprep.subr.bf16.mxu0 0
        %830 = vmatpush1.bf16.msra.mxu0 0
        %831 = vmatprep.subr.bf16.mxu0 0
        %832 = vmatpush1.bf16.msra.mxu0 0
        %833 = vmatprep.subr.bf16.mxu0 0
        %834 = vmatpush1.bf16.msra.mxu0 0
        %835 = vmatprep.subr.bf16.mxu0 0
        %836 = vmatpush1.bf16.msra.mxu0 0
        %837 = vmatprep.subr.bf16.mxu0 0
        %838 = vmatpush1.bf16.msra.mxu0 0
        %839 = vmatprep.subr.bf16.mxu0 0
        %840 = vmatpush1.bf16.msra.mxu0 0
        %841 = vmatprep.mubr.bf16.mxu0 0
        %842 = vmatmul.mubr.bf16.gmra.mrb[0].mxu0 %v804
        %v843 = vpop.f32.mrb[0].mxu0
        %v844 = vadd.f32 %v789, %v843
        %v845 = vpop.f32.mrb[0].mxu0
        %v846 = vpop.f32.mrb[0].mxu0
        %v847 = vadd.f32 %v789, %v846
        %v848 = vpop.f32.mrb[0].mxu0
        %849 = vmatprep.mubr.bf16.mxu0 0
        %850 = vmatmul.mubr.bf16.gmra.mrb[0].mxu0 %v807
        %v851 = vpop.f32.mrb[0].mxu0
        %v852 = vadd.f32 %v789, %v851
        %v853 = vpop.f32.mrb[0].mxu0
        %v854 = vpop.f32.mrb[0].mxu0
        %v855 = vadd.f32 %v789, %v854
        %v856 = vpop.f32.mrb[0].mxu0
        %857 = vdwg.mxu0
        %v858 = vld [vmem:[%s4] sm:$0xf]
        %v859 = vld [vmem:[%s4 + $0x4] sm:$0xf]
        %v860 = vld [vmem:[%s4 + $0x8] sm:$0xf]
        %v861 = vld [vmem:[%s4 + $0xc] sm:$0xf]
        %v862 = vld [vmem:[#allocation8] sm:$0x1]
        %v864 = vlaneseq
        %v865 = vshrl.u32 %v864, 7
        %v866 = vsub.s32 0, %v865
        %v867 = vrot.slane %v862, %v866
        %v873 = vunpack.c.l.b16 %v858
        %v874 = vunpack.c.l.b16 %v859
        %v875 = vunpack.c.l.b16 %v860
        %v876 = vunpack.c.l.b16 %v861
        %v877 = vpack.c.b16 %v874, %v873
        %v878 = vpack.c.b16 %v876, %v875
        %881 = vmatprep.subr.bf16.mxu0 0
        %882 = vmatpush1.bf16.msra.mxu0 %v877
        %883 = vmatprep.subr.bf16.mxu0 0
        %884 = vmatpush1.bf16.msra.mxu0 %v878
        %885 = vmatprep.subr.bf16.mxu0 0
        %886 = vmatpush1.bf16.msra.mxu0 0
        %887 = vmatprep.subr.bf16.mxu0 0
        %888 = vmatpush1.bf16.msra.mxu0 0
        %889 = vmatprep.subr.bf16.mxu0 0
        %890 = vmatpush1.bf16.msra.mxu0 0
        %891 = vmatprep.subr.bf16.mxu0 0
        %892 = vmatpush1.bf16.msra.mxu0 0
        %893 = vmatprep.subr.bf16.mxu0 0
        %894 = vmatpush1.bf16.msra.mxu0 0
        %895 = vmatprep.subr.bf16.mxu0 0
        %896 = vmatpush1.bf16.msra.mxu0 0
        %897 = vmatprep.subr.bf16.mxu0 0
        %898 = vmatpush1.bf16.msra.mxu0 0
        %899 = vmatprep.subr.bf16.mxu0 0
        %900 = vmatpush1.bf16.msra.mxu0 0
        %901 = vmatprep.subr.bf16.mxu0 0
        %902 = vmatpush1.bf16.msra.mxu0 0
        %903 = vmatprep.subr.bf16.mxu0 0
        %904 = vmatpush1.bf16.msra.mxu0 0
        %905 = vmatprep.subr.bf16.mxu0 0
        %906 = vmatpush1.bf16.msra.mxu0 0
        %907 = vmatprep.subr.bf16.mxu0 0
        %908 = vmatpush1.bf16.msra.mxu0 0
        %909 = vmatprep.subr.bf16.mxu0 0
        %910 = vmatpush1.bf16.msra.mxu0 0
        %911 = vmatprep.subr.bf16.mxu0 0
        %912 = vmatpush1.bf16.msra.mxu0 0
        %913 = vmatprep.mubr.bf16.mxu0 0
        %914 = vmatmul.mubr.bf16.gmra.mrb[0].mxu0 %v804
        %v915 = vpop.f32.mrb[0].mxu0
        %v916 = vadd.f32 %v867, %v915
        %v917 = vpop.f32.mrb[0].mxu0
        %v918 = vpop.f32.mrb[0].mxu0
        %v919 = vadd.f32 %v867, %v918
        %v920 = vpop.f32.mrb[0].mxu0
        %921 = vmatprep.mubr.bf16.mxu0 0
        %922 = vmatmul.mubr.bf16.gmra.mrb[0].mxu0 %v807
        %v923 = vpop.f32.mrb[0].mxu0
        %v924 = vadd.f32 %v867, %v923
        %v925 = vpop.f32.mrb[0].mxu0
        %v926 = vpop.f32.mrb[0].mxu0
        %v927 = vadd.f32 %v867, %v926
        %v928 = vpop.f32.mrb[0].mxu0
        %929 = vdwg.mxu0
        %v930 = vld [vmem:[%s5] sm:$0xf]
        %v931 = vld [vmem:[%s5 + $0x4] sm:$0xf]
        %v932 = vld [vmem:[%s5 + $0x8] sm:$0xf]
        %v933 = vld [vmem:[%s5 + $0xc] sm:$0xf]
        %v934 = vld [vmem:[#allocation10] sm:$0x1]
        %v936 = vlaneseq
        %v937 = vshrl.u32 %v936, 7
        %v938 = vsub.s32 0, %v937
        %v939 = vrot.slane %v934, %v938
        %v945 = vunpack.c.l.b16 %v930
        %v946 = vunpack.c.l.b16 %v931
        %v947 = vunpack.c.l.b16 %v932
        %v948 = vunpack.c.l.b16 %v933
        %v949 = vpack.c.b16 %v946, %v945
        %v950 = vpack.c.b16 %v948, %v947
        %953 = vmatprep.subr.bf16.mxu0 0
        %954 = vmatpush1.bf16.msra.mxu0 %v949
        %955 = vmatprep.subr.bf16.mxu0 0
        %956 = vmatpush1.bf16.msra.mxu0 %v950
        %957 = vmatprep.subr.bf16.mxu0 0
        %958 = vmatpush1.bf16.msra.mxu0 0
        %959 = vmatprep.subr.bf16.mxu0 0
        %960 = vmatpush1.bf16.msra.mxu0 0
        %961 = vmatprep.subr.bf16.mxu0 0
        %962 = vmatpush1.bf16.msra.mxu0 0
        %963 = vmatprep.subr.bf16.mxu0 0
        %964 = vmatpush1.bf16.msra.mxu0 0
        %965 = vmatprep.subr.bf16.mxu0 0
        %966 = vmatpush1.bf16.msra.mxu0 0
        %967 = vmatprep.subr.bf16.mxu0 0
        %968 = vmatpush1.bf16.msra.mxu0 0
        %969 = vmatprep.subr.bf16.mxu0 0
        %970 = vmatpush1.bf16.msra.mxu0 0
        %971 = vmatprep.subr.bf16.mxu0 0
        %972 = vmatpush1.bf16.msra.mxu0 0
        %973 = vmatprep.subr.bf16.mxu0 0
        %974 = vmatpush1.bf16.msra.mxu0 0
        %975 = vmatprep.subr.bf16.mxu0 0
        %976 = vmatpush1.bf16.msra.mxu0 0
        %977 = vmatprep.subr.bf16.mxu0 0
        %978 = vmatpush1.bf16.msra.mxu0 0
        %979 = vmatprep.subr.bf16.mxu0 0
        %980 = vmatpush1.bf16.msra.mxu0 0
        %981 = vmatprep.subr.bf16.mxu0 0
        %982 = vmatpush1.bf16.msra.mxu0 0
        %983 = vmatprep.subr.bf16.mxu0 0
        %984 = vmatpush1.bf16.msra.mxu0 0
        %985 = vmatprep.mubr.bf16.mxu0 0
        %986 = vmatmul.mubr.bf16.gmra.mrb[0].mxu0 %v804
        %v987 = vpop.f32.mrb[0].mxu0
        %v988 = vadd.f32 %v939, %v987
        %v989 = vpop.f32.mrb[0].mxu0
        %v990 = vpop.f32.mrb[0].mxu0
        %v991 = vadd.f32 %v939, %v990
        %v992 = vpop.f32.mrb[0].mxu0
        %993 = vmatprep.mubr.bf16.mxu0 0
        %994 = vmatmul.mubr.bf16.gmra.mrb[0].mxu0 %v807
        %v995 = vpop.f32.mrb[0].mxu0
        %v996 = vadd.f32 %v939, %v995
        %v997 = vpop.f32.mrb[0].mxu0
        %v998 = vpop.f32.mrb[0].mxu0
        %v999 = vadd.f32 %v939, %v998
        %v1000 = vpop.f32.mrb[0].mxu0
        %1001 = vdwg.mxu0
        %v1002 = vlaneseq
        %v1003 = vand.u32 %v1002, 127
        %vm1004 = vcmp.lt.s32.totalorder %v1003, 10
        %1007 = vrot.lane.b32.xlu0 %v844, 120
        %v1008 = vpop.permute.xlu0 %1007
        %1009 = vrot.lane.b32.xlu0 %v847, 120
        %v1010 = vpop.permute.xlu0 %1009
        %1013 = vrot.lane.b32.xlu0 %v844, 112
        %v1014 = vpop.permute.xlu0 %1013
        %1015 = vrot.lane.b32.xlu0 %v847, 112
        %v1016 = vpop.permute.xlu0 %1015
        %1019 = vrot.lane.b32.xlu0 %v844, 104
        %v1020 = vpop.permute.xlu0 %1019
        %1021 = vrot.lane.b32.xlu0 %v847, 104
        %v1022 = vpop.permute.xlu0 %1021
        %v1025 = vcombine.low %v844, %v1014
        %v1026 = vcombine.high %v844, %v1014
        %v1028 = vunpack.c.l.s4 1983009808
        %v1029 = vunpack.c.0.s8 %v1028
        %v1030 = vlaneseq
        %v1031 = vshrl.u32 %v1030, 7
        %v1032 = vsub.s32 %v1029, %v1031
        %v1033 = vrot.slane %v1025, %v1032
        %v1035 = vunpack.c.l.s4 1983009808
        %v1036 = vunpack.c.0.s8 %v1035
        %v1037 = vlaneseq
        %v1038 = vshrl.u32 %v1037, 7
        %v1039 = vsub.s32 %v1036, %v1038
        %v1040 = vrot.slane %v1026, %v1039
        %v1041 = vcombine.low %v1008, %v1020
        %v1042 = vcombine.high %v1008, %v1020
        %v1044 = vunpack.c.l.s4 1983009808
        %v1045 = vunpack.c.0.s8 %v1044
        %v1046 = vlaneseq
        %v1047 = vshrl.u32 %v1046, 7
        %v1048 = vsub.s32 %v1045, %v1047
        %v1049 = vrot.slane %v1041, %v1048
        %v1051 = vunpack.c.l.s4 1983009808
        %v1052 = vunpack.c.0.s8 %v1051
        %v1053 = vlaneseq
        %v1054 = vshrl.u32 %v1053, 7
        %v1055 = vsub.s32 %v1052, %v1054
        %v1056 = vrot.slane %v1042, %v1055
        %v1057 = vcombine.low %v1033, %v1049
        %v1058 = vcombine.high %v1033, %v1049
        %v1060 = vunpack.c.l.s4 1934713408
        %v1061 = vunpack.c.0.s8 %v1060
        %v1062 = vlaneseq
        %v1063 = vshrl.u32 %v1062, 7
        %v1064 = vsub.s32 %v1061, %v1063
        %v1065 = vrot.slane %v1057, %v1064
        %v1067 = vunpack.c.l.s4 1934713408
        %v1068 = vunpack.c.0.s8 %v1067
        %v1069 = vlaneseq
        %v1070 = vshrl.u32 %v1069, 7
        %v1071 = vsub.s32 %v1068, %v1070
        %v1072 = vrot.slane %v1058, %v1071
        %v1073 = vcombine.low %v1040, %v1056
        %v1074 = vcombine.high %v1040, %v1056
        %v1076 = vunpack.c.l.s4 1934713408
        %v1077 = vunpack.c.0.s8 %v1076
        %v1078 = vlaneseq
        %v1079 = vshrl.u32 %v1078, 7
        %v1080 = vsub.s32 %v1077, %v1079
        %v1081 = vrot.slane %v1073, %v1080
        %v1083 = vunpack.c.l.s4 1934713408
        %v1084 = vunpack.c.0.s8 %v1083
        %v1085 = vlaneseq
        %v1086 = vshrl.u32 %v1085, 7
        %v1087 = vsub.s32 %v1084, %v1086
        %v1088 = vrot.slane %v1074, %v1087
        %v1089 = vcombine.high %v1065, 0.0
        %v1090 = vcombine.high %v1072, 0.0
        %v1091 = vcombine.high %v1081, 0.0
        %v1092 = vcombine.high %v1088, 0.0
        %v1093 = vcombine.low %v847, %v1016
        %v1094 = vcombine.high %v847, %v1016
        %v1096 = vunpack.c.l.s4 1983009808
        %v1097 = vunpack.c.0.s8 %v1096
        %v1098 = vlaneseq
        %v1099 = vshrl.u32 %v1098, 7
        %v1100 = vsub.s32 %v1097, %v1099
        %v1101 = vrot.slane %v1093, %v1100
        %v1103 = vunpack.c.l.s4 1983009808
        %v1104 = vunpack.c.0.s8 %v1103
        %v1105 = vlaneseq
        %v1106 = vshrl.u32 %v1105, 7
        %v1107 = vsub.s32 %v1104, %v1106
        %v1108 = vrot.slane %v1094, %v1107
        %v1109 = vcombine.low %v1010, %v1022
        %v1110 = vcombine.high %v1010, %v1022
        %v1112 = vunpack.c.l.s4 1983009808
        %v1113 = vunpack.c.0.s8 %v1112
        %v1114 = vlaneseq
        %v1115 = vshrl.u32 %v1114, 7
        %v1116 = vsub.s32 %v1113, %v1115
        %v1117 = vrot.slane %v1109, %v1116
        %v1119 = vunpack.c.l.s4 1983009808
        %v1120 = vunpack.c.0.s8 %v1119
        %v1121 = vlaneseq
        %v1122 = vshrl.u32 %v1121, 7
        %v1123 = vsub.s32 %v1120, %v1122
        %v1124 = vrot.slane %v1110, %v1123
        %v1125 = vcombine.low %v1101, %v1117
        %v1126 = vcombine.high %v1101, %v1117
        %v1128 = vunpack.c.l.s4 1934713408
        %v1129 = vunpack.c.0.s8 %v1128
        %v1130 = vlaneseq
        %v1131 = vshrl.u32 %v1130, 7
        %v1132 = vsub.s32 %v1129, %v1131
        %v1133 = vrot.slane %v1125, %v1132
        %v1135 = vunpack.c.l.s4 1934713408
        %v1136 = vunpack.c.0.s8 %v1135
        %v1137 = vlaneseq
        %v1138 = vshrl.u32 %v1137, 7
        %v1139 = vsub.s32 %v1136, %v1138
        %v1140 = vrot.slane %v1126, %v1139
        %v1141 = vcombine.low %v1108, %v1124
        %v1142 = vcombine.high %v1108, %v1124
        %v1144 = vunpack.c.l.s4 1934713408
        %v1145 = vunpack.c.0.s8 %v1144
        %v1146 = vlaneseq
        %v1147 = vshrl.u32 %v1146, 7
        %v1148 = vsub.s32 %v1145, %v1147
        %v1149 = vrot.slane %v1141, %v1148
        %v1151 = vunpack.c.l.s4 1934713408
        %v1152 = vunpack.c.0.s8 %v1151
        %v1153 = vlaneseq
        %v1154 = vshrl.u32 %v1153, 7
        %v1155 = vsub.s32 %v1152, %v1154
        %v1156 = vrot.slane %v1142, %v1155
        %v1157 = vcombine.high %v1133, 0.0
        %v1158 = vcombine.high %v1140, 0.0
        %v1159 = vcombine.high %v1149, 0.0
        %v1160 = vcombine.high %v1156, 0.0
        %v1161 = vcombine.low %v1065, %v1072
        %v1163 = vunpack.c.l.s4 1983009808
        %v1164 = vunpack.c.0.s8 %v1163
        %v1165 = vlaneseq
        %v1166 = vshrl.u32 %v1165, 7
        %v1167 = vsub.s32 %v1164, %v1166
        %v1168 = vrot.slane %v1161, %v1167
        %v1169 = vcombine.low %v1089, %v1090
        %v1171 = vunpack.c.l.s4 1983009808
        %v1172 = vunpack.c.0.s8 %v1171
        %v1173 = vlaneseq
        %v1174 = vshrl.u32 %v1173, 7
        %v1175 = vsub.s32 %v1172, %v1174
        %v1176 = vrot.slane %v1169, %v1175
        %v1177 = vcombine.low %v1081, %v1088
        %v1179 = vunpack.c.l.s4 1983009808
        %v1180 = vunpack.c.0.s8 %v1179
        %v1181 = vlaneseq
        %v1182 = vshrl.u32 %v1181, 7
        %v1183 = vsub.s32 %v1180, %v1182
        %v1184 = vrot.slane %v1177, %v1183
        %v1185 = vcombine.low %v1091, %v1092
        %v1187 = vunpack.c.l.s4 1983009808
        %v1188 = vunpack.c.0.s8 %v1187
        %v1189 = vlaneseq
        %v1190 = vshrl.u32 %v1189, 7
        %v1191 = vsub.s32 %v1188, %v1190
        %v1192 = vrot.slane %v1185, %v1191
        %v1193 = vcombine.low %v1168, %v1176
        %v1194 = vcombine.high %v1168, %v1176
        %v1196 = vunpack.c.l.s4 1934713408
        %v1197 = vunpack.c.0.s8 %v1196
        %v1198 = vlaneseq
        %v1199 = vshrl.u32 %v1198, 7
        %v1200 = vsub.s32 %v1197, %v1199
        %v1201 = vrot.slane %v1193, %v1200
        %v1203 = vunpack.c.l.s4 1934713408
        %v1204 = vunpack.c.0.s8 %v1203
        %v1205 = vlaneseq
        %v1206 = vshrl.u32 %v1205, 7
        %v1207 = vsub.s32 %v1204, %v1206
        %v1208 = vrot.slane %v1194, %v1207
        %v1209 = vcombine.low %v1184, %v1192
        %v1210 = vcombine.high %v1184, %v1192
        %v1212 = vunpack.c.l.s4 1934713408
        %v1213 = vunpack.c.0.s8 %v1212
        %v1214 = vlaneseq
        %v1215 = vshrl.u32 %v1214, 7
        %v1216 = vsub.s32 %v1213, %v1215
        %v1217 = vrot.slane %v1209, %v1216
        %v1219 = vunpack.c.l.s4 1934713408
        %v1220 = vunpack.c.0.s8 %v1219
        %v1221 = vlaneseq
        %v1222 = vshrl.u32 %v1221, 7
        %v1223 = vsub.s32 %v1220, %v1222
        %v1224 = vrot.slane %v1210, %v1223
        %v1225 = vcombine.low %v1201, %v1217
        %v1226 = vcombine.high %v1201, %v1217
        %v1227 = vcombine.low %v1208, %v1224
        %v1228 = vcombine.high %v1208, %v1224
        %v1229 = vcombine.low %v1133, %v1140
        %v1231 = vunpack.c.l.s4 1983009808
        %v1232 = vunpack.c.0.s8 %v1231
        %v1233 = vlaneseq
        %v1234 = vshrl.u32 %v1233, 7
        %v1235 = vsub.s32 %v1232, %v1234
        %v1236 = vrot.slane %v1229, %v1235
        %v1237 = vcombine.low %v1157, %v1158
        %v1239 = vunpack.c.l.s4 1983009808
        %v1240 = vunpack.c.0.s8 %v1239
        %v1241 = vlaneseq
        %v1242 = vshrl.u32 %v1241, 7
        %v1243 = vsub.s32 %v1240, %v1242
        %v1244 = vrot.slane %v1237, %v1243
        %v1245 = vcombine.low %v1149, %v1156
        %v1247 = vunpack.c.l.s4 1983009808
        %v1248 = vunpack.c.0.s8 %v1247
        %v1249 = vlaneseq
        %v1250 = vshrl.u32 %v1249, 7
        %v1251 = vsub.s32 %v1248, %v1250
        %v1252 = vrot.slane %v1245, %v1251
        %v1253 = vcombine.low %v1159, %v1160
        %v1255 = vunpack.c.l.s4 1983009808
        %v1256 = vunpack.c.0.s8 %v1255
        %v1257 = vlaneseq
        %v1258 = vshrl.u32 %v1257, 7
        %v1259 = vsub.s32 %v1256, %v1258
        %v1260 = vrot.slane %v1253, %v1259
        %v1261 = vcombine.low %v1236, %v1244
        %v1262 = vcombine.high %v1236, %v1244
        %v1264 = vunpack.c.l.s4 1934713408
        %v1265 = vunpack.c.0.s8 %v1264
        %v1266 = vlaneseq
        %v1267 = vshrl.u32 %v1266, 7
        %v1268 = vsub.s32 %v1265, %v1267
        %v1269 = vrot.slane %v1261, %v1268
        %v1271 = vunpack.c.l.s4 1934713408
        %v1272 = vunpack.c.0.s8 %v1271
        %v1273 = vlaneseq
        %v1274 = vshrl.u32 %v1273, 7
        %v1275 = vsub.s32 %v1272, %v1274
        %v1276 = vrot.slane %v1262, %v1275
        %v1277 = vcombine.low %v1252, %v1260
        %v1278 = vcombine.high %v1252, %v1260
        %v1280 = vunpack.c.l.s4 1934713408
        %v1281 = vunpack.c.0.s8 %v1280
        %v1282 = vlaneseq
        %v1283 = vshrl.u32 %v1282, 7
        %v1284 = vsub.s32 %v1281, %v1283
        %v1285 = vrot.slane %v1277, %v1284
        %v1287 = vunpack.c.l.s4 1934713408
        %v1288 = vunpack.c.0.s8 %v1287
        %v1289 = vlaneseq
        %v1290 = vshrl.u32 %v1289, 7
        %v1291 = vsub.s32 %v1288, %v1290
        %v1292 = vrot.slane %v1278, %v1291
        %v1293 = vcombine.low %v1269, %v1285
        %v1294 = vcombine.high %v1269, %v1285
        %v1295 = vcombine.low %v1276, %v1292
        %v1296 = vcombine.high %v1276, %v1292
        %v1297 = vpack.c.bf16 %v1293, %v1225
        %v1298 = vpack.c.bf16 %v1294, %v1226
        %v1299 = vpack.c.bf16 %v1295, %v1227
        %v1300 = vpack.c.bf16 %v1296, %v1228
        %1303 = vrot.lane.b32.xlu0 %v916, 120
        %v1304 = vpop.permute.xlu0 %1303
        %1305 = vrot.lane.b32.xlu0 %v919, 120
        %v1306 = vpop.permute.xlu0 %1305
        %1309 = vrot.lane.b32.xlu0 %v916, 112
        %v1310 = vpop.permute.xlu0 %1309
        %1311 = vrot.lane.b32.xlu0 %v919, 112
        %v1312 = vpop.permute.xlu0 %1311
        %1315 = vrot.lane.b32.xlu0 %v916, 104
        %v1316 = vpop.permute.xlu0 %1315
        %1317 = vrot.lane.b32.xlu0 %v919, 104
        %v1318 = vpop.permute.xlu0 %1317
        %v1321 = vcombine.low %v916, %v1310
        %v1322 = vcombine.high %v916, %v1310
        %v1324 = vunpack.c.l.s4 1983009808
        %v1325 = vunpack.c.0.s8 %v1324
        %v1326 = vlaneseq
        %v1327 = vshrl.u32 %v1326, 7
        %v1328 = vsub.s32 %v1325, %v1327
        %v1329 = vrot.slane %v1321, %v1328
        %v1331 = vunpack.c.l.s4 1983009808
        %v1332 = vunpack.c.0.s8 %v1331
        %v1333 = vlaneseq
        %v1334 = vshrl.u32 %v1333, 7
        %v1335 = vsub.s32 %v1332, %v1334
        %v1336 = vrot.slane %v1322, %v1335
        %v1337 = vcombine.low %v1304, %v1316
        %v1338 = vcombine.high %v1304, %v1316
        %v1340 = vunpack.c.l.s4 1983009808
        %v1341 = vunpack.c.0.s8 %v1340
        %v1342 = vlaneseq
        %v1343 = vshrl.u32 %v1342, 7
        %v1344 = vsub.s32 %v1341, %v1343
        %v1345 = vrot.slane %v1337, %v1344
        %v1347 = vunpack.c.l.s4 1983009808
        %v1348 = vunpack.c.0.s8 %v1347
        %v1349 = vlaneseq
        %v1350 = vshrl.u32 %v1349, 7
        %v1351 = vsub.s32 %v1348, %v1350
        %v1352 = vrot.slane %v1338, %v1351
        %v1353 = vcombine.low %v1329, %v1345
        %v1354 = vcombine.high %v1329, %v1345
        %v1356 = vunpack.c.l.s4 1934713408
        %v1357 = vunpack.c.0.s8 %v1356
        %v1358 = vlaneseq
        %v1359 = vshrl.u32 %v1358, 7
        %v1360 = vsub.s32 %v1357, %v1359
        %v1361 = vrot.slane %v1353, %v1360
        %v1363 = vunpack.c.l.s4 1934713408
        %v1364 = vunpack.c.0.s8 %v1363
        %v1365 = vlaneseq
        %v1366 = vshrl.u32 %v1365, 7
        %v1367 = vsub.s32 %v1364, %v1366
        %v1368 = vrot.slane %v1354, %v1367
        %v1369 = vcombine.low %v1336, %v1352
        %v1370 = vcombine.high %v1336, %v1352
        %v1372 = vunpack.c.l.s4 1934713408
        %v1373 = vunpack.c.0.s8 %v1372
        %v1374 = vlaneseq
        %v1375 = vshrl.u32 %v1374, 7
        %v1376 = vsub.s32 %v1373, %v1375
        %v1377 = vrot.slane %v1369, %v1376
        %v1379 = vunpack.c.l.s4 1934713408
        %v1380 = vunpack.c.0.s8 %v1379
        %v1381 = vlaneseq
        %v1382 = vshrl.u32 %v1381, 7
        %v1383 = vsub.s32 %v1380, %v1382
        %v1384 = vrot.slane %v1370, %v1383
        %v1385 = vcombine.high %v1361, 0.0
        %v1386 = vcombine.high %v1368, 0.0
        %v1387 = vcombine.high %v1377, 0.0
        %v1388 = vcombine.high %v1384, 0.0
        %v1389 = vcombine.low %v919, %v1312
        %v1390 = vcombine.high %v919, %v1312
        %v1392 = vunpack.c.l.s4 1983009808
        %v1393 = vunpack.c.0.s8 %v1392
        %v1394 = vlaneseq
        %v1395 = vshrl.u32 %v1394, 7
        %v1396 = vsub.s32 %v1393, %v1395
        %v1397 = vrot.slane %v1389, %v1396
        %v1399 = vunpack.c.l.s4 1983009808
        %v1400 = vunpack.c.0.s8 %v1399
        %v1401 = vlaneseq
        %v1402 = vshrl.u32 %v1401, 7
        %v1403 = vsub.s32 %v1400, %v1402
        %v1404 = vrot.slane %v1390, %v1403
        %v1405 = vcombine.low %v1306, %v1318
        %v1406 = vcombine.high %v1306, %v1318
        %v1408 = vunpack.c.l.s4 1983009808
        %v1409 = vunpack.c.0.s8 %v1408
        %v1410 = vlaneseq
        %v1411 = vshrl.u32 %v1410, 7
        %v1412 = vsub.s32 %v1409, %v1411
        %v1413 = vrot.slane %v1405, %v1412
        %v1415 = vunpack.c.l.s4 1983009808
        %v1416 = vunpack.c.0.s8 %v1415
        %v1417 = vlaneseq
        %v1418 = vshrl.u32 %v1417, 7
        %v1419 = vsub.s32 %v1416, %v1418
        %v1420 = vrot.slane %v1406, %v1419
        %v1421 = vcombine.low %v1397, %v1413
        %v1422 = vcombine.high %v1397, %v1413
        %v1424 = vunpack.c.l.s4 1934713408
        %v1425 = vunpack.c.0.s8 %v1424
        %v1426 = vlaneseq
        %v1427 = vshrl.u32 %v1426, 7
        %v1428 = vsub.s32 %v1425, %v1427
        %v1429 = vrot.slane %v1421, %v1428
        %v1431 = vunpack.c.l.s4 1934713408
        %v1432 = vunpack.c.0.s8 %v1431
        %v1433 = vlaneseq
        %v1434 = vshrl.u32 %v1433, 7
        %v1435 = vsub.s32 %v1432, %v1434
        %v1436 = vrot.slane %v1422, %v1435
        %v1437 = vcombine.low %v1404, %v1420
        %v1438 = vcombine.high %v1404, %v1420
        %v1440 = vunpack.c.l.s4 1934713408
        %v1441 = vunpack.c.0.s8 %v1440
        %v1442 = vlaneseq
        %v1443 = vshrl.u32 %v1442, 7
        %v1444 = vsub.s32 %v1441, %v1443
        %v1445 = vrot.slane %v1437, %v1444
        %v1447 = vunpack.c.l.s4 1934713408
        %v1448 = vunpack.c.0.s8 %v1447
        %v1449 = vlaneseq
        %v1450 = vshrl.u32 %v1449, 7
        %v1451 = vsub.s32 %v1448, %v1450
        %v1452 = vrot.slane %v1438, %v1451
        %v1453 = vcombine.high %v1429, 0.0
        %v1454 = vcombine.high %v1436, 0.0
        %v1455 = vcombine.high %v1445, 0.0
        %v1456 = vcombine.high %v1452, 0.0
        %v1457 = vcombine.low %v1361, %v1368
        %v1459 = vunpack.c.l.s4 1983009808
        %v1460 = vunpack.c.0.s8 %v1459
        %v1461 = vlaneseq
        %v1462 = vshrl.u32 %v1461, 7
        %v1463 = vsub.s32 %v1460, %v1462
        %v1464 = vrot.slane %v1457, %v1463
        %v1465 = vcombine.low %v1385, %v1386
        %v1467 = vunpack.c.l.s4 1983009808
        %v1468 = vunpack.c.0.s8 %v1467
        %v1469 = vlaneseq
        %v1470 = vshrl.u32 %v1469, 7
        %v1471 = vsub.s32 %v1468, %v1470
        %v1472 = vrot.slane %v1465, %v1471
        %v1473 = vcombine.low %v1377, %v1384
        %v1475 = vunpack.c.l.s4 1983009808
        %v1476 = vunpack.c.0.s8 %v1475
        %v1477 = vlaneseq
        %v1478 = vshrl.u32 %v1477, 7
        %v1479 = vsub.s32 %v1476, %v1478
        %v1480 = vrot.slane %v1473, %v1479
        %v1481 = vcombine.low %v1387, %v1388
        %v1483 = vunpack.c.l.s4 1983009808
        %v1484 = vunpack.c.0.s8 %v1483
        %v1485 = vlaneseq
        %v1486 = vshrl.u32 %v1485, 7
        %v1487 = vsub.s32 %v1484, %v1486
        %v1488 = vrot.slane %v1481, %v1487
        %v1489 = vcombine.low %v1464, %v1472
        %v1490 = vcombine.high %v1464, %v1472
        %v1492 = vunpack.c.l.s4 1934713408
        %v1493 = vunpack.c.0.s8 %v1492
        %v1494 = vlaneseq
        %v1495 = vshrl.u32 %v1494, 7
        %v1496 = vsub.s32 %v1493, %v1495
        %v1497 = vrot.slane %v1489, %v1496
        %v1499 = vunpack.c.l.s4 1934713408
        %v1500 = vunpack.c.0.s8 %v1499
        %v1501 = vlaneseq
        %v1502 = vshrl.u32 %v1501, 7
        %v1503 = vsub.s32 %v1500, %v1502
        %v1504 = vrot.slane %v1490, %v1503
        %v1505 = vcombine.low %v1480, %v1488
        %v1506 = vcombine.high %v1480, %v1488
        %v1508 = vunpack.c.l.s4 1934713408
        %v1509 = vunpack.c.0.s8 %v1508
        %v1510 = vlaneseq
        %v1511 = vshrl.u32 %v1510, 7
        %v1512 = vsub.s32 %v1509, %v1511
        %v1513 = vrot.slane %v1505, %v1512
        %v1515 = vunpack.c.l.s4 1934713408
        %v1516 = vunpack.c.0.s8 %v1515
        %v1517 = vlaneseq
        %v1518 = vshrl.u32 %v1517, 7
        %v1519 = vsub.s32 %v1516, %v1518
        %v1520 = vrot.slane %v1506, %v1519
        %v1521 = vcombine.low %v1497, %v1513
        %v1522 = vcombine.high %v1497, %v1513
        %v1523 = vcombine.low %v1504, %v1520
        %v1524 = vcombine.high %v1504, %v1520
        %v1525 = vcombine.low %v1429, %v1436
        %v1527 = vunpack.c.l.s4 1983009808
        %v1528 = vunpack.c.0.s8 %v1527
        %v1529 = vlaneseq
        %v1530 = vshrl.u32 %v1529, 7
        %v1531 = vsub.s32 %v1528, %v1530
        %v1532 = vrot.slane %v1525, %v1531
        %v1533 = vcombine.low %v1453, %v1454
        %v1535 = vunpack.c.l.s4 1983009808
        %v1536 = vunpack.c.0.s8 %v1535
        %v1537 = vlaneseq
        %v1538 = vshrl.u32 %v1537, 7
        %v1539 = vsub.s32 %v1536, %v1538
        %v1540 = vrot.slane %v1533, %v1539
        %v1541 = vcombine.low %v1445, %v1452
        %v1543 = vunpack.c.l.s4 1983009808
        %v1544 = vunpack.c.0.s8 %v1543
        %v1545 = vlaneseq
        %v1546 = vshrl.u32 %v1545, 7
        %v1547 = vsub.s32 %v1544, %v1546
        %v1548 = vrot.slane %v1541, %v1547
        %v1549 = vcombine.low %v1455, %v1456
        %v1551 = vunpack.c.l.s4 1983009808
        %v1552 = vunpack.c.0.s8 %v1551
        %v1553 = vlaneseq
        %v1554 = vshrl.u32 %v1553, 7
        %v1555 = vsub.s32 %v1552, %v1554
        %v1556 = vrot.slane %v1549, %v1555
        %v1557 = vcombine.low %v1532, %v1540
        %v1558 = vcombine.high %v1532, %v1540
        %v1560 = vunpack.c.l.s4 1934713408
        %v1561 = vunpack.c.0.s8 %v1560
        %v1562 = vlaneseq
        %v1563 = vshrl.u32 %v1562, 7
        %v1564 = vsub.s32 %v1561, %v1563
        %v1565 = vrot.slane %v1557, %v1564
        %v1567 = vunpack.c.l.s4 1934713408
        %v1568 = vunpack.c.0.s8 %v1567
        %v1569 = vlaneseq
        %v1570 = vshrl.u32 %v1569, 7
        %v1571 = vsub.s32 %v1568, %v1570
        %v1572 = vrot.slane %v1558, %v1571
        %v1573 = vcombine.low %v1548, %v1556
        %v1574 = vcombine.high %v1548, %v1556
        %v1576 = vunpack.c.l.s4 1934713408
        %v1577 = vunpack.c.0.s8 %v1576
        %v1578 = vlaneseq
        %v1579 = vshrl.u32 %v1578, 7
        %v1580 = vsub.s32 %v1577, %v1579
        %v1581 = vrot.slane %v1573, %v1580
        %v1583 = vunpack.c.l.s4 1934713408
        %v1584 = vunpack.c.0.s8 %v1583
        %v1585 = vlaneseq
        %v1586 = vshrl.u32 %v1585, 7
        %v1587 = vsub.s32 %v1584, %v1586
        %v1588 = vrot.slane %v1574, %v1587
        %v1589 = vcombine.low %v1565, %v1581
        %v1590 = vcombine.high %v1565, %v1581
        %v1591 = vcombine.low %v1572, %v1588
        %v1592 = vcombine.high %v1572, %v1588
        %v1593 = vpack.c.bf16 %v1589, %v1521
        %v1594 = vpack.c.bf16 %v1590, %v1522
        %v1595 = vpack.c.bf16 %v1591, %v1523
        %v1596 = vpack.c.bf16 %v1592, %v1524
        %1599 = vrot.lane.b32.xlu0 %v988, 120
        %v1600 = vpop.permute.xlu0 %1599
        %1601 = vrot.lane.b32.xlu0 %v991, 120
        %v1602 = vpop.permute.xlu0 %1601
        %1605 = vrot.lane.b32.xlu0 %v988, 112
        %v1606 = vpop.permute.xlu0 %1605
        %1607 = vrot.lane.b32.xlu0 %v991, 112
        %v1608 = vpop.permute.xlu0 %1607
        %1611 = vrot.lane.b32.xlu0 %v988, 104
        %v1612 = vpop.permute.xlu0 %1611
        %1613 = vrot.lane.b32.xlu0 %v991, 104
        %v1614 = vpop.permute.xlu0 %1613
        %v1617 = vcombine.low %v988, %v1606
        %v1618 = vcombine.high %v988, %v1606
        %v1620 = vunpack.c.l.s4 1983009808
        %v1621 = vunpack.c.0.s8 %v1620
        %v1622 = vlaneseq
        %v1623 = vshrl.u32 %v1622, 7
        %v1624 = vsub.s32 %v1621, %v1623
        %v1625 = vrot.slane %v1617, %v1624
        %v1627 = vunpack.c.l.s4 1983009808
        %v1628 = vunpack.c.0.s8 %v1627
        %v1629 = vlaneseq
        %v1630 = vshrl.u32 %v1629, 7
        %v1631 = vsub.s32 %v1628, %v1630
        %v1632 = vrot.slane %v1618, %v1631
        %v1633 = vcombine.low %v1600, %v1612
        %v1634 = vcombine.high %v1600, %v1612
        %v1636 = vunpack.c.l.s4 1983009808
        %v1637 = vunpack.c.0.s8 %v1636
        %v1638 = vlaneseq
        %v1639 = vshrl.u32 %v1638, 7
        %v1640 = vsub.s32 %v1637, %v1639
        %v1641 = vrot.slane %v1633, %v1640
        %v1643 = vunpack.c.l.s4 1983009808
        %v1644 = vunpack.c.0.s8 %v1643
        %v1645 = vlaneseq
        %v1646 = vshrl.u32 %v1645, 7
        %v1647 = vsub.s32 %v1644, %v1646
        %v1648 = vrot.slane %v1634, %v1647
        %v1649 = vcombine.low %v1625, %v1641
        %v1650 = vcombine.high %v1625, %v1641
        %v1652 = vunpack.c.l.s4 1934713408
        %v1653 = vunpack.c.0.s8 %v1652
        %v1654 = vlaneseq
        %v1655 = vshrl.u32 %v1654, 7
        %v1656 = vsub.s32 %v1653, %v1655
        %v1657 = vrot.slane %v1649, %v1656
        %v1659 = vunpack.c.l.s4 1934713408
        %v1660 = vunpack.c.0.s8 %v1659
        %v1661 = vlaneseq
        %v1662 = vshrl.u32 %v1661, 7
        %v1663 = vsub.s32 %v1660, %v1662
        %v1664 = vrot.slane %v1650, %v1663
        %v1665 = vcombine.low %v1632, %v1648
        %v1666 = vcombine.high %v1632, %v1648
        %v1668 = vunpack.c.l.s4 1934713408
        %v1669 = vunpack.c.0.s8 %v1668
        %v1670 = vlaneseq
        %v1671 = vshrl.u32 %v1670, 7
        %v1672 = vsub.s32 %v1669, %v1671
        %v1673 = vrot.slane %v1665, %v1672
        %v1675 = vunpack.c.l.s4 1934713408
        %v1676 = vunpack.c.0.s8 %v1675
        %v1677 = vlaneseq
        %v1678 = vshrl.u32 %v1677, 7
        %v1679 = vsub.s32 %v1676, %v1678
        %v1680 = vrot.slane %v1666, %v1679
        %v1681 = vcombine.high %v1657, 0.0
        %v1682 = vcombine.high %v1664, 0.0
        %v1683 = vcombine.high %v1673, 0.0
        %v1684 = vcombine.high %v1680, 0.0
        %v1685 = vcombine.low %v991, %v1608
        %v1686 = vcombine.high %v991, %v1608
        %v1688 = vunpack.c.l.s4 1983009808
        %v1689 = vunpack.c.0.s8 %v1688
        %v1690 = vlaneseq
        %v1691 = vshrl.u32 %v1690, 7
        %v1692 = vsub.s32 %v1689, %v1691
        %v1693 = vrot.slane %v1685, %v1692
        %v1695 = vunpack.c.l.s4 1983009808
        %v1696 = vunpack.c.0.s8 %v1695
        %v1697 = vlaneseq
        %v1698 = vshrl.u32 %v1697, 7
        %v1699 = vsub.s32 %v1696, %v1698
        %v1700 = vrot.slane %v1686, %v1699
        %v1701 = vcombine.low %v1602, %v1614
        %v1702 = vcombine.high %v1602, %v1614
        %v1704 = vunpack.c.l.s4 1983009808
        %v1705 = vunpack.c.0.s8 %v1704
        %v1706 = vlaneseq
        %v1707 = vshrl.u32 %v1706, 7
        %v1708 = vsub.s32 %v1705, %v1707
        %v1709 = vrot.slane %v1701, %v1708
        %v1711 = vunpack.c.l.s4 1983009808
        %v1712 = vunpack.c.0.s8 %v1711
        %v1713 = vlaneseq
        %v1714 = vshrl.u32 %v1713, 7
        %v1715 = vsub.s32 %v1712, %v1714
        %v1716 = vrot.slane %v1702, %v1715
        %v1717 = vcombine.low %v1693, %v1709
        %v1718 = vcombine.high %v1693, %v1709
        %v1720 = vunpack.c.l.s4 1934713408
        %v1721 = vunpack.c.0.s8 %v1720
        %v1722 = vlaneseq
        %v1723 = vshrl.u32 %v1722, 7
        %v1724 = vsub.s32 %v1721, %v1723
        %v1725 = vrot.slane %v1717, %v1724
        %v1727 = vunpack.c.l.s4 1934713408
        %v1728 = vunpack.c.0.s8 %v1727
        %v1729 = vlaneseq
        %v1730 = vshrl.u32 %v1729, 7
        %v1731 = vsub.s32 %v1728, %v1730
        %v1732 = vrot.slane %v1718, %v1731
        %v1733 = vcombine.low %v1700, %v1716
        %v1734 = vcombine.high %v1700, %v1716
        %v1736 = vunpack.c.l.s4 1934713408
        %v1737 = vunpack.c.0.s8 %v1736
        %v1738 = vlaneseq
        %v1739 = vshrl.u32 %v1738, 7
        %v1740 = vsub.s32 %v1737, %v1739
        %v1741 = vrot.slane %v1733, %v1740
        %v1743 = vunpack.c.l.s4 1934713408
        %v1744 = vunpack.c.0.s8 %v1743
        %v1745 = vlaneseq
        %v1746 = vshrl.u32 %v1745, 7
        %v1747 = vsub.s32 %v1744, %v1746
        %v1748 = vrot.slane %v1734, %v1747
        %v1749 = vcombine.high %v1725, 0.0
        %v1750 = vcombine.high %v1732, 0.0
        %v1751 = vcombine.high %v1741, 0.0
        %v1752 = vcombine.high %v1748, 0.0
        %v1753 = vcombine.low %v1657, %v1664
        %v1755 = vunpack.c.l.s4 1983009808
        %v1756 = vunpack.c.0.s8 %v1755
        %v1757 = vlaneseq
        %v1758 = vshrl.u32 %v1757, 7
        %v1759 = vsub.s32 %v1756, %v1758
        %v1760 = vrot.slane %v1753, %v1759
        %v1761 = vcombine.low %v1681, %v1682
        %v1763 = vunpack.c.l.s4 1983009808
        %v1764 = vunpack.c.0.s8 %v1763
        %v1765 = vlaneseq
        %v1766 = vshrl.u32 %v1765, 7
        %v1767 = vsub.s32 %v1764, %v1766
        %v1768 = vrot.slane %v1761, %v1767
        %v1769 = vcombine.low %v1673, %v1680
        %v1771 = vunpack.c.l.s4 1983009808
        %v1772 = vunpack.c.0.s8 %v1771
        %v1773 = vlaneseq
        %v1774 = vshrl.u32 %v1773, 7
        %v1775 = vsub.s32 %v1772, %v1774
        %v1776 = vrot.slane %v1769, %v1775
        %v1777 = vcombine.low %v1683, %v1684
        %v1779 = vunpack.c.l.s4 1983009808
        %v1780 = vunpack.c.0.s8 %v1779
        %v1781 = vlaneseq
        %v1782 = vshrl.u32 %v1781, 7
        %v1783 = vsub.s32 %v1780, %v1782
        %v1784 = vrot.slane %v1777, %v1783
        %v1785 = vcombine.low %v1760, %v1768
        %v1786 = vcombine.high %v1760, %v1768
        %v1788 = vunpack.c.l.s4 1934713408
        %v1789 = vunpack.c.0.s8 %v1788
        %v1790 = vlaneseq
        %v1791 = vshrl.u32 %v1790, 7
        %v1792 = vsub.s32 %v1789, %v1791
        %v1793 = vrot.slane %v1785, %v1792
        %v1795 = vunpack.c.l.s4 1934713408
        %v1796 = vunpack.c.0.s8 %v1795
        %v1797 = vlaneseq
        %v1798 = vshrl.u32 %v1797, 7
        %v1799 = vsub.s32 %v1796, %v1798
        %v1800 = vrot.slane %v1786, %v1799
        %v1801 = vcombine.low %v1776, %v1784
        %v1802 = vcombine.high %v1776, %v1784
        %v1804 = vunpack.c.l.s4 1934713408
        %v1805 = vunpack.c.0.s8 %v1804
        %v1806 = vlaneseq
        %v1807 = vshrl.u32 %v1806, 7
        %v1808 = vsub.s32 %v1805, %v1807
        %v1809 = vrot.slane %v1801, %v1808
        %v1811 = vunpack.c.l.s4 1934713408
        %v1812 = vunpack.c.0.s8 %v1811
        %v1813 = vlaneseq
        %v1814 = vshrl.u32 %v1813, 7
        %v1815 = vsub.s32 %v1812, %v1814
        %v1816 = vrot.slane %v1802, %v1815
        %v1817 = vcombine.low %v1793, %v1809
        %v1818 = vcombine.high %v1793, %v1809
        %v1819 = vcombine.low %v1800, %v1816
        %v1820 = vcombine.high %v1800, %v1816
        %v1821 = vcombine.low %v1725, %v1732
        %v1823 = vunpack.c.l.s4 1983009808
        %v1824 = vunpack.c.0.s8 %v1823
        %v1825 = vlaneseq
        %v1826 = vshrl.u32 %v1825, 7
        %v1827 = vsub.s32 %v1824, %v1826
        %v1828 = vrot.slane %v1821, %v1827
        %v1829 = vcombine.low %v1749, %v1750
        %v1831 = vunpack.c.l.s4 1983009808
        %v1832 = vunpack.c.0.s8 %v1831
        %v1833 = vlaneseq
        %v1834 = vshrl.u32 %v1833, 7
        %v1835 = vsub.s32 %v1832, %v1834
        %v1836 = vrot.slane %v1829, %v1835
        %v1837 = vcombine.low %v1741, %v1748
        %v1839 = vunpack.c.l.s4 1983009808
        %v1840 = vunpack.c.0.s8 %v1839
        %v1841 = vlaneseq
        %v1842 = vshrl.u32 %v1841, 7
        %v1843 = vsub.s32 %v1840, %v1842
        %v1844 = vrot.slane %v1837, %v1843
        %v1845 = vcombine.low %v1751, %v1752
        %v1847 = vunpack.c.l.s4 1983009808
        %v1848 = vunpack.c.0.s8 %v1847
        %v1849 = vlaneseq
        %v1850 = vshrl.u32 %v1849, 7
        %v1851 = vsub.s32 %v1848, %v1850
        %v1852 = vrot.slane %v1845, %v1851
        %v1853 = vcombine.low %v1828, %v1836
        %v1854 = vcombine.high %v1828, %v1836
        %v1856 = vunpack.c.l.s4 1934713408
        %v1857 = vunpack.c.0.s8 %v1856
        %v1858 = vlaneseq
        %v1859 = vshrl.u32 %v1858, 7
        %v1860 = vsub.s32 %v1857, %v1859
        %v1861 = vrot.slane %v1853, %v1860
        %v1863 = vunpack.c.l.s4 1934713408
        %v1864 = vunpack.c.0.s8 %v1863
        %v1865 = vlaneseq
        %v1866 = vshrl.u32 %v1865, 7
        %v1867 = vsub.s32 %v1864, %v1866
        %v1868 = vrot.slane %v1854, %v1867
        %v1869 = vcombine.low %v1844, %v1852
        %v1870 = vcombine.high %v1844, %v1852
        %v1872 = vunpack.c.l.s4 1934713408
        %v1873 = vunpack.c.0.s8 %v1872
        %v1874 = vlaneseq
        %v1875 = vshrl.u32 %v1874, 7
        %v1876 = vsub.s32 %v1873, %v1875
        %v1877 = vrot.slane %v1869, %v1876
        %v1879 = vunpack.c.l.s4 1934713408
        %v1880 = vunpack.c.0.s8 %v1879
        %v1881 = vlaneseq
        %v1882 = vshrl.u32 %v1881, 7
        %v1883 = vsub.s32 %v1880, %v1882
        %v1884 = vrot.slane %v1870, %v1883
        %v1885 = vcombine.low %v1861, %v1877
        %v1886 = vcombine.high %v1861, %v1877
        %v1887 = vcombine.low %v1868, %v1884
        %v1888 = vcombine.high %v1868, %v1884
        %v1889 = vpack.c.bf16 %v1885, %v1817
        %v1890 = vpack.c.bf16 %v1886, %v1818
        %v1891 = vpack.c.bf16 %v1887, %v1819
        %v1892 = vpack.c.bf16 %v1888, %v1820
        %vm1893 = vcmask 64512
        %v1895 = vsel %vm1893, %v1297, 0
        %v1898 = vsel %vm1893, %v1593, 0
        %1900 = vmatprep.subr.bf16.mxu0 0
        %1901 = vmatpush1.bf16.xpose.msra.mxu0 %v1898
        %1902 = vmatprep.subr.bf16.mxu0 0
        %1903 = vmatpush1.bf16.xpose.msra.mxu0 0
        %1904 = vmatprep.subr.bf16.mxu0 0
        %1905 = vmatpush1.bf16.xpose.msra.mxu0 0
        %1906 = vmatprep.subr.bf16.mxu0 0
        %1907 = vmatpush1.bf16.xpose.msra.mxu0 0
        %1908 = vmatprep.subr.bf16.mxu0 0
        %1909 = vmatpush1.bf16.xpose.msra.mxu0 0
        %1910 = vmatprep.subr.bf16.mxu0 0
        %1911 = vmatpush1.bf16.xpose.msra.mxu0 0
        %1912 = vmatprep.subr.bf16.mxu0 0
        %1913 = vmatpush1.bf16.xpose.msra.mxu0 0
        %1914 = vmatprep.subr.bf16.mxu0 0
        %1915 = vmatpush1.bf16.xpose.msra.mxu0 0
        %1916 = vmatprep.subr.bf16.mxu0 0
        %1917 = vmatpush1.bf16.xpose.msra.mxu0 0
        %1918 = vmatprep.subr.bf16.mxu0 0
        %1919 = vmatpush1.bf16.xpose.msra.mxu0 0
        %1920 = vmatprep.subr.bf16.mxu0 0
        %1921 = vmatpush1.bf16.xpose.msra.mxu0 0
        %1922 = vmatprep.subr.bf16.mxu0 0
        %1923 = vmatpush1.bf16.xpose.msra.mxu0 0
        %1924 = vmatprep.subr.bf16.mxu0 0
        %1925 = vmatpush1.bf16.xpose.msra.mxu0 0
        %1926 = vmatprep.subr.bf16.mxu0 0
        %1927 = vmatpush1.bf16.xpose.msra.mxu0 0
        %1928 = vmatprep.subr.bf16.mxu0 0
        %1929 = vmatpush1.bf16.xpose.msra.mxu0 0
        %1930 = vmatprep.subr.bf16.mxu0 0
        %1931 = vmatpush1.bf16.xpose.msra.mxu0 0
        %1932 = vmatprep.mubr.bf16.mxu0 0
        %1933 = vmatmul.mubr.bf16.gmra.mrb[0].mxu0 %v1895
        %v1934 = vpop.f32.mrb[0].mxu0
        %v1935 = vadd.f32 0.0, %v1934
        %v1936 = vpop.f32.mrb[0].mxu0
        %v1937 = vpop.f32.mrb[0].mxu0
        %v1938 = vadd.f32 0.0, %v1937
        %v1939 = vpop.f32.mrb[0].mxu0
        %1940 = vdwg.mxu0
        %v1942 = vsel %vm1893, %v1298, 0
        %v1945 = vsel %vm1893, %v1594, 0
        %1947 = vmatprep.subr.bf16.mxu0 0
        %1948 = vmatpush1.bf16.xpose.msra.mxu0 %v1945
        %1949 = vmatprep.subr.bf16.mxu0 0
        %1950 = vmatpush1.bf16.xpose.msra.mxu0 0
        %1951 = vmatprep.subr.bf16.mxu0 0
        %1952 = vmatpush1.bf16.xpose.msra.mxu0 0
        %1953 = vmatprep.subr.bf16.mxu0 0
        %1954 = vmatpush1.bf16.xpose.msra.mxu0 0
        %1955 = vmatprep.subr.bf16.mxu0 0
        %1956 = vmatpush1.bf16.xpose.msra.mxu0 0
        %1957 = vmatprep.subr.bf16.mxu0 0
        %1958 = vmatpush1.bf16.xpose.msra.mxu0 0
        %1959 = vmatprep.subr.bf16.mxu0 0
        %1960 = vmatpush1.bf16.xpose.msra.mxu0 0
        %1961 = vmatprep.subr.bf16.mxu0 0
        %1962 = vmatpush1.bf16.xpose.msra.mxu0 0
        %1963 = vmatprep.subr.bf16.mxu0 0
        %1964 = vmatpush1.bf16.xpose.msra.mxu0 0
        %1965 = vmatprep.subr.bf16.mxu0 0
        %1966 = vmatpush1.bf16.xpose.msra.mxu0 0
        %1967 = vmatprep.subr.bf16.mxu0 0
        %1968 = vmatpush1.bf16.xpose.msra.mxu0 0
        %1969 = vmatprep.subr.bf16.mxu0 0
        %1970 = vmatpush1.bf16.xpose.msra.mxu0 0
        %1971 = vmatprep.subr.bf16.mxu0 0
        %1972 = vmatpush1.bf16.xpose.msra.mxu0 0
        %1973 = vmatprep.subr.bf16.mxu0 0
        %1974 = vmatpush1.bf16.xpose.msra.mxu0 0
        %1975 = vmatprep.subr.bf16.mxu0 0
        %1976 = vmatpush1.bf16.xpose.msra.mxu0 0
        %1977 = vmatprep.subr.bf16.mxu0 0
        %1978 = vmatpush1.bf16.xpose.msra.mxu0 0
        %1979 = vmatprep.mubr.bf16.mxu0 0
        %1980 = vmatmul.mubr.bf16.gmra.mrb[0].mxu0 %v1942
        %v1981 = vpop.f32.mrb[0].mxu0
        %v1982 = vadd.f32 0.0, %v1981
        %v1983 = vpop.f32.mrb[0].mxu0
        %v1984 = vpop.f32.mrb[0].mxu0
        %v1985 = vadd.f32 0.0, %v1984
        %v1986 = vpop.f32.mrb[0].mxu0
        %1987 = vdwg.mxu0
        %v1989 = vsel %vm1893, %v1299, 0
        %v1992 = vsel %vm1893, %v1595, 0
        %1994 = vmatprep.subr.bf16.mxu0 0
        %1995 = vmatpush1.bf16.xpose.msra.mxu0 %v1992
        %1996 = vmatprep.subr.bf16.mxu0 0
        %1997 = vmatpush1.bf16.xpose.msra.mxu0 0
        %1998 = vmatprep.subr.bf16.mxu0 0
        %1999 = vmatpush1.bf16.xpose.msra.mxu0 0
        %2000 = vmatprep.subr.bf16.mxu0 0
        %2001 = vmatpush1.bf16.xpose.msra.mxu0 0
        %2002 = vmatprep.subr.bf16.mxu0 0
        %2003 = vmatpush1.bf16.xpose.msra.mxu0 0
        %2004 = vmatprep.subr.bf16.mxu0 0
        %2005 = vmatpush1.bf16.xpose.msra.mxu0 0
        %2006 = vmatprep.subr.bf16.mxu0 0
        %2007 = vmatpush1.bf16.xpose.msra.mxu0 0
        %2008 = vmatprep.subr.bf16.mxu0 0
        %2009 = vmatpush1.bf16.xpose.msra.mxu0 0
        %2010 = vmatprep.subr.bf16.mxu0 0
        %2011 = vmatpush1.bf16.xpose.msra.mxu0 0
        %2012 = vmatprep.subr.bf16.mxu0 0
        %2013 = vmatpush1.bf16.xpose.msra.mxu0 0
        %2014 = vmatprep.subr.bf16.mxu0 0
        %2015 = vmatpush1.bf16.xpose.msra.mxu0 0
        %2016 = vmatprep.subr.bf16.mxu0 0
        %2017 = vmatpush1.bf16.xpose.msra.mxu0 0
        %2018 = vmatprep.subr.bf16.mxu0 0
        %2019 = vmatpush1.bf16.xpose.msra.mxu0 0
        %2020 = vmatprep.subr.bf16.mxu0 0
        %2021 = vmatpush1.bf16.xpose.msra.mxu0 0
        %2022 = vmatprep.subr.bf16.mxu0 0
        %2023 = vmatpush1.bf16.xpose.msra.mxu0 0
        %2024 = vmatprep.subr.bf16.mxu0 0
        %2025 = vmatpush1.bf16.xpose.msra.mxu0 0
        %2026 = vmatprep.mubr.bf16.mxu0 0
        %2027 = vmatmul.mubr.bf16.gmra.mrb[0].mxu0 %v1989
        %v2028 = vpop.f32.mrb[0].mxu0
        %v2029 = vadd.f32 0.0, %v2028
        %v2030 = vpop.f32.mrb[0].mxu0
        %v2031 = vpop.f32.mrb[0].mxu0
        %v2032 = vadd.f32 0.0, %v2031
        %v2033 = vpop.f32.mrb[0].mxu0
        %2034 = vdwg.mxu0
        %v2036 = vsel %vm1893, %v1300, 0
        %v2039 = vsel %vm1893, %v1596, 0
        %2041 = vmatprep.subr.bf16.mxu0 0
        %2042 = vmatpush1.bf16.xpose.msra.mxu0 %v2039
        %2043 = vmatprep.subr.bf16.mxu0 0
        %2044 = vmatpush1.bf16.xpose.msra.mxu0 0
        %2045 = vmatprep.subr.bf16.mxu0 0
        %2046 = vmatpush1.bf16.xpose.msra.mxu0 0
        %2047 = vmatprep.subr.bf16.mxu0 0
        %2048 = vmatpush1.bf16.xpose.msra.mxu0 0
        %2049 = vmatprep.subr.bf16.mxu0 0
        %2050 = vmatpush1.bf16.xpose.msra.mxu0 0
        %2051 = vmatprep.subr.bf16.mxu0 0
        %2052 = vmatpush1.bf16.xpose.msra.mxu0 0
        %2053 = vmatprep.subr.bf16.mxu0 0
        %2054 = vmatpush1.bf16.xpose.msra.mxu0 0
        %2055 = vmatprep.subr.bf16.mxu0 0
        %2056 = vmatpush1.bf16.xpose.msra.mxu0 0
        %2057 = vmatprep.subr.bf16.mxu0 0
        %2058 = vmatpush1.bf16.xpose.msra.mxu0 0
        %2059 = vmatprep.subr.bf16.mxu0 0
        %2060 = vmatpush1.bf16.xpose.msra.mxu0 0
        %2061 = vmatprep.subr.bf16.mxu0 0
        %2062 = vmatpush1.bf16.xpose.msra.mxu0 0
        %2063 = vmatprep.subr.bf16.mxu0 0
        %2064 = vmatpush1.bf16.xpose.msra.mxu0 0
        %2065 = vmatprep.subr.bf16.mxu0 0
        %2066 = vmatpush1.bf16.xpose.msra.mxu0 0
        %2067 = vmatprep.subr.bf16.mxu0 0
        %2068 = vmatpush1.bf16.xpose.msra.mxu0 0
        %2069 = vmatprep.subr.bf16.mxu0 0
        %2070 = vmatpush1.bf16.xpose.msra.mxu0 0
        %2071 = vmatprep.subr.bf16.mxu0 0
        %2072 = vmatpush1.bf16.xpose.msra.mxu0 0
        %2073 = vmatprep.mubr.bf16.mxu0 0
        %2074 = vmatmul.mubr.bf16.gmra.mrb[0].mxu0 %v2036
        %v2075 = vpop.f32.mrb[0].mxu0
        %v2076 = vadd.f32 0.0, %v2075
        %v2077 = vpop.f32.mrb[0].mxu0
        %v2078 = vpop.f32.mrb[0].mxu0
        %v2079 = vadd.f32 0.0, %v2078
        %v2080 = vpop.f32.mrb[0].mxu0
        %2081 = vdwg.mxu0
        %v2082 = vsel %vm1004, 1, 0
        %vm2083 = vcmp.eq.s32.totalorder %v2082, 1
        %v2084 = vsel %vm2083, %v1935, -1e+30
        %v2085 = vsel %vm2083, %v1938, -1e+30
        %v2086 = vsel %vm2083, %v1982, -1e+30
        %v2087 = vsel %vm2083, %v1985, -1e+30
        %v2088 = vsel %vm2083, %v2029, -1e+30
        %v2089 = vsel %vm2083, %v2032, -1e+30
        %v2090 = vsel %vm2083, %v2076, -1e+30
        %v2091 = vsel %vm2083, %v2079, -1e+30
        %vm2092 = vcmask 130048
        %v2093 = vsel %vm2092, %v2084, -inf
        %2094 = vmax.xlane.f32.xlu0 %v2093
        %v2095 = vpop.xlane.xlu0 %2094
        %v2096 = vsel %vm2092, %v2085, -inf
        %2097 = vmax.xlane.f32.xlu0 %v2096
        %v2098 = vpop.xlane.xlu0 %2097
        %v2099 = vsel %vm2092, %v2086, -inf
        %2100 = vmax.xlane.f32.xlu0 %v2099
        %v2101 = vpop.xlane.xlu0 %2100
        %v2102 = vsel %vm2092, %v2087, -inf
        %2103 = vmax.xlane.f32.xlu0 %v2102
        %v2104 = vpop.xlane.xlu0 %2103
        %v2105 = vsel %vm2092, %v2088, -inf
        %2106 = vmax.xlane.f32.xlu0 %v2105
        %v2107 = vpop.xlane.xlu0 %2106
        %v2108 = vsel %vm2092, %v2089, -inf
        %2109 = vmax.xlane.f32.xlu0 %v2108
        %v2110 = vpop.xlane.xlu0 %2109
        %v2111 = vsel %vm2092, %v2090, -inf
        %2112 = vmax.xlane.f32.xlu0 %v2111
        %v2113 = vpop.xlane.xlu0 %2112
        %v2114 = vsel %vm2092, %v2091, -inf
        %2115 = vmax.xlane.f32.xlu0 %v2114
        %v2116 = vpop.xlane.xlu0 %2115
        %v2117 = vsub.f32 %v2084, %v2095
        %v2118 = vsub.f32 %v2085, %v2098
        %v2119 = vsub.f32 %v2086, %v2101
        %v2120 = vsub.f32 %v2087, %v2104
        %v2121 = vsub.f32 %v2088, %v2107
        %v2122 = vsub.f32 %v2089, %v2110
        %v2123 = vsub.f32 %v2090, %v2113
        %v2124 = vsub.f32 %v2091, %v2116
        %v2125 = vmul.f32 %v2117, 1.442695
        %v2126 = vpow.pop %v2125
        %v2127 = vmul.f32 %v2118, 1.442695
        %v2128 = vpow.pop %v2127
        %v2129 = vmul.f32 %v2119, 1.442695
        %v2130 = vpow.pop %v2129
        %v2131 = vmul.f32 %v2120, 1.442695
        %v2132 = vpow.pop %v2131
        %v2133 = vmul.f32 %v2121, 1.442695
        %v2134 = vpow.pop %v2133
        %v2135 = vmul.f32 %v2122, 1.442695
        %v2136 = vpow.pop %v2135
        %v2137 = vmul.f32 %v2123, 1.442695
        %v2138 = vpow.pop %v2137
        %v2139 = vmul.f32 %v2124, 1.442695
        %v2140 = vpow.pop %v2139
        %v2141 = vsel %vm2092, %v2126, 0.0
        %2142 = vadd.xlane.f32.xlu0 %v2141
        %v2143 = vpop.xlane.xlu0 %2142
        %v2144 = vsel %vm2092, %v2128, 0.0
        %2145 = vadd.xlane.f32.xlu0 %v2144
        %v2146 = vpop.xlane.xlu0 %2145
        %v2147 = vsel %vm2092, %v2130, 0.0
        %2148 = vadd.xlane.f32.xlu0 %v2147
        %v2149 = vpop.xlane.xlu0 %2148
        %v2150 = vsel %vm2092, %v2132, 0.0
        %2151 = vadd.xlane.f32.xlu0 %v2150
        %v2152 = vpop.xlane.xlu0 %2151
        %v2153 = vsel %vm2092, %v2134, 0.0
        %2154 = vadd.xlane.f32.xlu0 %v2153
        %v2155 = vpop.xlane.xlu0 %2154
        %v2156 = vsel %vm2092, %v2136, 0.0
        %2157 = vadd.xlane.f32.xlu0 %v2156
        %v2158 = vpop.xlane.xlu0 %2157
        %v2159 = vsel %vm2092, %v2138, 0.0
        %2160 = vadd.xlane.f32.xlu0 %v2159
        %v2161 = vpop.xlane.xlu0 %2160
        %v2162 = vsel %vm2092, %v2140, 0.0
        %2163 = vadd.xlane.f32.xlu0 %v2162
        %v2164 = vpop.xlane.xlu0 %2163
        %v2165 = vrcp.pop %v2143
        %v2166 = vrcp.pop %v2146
        %v2167 = vrcp.pop %v2149
        %v2168 = vrcp.pop %v2152
        %v2169 = vrcp.pop %v2155
        %v2170 = vrcp.pop %v2158
        %v2171 = vrcp.pop %v2161
        %v2172 = vrcp.pop %v2164
        %v2173 = vmul.f32 %v2126, %v2165
        %v2174 = vmul.f32 %v2128, %v2166
        %v2175 = vmul.f32 %v2130, %v2167
        %v2176 = vmul.f32 %v2132, %v2168
        %v2177 = vmul.f32 %v2134, %v2169
        %v2178 = vmul.f32 %v2136, %v2170
        %v2179 = vmul.f32 %v2138, %v2171
        %v2180 = vmul.f32 %v2140, %v2172
        %v2181 = vpack.c.bf16 %v2174, %v2173
        %v2182 = vpack.c.bf16 %v2176, %v2175
        %v2183 = vpack.c.bf16 %v2178, %v2177
        %v2184 = vpack.c.bf16 %v2180, %v2179
        %v2186 = vsel %vm2092, %v2181, 0
        %2188 = vmatprep.subr.bf16.mxu0 0
        %2189 = vmatpush1.bf16.msra.mxu0 %v1889
        %2190 = vmatprep.subr.bf16.mxu0 0
        %2191 = vmatpush1.bf16.msra.mxu0 0
        %2192 = vmatprep.subr.bf16.mxu0 0
        %2193 = vmatpush1.bf16.msra.mxu0 0
        %2194 = vmatprep.subr.bf16.mxu0 0
        %2195 = vmatpush1.bf16.msra.mxu0 0
        %2196 = vmatprep.subr.bf16.mxu0 0
        %2197 = vmatpush1.bf16.msra.mxu0 0
        %2198 = vmatprep.subr.bf16.mxu0 0
        %2199 = vmatpush1.bf16.msra.mxu0 0
        %2200 = vmatprep.subr.bf16.mxu0 0
        %2201 = vmatpush1.bf16.msra.mxu0 0
        %2202 = vmatprep.subr.bf16.mxu0 0
        %2203 = vmatpush1.bf16.msra.mxu0 0
        %2204 = vmatprep.subr.bf16.mxu0 0
        %2205 = vmatpush1.bf16.msra.mxu0 0
        %2206 = vmatprep.subr.bf16.mxu0 0
        %2207 = vmatpush1.bf16.msra.mxu0 0
        %2208 = vmatprep.subr.bf16.mxu0 0
        %2209 = vmatpush1.bf16.msra.mxu0 0
        %2210 = vmatprep.subr.bf16.mxu0 0
        %2211 = vmatpush1.bf16.msra.mxu0 0
        %2212 = vmatprep.subr.bf16.mxu0 0
        %2213 = vmatpush1.bf16.msra.mxu0 0
        %2214 = vmatprep.subr.bf16.mxu0 0
        %2215 = vmatpush1.bf16.msra.mxu0 0
        %2216 = vmatprep.subr.bf16.mxu0 0
        %2217 = vmatpush1.bf16.msra.mxu0 0
        %2218 = vmatprep.subr.bf16.mxu0 0
        %2219 = vmatpush1.bf16.msra.mxu0 0
        %2220 = vmatprep.mubr.bf16.mxu0 0
        %2221 = vmatmul.mubr.bf16.gmra.mrb[0].mxu0 %v2186
        %v2222 = vpop.f32.mrb[0].mxu0
        %v2223 = vadd.f32 0.0, %v2222
        %v2224 = vpop.f32.mrb[0].mxu0
        %v2225 = vpop.f32.mrb[0].mxu0
        %v2226 = vadd.f32 0.0, %v2225
        %v2227 = vpop.f32.mrb[0].mxu0
        %2228 = vdwg.mxu0
        %v2230 = vsel %vm2092, %v2182, 0
        %2232 = vmatprep.subr.bf16.mxu0 0
        %2233 = vmatpush1.bf16.msra.mxu0 %v1890
        %2234 = vmatprep.subr.bf16.mxu0 0
        %2235 = vmatpush1.bf16.msra.mxu0 0
        %2236 = vmatprep.subr.bf16.mxu0 0
        %2237 = vmatpush1.bf16.msra.mxu0 0
        %2238 = vmatprep.subr.bf16.mxu0 0
        %2239 = vmatpush1.bf16.msra.mxu0 0
        %2240 = vmatprep.subr.bf16.mxu0 0
        %2241 = vmatpush1.bf16.msra.mxu0 0
        %2242 = vmatprep.subr.bf16.mxu0 0
        %2243 = vmatpush1.bf16.msra.mxu0 0
        %2244 = vmatprep.subr.bf16.mxu0 0
        %2245 = vmatpush1.bf16.msra.mxu0 0
        %2246 = vmatprep.subr.bf16.mxu0 0
        %2247 = vmatpush1.bf16.msra.mxu0 0
        %2248 = vmatprep.subr.bf16.mxu0 0
        %2249 = vmatpush1.bf16.msra.mxu0 0
        %2250 = vmatprep.subr.bf16.mxu0 0
        %2251 = vmatpush1.bf16.msra.mxu0 0
        %2252 = vmatprep.subr.bf16.mxu0 0
        %2253 = vmatpush1.bf16.msra.mxu0 0
        %2254 = vmatprep.subr.bf16.mxu0 0
        %2255 = vmatpush1.bf16.msra.mxu0 0
        %2256 = vmatprep.subr.bf16.mxu0 0
        %2257 = vmatpush1.bf16.msra.mxu0 0
        %2258 = vmatprep.subr.bf16.mxu0 0
        %2259 = vmatpush1.bf16.msra.mxu0 0
        %2260 = vmatprep.subr.bf16.mxu0 0
        %2261 = vmatpush1.bf16.msra.mxu0 0
        %2262 = vmatprep.subr.bf16.mxu0 0
        %2263 = vmatpush1.bf16.msra.mxu0 0
        %2264 = vmatprep.mubr.bf16.mxu0 0
        %2265 = vmatmul.mubr.bf16.gmra.mrb[0].mxu0 %v2230
        %v2266 = vpop.f32.mrb[0].mxu0
        %v2267 = vadd.f32 0.0, %v2266
        %v2268 = vpop.f32.mrb[0].mxu0
        %v2269 = vpop.f32.mrb[0].mxu0
        %v2270 = vadd.f32 0.0, %v2269
        %v2271 = vpop.f32.mrb[0].mxu0
        %2272 = vdwg.mxu0
        %v2274 = vsel %vm2092, %v2183, 0
        %2276 = vmatprep.subr.bf16.mxu0 0
        %2277 = vmatpush1.bf16.msra.mxu0 %v1891
        %2278 = vmatprep.subr.bf16.mxu0 0
        %2279 = vmatpush1.bf16.msra.mxu0 0
        %2280 = vmatprep.subr.bf16.mxu0 0
        %2281 = vmatpush1.bf16.msra.mxu0 0
        %2282 = vmatprep.subr.bf16.mxu0 0
        %2283 = vmatpush1.bf16.msra.mxu0 0
        %2284 = vmatprep.subr.bf16.mxu0 0
        %2285 = vmatpush1.bf16.msra.mxu0 0
        %2286 = vmatprep.subr.bf16.mxu0 0
        %2287 = vmatpush1.bf16.msra.mxu0 0
        %2288 = vmatprep.subr.bf16.mxu0 0
        %2289 = vmatpush1.bf16.msra.mxu0 0
        %2290 = vmatprep.subr.bf16.mxu0 0
        %2291 = vmatpush1.bf16.msra.mxu0 0
        %2292 = vmatprep.subr.bf16.mxu0 0
        %2293 = vmatpush1.bf16.msra.mxu0 0
        %2294 = vmatprep.subr.bf16.mxu0 0
        %2295 = vmatpush1.bf16.msra.mxu0 0
        %2296 = vmatprep.subr.bf16.mxu0 0
        %2297 = vmatpush1.bf16.msra.mxu0 0
        %2298 = vmatprep.subr.bf16.mxu0 0
        %2299 = vmatpush1.bf16.msra.mxu0 0
        %2300 = vmatprep.subr.bf16.mxu0 0
        %2301 = vmatpush1.bf16.msra.mxu0 0
        %2302 = vmatprep.subr.bf16.mxu0 0
        %2303 = vmatpush1.bf16.msra.mxu0 0
        %2304 = vmatprep.subr.bf16.mxu0 0
        %2305 = vmatpush1.bf16.msra.mxu0 0
        %2306 = vmatprep.subr.bf16.mxu0 0
        %2307 = vmatpush1.bf16.msra.mxu0 0
        %2308 = vmatprep.mubr.bf16.mxu0 0
        %2309 = vmatmul.mubr.bf16.gmra.mrb[0].mxu0 %v2274
        %v2310 = vpop.f32.mrb[0].mxu0
        %v2311 = vadd.f32 0.0, %v2310
        %v2312 = vpop.f32.mrb[0].mxu0
        %v2313 = vpop.f32.mrb[0].mxu0
        %v2314 = vadd.f32 0.0, %v2313
        %v2315 = vpop.f32.mrb[0].mxu0
        %2316 = vdwg.mxu0
        %v2318 = vsel %vm2092, %v2184, 0
        %2320 = vmatprep.subr.bf16.mxu0 0
        %2321 = vmatpush1.bf16.msra.mxu0 %v1892
        %2322 = vmatprep.subr.bf16.mxu0 0
        %2323 = vmatpush1.bf16.msra.mxu0 0
        %2324 = vmatprep.subr.bf16.mxu0 0
        %2325 = vmatpush1.bf16.msra.mxu0 0
        %2326 = vmatprep.subr.bf16.mxu0 0
        %2327 = vmatpush1.bf16.msra.mxu0 0
        %2328 = vmatprep.subr.bf16.mxu0 0
        %2329 = vmatpush1.bf16.msra.mxu0 0
        %2330 = vmatprep.subr.bf16.mxu0 0
        %2331 = vmatpush1.bf16.msra.mxu0 0
        %2332 = vmatprep.subr.bf16.mxu0 0
        %2333 = vmatpush1.bf16.msra.mxu0 0
        %2334 = vmatprep.subr.bf16.mxu0 0
        %2335 = vmatpush1.bf16.msra.mxu0 0
        %2336 = vmatprep.subr.bf16.mxu0 0
        %2337 = vmatpush1.bf16.msra.mxu0 0
        %2338 = vmatprep.subr.bf16.mxu0 0
        %2339 = vmatpush1.bf16.msra.mxu0 0
        %2340 = vmatprep.subr.bf16.mxu0 0
        %2341 = vmatpush1.bf16.msra.mxu0 0
        %2342 = vmatprep.subr.bf16.mxu0 0
        %2343 = vmatpush1.bf16.msra.mxu0 0
        %2344 = vmatprep.subr.bf16.mxu0 0
        %2345 = vmatpush1.bf16.msra.mxu0 0
        %2346 = vmatprep.subr.bf16.mxu0 0
        %2347 = vmatpush1.bf16.msra.mxu0 0
        %2348 = vmatprep.subr.bf16.mxu0 0
        %2349 = vmatpush1.bf16.msra.mxu0 0
        %2350 = vmatprep.subr.bf16.mxu0 0
        %2351 = vmatpush1.bf16.msra.mxu0 0
        %2352 = vmatprep.mubr.bf16.mxu0 0
        %2353 = vmatmul.mubr.bf16.gmra.mrb[0].mxu0 %v2318
        %v2354 = vpop.f32.mrb[0].mxu0
        %v2355 = vadd.f32 0.0, %v2354
        %v2356 = vpop.f32.mrb[0].mxu0
        %v2357 = vpop.f32.mrb[0].mxu0
        %v2358 = vadd.f32 0.0, %v2357
        %v2359 = vpop.f32.mrb[0].mxu0
        %2360 = vdwg.mxu0
        %v2361 = vcombine.low %v2223, %v2311
        %v2362 = vcombine.high %v2223, %v2311
        %v2364 = vunpack.c.l.s4 1983009808
        %v2365 = vunpack.c.0.s8 %v2364
        %v2366 = vlaneseq
        %v2367 = vshrl.u32 %v2366, 7
        %v2368 = vsub.s32 %v2365, %v2367
        %v2369 = vrot.slane %v2361, %v2368
        %v2371 = vunpack.c.l.s4 1983009808
        %v2372 = vunpack.c.0.s8 %v2371
        %v2373 = vlaneseq
        %v2374 = vshrl.u32 %v2373, 7
        %v2375 = vsub.s32 %v2372, %v2374
        %v2376 = vrot.slane %v2362, %v2375
        %v2377 = vcombine.low %v2267, %v2355
        %v2378 = vcombine.high %v2267, %v2355
        %v2380 = vunpack.c.l.s4 1983009808
        %v2381 = vunpack.c.0.s8 %v2380
        %v2382 = vlaneseq
        %v2383 = vshrl.u32 %v2382, 7
        %v2384 = vsub.s32 %v2381, %v2383
        %v2385 = vrot.slane %v2377, %v2384
        %v2387 = vunpack.c.l.s4 1983009808
        %v2388 = vunpack.c.0.s8 %v2387
        %v2389 = vlaneseq
        %v2390 = vshrl.u32 %v2389, 7
        %v2391 = vsub.s32 %v2388, %v2390
        %v2392 = vrot.slane %v2378, %v2391
        %v2393 = vcombine.low %v2369, %v2385
        %v2394 = vcombine.high %v2369, %v2385
        %v2396 = vunpack.c.l.s4 1934713408
        %v2397 = vunpack.c.0.s8 %v2396
        %v2398 = vlaneseq
        %v2399 = vshrl.u32 %v2398, 7
        %v2400 = vsub.s32 %v2397, %v2399
        %v2401 = vrot.slane %v2393, %v2400
        %v2403 = vunpack.c.l.s4 1934713408
        %v2404 = vunpack.c.0.s8 %v2403
        %v2405 = vlaneseq
        %v2406 = vshrl.u32 %v2405, 7
        %v2407 = vsub.s32 %v2404, %v2406
        %v2408 = vrot.slane %v2394, %v2407
        %v2409 = vcombine.low %v2376, %v2392
        %v2410 = vcombine.high %v2376, %v2392
        %v2412 = vunpack.c.l.s4 1934713408
        %v2413 = vunpack.c.0.s8 %v2412
        %v2414 = vlaneseq
        %v2415 = vshrl.u32 %v2414, 7
        %v2416 = vsub.s32 %v2413, %v2415
        %v2417 = vrot.slane %v2409, %v2416
        %v2419 = vunpack.c.l.s4 1934713408
        %v2420 = vunpack.c.0.s8 %v2419
        %v2421 = vlaneseq
        %v2422 = vshrl.u32 %v2421, 7
        %v2423 = vsub.s32 %v2420, %v2422
        %v2424 = vrot.slane %v2410, %v2423
        %v2425 = vcombine.high %v2401, 0.0
        %v2426 = vcombine.high %v2408, 0.0
        %v2427 = vcombine.high %v2417, 0.0
        %v2428 = vcombine.high %v2424, 0.0
        %v2429 = vcombine.low %v2226, %v2314
        %v2430 = vcombine.high %v2226, %v2314
        %v2432 = vunpack.c.l.s4 1983009808
        %v2433 = vunpack.c.0.s8 %v2432
        %v2434 = vlaneseq
        %v2435 = vshrl.u32 %v2434, 7
        %v2436 = vsub.s32 %v2433, %v2435
        %v2437 = vrot.slane %v2429, %v2436
        %v2439 = vunpack.c.l.s4 1983009808
        %v2440 = vunpack.c.0.s8 %v2439
        %v2441 = vlaneseq
        %v2442 = vshrl.u32 %v2441, 7
        %v2443 = vsub.s32 %v2440, %v2442
        %v2444 = vrot.slane %v2430, %v2443
        %v2445 = vcombine.low %v2270, %v2358
        %v2446 = vcombine.high %v2270, %v2358
        %v2448 = vunpack.c.l.s4 1983009808
        %v2449 = vunpack.c.0.s8 %v2448
        %v2450 = vlaneseq
        %v2451 = vshrl.u32 %v2450, 7
        %v2452 = vsub.s32 %v2449, %v2451
        %v2453 = vrot.slane %v2445, %v2452
        %v2455 = vunpack.c.l.s4 1983009808
        %v2456 = vunpack.c.0.s8 %v2455
        %v2457 = vlaneseq
        %v2458 = vshrl.u32 %v2457, 7
        %v2459 = vsub.s32 %v2456, %v2458
        %v2460 = vrot.slane %v2446, %v2459
        %v2461 = vcombine.low %v2437, %v2453
        %v2462 = vcombine.high %v2437, %v2453
        %v2464 = vunpack.c.l.s4 1934713408
        %v2465 = vunpack.c.0.s8 %v2464
        %v2466 = vlaneseq
        %v2467 = vshrl.u32 %v2466, 7
        %v2468 = vsub.s32 %v2465, %v2467
        %v2469 = vrot.slane %v2461, %v2468
        %v2471 = vunpack.c.l.s4 1934713408
        %v2472 = vunpack.c.0.s8 %v2471
        %v2473 = vlaneseq
        %v2474 = vshrl.u32 %v2473, 7
        %v2475 = vsub.s32 %v2472, %v2474
        %v2476 = vrot.slane %v2462, %v2475
        %v2477 = vcombine.low %v2444, %v2460
        %v2478 = vcombine.high %v2444, %v2460
        %v2480 = vunpack.c.l.s4 1934713408
        %v2481 = vunpack.c.0.s8 %v2480
        %v2482 = vlaneseq
        %v2483 = vshrl.u32 %v2482, 7
        %v2484 = vsub.s32 %v2481, %v2483
        %v2485 = vrot.slane %v2477, %v2484
        %v2487 = vunpack.c.l.s4 1934713408
        %v2488 = vunpack.c.0.s8 %v2487
        %v2489 = vlaneseq
        %v2490 = vshrl.u32 %v2489, 7
        %v2491 = vsub.s32 %v2488, %v2490
        %v2492 = vrot.slane %v2478, %v2491
        %v2493 = vcombine.high %v2469, 0.0
        %v2494 = vcombine.high %v2476, 0.0
        %v2495 = vcombine.high %v2485, 0.0
        %v2496 = vcombine.high %v2492, 0.0
        %v2497 = vcombine.low %v2401, %v2408
        %v2499 = vunpack.c.l.s4 1983009808
        %v2500 = vunpack.c.0.s8 %v2499
        %v2501 = vlaneseq
        %v2502 = vshrl.u32 %v2501, 7
        %v2503 = vsub.s32 %v2500, %v2502
        %v2504 = vrot.slane %v2497, %v2503
        %v2505 = vcombine.low %v2425, %v2426
        %v2507 = vunpack.c.l.s4 1983009808
        %v2508 = vunpack.c.0.s8 %v2507
        %v2509 = vlaneseq
        %v2510 = vshrl.u32 %v2509, 7
        %v2511 = vsub.s32 %v2508, %v2510
        %v2512 = vrot.slane %v2505, %v2511
        %v2513 = vcombine.low %v2417, %v2424
        %v2515 = vunpack.c.l.s4 1983009808
        %v2516 = vunpack.c.0.s8 %v2515
        %v2517 = vlaneseq
        %v2518 = vshrl.u32 %v2517, 7
        %v2519 = vsub.s32 %v2516, %v2518
        %v2520 = vrot.slane %v2513, %v2519
        %v2521 = vcombine.low %v2427, %v2428
        %v2523 = vunpack.c.l.s4 1983009808
        %v2524 = vunpack.c.0.s8 %v2523
        %v2525 = vlaneseq
        %v2526 = vshrl.u32 %v2525, 7
        %v2527 = vsub.s32 %v2524, %v2526
        %v2528 = vrot.slane %v2521, %v2527
        %v2529 = vcombine.low %v2504, %v2512
        %v2530 = vcombine.high %v2504, %v2512
        %v2532 = vunpack.c.l.s4 1934713408
        %v2533 = vunpack.c.0.s8 %v2532
        %v2534 = vlaneseq
        %v2535 = vshrl.u32 %v2534, 7
        %v2536 = vsub.s32 %v2533, %v2535
        %v2537 = vrot.slane %v2529, %v2536
        %v2539 = vunpack.c.l.s4 1934713408
        %v2540 = vunpack.c.0.s8 %v2539
        %v2541 = vlaneseq
        %v2542 = vshrl.u32 %v2541, 7
        %v2543 = vsub.s32 %v2540, %v2542
        %v2544 = vrot.slane %v2530, %v2543
        %v2545 = vcombine.low %v2520, %v2528
        %v2546 = vcombine.high %v2520, %v2528
        %v2548 = vunpack.c.l.s4 1934713408
        %v2549 = vunpack.c.0.s8 %v2548
        %v2550 = vlaneseq
        %v2551 = vshrl.u32 %v2550, 7
        %v2552 = vsub.s32 %v2549, %v2551
        %v2553 = vrot.slane %v2545, %v2552
        %v2555 = vunpack.c.l.s4 1934713408
        %v2556 = vunpack.c.0.s8 %v2555
        %v2557 = vlaneseq
        %v2558 = vshrl.u32 %v2557, 7
        %v2559 = vsub.s32 %v2556, %v2558
        %v2560 = vrot.slane %v2546, %v2559
        %v2561 = vcombine.low %v2537, %v2553
        %v2562 = vcombine.high %v2537, %v2553
        %v2563 = vcombine.low %v2544, %v2560
        %v2564 = vcombine.high %v2544, %v2560
        %v2565 = vcombine.low %v2469, %v2476
        %v2567 = vunpack.c.l.s4 1983009808
        %v2568 = vunpack.c.0.s8 %v2567
        %v2569 = vlaneseq
        %v2570 = vshrl.u32 %v2569, 7
        %v2571 = vsub.s32 %v2568, %v2570
        %v2572 = vrot.slane %v2565, %v2571
        %v2573 = vcombine.low %v2493, %v2494
        %v2575 = vunpack.c.l.s4 1983009808
        %v2576 = vunpack.c.0.s8 %v2575
        %v2577 = vlaneseq
        %v2578 = vshrl.u32 %v2577, 7
        %v2579 = vsub.s32 %v2576, %v2578
        %v2580 = vrot.slane %v2573, %v2579
        %v2581 = vcombine.low %v2485, %v2492
        %v2583 = vunpack.c.l.s4 1983009808
        %v2584 = vunpack.c.0.s8 %v2583
        %v2585 = vlaneseq
        %v2586 = vshrl.u32 %v2585, 7
        %v2587 = vsub.s32 %v2584, %v2586
        %v2588 = vrot.slane %v2581, %v2587
        %v2589 = vcombine.low %v2495, %v2496
        %v2591 = vunpack.c.l.s4 1983009808
        %v2592 = vunpack.c.0.s8 %v2591
        %v2593 = vlaneseq
        %v2594 = vshrl.u32 %v2593, 7
        %v2595 = vsub.s32 %v2592, %v2594
        %v2596 = vrot.slane %v2589, %v2595
        %v2597 = vcombine.low %v2572, %v2580
        %v2598 = vcombine.high %v2572, %v2580
        %v2600 = vunpack.c.l.s4 1934713408
        %v2601 = vunpack.c.0.s8 %v2600
        %v2602 = vlaneseq
        %v2603 = vshrl.u32 %v2602, 7
        %v2604 = vsub.s32 %v2601, %v2603
        %v2605 = vrot.slane %v2597, %v2604
        %v2607 = vunpack.c.l.s4 1934713408
        %v2608 = vunpack.c.0.s8 %v2607
        %v2609 = vlaneseq
        %v2610 = vshrl.u32 %v2609, 7
        %v2611 = vsub.s32 %v2608, %v2610
        %v2612 = vrot.slane %v2598, %v2611
        %v2613 = vcombine.low %v2588, %v2596
        %v2614 = vcombine.high %v2588, %v2596
        %v2616 = vunpack.c.l.s4 1934713408
        %v2617 = vunpack.c.0.s8 %v2616
        %v2618 = vlaneseq
        %v2619 = vshrl.u32 %v2618, 7
        %v2620 = vsub.s32 %v2617, %v2619
        %v2621 = vrot.slane %v2613, %v2620
        %v2623 = vunpack.c.l.s4 1934713408
        %v2624 = vunpack.c.0.s8 %v2623
        %v2625 = vlaneseq
        %v2626 = vshrl.u32 %v2625, 7
        %v2627 = vsub.s32 %v2624, %v2626
        %v2628 = vrot.slane %v2614, %v2627
        %v2629 = vcombine.low %v2605, %v2621
        %v2630 = vcombine.high %v2605, %v2621
        %v2631 = vcombine.low %v2612, %v2628
        %v2632 = vcombine.high %v2612, %v2628
        %2635 = vrot.lane.b32.xlu0 %v2562, 8
        %v2636 = vpop.permute.xlu0 %2635
        %2637 = vrot.lane.b32.xlu0 %v2630, 8
        %v2638 = vpop.permute.xlu0 %2637
        %2643 = vrot.lane.b32.xlu0 %v2563, 16
        %v2644 = vpop.permute.xlu0 %2643
        %2645 = vrot.lane.b32.xlu0 %v2631, 16
        %v2646 = vpop.permute.xlu0 %2645
        %2651 = vrot.lane.b32.xlu0 %v2564, 24
        %v2652 = vpop.permute.xlu0 %2651
        %2653 = vrot.lane.b32.xlu0 %v2632, 24
        %v2654 = vpop.permute.xlu0 %2653
        %v2657 = vsel %vm1893, %v2561, %v2636
        %v2658 = vsel %vm1893, %v2629, %v2638
        %v2659 = vsel %vm2092, %v2657, %v2644
        %v2660 = vsel %vm2092, %v2658, %v2646
        %vm2661 = vcmask 195584
        %v2662 = vsel %vm2661, %v2659, %v2652
        %v2663 = vsel %vm2661, %v2660, %v2654
        %v2664 = vsel %vm2092, %v2173, 0.0
        %v2665 = vsel %vm2092, %v2175, 0.0
        %v2666 = vadd.f32 %v2664, %v2665
        %v2667 = vsel %vm2092, %v2177, 0.0
        %v2668 = vadd.f32 %v2666, %v2667
        %v2669 = vsel %vm2092, %v2179, 0.0
        %v2670 = vadd.f32 %v2668, %v2669
        %v2671 = vsel %vm2092, %v2174, 0.0
        %v2672 = vsel %vm2092, %v2176, 0.0
        %v2673 = vadd.f32 %v2671, %v2672
        %v2674 = vsel %vm2092, %v2178, 0.0
        %v2675 = vadd.f32 %v2673, %v2674
        %v2676 = vsel %vm2092, %v2180, 0.0
        %v2677 = vadd.f32 %v2675, %v2676
        %v2678 = vrcp.pop 4.0
        %v2679 = vmul.f32 %v2670, %v2678
        %v2680 = vmul.f32 %v2677, %v2678
        %2683 = vrot.lane.b32.xlu0 %v852, 120
        %v2684 = vpop.permute.xlu0 %2683
        %2685 = vrot.lane.b32.xlu0 %v855, 120
        %v2686 = vpop.permute.xlu0 %2685
        %2689 = vrot.lane.b32.xlu0 %v852, 112
        %v2690 = vpop.permute.xlu0 %2689
        %2691 = vrot.lane.b32.xlu0 %v855, 112
        %v2692 = vpop.permute.xlu0 %2691
        %2695 = vrot.lane.b32.xlu0 %v852, 104
        %v2696 = vpop.permute.xlu0 %2695
        %2697 = vrot.lane.b32.xlu0 %v855, 104
        %v2698 = vpop.permute.xlu0 %2697
        %v2701 = vcombine.low %v852, %v2690
        %v2702 = vcombine.high %v852, %v2690
        %v2704 = vunpack.c.l.s4 1983009808
        %v2705 = vunpack.c.0.s8 %v2704
        %v2706 = vlaneseq
        %v2707 = vshrl.u32 %v2706, 7
        %v2708 = vsub.s32 %v2705, %v2707
        %v2709 = vrot.slane %v2701, %v2708
        %v2711 = vunpack.c.l.s4 1983009808
        %v2712 = vunpack.c.0.s8 %v2711
        %v2713 = vlaneseq
        %v2714 = vshrl.u32 %v2713, 7
        %v2715 = vsub.s32 %v2712, %v2714
        %v2716 = vrot.slane %v2702, %v2715
        %v2717 = vcombine.low %v2684, %v2696
        %v2718 = vcombine.high %v2684, %v2696
        %v2720 = vunpack.c.l.s4 1983009808
        %v2721 = vunpack.c.0.s8 %v2720
        %v2722 = vlaneseq
        %v2723 = vshrl.u32 %v2722, 7
        %v2724 = vsub.s32 %v2721, %v2723
        %v2725 = vrot.slane %v2717, %v2724
        %v2727 = vunpack.c.l.s4 1983009808
        %v2728 = vunpack.c.0.s8 %v2727
        %v2729 = vlaneseq
        %v2730 = vshrl.u32 %v2729, 7
        %v2731 = vsub.s32 %v2728, %v2730
        %v2732 = vrot.slane %v2718, %v2731
        %v2733 = vcombine.low %v2709, %v2725
        %v2734 = vcombine.high %v2709, %v2725
        %v2736 = vunpack.c.l.s4 1934713408
        %v2737 = vunpack.c.0.s8 %v2736
        %v2738 = vlaneseq
        %v2739 = vshrl.u32 %v2738, 7
        %v2740 = vsub.s32 %v2737, %v2739
        %v2741 = vrot.slane %v2733, %v2740
        %v2743 = vunpack.c.l.s4 1934713408
        %v2744 = vunpack.c.0.s8 %v2743
        %v2745 = vlaneseq
        %v2746 = vshrl.u32 %v2745, 7
        %v2747 = vsub.s32 %v2744, %v2746
        %v2748 = vrot.slane %v2734, %v2747
        %v2749 = vcombine.low %v2716, %v2732
        %v2750 = vcombine.high %v2716, %v2732
        %v2752 = vunpack.c.l.s4 1934713408
        %v2753 = vunpack.c.0.s8 %v2752
        %v2754 = vlaneseq
        %v2755 = vshrl.u32 %v2754, 7
        %v2756 = vsub.s32 %v2753, %v2755
        %v2757 = vrot.slane %v2749, %v2756
        %v2759 = vunpack.c.l.s4 1934713408
        %v2760 = vunpack.c.0.s8 %v2759
        %v2761 = vlaneseq
        %v2762 = vshrl.u32 %v2761, 7
        %v2763 = vsub.s32 %v2760, %v2762
        %v2764 = vrot.slane %v2750, %v2763
        %v2765 = vcombine.high %v2741, 0.0
        %v2766 = vcombine.high %v2748, 0.0
        %v2767 = vcombine.high %v2757, 0.0
        %v2768 = vcombine.high %v2764, 0.0
        %v2769 = vcombine.low %v855, %v2692
        %v2770 = vcombine.high %v855, %v2692
        %v2772 = vunpack.c.l.s4 1983009808
        %v2773 = vunpack.c.0.s8 %v2772
        %v2774 = vlaneseq
        %v2775 = vshrl.u32 %v2774, 7
        %v2776 = vsub.s32 %v2773, %v2775
        %v2777 = vrot.slane %v2769, %v2776
        %v2779 = vunpack.c.l.s4 1983009808
        %v2780 = vunpack.c.0.s8 %v2779
        %v2781 = vlaneseq
        %v2782 = vshrl.u32 %v2781, 7
        %v2783 = vsub.s32 %v2780, %v2782
        %v2784 = vrot.slane %v2770, %v2783
        %v2785 = vcombine.low %v2686, %v2698
        %v2786 = vcombine.high %v2686, %v2698
        %v2788 = vunpack.c.l.s4 1983009808
        %v2789 = vunpack.c.0.s8 %v2788
        %v2790 = vlaneseq
        %v2791 = vshrl.u32 %v2790, 7
        %v2792 = vsub.s32 %v2789, %v2791
        %v2793 = vrot.slane %v2785, %v2792
        %v2795 = vunpack.c.l.s4 1983009808
        %v2796 = vunpack.c.0.s8 %v2795
        %v2797 = vlaneseq
        %v2798 = vshrl.u32 %v2797, 7
        %v2799 = vsub.s32 %v2796, %v2798
        %v2800 = vrot.slane %v2786, %v2799
        %v2801 = vcombine.low %v2777, %v2793
        %v2802 = vcombine.high %v2777, %v2793
        %v2804 = vunpack.c.l.s4 1934713408
        %v2805 = vunpack.c.0.s8 %v2804
        %v2806 = vlaneseq
        %v2807 = vshrl.u32 %v2806, 7
        %v2808 = vsub.s32 %v2805, %v2807
        %v2809 = vrot.slane %v2801, %v2808
        %v2811 = vunpack.c.l.s4 1934713408
        %v2812 = vunpack.c.0.s8 %v2811
        %v2813 = vlaneseq
        %v2814 = vshrl.u32 %v2813, 7
        %v2815 = vsub.s32 %v2812, %v2814
        %v2816 = vrot.slane %v2802, %v2815
        %v2817 = vcombine.low %v2784, %v2800
        %v2818 = vcombine.high %v2784, %v2800
        %v2820 = vunpack.c.l.s4 1934713408
        %v2821 = vunpack.c.0.s8 %v2820
        %v2822 = vlaneseq
        %v2823 = vshrl.u32 %v2822, 7
        %v2824 = vsub.s32 %v2821, %v2823
        %v2825 = vrot.slane %v2817, %v2824
        %v2827 = vunpack.c.l.s4 1934713408
        %v2828 = vunpack.c.0.s8 %v2827
        %v2829 = vlaneseq
        %v2830 = vshrl.u32 %v2829, 7
        %v2831 = vsub.s32 %v2828, %v2830
        %v2832 = vrot.slane %v2818, %v2831
        %v2833 = vcombine.high %v2809, 0.0
        %v2834 = vcombine.high %v2816, 0.0
        %v2835 = vcombine.high %v2825, 0.0
        %v2836 = vcombine.high %v2832, 0.0
        %v2837 = vcombine.low %v2741, %v2748
        %v2839 = vunpack.c.l.s4 1983009808
        %v2840 = vunpack.c.0.s8 %v2839
        %v2841 = vlaneseq
        %v2842 = vshrl.u32 %v2841, 7
        %v2843 = vsub.s32 %v2840, %v2842
        %v2844 = vrot.slane %v2837, %v2843
        %v2845 = vcombine.low %v2765, %v2766
        %v2847 = vunpack.c.l.s4 1983009808
        %v2848 = vunpack.c.0.s8 %v2847
        %v2849 = vlaneseq
        %v2850 = vshrl.u32 %v2849, 7
        %v2851 = vsub.s32 %v2848, %v2850
        %v2852 = vrot.slane %v2845, %v2851
        %v2853 = vcombine.low %v2757, %v2764
        %v2855 = vunpack.c.l.s4 1983009808
        %v2856 = vunpack.c.0.s8 %v2855
        %v2857 = vlaneseq
        %v2858 = vshrl.u32 %v2857, 7
        %v2859 = vsub.s32 %v2856, %v2858
        %v2860 = vrot.slane %v2853, %v2859
        %v2861 = vcombine.low %v2767, %v2768
        %v2863 = vunpack.c.l.s4 1983009808
        %v2864 = vunpack.c.0.s8 %v2863
        %v2865 = vlaneseq
        %v2866 = vshrl.u32 %v2865, 7
        %v2867 = vsub.s32 %v2864, %v2866
        %v2868 = vrot.slane %v2861, %v2867
        %v2869 = vcombine.low %v2844, %v2852
        %v2870 = vcombine.high %v2844, %v2852
        %v2872 = vunpack.c.l.s4 1934713408
        %v2873 = vunpack.c.0.s8 %v2872
        %v2874 = vlaneseq
        %v2875 = vshrl.u32 %v2874, 7
        %v2876 = vsub.s32 %v2873, %v2875
        %v2877 = vrot.slane %v2869, %v2876
        %v2879 = vunpack.c.l.s4 1934713408
        %v2880 = vunpack.c.0.s8 %v2879
        %v2881 = vlaneseq
        %v2882 = vshrl.u32 %v2881, 7
        %v2883 = vsub.s32 %v2880, %v2882
        %v2884 = vrot.slane %v2870, %v2883
        %v2885 = vcombine.low %v2860, %v2868
        %v2886 = vcombine.high %v2860, %v2868
        %v2888 = vunpack.c.l.s4 1934713408
        %v2889 = vunpack.c.0.s8 %v2888
        %v2890 = vlaneseq
        %v2891 = vshrl.u32 %v2890, 7
        %v2892 = vsub.s32 %v2889, %v2891
        %v2893 = vrot.slane %v2885, %v2892
        %v2895 = vunpack.c.l.s4 1934713408
        %v2896 = vunpack.c.0.s8 %v2895
        %v2897 = vlaneseq
        %v2898 = vshrl.u32 %v2897, 7
        %v2899 = vsub.s32 %v2896, %v2898
        %v2900 = vrot.slane %v2886, %v2899
        %v2901 = vcombine.low %v2877, %v2893
        %v2902 = vcombine.high %v2877, %v2893
        %v2903 = vcombine.low %v2884, %v2900
        %v2904 = vcombine.high %v2884, %v2900
        %v2905 = vcombine.low %v2809, %v2816
        %v2907 = vunpack.c.l.s4 1983009808
        %v2908 = vunpack.c.0.s8 %v2907
        %v2909 = vlaneseq
        %v2910 = vshrl.u32 %v2909, 7
        %v2911 = vsub.s32 %v2908, %v2910
        %v2912 = vrot.slane %v2905, %v2911
        %v2913 = vcombine.low %v2833, %v2834
        %v2915 = vunpack.c.l.s4 1983009808
        %v2916 = vunpack.c.0.s8 %v2915
        %v2917 = vlaneseq
        %v2918 = vshrl.u32 %v2917, 7
        %v2919 = vsub.s32 %v2916, %v2918
        %v2920 = vrot.slane %v2913, %v2919
        %v2921 = vcombine.low %v2825, %v2832
        %v2923 = vunpack.c.l.s4 1983009808
        %v2924 = vunpack.c.0.s8 %v2923
        %v2925 = vlaneseq
        %v2926 = vshrl.u32 %v2925, 7
        %v2927 = vsub.s32 %v2924, %v2926
        %v2928 = vrot.slane %v2921, %v2927
        %v2929 = vcombine.low %v2835, %v2836
        %v2931 = vunpack.c.l.s4 1983009808
        %v2932 = vunpack.c.0.s8 %v2931
        %v2933 = vlaneseq
        %v2934 = vshrl.u32 %v2933, 7
        %v2935 = vsub.s32 %v2932, %v2934
        %v2936 = vrot.slane %v2929, %v2935
        %v2937 = vcombine.low %v2912, %v2920
        %v2938 = vcombine.high %v2912, %v2920
        %v2940 = vunpack.c.l.s4 1934713408
        %v2941 = vunpack.c.0.s8 %v2940
        %v2942 = vlaneseq
        %v2943 = vshrl.u32 %v2942, 7
        %v2944 = vsub.s32 %v2941, %v2943
        %v2945 = vrot.slane %v2937, %v2944
        %v2947 = vunpack.c.l.s4 1934713408
        %v2948 = vunpack.c.0.s8 %v2947
        %v2949 = vlaneseq
        %v2950 = vshrl.u32 %v2949, 7
        %v2951 = vsub.s32 %v2948, %v2950
        %v2952 = vrot.slane %v2938, %v2951
        %v2953 = vcombine.low %v2928, %v2936
        %v2954 = vcombine.high %v2928, %v2936
        %v2956 = vunpack.c.l.s4 1934713408
        %v2957 = vunpack.c.0.s8 %v2956
        %v2958 = vlaneseq
        %v2959 = vshrl.u32 %v2958, 7
        %v2960 = vsub.s32 %v2957, %v2959
        %v2961 = vrot.slane %v2953, %v2960
        %v2963 = vunpack.c.l.s4 1934713408
        %v2964 = vunpack.c.0.s8 %v2963
        %v2965 = vlaneseq
        %v2966 = vshrl.u32 %v2965, 7
        %v2967 = vsub.s32 %v2964, %v2966
        %v2968 = vrot.slane %v2954, %v2967
        %v2969 = vcombine.low %v2945, %v2961
        %v2970 = vcombine.high %v2945, %v2961
        %v2971 = vcombine.low %v2952, %v2968
        %v2972 = vcombine.high %v2952, %v2968
        %v2973 = vpack.c.bf16 %v2969, %v2901
        %v2974 = vpack.c.bf16 %v2970, %v2902
        %v2975 = vpack.c.bf16 %v2971, %v2903
        %v2976 = vpack.c.bf16 %v2972, %v2904
        %2979 = vrot.lane.b32.xlu0 %v924, 120
        %v2980 = vpop.permute.xlu0 %2979
        %2981 = vrot.lane.b32.xlu0 %v927, 120
        %v2982 = vpop.permute.xlu0 %2981
        %2985 = vrot.lane.b32.xlu0 %v924, 112
        %v2986 = vpop.permute.xlu0 %2985
        %2987 = vrot.lane.b32.xlu0 %v927, 112
        %v2988 = vpop.permute.xlu0 %2987
        %2991 = vrot.lane.b32.xlu0 %v924, 104
        %v2992 = vpop.permute.xlu0 %2991
        %2993 = vrot.lane.b32.xlu0 %v927, 104
        %v2994 = vpop.permute.xlu0 %2993
        %v2997 = vcombine.low %v924, %v2986
        %v2998 = vcombine.high %v924, %v2986
        %v3000 = vunpack.c.l.s4 1983009808
        %v3001 = vunpack.c.0.s8 %v3000
        %v3002 = vlaneseq
        %v3003 = vshrl.u32 %v3002, 7
        %v3004 = vsub.s32 %v3001, %v3003
        %v3005 = vrot.slane %v2997, %v3004
        %v3007 = vunpack.c.l.s4 1983009808
        %v3008 = vunpack.c.0.s8 %v3007
        %v3009 = vlaneseq
        %v3010 = vshrl.u32 %v3009, 7
        %v3011 = vsub.s32 %v3008, %v3010
        %v3012 = vrot.slane %v2998, %v3011
        %v3013 = vcombine.low %v2980, %v2992
        %v3014 = vcombine.high %v2980, %v2992
        %v3016 = vunpack.c.l.s4 1983009808
        %v3017 = vunpack.c.0.s8 %v3016
        %v3018 = vlaneseq
        %v3019 = vshrl.u32 %v3018, 7
        %v3020 = vsub.s32 %v3017, %v3019
        %v3021 = vrot.slane %v3013, %v3020
        %v3023 = vunpack.c.l.s4 1983009808
        %v3024 = vunpack.c.0.s8 %v3023
        %v3025 = vlaneseq
        %v3026 = vshrl.u32 %v3025, 7
        %v3027 = vsub.s32 %v3024, %v3026
        %v3028 = vrot.slane %v3014, %v3027
        %v3029 = vcombine.low %v3005, %v3021
        %v3030 = vcombine.high %v3005, %v3021
        %v3032 = vunpack.c.l.s4 1934713408
        %v3033 = vunpack.c.0.s8 %v3032
        %v3034 = vlaneseq
        %v3035 = vshrl.u32 %v3034, 7
        %v3036 = vsub.s32 %v3033, %v3035
        %v3037 = vrot.slane %v3029, %v3036
        %v3039 = vunpack.c.l.s4 1934713408
        %v3040 = vunpack.c.0.s8 %v3039
        %v3041 = vlaneseq
        %v3042 = vshrl.u32 %v3041, 7
        %v3043 = vsub.s32 %v3040, %v3042
        %v3044 = vrot.slane %v3030, %v3043
        %v3045 = vcombine.low %v3012, %v3028
        %v3046 = vcombine.high %v3012, %v3028
        %v3048 = vunpack.c.l.s4 1934713408
        %v3049 = vunpack.c.0.s8 %v3048
        %v3050 = vlaneseq
        %v3051 = vshrl.u32 %v3050, 7
        %v3052 = vsub.s32 %v3049, %v3051
        %v3053 = vrot.slane %v3045, %v3052
        %v3055 = vunpack.c.l.s4 1934713408
        %v3056 = vunpack.c.0.s8 %v3055
        %v3057 = vlaneseq
        %v3058 = vshrl.u32 %v3057, 7
        %v3059 = vsub.s32 %v3056, %v3058
        %v3060 = vrot.slane %v3046, %v3059
        %v3061 = vcombine.high %v3037, 0.0
        %v3062 = vcombine.high %v3044, 0.0
        %v3063 = vcombine.high %v3053, 0.0
        %v3064 = vcombine.high %v3060, 0.0
        %v3065 = vcombine.low %v927, %v2988
        %v3066 = vcombine.high %v927, %v2988
        %v3068 = vunpack.c.l.s4 1983009808
        %v3069 = vunpack.c.0.s8 %v3068
        %v3070 = vlaneseq
        %v3071 = vshrl.u32 %v3070, 7
        %v3072 = vsub.s32 %v3069, %v3071
        %v3073 = vrot.slane %v3065, %v3072
        %v3075 = vunpack.c.l.s4 1983009808
        %v3076 = vunpack.c.0.s8 %v3075
        %v3077 = vlaneseq
        %v3078 = vshrl.u32 %v3077, 7
        %v3079 = vsub.s32 %v3076, %v3078
        %v3080 = vrot.slane %v3066, %v3079
        %v3081 = vcombine.low %v2982, %v2994
        %v3082 = vcombine.high %v2982, %v2994
        %v3084 = vunpack.c.l.s4 1983009808
        %v3085 = vunpack.c.0.s8 %v3084
        %v3086 = vlaneseq
        %v3087 = vshrl.u32 %v3086, 7
        %v3088 = vsub.s32 %v3085, %v3087
        %v3089 = vrot.slane %v3081, %v3088
        %v3091 = vunpack.c.l.s4 1983009808
        %v3092 = vunpack.c.0.s8 %v3091
        %v3093 = vlaneseq
        %v3094 = vshrl.u32 %v3093, 7
        %v3095 = vsub.s32 %v3092, %v3094
        %v3096 = vrot.slane %v3082, %v3095
        %v3097 = vcombine.low %v3073, %v3089
        %v3098 = vcombine.high %v3073, %v3089
        %v3100 = vunpack.c.l.s4 1934713408
        %v3101 = vunpack.c.0.s8 %v3100
        %v3102 = vlaneseq
        %v3103 = vshrl.u32 %v3102, 7
        %v3104 = vsub.s32 %v3101, %v3103
        %v3105 = vrot.slane %v3097, %v3104
        %v3107 = vunpack.c.l.s4 1934713408
        %v3108 = vunpack.c.0.s8 %v3107
        %v3109 = vlaneseq
        %v3110 = vshrl.u32 %v3109, 7
        %v3111 = vsub.s32 %v3108, %v3110
        %v3112 = vrot.slane %v3098, %v3111
        %v3113 = vcombine.low %v3080, %v3096
        %v3114 = vcombine.high %v3080, %v3096
        %v3116 = vunpack.c.l.s4 1934713408
        %v3117 = vunpack.c.0.s8 %v3116
        %v3118 = vlaneseq
        %v3119 = vshrl.u32 %v3118, 7
        %v3120 = vsub.s32 %v3117, %v3119
        %v3121 = vrot.slane %v3113, %v3120
        %v3123 = vunpack.c.l.s4 1934713408
        %v3124 = vunpack.c.0.s8 %v3123
        %v3125 = vlaneseq
        %v3126 = vshrl.u32 %v3125, 7
        %v3127 = vsub.s32 %v3124, %v3126
        %v3128 = vrot.slane %v3114, %v3127
        %v3129 = vcombine.high %v3105, 0.0
        %v3130 = vcombine.high %v3112, 0.0
        %v3131 = vcombine.high %v3121, 0.0
        %v3132 = vcombine.high %v3128, 0.0
        %v3133 = vcombine.low %v3037, %v3044
        %v3135 = vunpack.c.l.s4 1983009808
        %v3136 = vunpack.c.0.s8 %v3135
        %v3137 = vlaneseq
        %v3138 = vshrl.u32 %v3137, 7
        %v3139 = vsub.s32 %v3136, %v3138
        %v3140 = vrot.slane %v3133, %v3139
        %v3141 = vcombine.low %v3061, %v3062
        %v3143 = vunpack.c.l.s4 1983009808
        %v3144 = vunpack.c.0.s8 %v3143
        %v3145 = vlaneseq
        %v3146 = vshrl.u32 %v3145, 7
        %v3147 = vsub.s32 %v3144, %v3146
        %v3148 = vrot.slane %v3141, %v3147
        %v3149 = vcombine.low %v3053, %v3060
        %v3151 = vunpack.c.l.s4 1983009808
        %v3152 = vunpack.c.0.s8 %v3151
        %v3153 = vlaneseq
        %v3154 = vshrl.u32 %v3153, 7
        %v3155 = vsub.s32 %v3152, %v3154
        %v3156 = vrot.slane %v3149, %v3155
        %v3157 = vcombine.low %v3063, %v3064
        %v3159 = vunpack.c.l.s4 1983009808
        %v3160 = vunpack.c.0.s8 %v3159
        %v3161 = vlaneseq
        %v3162 = vshrl.u32 %v3161, 7
        %v3163 = vsub.s32 %v3160, %v3162
        %v3164 = vrot.slane %v3157, %v3163
        %v3165 = vcombine.low %v3140, %v3148
        %v3166 = vcombine.high %v3140, %v3148
        %v3168 = vunpack.c.l.s4 1934713408
        %v3169 = vunpack.c.0.s8 %v3168
        %v3170 = vlaneseq
        %v3171 = vshrl.u32 %v3170, 7
        %v3172 = vsub.s32 %v3169, %v3171
        %v3173 = vrot.slane %v3165, %v3172
        %v3175 = vunpack.c.l.s4 1934713408
        %v3176 = vunpack.c.0.s8 %v3175
        %v3177 = vlaneseq
        %v3178 = vshrl.u32 %v3177, 7
        %v3179 = vsub.s32 %v3176, %v3178
        %v3180 = vrot.slane %v3166, %v3179
        %v3181 = vcombine.low %v3156, %v3164
        %v3182 = vcombine.high %v3156, %v3164
        %v3184 = vunpack.c.l.s4 1934713408
        %v3185 = vunpack.c.0.s8 %v3184
        %v3186 = vlaneseq
        %v3187 = vshrl.u32 %v3186, 7
        %v3188 = vsub.s32 %v3185, %v3187
        %v3189 = vrot.slane %v3181, %v3188
        %v3191 = vunpack.c.l.s4 1934713408
        %v3192 = vunpack.c.0.s8 %v3191
        %v3193 = vlaneseq
        %v3194 = vshrl.u32 %v3193, 7
        %v3195 = vsub.s32 %v3192, %v3194
        %v3196 = vrot.slane %v3182, %v3195
        %v3197 = vcombine.low %v3173, %v3189
        %v3198 = vcombine.high %v3173, %v3189
        %v3199 = vcombine.low %v3180, %v3196
        %v3200 = vcombine.high %v3180, %v3196
        %v3201 = vcombine.low %v3105, %v3112
        %v3203 = vunpack.c.l.s4 1983009808
        %v3204 = vunpack.c.0.s8 %v3203
        %v3205 = vlaneseq
        %v3206 = vshrl.u32 %v3205, 7
        %v3207 = vsub.s32 %v3204, %v3206
        %v3208 = vrot.slane %v3201, %v3207
        %v3209 = vcombine.low %v3129, %v3130
        %v3211 = vunpack.c.l.s4 1983009808
        %v3212 = vunpack.c.0.s8 %v3211
        %v3213 = vlaneseq
        %v3214 = vshrl.u32 %v3213, 7
        %v3215 = vsub.s32 %v3212, %v3214
        %v3216 = vrot.slane %v3209, %v3215
        %v3217 = vcombine.low %v3121, %v3128
        %v3219 = vunpack.c.l.s4 1983009808
        %v3220 = vunpack.c.0.s8 %v3219
        %v3221 = vlaneseq
        %v3222 = vshrl.u32 %v3221, 7
        %v3223 = vsub.s32 %v3220, %v3222
        %v3224 = vrot.slane %v3217, %v3223
        %v3225 = vcombine.low %v3131, %v3132
        %v3227 = vunpack.c.l.s4 1983009808
        %v3228 = vunpack.c.0.s8 %v3227
        %v3229 = vlaneseq
        %v3230 = vshrl.u32 %v3229, 7
        %v3231 = vsub.s32 %v3228, %v3230
        %v3232 = vrot.slane %v3225, %v3231
        %v3233 = vcombine.low %v3208, %v3216
        %v3234 = vcombine.high %v3208, %v3216
        %v3236 = vunpack.c.l.s4 1934713408
        %v3237 = vunpack.c.0.s8 %v3236
        %v3238 = vlaneseq
        %v3239 = vshrl.u32 %v3238, 7
        %v3240 = vsub.s32 %v3237, %v3239
        %v3241 = vrot.slane %v3233, %v3240
        %v3243 = vunpack.c.l.s4 1934713408
        %v3244 = vunpack.c.0.s8 %v3243
        %v3245 = vlaneseq
        %v3246 = vshrl.u32 %v3245, 7
        %v3247 = vsub.s32 %v3244, %v3246
        %v3248 = vrot.slane %v3234, %v3247
        %v3249 = vcombine.low %v3224, %v3232
        %v3250 = vcombine.high %v3224, %v3232
        %v3252 = vunpack.c.l.s4 1934713408
        %v3253 = vunpack.c.0.s8 %v3252
        %v3254 = vlaneseq
        %v3255 = vshrl.u32 %v3254, 7
        %v3256 = vsub.s32 %v3253, %v3255
        %v3257 = vrot.slane %v3249, %v3256
        %v3259 = vunpack.c.l.s4 1934713408
        %v3260 = vunpack.c.0.s8 %v3259
        %v3261 = vlaneseq
        %v3262 = vshrl.u32 %v3261, 7
        %v3263 = vsub.s32 %v3260, %v3262
        %v3264 = vrot.slane %v3250, %v3263
        %v3265 = vcombine.low %v3241, %v3257
        %v3266 = vcombine.high %v3241, %v3257
        %v3267 = vcombine.low %v3248, %v3264
        %v3268 = vcombine.high %v3248, %v3264
        %v3269 = vpack.c.bf16 %v3265, %v3197
        %v3270 = vpack.c.bf16 %v3266, %v3198
        %v3271 = vpack.c.bf16 %v3267, %v3199
        %v3272 = vpack.c.bf16 %v3268, %v3200
        %3275 = vrot.lane.b32.xlu0 %v996, 120
        %v3276 = vpop.permute.xlu0 %3275
        %3277 = vrot.lane.b32.xlu0 %v999, 120
        %v3278 = vpop.permute.xlu0 %3277
        %3281 = vrot.lane.b32.xlu0 %v996, 112
        %v3282 = vpop.permute.xlu0 %3281
        %3283 = vrot.lane.b32.xlu0 %v999, 112
        %v3284 = vpop.permute.xlu0 %3283
        %3287 = vrot.lane.b32.xlu0 %v996, 104
        %v3288 = vpop.permute.xlu0 %3287
        %3289 = vrot.lane.b32.xlu0 %v999, 104
        %v3290 = vpop.permute.xlu0 %3289
        %v3293 = vcombine.low %v996, %v3282
        %v3294 = vcombine.high %v996, %v3282
        %v3296 = vunpack.c.l.s4 1983009808
        %v3297 = vunpack.c.0.s8 %v3296
        %v3298 = vlaneseq
        %v3299 = vshrl.u32 %v3298, 7
        %v3300 = vsub.s32 %v3297, %v3299
        %v3301 = vrot.slane %v3293, %v3300
        %v3303 = vunpack.c.l.s4 1983009808
        %v3304 = vunpack.c.0.s8 %v3303
        %v3305 = vlaneseq
        %v3306 = vshrl.u32 %v3305, 7
        %v3307 = vsub.s32 %v3304, %v3306
        %v3308 = vrot.slane %v3294, %v3307
        %v3309 = vcombine.low %v3276, %v3288
        %v3310 = vcombine.high %v3276, %v3288
        %v3312 = vunpack.c.l.s4 1983009808
        %v3313 = vunpack.c.0.s8 %v3312
        %v3314 = vlaneseq
        %v3315 = vshrl.u32 %v3314, 7
        %v3316 = vsub.s32 %v3313, %v3315
        %v3317 = vrot.slane %v3309, %v3316
        %v3319 = vunpack.c.l.s4 1983009808
        %v3320 = vunpack.c.0.s8 %v3319
        %v3321 = vlaneseq
        %v3322 = vshrl.u32 %v3321, 7
        %v3323 = vsub.s32 %v3320, %v3322
        %v3324 = vrot.slane %v3310, %v3323
        %v3325 = vcombine.low %v3301, %v3317
        %v3326 = vcombine.high %v3301, %v3317
        %v3328 = vunpack.c.l.s4 1934713408
        %v3329 = vunpack.c.0.s8 %v3328
        %v3330 = vlaneseq
        %v3331 = vshrl.u32 %v3330, 7
        %v3332 = vsub.s32 %v3329, %v3331
        %v3333 = vrot.slane %v3325, %v3332
        %v3335 = vunpack.c.l.s4 1934713408
        %v3336 = vunpack.c.0.s8 %v3335
        %v3337 = vlaneseq
        %v3338 = vshrl.u32 %v3337, 7
        %v3339 = vsub.s32 %v3336, %v3338
        %v3340 = vrot.slane %v3326, %v3339
        %v3341 = vcombine.low %v3308, %v3324
        %v3342 = vcombine.high %v3308, %v3324
        %v3344 = vunpack.c.l.s4 1934713408
        %v3345 = vunpack.c.0.s8 %v3344
        %v3346 = vlaneseq
        %v3347 = vshrl.u32 %v3346, 7
        %v3348 = vsub.s32 %v3345, %v3347
        %v3349 = vrot.slane %v3341, %v3348
        %v3351 = vunpack.c.l.s4 1934713408
        %v3352 = vunpack.c.0.s8 %v3351
        %v3353 = vlaneseq
        %v3354 = vshrl.u32 %v3353, 7
        %v3355 = vsub.s32 %v3352, %v3354
        %v3356 = vrot.slane %v3342, %v3355
        %v3357 = vcombine.high %v3333, 0.0
        %v3358 = vcombine.high %v3340, 0.0
        %v3359 = vcombine.high %v3349, 0.0
        %v3360 = vcombine.high %v3356, 0.0
        %v3361 = vcombine.low %v999, %v3284
        %v3362 = vcombine.high %v999, %v3284
        %v3364 = vunpack.c.l.s4 1983009808
        %v3365 = vunpack.c.0.s8 %v3364
        %v3366 = vlaneseq
        %v3367 = vshrl.u32 %v3366, 7
        %v3368 = vsub.s32 %v3365, %v3367
        %v3369 = vrot.slane %v3361, %v3368
        %v3371 = vunpack.c.l.s4 1983009808
        %v3372 = vunpack.c.0.s8 %v3371
        %v3373 = vlaneseq
        %v3374 = vshrl.u32 %v3373, 7
        %v3375 = vsub.s32 %v3372, %v3374
        %v3376 = vrot.slane %v3362, %v3375
        %v3377 = vcombine.low %v3278, %v3290
        %v3378 = vcombine.high %v3278, %v3290
        %v3380 = vunpack.c.l.s4 1983009808
        %v3381 = vunpack.c.0.s8 %v3380
        %v3382 = vlaneseq
        %v3383 = vshrl.u32 %v3382, 7
        %v3384 = vsub.s32 %v3381, %v3383
        %v3385 = vrot.slane %v3377, %v3384
        %v3387 = vunpack.c.l.s4 1983009808
        %v3388 = vunpack.c.0.s8 %v3387
        %v3389 = vlaneseq
        %v3390 = vshrl.u32 %v3389, 7
        %v3391 = vsub.s32 %v3388, %v3390
        %v3392 = vrot.slane %v3378, %v3391
        %v3393 = vcombine.low %v3369, %v3385
        %v3394 = vcombine.high %v3369, %v3385
        %v3396 = vunpack.c.l.s4 1934713408
        %v3397 = vunpack.c.0.s8 %v3396
        %v3398 = vlaneseq
        %v3399 = vshrl.u32 %v3398, 7
        %v3400 = vsub.s32 %v3397, %v3399
        %v3401 = vrot.slane %v3393, %v3400
        %v3403 = vunpack.c.l.s4 1934713408
        %v3404 = vunpack.c.0.s8 %v3403
        %v3405 = vlaneseq
        %v3406 = vshrl.u32 %v3405, 7
        %v3407 = vsub.s32 %v3404, %v3406
        %v3408 = vrot.slane %v3394, %v3407
        %v3409 = vcombine.low %v3376, %v3392
        %v3410 = vcombine.high %v3376, %v3392
        %v3412 = vunpack.c.l.s4 1934713408
        %v3413 = vunpack.c.0.s8 %v3412
        %v3414 = vlaneseq
        %v3415 = vshrl.u32 %v3414, 7
        %v3416 = vsub.s32 %v3413, %v3415
        %v3417 = vrot.slane %v3409, %v3416
        %v3419 = vunpack.c.l.s4 1934713408
        %v3420 = vunpack.c.0.s8 %v3419
        %v3421 = vlaneseq
        %v3422 = vshrl.u32 %v3421, 7
        %v3423 = vsub.s32 %v3420, %v3422
        %v3424 = vrot.slane %v3410, %v3423
        %v3425 = vcombine.high %v3401, 0.0
        %v3426 = vcombine.high %v3408, 0.0
        %v3427 = vcombine.high %v3417, 0.0
        %v3428 = vcombine.high %v3424, 0.0
        %v3429 = vcombine.low %v3333, %v3340
        %v3431 = vunpack.c.l.s4 1983009808
        %v3432 = vunpack.c.0.s8 %v3431
        %v3433 = vlaneseq
        %v3434 = vshrl.u32 %v3433, 7
        %v3435 = vsub.s32 %v3432, %v3434
        %v3436 = vrot.slane %v3429, %v3435
        %v3437 = vcombine.low %v3357, %v3358
        %v3439 = vunpack.c.l.s4 1983009808
        %v3440 = vunpack.c.0.s8 %v3439
        %v3441 = vlaneseq
        %v3442 = vshrl.u32 %v3441, 7
        %v3443 = vsub.s32 %v3440, %v3442
        %v3444 = vrot.slane %v3437, %v3443
        %v3445 = vcombine.low %v3349, %v3356
        %v3447 = vunpack.c.l.s4 1983009808
        %v3448 = vunpack.c.0.s8 %v3447
        %v3449 = vlaneseq
        %v3450 = vshrl.u32 %v3449, 7
        %v3451 = vsub.s32 %v3448, %v3450
        %v3452 = vrot.slane %v3445, %v3451
        %v3453 = vcombine.low %v3359, %v3360
        %v3455 = vunpack.c.l.s4 1983009808
        %v3456 = vunpack.c.0.s8 %v3455
        %v3457 = vlaneseq
        %v3458 = vshrl.u32 %v3457, 7
        %v3459 = vsub.s32 %v3456, %v3458
        %v3460 = vrot.slane %v3453, %v3459
        %v3461 = vcombine.low %v3436, %v3444
        %v3462 = vcombine.high %v3436, %v3444
        %v3464 = vunpack.c.l.s4 1934713408
        %v3465 = vunpack.c.0.s8 %v3464
        %v3466 = vlaneseq
        %v3467 = vshrl.u32 %v3466, 7
        %v3468 = vsub.s32 %v3465, %v3467
        %v3469 = vrot.slane %v3461, %v3468
        %v3471 = vunpack.c.l.s4 1934713408
        %v3472 = vunpack.c.0.s8 %v3471
        %v3473 = vlaneseq
        %v3474 = vshrl.u32 %v3473, 7
        %v3475 = vsub.s32 %v3472, %v3474
        %v3476 = vrot.slane %v3462, %v3475
        %v3477 = vcombine.low %v3452, %v3460
        %v3478 = vcombine.high %v3452, %v3460
        %v3480 = vunpack.c.l.s4 1934713408
        %v3481 = vunpack.c.0.s8 %v3480
        %v3482 = vlaneseq
        %v3483 = vshrl.u32 %v3482, 7
        %v3484 = vsub.s32 %v3481, %v3483
        %v3485 = vrot.slane %v3477, %v3484
        %v3487 = vunpack.c.l.s4 1934713408
        %v3488 = vunpack.c.0.s8 %v3487
        %v3489 = vlaneseq
        %v3490 = vshrl.u32 %v3489, 7
        %v3491 = vsub.s32 %v3488, %v3490
        %v3492 = vrot.slane %v3478, %v3491
        %v3493 = vcombine.low %v3469, %v3485
        %v3494 = vcombine.high %v3469, %v3485
        %v3495 = vcombine.low %v3476, %v3492
        %v3496 = vcombine.high %v3476, %v3492
        %v3497 = vcombine.low %v3401, %v3408
        %v3499 = vunpack.c.l.s4 1983009808
        %v3500 = vunpack.c.0.s8 %v3499
        %v3501 = vlaneseq
        %v3502 = vshrl.u32 %v3501, 7
        %v3503 = vsub.s32 %v3500, %v3502
        %v3504 = vrot.slane %v3497, %v3503
        %v3505 = vcombine.low %v3425, %v3426
        %v3507 = vunpack.c.l.s4 1983009808
        %v3508 = vunpack.c.0.s8 %v3507
        %v3509 = vlaneseq
        %v3510 = vshrl.u32 %v3509, 7
        %v3511 = vsub.s32 %v3508, %v3510
        %v3512 = vrot.slane %v3505, %v3511
        %v3513 = vcombine.low %v3417, %v3424
        %v3515 = vunpack.c.l.s4 1983009808
        %v3516 = vunpack.c.0.s8 %v3515
        %v3517 = vlaneseq
        %v3518 = vshrl.u32 %v3517, 7
        %v3519 = vsub.s32 %v3516, %v3518
        %v3520 = vrot.slane %v3513, %v3519
        %v3521 = vcombine.low %v3427, %v3428
        %v3523 = vunpack.c.l.s4 1983009808
        %v3524 = vunpack.c.0.s8 %v3523
        %v3525 = vlaneseq
        %v3526 = vshrl.u32 %v3525, 7
        %v3527 = vsub.s32 %v3524, %v3526
        %v3528 = vrot.slane %v3521, %v3527
        %v3529 = vcombine.low %v3504, %v3512
        %v3530 = vcombine.high %v3504, %v3512
        %v3532 = vunpack.c.l.s4 1934713408
        %v3533 = vunpack.c.0.s8 %v3532
        %v3534 = vlaneseq
        %v3535 = vshrl.u32 %v3534, 7
        %v3536 = vsub.s32 %v3533, %v3535
        %v3537 = vrot.slane %v3529, %v3536
        %v3539 = vunpack.c.l.s4 1934713408
        %v3540 = vunpack.c.0.s8 %v3539
        %v3541 = vlaneseq
        %v3542 = vshrl.u32 %v3541, 7
        %v3543 = vsub.s32 %v3540, %v3542
        %v3544 = vrot.slane %v3530, %v3543
        %v3545 = vcombine.low %v3520, %v3528
        %v3546 = vcombine.high %v3520, %v3528
        %v3548 = vunpack.c.l.s4 1934713408
        %v3549 = vunpack.c.0.s8 %v3548
        %v3550 = vlaneseq
        %v3551 = vshrl.u32 %v3550, 7
        %v3552 = vsub.s32 %v3549, %v3551
        %v3553 = vrot.slane %v3545, %v3552
        %v3555 = vunpack.c.l.s4 1934713408
        %v3556 = vunpack.c.0.s8 %v3555
        %v3557 = vlaneseq
        %v3558 = vshrl.u32 %v3557, 7
        %v3559 = vsub.s32 %v3556, %v3558
        %v3560 = vrot.slane %v3546, %v3559
        %v3561 = vcombine.low %v3537, %v3553
        %v3562 = vcombine.high %v3537, %v3553
        %v3563 = vcombine.low %v3544, %v3560
        %v3564 = vcombine.high %v3544, %v3560
        %v3565 = vpack.c.bf16 %v3561, %v3493
        %v3566 = vpack.c.bf16 %v3562, %v3494
        %v3567 = vpack.c.bf16 %v3563, %v3495
        %v3568 = vpack.c.bf16 %v3564, %v3496
        %v3570 = vsel %vm1893, %v2973, 0
        %v3573 = vsel %vm1893, %v3269, 0
        %3575 = vmatprep.subr.bf16.mxu0 0
        %3576 = vmatpush1.bf16.xpose.msra.mxu0 %v3573
        %3577 = vmatprep.subr.bf16.mxu0 0
        %3578 = vmatpush1.bf16.xpose.msra.mxu0 0
        %3579 = vmatprep.subr.bf16.mxu0 0
        %3580 = vmatpush1.bf16.xpose.msra.mxu0 0
        %3581 = vmatprep.subr.bf16.mxu0 0
        %3582 = vmatpush1.bf16.xpose.msra.mxu0 0
        %3583 = vmatprep.subr.bf16.mxu0 0
        %3584 = vmatpush1.bf16.xpose.msra.mxu0 0
        %3585 = vmatprep.subr.bf16.mxu0 0
        %3586 = vmatpush1.bf16.xpose.msra.mxu0 0
        %3587 = vmatprep.subr.bf16.mxu0 0
        %3588 = vmatpush1.bf16.xpose.msra.mxu0 0
        %3589 = vmatprep.subr.bf16.mxu0 0
        %3590 = vmatpush1.bf16.xpose.msra.mxu0 0
        %3591 = vmatprep.subr.bf16.mxu0 0
        %3592 = vmatpush1.bf16.xpose.msra.mxu0 0
        %3593 = vmatprep.subr.bf16.mxu0 0
        %3594 = vmatpush1.bf16.xpose.msra.mxu0 0
        %3595 = vmatprep.subr.bf16.mxu0 0
        %3596 = vmatpush1.bf16.xpose.msra.mxu0 0
        %3597 = vmatprep.subr.bf16.mxu0 0
        %3598 = vmatpush1.bf16.xpose.msra.mxu0 0
        %3599 = vmatprep.subr.bf16.mxu0 0
        %3600 = vmatpush1.bf16.xpose.msra.mxu0 0
        %3601 = vmatprep.subr.bf16.mxu0 0
        %3602 = vmatpush1.bf16.xpose.msra.mxu0 0
        %3603 = vmatprep.subr.bf16.mxu0 0
        %3604 = vmatpush1.bf16.xpose.msra.mxu0 0
        %3605 = vmatprep.subr.bf16.mxu0 0
        %3606 = vmatpush1.bf16.xpose.msra.mxu0 0
        %3607 = vmatprep.mubr.bf16.mxu0 0
        %3608 = vmatmul.mubr.bf16.gmra.mrb[0].mxu0 %v3570
        %v3609 = vpop.f32.mrb[0].mxu0
        %v3610 = vadd.f32 0.0, %v3609
        %v3611 = vpop.f32.mrb[0].mxu0
        %v3612 = vpop.f32.mrb[0].mxu0
        %v3613 = vadd.f32 0.0, %v3612
        %v3614 = vpop.f32.mrb[0].mxu0
        %3615 = vdwg.mxu0
        %v3617 = vsel %vm1893, %v2974, 0
        %v3620 = vsel %vm1893, %v3270, 0
        %3622 = vmatprep.subr.bf16.mxu0 0
        %3623 = vmatpush1.bf16.xpose.msra.mxu0 %v3620
        %3624 = vmatprep.subr.bf16.mxu0 0
        %3625 = vmatpush1.bf16.xpose.msra.mxu0 0
        %3626 = vmatprep.subr.bf16.mxu0 0
        %3627 = vmatpush1.bf16.xpose.msra.mxu0 0
        %3628 = vmatprep.subr.bf16.mxu0 0
        %3629 = vmatpush1.bf16.xpose.msra.mxu0 0
        %3630 = vmatprep.subr.bf16.mxu0 0
        %3631 = vmatpush1.bf16.xpose.msra.mxu0 0
        %3632 = vmatprep.subr.bf16.mxu0 0
        %3633 = vmatpush1.bf16.xpose.msra.mxu0 0
        %3634 = vmatprep.subr.bf16.mxu0 0
        %3635 = vmatpush1.bf16.xpose.msra.mxu0 0
        %3636 = vmatprep.subr.bf16.mxu0 0
        %3637 = vmatpush1.bf16.xpose.msra.mxu0 0
        %3638 = vmatprep.subr.bf16.mxu0 0
        %3639 = vmatpush1.bf16.xpose.msra.mxu0 0
        %3640 = vmatprep.subr.bf16.mxu0 0
        %3641 = vmatpush1.bf16.xpose.msra.mxu0 0
        %3642 = vmatprep.subr.bf16.mxu0 0
        %3643 = vmatpush1.bf16.xpose.msra.mxu0 0
        %3644 = vmatprep.subr.bf16.mxu0 0
        %3645 = vmatpush1.bf16.xpose.msra.mxu0 0
        %3646 = vmatprep.subr.bf16.mxu0 0
        %3647 = vmatpush1.bf16.xpose.msra.mxu0 0
        %3648 = vmatprep.subr.bf16.mxu0 0
        %3649 = vmatpush1.bf16.xpose.msra.mxu0 0
        %3650 = vmatprep.subr.bf16.mxu0 0
        %3651 = vmatpush1.bf16.xpose.msra.mxu0 0
        %3652 = vmatprep.subr.bf16.mxu0 0
        %3653 = vmatpush1.bf16.xpose.msra.mxu0 0
        %3654 = vmatprep.mubr.bf16.mxu0 0
        %3655 = vmatmul.mubr.bf16.gmra.mrb[0].mxu0 %v3617
        %v3656 = vpop.f32.mrb[0].mxu0
        %v3657 = vadd.f32 0.0, %v3656
        %v3658 = vpop.f32.mrb[0].mxu0
        %v3659 = vpop.f32.mrb[0].mxu0
        %v3660 = vadd.f32 0.0, %v3659
        %v3661 = vpop.f32.mrb[0].mxu0
        %3662 = vdwg.mxu0
        %v3664 = vsel %vm1893, %v2975, 0
        %v3667 = vsel %vm1893, %v3271, 0
        %3669 = vmatprep.subr.bf16.mxu0 0
        %3670 = vmatpush1.bf16.xpose.msra.mxu0 %v3667
        %3671 = vmatprep.subr.bf16.mxu0 0
        %3672 = vmatpush1.bf16.xpose.msra.mxu0 0
        %3673 = vmatprep.subr.bf16.mxu0 0
        %3674 = vmatpush1.bf16.xpose.msra.mxu0 0
        %3675 = vmatprep.subr.bf16.mxu0 0
        %3676 = vmatpush1.bf16.xpose.msra.mxu0 0
        %3677 = vmatprep.subr.bf16.mxu0 0
        %3678 = vmatpush1.bf16.xpose.msra.mxu0 0
        %3679 = vmatprep.subr.bf16.mxu0 0
        %3680 = vmatpush1.bf16.xpose.msra.mxu0 0
        %3681 = vmatprep.subr.bf16.mxu0 0
        %3682 = vmatpush1.bf16.xpose.msra.mxu0 0
        %3683 = vmatprep.subr.bf16.mxu0 0
        %3684 = vmatpush1.bf16.xpose.msra.mxu0 0
        %3685 = vmatprep.subr.bf16.mxu0 0
        %3686 = vmatpush1.bf16.xpose.msra.mxu0 0
        %3687 = vmatprep.subr.bf16.mxu0 0
        %3688 = vmatpush1.bf16.xpose.msra.mxu0 0
        %3689 = vmatprep.subr.bf16.mxu0 0
        %3690 = vmatpush1.bf16.xpose.msra.mxu0 0
        %3691 = vmatprep.subr.bf16.mxu0 0
        %3692 = vmatpush1.bf16.xpose.msra.mxu0 0
        %3693 = vmatprep.subr.bf16.mxu0 0
        %3694 = vmatpush1.bf16.xpose.msra.mxu0 0
        %3695 = vmatprep.subr.bf16.mxu0 0
        %3696 = vmatpush1.bf16.xpose.msra.mxu0 0
        %3697 = vmatprep.subr.bf16.mxu0 0
        %3698 = vmatpush1.bf16.xpose.msra.mxu0 0
        %3699 = vmatprep.subr.bf16.mxu0 0
        %3700 = vmatpush1.bf16.xpose.msra.mxu0 0
        %3701 = vmatprep.mubr.bf16.mxu0 0
        %3702 = vmatmul.mubr.bf16.gmra.mrb[0].mxu0 %v3664
        %v3703 = vpop.f32.mrb[0].mxu0
        %v3704 = vadd.f32 0.0, %v3703
        %v3705 = vpop.f32.mrb[0].mxu0
        %v3706 = vpop.f32.mrb[0].mxu0
        %v3707 = vadd.f32 0.0, %v3706
        %v3708 = vpop.f32.mrb[0].mxu0
        %3709 = vdwg.mxu0
        %v3711 = vsel %vm1893, %v2976, 0
        %v3714 = vsel %vm1893, %v3272, 0
        %3716 = vmatprep.subr.bf16.mxu0 0
        %3717 = vmatpush1.bf16.xpose.msra.mxu0 %v3714
        %3718 = vmatprep.subr.bf16.mxu0 0
        %3719 = vmatpush1.bf16.xpose.msra.mxu0 0
        %3720 = vmatprep.subr.bf16.mxu0 0
        %3721 = vmatpush1.bf16.xpose.msra.mxu0 0
        %3722 = vmatprep.subr.bf16.mxu0 0
        %3723 = vmatpush1.bf16.xpose.msra.mxu0 0
        %3724 = vmatprep.subr.bf16.mxu0 0
        %3725 = vmatpush1.bf16.xpose.msra.mxu0 0
        %3726 = vmatprep.subr.bf16.mxu0 0
        %3727 = vmatpush1.bf16.xpose.msra.mxu0 0
        %3728 = vmatprep.subr.bf16.mxu0 0
        %3729 = vmatpush1.bf16.xpose.msra.mxu0 0
        %3730 = vmatprep.subr.bf16.mxu0 0
        %3731 = vmatpush1.bf16.xpose.msra.mxu0 0
        %3732 = vmatprep.subr.bf16.mxu0 0
        %3733 = vmatpush1.bf16.xpose.msra.mxu0 0
        %3734 = vmatprep.subr.bf16.mxu0 0
        %3735 = vmatpush1.bf16.xpose.msra.mxu0 0
        %3736 = vmatprep.subr.bf16.mxu0 0
        %3737 = vmatpush1.bf16.xpose.msra.mxu0 0
        %3738 = vmatprep.subr.bf16.mxu0 0
        %3739 = vmatpush1.bf16.xpose.msra.mxu0 0
        %3740 = vmatprep.subr.bf16.mxu0 0
        %3741 = vmatpush1.bf16.xpose.msra.mxu0 0
        %3742 = vmatprep.subr.bf16.mxu0 0
        %3743 = vmatpush1.bf16.xpose.msra.mxu0 0
        %3744 = vmatprep.subr.bf16.mxu0 0
        %3745 = vmatpush1.bf16.xpose.msra.mxu0 0
        %3746 = vmatprep.subr.bf16.mxu0 0
        %3747 = vmatpush1.bf16.xpose.msra.mxu0 0
        %3748 = vmatprep.mubr.bf16.mxu0 0
        %3749 = vmatmul.mubr.bf16.gmra.mrb[0].mxu0 %v3711
        %v3750 = vpop.f32.mrb[0].mxu0
        %v3751 = vadd.f32 0.0, %v3750
        %v3752 = vpop.f32.mrb[0].mxu0
        %v3753 = vpop.f32.mrb[0].mxu0
        %v3754 = vadd.f32 0.0, %v3753
        %v3755 = vpop.f32.mrb[0].mxu0
        %3756 = vdwg.mxu0
        %v3757 = vsel %vm2083, %v3610, -1e+30
        %v3758 = vsel %vm2083, %v3613, -1e+30
        %v3759 = vsel %vm2083, %v3657, -1e+30
        %v3760 = vsel %vm2083, %v3660, -1e+30
        %v3761 = vsel %vm2083, %v3704, -1e+30
        %v3762 = vsel %vm2083, %v3707, -1e+30
        %v3763 = vsel %vm2083, %v3751, -1e+30
        %v3764 = vsel %vm2083, %v3754, -1e+30
        %v3765 = vsel %vm2092, %v3757, -inf
        %3766 = vmax.xlane.f32.xlu0 %v3765
        %v3767 = vpop.xlane.xlu0 %3766
        %v3768 = vsel %vm2092, %v3758, -inf
        %3769 = vmax.xlane.f32.xlu0 %v3768
        %v3770 = vpop.xlane.xlu0 %3769
        %v3771 = vsel %vm2092, %v3759, -inf
        %3772 = vmax.xlane.f32.xlu0 %v3771
        %v3773 = vpop.xlane.xlu0 %3772
        %v3774 = vsel %vm2092, %v3760, -inf
        %3775 = vmax.xlane.f32.xlu0 %v3774
        %v3776 = vpop.xlane.xlu0 %3775
        %v3777 = vsel %vm2092, %v3761, -inf
        %3778 = vmax.xlane.f32.xlu0 %v3777
        %v3779 = vpop.xlane.xlu0 %3778
        %v3780 = vsel %vm2092, %v3762, -inf
        %3781 = vmax.xlane.f32.xlu0 %v3780
        %v3782 = vpop.xlane.xlu0 %3781
        %v3783 = vsel %vm2092, %v3763, -inf
        %3784 = vmax.xlane.f32.xlu0 %v3783
        %v3785 = vpop.xlane.xlu0 %3784
        %v3786 = vsel %vm2092, %v3764, -inf
        %3787 = vmax.xlane.f32.xlu0 %v3786
        %v3788 = vpop.xlane.xlu0 %3787
        %v3789 = vsub.f32 %v3757, %v3767
        %v3790 = vsub.f32 %v3758, %v3770
        %v3791 = vsub.f32 %v3759, %v3773
        %v3792 = vsub.f32 %v3760, %v3776
        %v3793 = vsub.f32 %v3761, %v3779
        %v3794 = vsub.f32 %v3762, %v3782
        %v3795 = vsub.f32 %v3763, %v3785
        %v3796 = vsub.f32 %v3764, %v3788
        %v3797 = vmul.f32 %v3789, 1.442695
        %v3798 = vpow.pop %v3797
        %v3799 = vmul.f32 %v3790, 1.442695
        %v3800 = vpow.pop %v3799
        %v3801 = vmul.f32 %v3791, 1.442695
        %v3802 = vpow.pop %v3801
        %v3803 = vmul.f32 %v3792, 1.442695
        %v3804 = vpow.pop %v3803
        %v3805 = vmul.f32 %v3793, 1.442695
        %v3806 = vpow.pop %v3805
        %v3807 = vmul.f32 %v3794, 1.442695
        %v3808 = vpow.pop %v3807
        %v3809 = vmul.f32 %v3795, 1.442695
        %v3810 = vpow.pop %v3809
        %v3811 = vmul.f32 %v3796, 1.442695
        %v3812 = vpow.pop %v3811
        %v3813 = vsel %vm2092, %v3798, 0.0
        %3814 = vadd.xlane.f32.xlu0 %v3813
        %v3815 = vpop.xlane.xlu0 %3814
        %v3816 = vsel %vm2092, %v3800, 0.0
        %3817 = vadd.xlane.f32.xlu0 %v3816
        %v3818 = vpop.xlane.xlu0 %3817
        %v3819 = vsel %vm2092, %v3802, 0.0
        %3820 = vadd.xlane.f32.xlu0 %v3819
        %v3821 = vpop.xlane.xlu0 %3820
        %v3822 = vsel %vm2092, %v3804, 0.0
        %3823 = vadd.xlane.f32.xlu0 %v3822
        %v3824 = vpop.xlane.xlu0 %3823
        %v3825 = vsel %vm2092, %v3806, 0.0
        %3826 = vadd.xlane.f32.xlu0 %v3825
        %v3827 = vpop.xlane.xlu0 %3826
        %v3828 = vsel %vm2092, %v3808, 0.0
        %3829 = vadd.xlane.f32.xlu0 %v3828
        %v3830 = vpop.xlane.xlu0 %3829
        %v3831 = vsel %vm2092, %v3810, 0.0
        %3832 = vadd.xlane.f32.xlu0 %v3831
        %v3833 = vpop.xlane.xlu0 %3832
        %v3834 = vsel %vm2092, %v3812, 0.0
        %3835 = vadd.xlane.f32.xlu0 %v3834
        %v3836 = vpop.xlane.xlu0 %3835
        %v3837 = vrcp.pop %v3815
        %v3838 = vrcp.pop %v3818
        %v3839 = vrcp.pop %v3821
        %v3840 = vrcp.pop %v3824
        %v3841 = vrcp.pop %v3827
        %v3842 = vrcp.pop %v3830
        %v3843 = vrcp.pop %v3833
        %v3844 = vrcp.pop %v3836
        %v3845 = vmul.f32 %v3798, %v3837
        %v3846 = vmul.f32 %v3800, %v3838
        %v3847 = vmul.f32 %v3802, %v3839
        %v3848 = vmul.f32 %v3804, %v3840
        %v3849 = vmul.f32 %v3806, %v3841
        %v3850 = vmul.f32 %v3808, %v3842
        %v3851 = vmul.f32 %v3810, %v3843
        %v3852 = vmul.f32 %v3812, %v3844
        %v3853 = vpack.c.bf16 %v3846, %v3845
        %v3854 = vpack.c.bf16 %v3848, %v3847
        %v3855 = vpack.c.bf16 %v3850, %v3849
        %v3856 = vpack.c.bf16 %v3852, %v3851
        %v3858 = vsel %vm2092, %v3853, 0
        %3860 = vmatprep.subr.bf16.mxu0 0
        %3861 = vmatpush1.bf16.msra.mxu0 %v3565
        %3862 = vmatprep.subr.bf16.mxu0 0
        %3863 = vmatpush1.bf16.msra.mxu0 0
        %3864 = vmatprep.subr.bf16.mxu0 0
        %3865 = vmatpush1.bf16.msra.mxu0 0
        %3866 = vmatprep.subr.bf16.mxu0 0
        %3867 = vmatpush1.bf16.msra.mxu0 0
        %3868 = vmatprep.subr.bf16.mxu0 0
        %3869 = vmatpush1.bf16.msra.mxu0 0
        %3870 = vmatprep.subr.bf16.mxu0 0
        %3871 = vmatpush1.bf16.msra.mxu0 0
        %3872 = vmatprep.subr.bf16.mxu0 0
        %3873 = vmatpush1.bf16.msra.mxu0 0
        %3874 = vmatprep.subr.bf16.mxu0 0
        %3875 = vmatpush1.bf16.msra.mxu0 0
        %3876 = vmatprep.subr.bf16.mxu0 0
        %3877 = vmatpush1.bf16.msra.mxu0 0
        %3878 = vmatprep.subr.bf16.mxu0 0
        %3879 = vmatpush1.bf16.msra.mxu0 0
        %3880 = vmatprep.subr.bf16.mxu0 0
        %3881 = vmatpush1.bf16.msra.mxu0 0
        %3882 = vmatprep.subr.bf16.mxu0 0
        %3883 = vmatpush1.bf16.msra.mxu0 0
        %3884 = vmatprep.subr.bf16.mxu0 0
        %3885 = vmatpush1.bf16.msra.mxu0 0
        %3886 = vmatprep.subr.bf16.mxu0 0
        %3887 = vmatpush1.bf16.msra.mxu0 0
        %3888 = vmatprep.subr.bf16.mxu0 0
        %3889 = vmatpush1.bf16.msra.mxu0 0
        %3890 = vmatprep.subr.bf16.mxu0 0
        %3891 = vmatpush1.bf16.msra.mxu0 0
        %3892 = vmatprep.mubr.bf16.mxu0 0
        %3893 = vmatmul.mubr.bf16.gmra.mrb[0].mxu0 %v3858
        %v3894 = vpop.f32.mrb[0].mxu0
        %v3895 = vadd.f32 0.0, %v3894
        %v3896 = vpop.f32.mrb[0].mxu0
        %v3897 = vpop.f32.mrb[0].mxu0
        %v3898 = vadd.f32 0.0, %v3897
        %v3899 = vpop.f32.mrb[0].mxu0
        %3900 = vdwg.mxu0
        %v3902 = vsel %vm2092, %v3854, 0
        %3904 = vmatprep.subr.bf16.mxu0 0
        %3905 = vmatpush1.bf16.msra.mxu0 %v3566
        %3906 = vmatprep.subr.bf16.mxu0 0
        %3907 = vmatpush1.bf16.msra.mxu0 0
        %3908 = vmatprep.subr.bf16.mxu0 0
        %3909 = vmatpush1.bf16.msra.mxu0 0
        %3910 = vmatprep.subr.bf16.mxu0 0
        %3911 = vmatpush1.bf16.msra.mxu0 0
        %3912 = vmatprep.subr.bf16.mxu0 0
        %3913 = vmatpush1.bf16.msra.mxu0 0
        %3914 = vmatprep.subr.bf16.mxu0 0
        %3915 = vmatpush1.bf16.msra.mxu0 0
        %3916 = vmatprep.subr.bf16.mxu0 0
        %3917 = vmatpush1.bf16.msra.mxu0 0
        %3918 = vmatprep.subr.bf16.mxu0 0
        %3919 = vmatpush1.bf16.msra.mxu0 0
        %3920 = vmatprep.subr.bf16.mxu0 0
        %3921 = vmatpush1.bf16.msra.mxu0 0
        %3922 = vmatprep.subr.bf16.mxu0 0
        %3923 = vmatpush1.bf16.msra.mxu0 0
        %3924 = vmatprep.subr.bf16.mxu0 0
        %3925 = vmatpush1.bf16.msra.mxu0 0
        %3926 = vmatprep.subr.bf16.mxu0 0
        %3927 = vmatpush1.bf16.msra.mxu0 0
        %3928 = vmatprep.subr.bf16.mxu0 0
        %3929 = vmatpush1.bf16.msra.mxu0 0
        %3930 = vmatprep.subr.bf16.mxu0 0
        %3931 = vmatpush1.bf16.msra.mxu0 0
        %3932 = vmatprep.subr.bf16.mxu0 0
        %3933 = vmatpush1.bf16.msra.mxu0 0
        %3934 = vmatprep.subr.bf16.mxu0 0
        %3935 = vmatpush1.bf16.msra.mxu0 0
        %3936 = vmatprep.mubr.bf16.mxu0 0
        %3937 = vmatmul.mubr.bf16.gmra.mrb[0].mxu0 %v3902
        %v3938 = vpop.f32.mrb[0].mxu0
        %v3939 = vadd.f32 0.0, %v3938
        %v3940 = vpop.f32.mrb[0].mxu0
        %v3941 = vpop.f32.mrb[0].mxu0
        %v3942 = vadd.f32 0.0, %v3941
        %v3943 = vpop.f32.mrb[0].mxu0
        %3944 = vdwg.mxu0
        %v3946 = vsel %vm2092, %v3855, 0
        %3948 = vmatprep.subr.bf16.mxu0 0
        %3949 = vmatpush1.bf16.msra.mxu0 %v3567
        %3950 = vmatprep.subr.bf16.mxu0 0
        %3951 = vmatpush1.bf16.msra.mxu0 0
        %3952 = vmatprep.subr.bf16.mxu0 0
        %3953 = vmatpush1.bf16.msra.mxu0 0
        %3954 = vmatprep.subr.bf16.mxu0 0
        %3955 = vmatpush1.bf16.msra.mxu0 0
        %3956 = vmatprep.subr.bf16.mxu0 0
        %3957 = vmatpush1.bf16.msra.mxu0 0
        %3958 = vmatprep.subr.bf16.mxu0 0
        %3959 = vmatpush1.bf16.msra.mxu0 0
        %3960 = vmatprep.subr.bf16.mxu0 0
        %3961 = vmatpush1.bf16.msra.mxu0 0
        %3962 = vmatprep.subr.bf16.mxu0 0
        %3963 = vmatpush1.bf16.msra.mxu0 0
        %3964 = vmatprep.subr.bf16.mxu0 0
        %3965 = vmatpush1.bf16.msra.mxu0 0
        %3966 = vmatprep.subr.bf16.mxu0 0
        %3967 = vmatpush1.bf16.msra.mxu0 0
        %3968 = vmatprep.subr.bf16.mxu0 0
        %3969 = vmatpush1.bf16.msra.mxu0 0
        %3970 = vmatprep.subr.bf16.mxu0 0
        %3971 = vmatpush1.bf16.msra.mxu0 0
        %3972 = vmatprep.subr.bf16.mxu0 0
        %3973 = vmatpush1.bf16.msra.mxu0 0
        %3974 = vmatprep.subr.bf16.mxu0 0
        %3975 = vmatpush1.bf16.msra.mxu0 0
        %3976 = vmatprep.subr.bf16.mxu0 0
        %3977 = vmatpush1.bf16.msra.mxu0 0
        %3978 = vmatprep.subr.bf16.mxu0 0
        %3979 = vmatpush1.bf16.msra.mxu0 0
        %3980 = vmatprep.mubr.bf16.mxu0 0
        %3981 = vmatmul.mubr.bf16.gmra.mrb[0].mxu0 %v3946
        %v3982 = vpop.f32.mrb[0].mxu0
        %v3983 = vadd.f32 0.0, %v3982
        %v3984 = vpop.f32.mrb[0].mxu0
        %v3985 = vpop.f32.mrb[0].mxu0
        %v3986 = vadd.f32 0.0, %v3985
        %v3987 = vpop.f32.mrb[0].mxu0
        %3988 = vdwg.mxu0
        %v3990 = vsel %vm2092, %v3856, 0
        %3992 = vmatprep.subr.bf16.mxu0 0
        %3993 = vmatpush1.bf16.msra.mxu0 %v3568
        %3994 = vmatprep.subr.bf16.mxu0 0
        %3995 = vmatpush1.bf16.msra.mxu0 0
        %3996 = vmatprep.subr.bf16.mxu0 0
        %3997 = vmatpush1.bf16.msra.mxu0 0
        %3998 = vmatprep.subr.bf16.mxu0 0
        %3999 = vmatpush1.bf16.msra.mxu0 0
        %4000 = vmatprep.subr.bf16.mxu0 0
        %4001 = vmatpush1.bf16.msra.mxu0 0
        %4002 = vmatprep.subr.bf16.mxu0 0
        %4003 = vmatpush1.bf16.msra.mxu0 0
        %4004 = vmatprep.subr.bf16.mxu0 0
        %4005 = vmatpush1.bf16.msra.mxu0 0
        %4006 = vmatprep.subr.bf16.mxu0 0
        %4007 = vmatpush1.bf16.msra.mxu0 0
        %4008 = vmatprep.subr.bf16.mxu0 0
        %4009 = vmatpush1.bf16.msra.mxu0 0
        %4010 = vmatprep.subr.bf16.mxu0 0
        %4011 = vmatpush1.bf16.msra.mxu0 0
        %4012 = vmatprep.subr.bf16.mxu0 0
        %4013 = vmatpush1.bf16.msra.mxu0 0
        %4014 = vmatprep.subr.bf16.mxu0 0
        %4015 = vmatpush1.bf16.msra.mxu0 0
        %4016 = vmatprep.subr.bf16.mxu0 0
        %4017 = vmatpush1.bf16.msra.mxu0 0
        %4018 = vmatprep.subr.bf16.mxu0 0
        %4019 = vmatpush1.bf16.msra.mxu0 0
        %4020 = vmatprep.subr.bf16.mxu0 0
        %4021 = vmatpush1.bf16.msra.mxu0 0
        %4022 = vmatprep.subr.bf16.mxu0 0
        %4023 = vmatpush1.bf16.msra.mxu0 0
        %4024 = vmatprep.mubr.bf16.mxu0 0
        %4025 = vmatmul.mubr.bf16.gmra.mrb[0].mxu0 %v3990
        %v4026 = vpop.f32.mrb[0].mxu0
        %v4027 = vadd.f32 0.0, %v4026
        %v4028 = vpop.f32.mrb[0].mxu0
        %v4029 = vpop.f32.mrb[0].mxu0
        %v4030 = vadd.f32 0.0, %v4029
        %v4031 = vpop.f32.mrb[0].mxu0
        %4032 = vdwg.mxu0
        %v4033 = vcombine.low %v3895, %v3983
        %v4034 = vcombine.high %v3895, %v3983
        %v4036 = vunpack.c.l.s4 1983009808
        %v4037 = vunpack.c.0.s8 %v4036
        %v4038 = vlaneseq
        %v4039 = vshrl.u32 %v4038, 7
        %v4040 = vsub.s32 %v4037, %v4039
        %v4041 = vrot.slane %v4033, %v4040
        %v4043 = vunpack.c.l.s4 1983009808
        %v4044 = vunpack.c.0.s8 %v4043
        %v4045 = vlaneseq
        %v4046 = vshrl.u32 %v4045, 7
        %v4047 = vsub.s32 %v4044, %v4046
        %v4048 = vrot.slane %v4034, %v4047
        %v4049 = vcombine.low %v3939, %v4027
        %v4050 = vcombine.high %v3939, %v4027
        %v4052 = vunpack.c.l.s4 1983009808
        %v4053 = vunpack.c.0.s8 %v4052
        %v4054 = vlaneseq
        %v4055 = vshrl.u32 %v4054, 7
        %v4056 = vsub.s32 %v4053, %v4055
        %v4057 = vrot.slane %v4049, %v4056
        %v4059 = vunpack.c.l.s4 1983009808
        %v4060 = vunpack.c.0.s8 %v4059
        %v4061 = vlaneseq
        %v4062 = vshrl.u32 %v4061, 7
        %v4063 = vsub.s32 %v4060, %v4062
        %v4064 = vrot.slane %v4050, %v4063
        %v4065 = vcombine.low %v4041, %v4057
        %v4066 = vcombine.high %v4041, %v4057
        %v4068 = vunpack.c.l.s4 1934713408
        %v4069 = vunpack.c.0.s8 %v4068
        %v4070 = vlaneseq
        %v4071 = vshrl.u32 %v4070, 7
        %v4072 = vsub.s32 %v4069, %v4071
        %v4073 = vrot.slane %v4065, %v4072
        %v4075 = vunpack.c.l.s4 1934713408
        %v4076 = vunpack.c.0.s8 %v4075
        %v4077 = vlaneseq
        %v4078 = vshrl.u32 %v4077, 7
        %v4079 = vsub.s32 %v4076, %v4078
        %v4080 = vrot.slane %v4066, %v4079
        %v4081 = vcombine.low %v4048, %v4064
        %v4082 = vcombine.high %v4048, %v4064
        %v4084 = vunpack.c.l.s4 1934713408
        %v4085 = vunpack.c.0.s8 %v4084
        %v4086 = vlaneseq
        %v4087 = vshrl.u32 %v4086, 7
        %v4088 = vsub.s32 %v4085, %v4087
        %v4089 = vrot.slane %v4081, %v4088
        %v4091 = vunpack.c.l.s4 1934713408
        %v4092 = vunpack.c.0.s8 %v4091
        %v4093 = vlaneseq
        %v4094 = vshrl.u32 %v4093, 7
        %v4095 = vsub.s32 %v4092, %v4094
        %v4096 = vrot.slane %v4082, %v4095
        %v4097 = vcombine.high %v4073, 0.0
        %v4098 = vcombine.high %v4080, 0.0
        %v4099 = vcombine.high %v4089, 0.0
        %v4100 = vcombine.high %v4096, 0.0
        %v4101 = vcombine.low %v3898, %v3986
        %v4102 = vcombine.high %v3898, %v3986
        %v4104 = vunpack.c.l.s4 1983009808
        %v4105 = vunpack.c.0.s8 %v4104
        %v4106 = vlaneseq
        %v4107 = vshrl.u32 %v4106, 7
        %v4108 = vsub.s32 %v4105, %v4107
        %v4109 = vrot.slane %v4101, %v4108
        %v4111 = vunpack.c.l.s4 1983009808
        %v4112 = vunpack.c.0.s8 %v4111
        %v4113 = vlaneseq
        %v4114 = vshrl.u32 %v4113, 7
        %v4115 = vsub.s32 %v4112, %v4114
        %v4116 = vrot.slane %v4102, %v4115
        %v4117 = vcombine.low %v3942, %v4030
        %v4118 = vcombine.high %v3942, %v4030
        %v4120 = vunpack.c.l.s4 1983009808
        %v4121 = vunpack.c.0.s8 %v4120
        %v4122 = vlaneseq
        %v4123 = vshrl.u32 %v4122, 7
        %v4124 = vsub.s32 %v4121, %v4123
        %v4125 = vrot.slane %v4117, %v4124
        %v4127 = vunpack.c.l.s4 1983009808
        %v4128 = vunpack.c.0.s8 %v4127
        %v4129 = vlaneseq
        %v4130 = vshrl.u32 %v4129, 7
        %v4131 = vsub.s32 %v4128, %v4130
        %v4132 = vrot.slane %v4118, %v4131
        %v4133 = vcombine.low %v4109, %v4125
        %v4134 = vcombine.high %v4109, %v4125
        %v4136 = vunpack.c.l.s4 1934713408
        %v4137 = vunpack.c.0.s8 %v4136
        %v4138 = vlaneseq
        %v4139 = vshrl.u32 %v4138, 7
        %v4140 = vsub.s32 %v4137, %v4139
        %v4141 = vrot.slane %v4133, %v4140
        %v4143 = vunpack.c.l.s4 1934713408
        %v4144 = vunpack.c.0.s8 %v4143
        %v4145 = vlaneseq
        %v4146 = vshrl.u32 %v4145, 7
        %v4147 = vsub.s32 %v4144, %v4146
        %v4148 = vrot.slane %v4134, %v4147
        %v4149 = vcombine.low %v4116, %v4132
        %v4150 = vcombine.high %v4116, %v4132
        %v4152 = vunpack.c.l.s4 1934713408
        %v4153 = vunpack.c.0.s8 %v4152
        %v4154 = vlaneseq
        %v4155 = vshrl.u32 %v4154, 7
        %v4156 = vsub.s32 %v4153, %v4155
        %v4157 = vrot.slane %v4149, %v4156
        %v4159 = vunpack.c.l.s4 1934713408
        %v4160 = vunpack.c.0.s8 %v4159
        %v4161 = vlaneseq
        %v4162 = vshrl.u32 %v4161, 7
        %v4163 = vsub.s32 %v4160, %v4162
        %v4164 = vrot.slane %v4150, %v4163
        %v4165 = vcombine.high %v4141, 0.0
        %v4166 = vcombine.high %v4148, 0.0
        %v4167 = vcombine.high %v4157, 0.0
        %v4168 = vcombine.high %v4164, 0.0
        %v4169 = vcombine.low %v4073, %v4080
        %v4171 = vunpack.c.l.s4 1983009808
        %v4172 = vunpack.c.0.s8 %v4171
        %v4173 = vlaneseq
        %v4174 = vshrl.u32 %v4173, 7
        %v4175 = vsub.s32 %v4172, %v4174
        %v4176 = vrot.slane %v4169, %v4175
        %v4177 = vcombine.low %v4097, %v4098
        %v4179 = vunpack.c.l.s4 1983009808
        %v4180 = vunpack.c.0.s8 %v4179
        %v4181 = vlaneseq
        %v4182 = vshrl.u32 %v4181, 7
        %v4183 = vsub.s32 %v4180, %v4182
        %v4184 = vrot.slane %v4177, %v4183
        %v4185 = vcombine.low %v4089, %v4096
        %v4187 = vunpack.c.l.s4 1983009808
        %v4188 = vunpack.c.0.s8 %v4187
        %v4189 = vlaneseq
        %v4190 = vshrl.u32 %v4189, 7
        %v4191 = vsub.s32 %v4188, %v4190
        %v4192 = vrot.slane %v4185, %v4191
        %v4193 = vcombine.low %v4099, %v4100
        %v4195 = vunpack.c.l.s4 1983009808
        %v4196 = vunpack.c.0.s8 %v4195
        %v4197 = vlaneseq
        %v4198 = vshrl.u32 %v4197, 7
        %v4199 = vsub.s32 %v4196, %v4198
        %v4200 = vrot.slane %v4193, %v4199
        %v4201 = vcombine.low %v4176, %v4184
        %v4202 = vcombine.high %v4176, %v4184
        %v4204 = vunpack.c.l.s4 1934713408
        %v4205 = vunpack.c.0.s8 %v4204
        %v4206 = vlaneseq
        %v4207 = vshrl.u32 %v4206, 7
        %v4208 = vsub.s32 %v4205, %v4207
        %v4209 = vrot.slane %v4201, %v4208
        %v4211 = vunpack.c.l.s4 1934713408
        %v4212 = vunpack.c.0.s8 %v4211
        %v4213 = vlaneseq
        %v4214 = vshrl.u32 %v4213, 7
        %v4215 = vsub.s32 %v4212, %v4214
        %v4216 = vrot.slane %v4202, %v4215
        %v4217 = vcombine.low %v4192, %v4200
        %v4218 = vcombine.high %v4192, %v4200
        %v4220 = vunpack.c.l.s4 1934713408
        %v4221 = vunpack.c.0.s8 %v4220
        %v4222 = vlaneseq
        %v4223 = vshrl.u32 %v4222, 7
        %v4224 = vsub.s32 %v4221, %v4223
        %v4225 = vrot.slane %v4217, %v4224
        %v4227 = vunpack.c.l.s4 1934713408
        %v4228 = vunpack.c.0.s8 %v4227
        %v4229 = vlaneseq
        %v4230 = vshrl.u32 %v4229, 7
        %v4231 = vsub.s32 %v4228, %v4230
        %v4232 = vrot.slane %v4218, %v4231
        %v4233 = vcombine.low %v4209, %v4225
        %v4234 = vcombine.high %v4209, %v4225
        %v4235 = vcombine.low %v4216, %v4232
        %v4236 = vcombine.high %v4216, %v4232
        %v4237 = vcombine.low %v4141, %v4148
        %v4239 = vunpack.c.l.s4 1983009808
        %v4240 = vunpack.c.0.s8 %v4239
        %v4241 = vlaneseq
        %v4242 = vshrl.u32 %v4241, 7
        %v4243 = vsub.s32 %v4240, %v4242
        %v4244 = vrot.slane %v4237, %v4243
        %v4245 = vcombine.low %v4165, %v4166
        %v4247 = vunpack.c.l.s4 1983009808
        %v4248 = vunpack.c.0.s8 %v4247
        %v4249 = vlaneseq
        %v4250 = vshrl.u32 %v4249, 7
        %v4251 = vsub.s32 %v4248, %v4250
        %v4252 = vrot.slane %v4245, %v4251
        %v4253 = vcombine.low %v4157, %v4164
        %v4255 = vunpack.c.l.s4 1983009808
        %v4256 = vunpack.c.0.s8 %v4255
        %v4257 = vlaneseq
        %v4258 = vshrl.u32 %v4257, 7
        %v4259 = vsub.s32 %v4256, %v4258
        %v4260 = vrot.slane %v4253, %v4259
        %v4261 = vcombine.low %v4167, %v4168
        %v4263 = vunpack.c.l.s4 1983009808
        %v4264 = vunpack.c.0.s8 %v4263
        %v4265 = vlaneseq
        %v4266 = vshrl.u32 %v4265, 7
        %v4267 = vsub.s32 %v4264, %v4266
        %v4268 = vrot.slane %v4261, %v4267
        %v4269 = vcombine.low %v4244, %v4252
        %v4270 = vcombine.high %v4244, %v4252
        %v4272 = vunpack.c.l.s4 1934713408
        %v4273 = vunpack.c.0.s8 %v4272
        %v4274 = vlaneseq
        %v4275 = vshrl.u32 %v4274, 7
        %v4276 = vsub.s32 %v4273, %v4275
        %v4277 = vrot.slane %v4269, %v4276
        %v4279 = vunpack.c.l.s4 1934713408
        %v4280 = vunpack.c.0.s8 %v4279
        %v4281 = vlaneseq
        %v4282 = vshrl.u32 %v4281, 7
        %v4283 = vsub.s32 %v4280, %v4282
        %v4284 = vrot.slane %v4270, %v4283
        %v4285 = vcombine.low %v4260, %v4268
        %v4286 = vcombine.high %v4260, %v4268
        %v4288 = vunpack.c.l.s4 1934713408
        %v4289 = vunpack.c.0.s8 %v4288
        %v4290 = vlaneseq
        %v4291 = vshrl.u32 %v4290, 7
        %v4292 = vsub.s32 %v4289, %v4291
        %v4293 = vrot.slane %v4285, %v4292
        %v4295 = vunpack.c.l.s4 1934713408
        %v4296 = vunpack.c.0.s8 %v4295
        %v4297 = vlaneseq
        %v4298 = vshrl.u32 %v4297, 7
        %v4299 = vsub.s32 %v4296, %v4298
        %v4300 = vrot.slane %v4286, %v4299
        %v4301 = vcombine.low %v4277, %v4293
        %v4302 = vcombine.high %v4277, %v4293
        %v4303 = vcombine.low %v4284, %v4300
        %v4304 = vcombine.high %v4284, %v4300
        %4307 = vrot.lane.b32.xlu0 %v4234, 8
        %v4308 = vpop.permute.xlu0 %4307
        %4309 = vrot.lane.b32.xlu0 %v4302, 8
        %v4310 = vpop.permute.xlu0 %4309
        %4315 = vrot.lane.b32.xlu0 %v4235, 16
        %v4316 = vpop.permute.xlu0 %4315
        %4317 = vrot.lane.b32.xlu0 %v4303, 16
        %v4318 = vpop.permute.xlu0 %4317
        %4323 = vrot.lane.b32.xlu0 %v4236, 24
        %v4324 = vpop.permute.xlu0 %4323
        %4325 = vrot.lane.b32.xlu0 %v4304, 24
        %v4326 = vpop.permute.xlu0 %4325
        %v4329 = vsel %vm1893, %v4233, %v4308
        %v4330 = vsel %vm1893, %v4301, %v4310
        %v4331 = vsel %vm2092, %v4329, %v4316
        %v4332 = vsel %vm2092, %v4330, %v4318
        %v4333 = vsel %vm2661, %v4331, %v4324
        %v4334 = vsel %vm2661, %v4332, %v4326
        %v4335 = vsel %vm2092, %v3845, 0.0
        %v4336 = vsel %vm2092, %v3847, 0.0
        %v4337 = vadd.f32 %v4335, %v4336
        %v4338 = vsel %vm2092, %v3849, 0.0
        %v4339 = vadd.f32 %v4337, %v4338
        %v4340 = vsel %vm2092, %v3851, 0.0
        %v4341 = vadd.f32 %v4339, %v4340
        %v4342 = vsel %vm2092, %v3846, 0.0
        %v4343 = vsel %vm2092, %v3848, 0.0
        %v4344 = vadd.f32 %v4342, %v4343
        %v4345 = vsel %vm2092, %v3850, 0.0
        %v4346 = vadd.f32 %v4344, %v4345
        %v4347 = vsel %vm2092, %v3852, 0.0
        %v4348 = vadd.f32 %v4346, %v4347
        %v4349 = vmul.f32 %v4341, %v2678
        %v4350 = vmul.f32 %v4348, %v2678
        %v4351 = vpack.c.bf16 %v2663, %v2662
        %v4352 = vpack.c.bf16 %v4334, %v4333
        %v4353 = vld [vmem:[%s9] sm:$0xf]
        %v4354 = vld [vmem:[%s9 + $0x4] sm:$0xf]
        %v4355 = vld [vmem:[%s9 + $0x8] sm:$0xf]
        %v4356 = vld [vmem:[%s9 + $0xc] sm:$0xf]
        %v4357 = vld [vmem:[#allocation11] sm:$0x1]
        %v4359 = vlaneseq
        %v4360 = vshrl.u32 %v4359, 7
        %v4361 = vsub.s32 0, %v4360
        %v4362 = vrot.slane %v4357, %v4361
        %v4368 = vunpack.c.l.b16 %v4353
        %v4369 = vunpack.c.l.b16 %v4354
        %v4370 = vunpack.c.l.b16 %v4355
        %v4371 = vunpack.c.l.b16 %v4356
        %v4372 = vpack.c.b16 %v4369, %v4368
        %v4373 = vpack.c.b16 %v4371, %v4370
        %v4377 = vsel %vm704, %v4351, 0
        %v4380 = vsel %vm704, %v4352, 0
        %4382 = vmatprep.subr.bf16.mxu0 0
        %4383 = vmatpush1.bf16.msra.mxu0 %v4372
        %4384 = vmatprep.subr.bf16.mxu0 0
        %4385 = vmatpush1.bf16.msra.mxu0 %v4373
        %4386 = vmatprep.subr.bf16.mxu0 0
        %4387 = vmatpush1.bf16.msra.mxu0 0
        %4388 = vmatprep.subr.bf16.mxu0 0
        %4389 = vmatpush1.bf16.msra.mxu0 0
        %4390 = vmatprep.subr.bf16.mxu0 0
        %4391 = vmatpush1.bf16.msra.mxu0 0
        %4392 = vmatprep.subr.bf16.mxu0 0
        %4393 = vmatpush1.bf16.msra.mxu0 0
        %4394 = vmatprep.subr.bf16.mxu0 0
        %4395 = vmatpush1.bf16.msra.mxu0 0
        %4396 = vmatprep.subr.bf16.mxu0 0
        %4397 = vmatpush1.bf16.msra.mxu0 0
        %4398 = vmatprep.subr.bf16.mxu0 0
        %4399 = vmatpush1.bf16.msra.mxu0 0
        %4400 = vmatprep.subr.bf16.mxu0 0
        %4401 = vmatpush1.bf16.msra.mxu0 0
        %4402 = vmatprep.subr.bf16.mxu0 0
        %4403 = vmatpush1.bf16.msra.mxu0 0
        %4404 = vmatprep.subr.bf16.mxu0 0
        %4405 = vmatpush1.bf16.msra.mxu0 0
        %4406 = vmatprep.subr.bf16.mxu0 0
        %4407 = vmatpush1.bf16.msra.mxu0 0
        %4408 = vmatprep.subr.bf16.mxu0 0
        %4409 = vmatpush1.bf16.msra.mxu0 0
        %4410 = vmatprep.subr.bf16.mxu0 0
        %4411 = vmatpush1.bf16.msra.mxu0 0
        %4412 = vmatprep.subr.bf16.mxu0 0
        %4413 = vmatpush1.bf16.msra.mxu0 0
        %4414 = vmatprep.mubr.bf16.mxu0 0
        %4415 = vmatmul.mubr.bf16.gmra.mrb[0].mxu0 %v4377
        %v4416 = vpop.f32.mrb[0].mxu0
        %v4417 = vadd.f32 %v4362, %v4416
        %v4418 = vpop.f32.mrb[0].mxu0
        %v4419 = vpop.f32.mrb[0].mxu0
        %v4420 = vadd.f32 %v4362, %v4419
        %v4421 = vpop.f32.mrb[0].mxu0
        %4422 = vmatprep.mubr.bf16.mxu0 0
        %4423 = vmatmul.mubr.bf16.gmra.mrb[0].mxu0 %v4380
        %v4424 = vpop.f32.mrb[0].mxu0
        %v4425 = vadd.f32 %v4362, %v4424
        %v4426 = vpop.f32.mrb[0].mxu0
        %v4427 = vpop.f32.mrb[0].mxu0
        %v4428 = vadd.f32 %v4362, %v4427
        %v4429 = vpop.f32.mrb[0].mxu0
        %4430 = vdwg.mxu0
        %v4431 = vadd.f32 %v698, %v4417
        %v4432 = vadd.f32 %v699, %v4420
        %v4433 = vadd.f32 %v700, %v4425
        %v4434 = vadd.f32 %v701, %v4428
        %v4435 = vld [vmem:[#allocation13] sm:$0x1]
        %v4436 = vld [vmem:[#allocation14] sm:$0x1]
        %v4437 = vsel %vm704, %v4431, 0.0
        %4438 = vadd.xlane.f32.xlu0 %v4437
        %v4439 = vpop.xlane.xlu0 %4438
        %v4440 = vsel %vm704, %v4432, 0.0
        %4441 = vadd.xlane.f32.xlu0 %v4440
        %v4442 = vpop.xlane.xlu0 %4441
        %v4443 = vsel %vm704, %v4433, 0.0
        %4444 = vadd.xlane.f32.xlu0 %v4443
        %v4445 = vpop.xlane.xlu0 %4444
        %v4446 = vsel %vm704, %v4434, 0.0
        %4447 = vadd.xlane.f32.xlu0 %v4446
        %v4448 = vpop.xlane.xlu0 %4447
        %v4449 = vmul.f32 %v4439, %v717
        %v4450 = vmul.f32 %v4442, %v717
        %v4451 = vmul.f32 %v4445, %v717
        %v4452 = vmul.f32 %v4448, %v717
        %v4453 = vsub.f32 %v4431, %v4449
        %v4454 = vsub.f32 %v4432, %v4450
        %v4455 = vsub.f32 %v4433, %v4451
        %v4456 = vsub.f32 %v4434, %v4452
        %v4457 = vmul.f32 %v4453, %v4453
        %v4458 = vmul.f32 %v4454, %v4454
        %v4459 = vmul.f32 %v4455, %v4455
        %v4460 = vmul.f32 %v4456, %v4456
        %v4461 = vsel %vm704, %v4457, 0.0
        %4462 = vadd.xlane.f32.xlu0 %v4461
        %v4463 = vpop.xlane.xlu0 %4462
        %v4464 = vsel %vm704, %v4458, 0.0
        %4465 = vadd.xlane.f32.xlu0 %v4464
        %v4466 = vpop.xlane.xlu0 %4465
        %v4467 = vsel %vm704, %v4459, 0.0
        %4468 = vadd.xlane.f32.xlu0 %v4467
        %v4469 = vpop.xlane.xlu0 %4468
        %v4470 = vsel %vm704, %v4460, 0.0
        %4471 = vadd.xlane.f32.xlu0 %v4470
        %v4472 = vpop.xlane.xlu0 %4471
        %v4473 = vmul.f32 %v4463, %v717
        %v4474 = vmul.f32 %v4466, %v717
        %v4475 = vmul.f32 %v4469, %v717
        %v4476 = vmul.f32 %v4472, %v717
        %v4477 = vadd.f32 %v4473, 1e-06
        %v4478 = vadd.f32 %v4474, 1e-06
        %v4479 = vadd.f32 %v4475, 1e-06
        %v4480 = vadd.f32 %v4476, 1e-06
        %v4481 = vrsqrt.pop %v4477
        %v4482 = vrsqrt.pop %v4478
        %v4483 = vrsqrt.pop %v4479
        %v4484 = vrsqrt.pop %v4480
        %v4485 = vmul.f32 %v4453, %v4481
        %v4486 = vmul.f32 %v4454, %v4482
        %v4487 = vmul.f32 %v4455, %v4483
        %v4488 = vmul.f32 %v4456, %v4484
        %v4490 = vlaneseq
        %v4491 = vshrl.u32 %v4490, 7
        %v4492 = vsub.s32 0, %v4491
        %v4493 = vrot.slane %v4435, %v4492
        %v4495 = vmul.f32 %v4485, %v4493
        %v4496 = vmul.f32 %v4486, %v4493
        %v4497 = vmul.f32 %v4487, %v4493
        %v4498 = vmul.f32 %v4488, %v4493
        %v4500 = vlaneseq
        %v4501 = vshrl.u32 %v4500, 7
        %v4502 = vsub.s32 0, %v4501
        %v4503 = vrot.slane %v4436, %v4502
        %v4505 = vadd.f32 %v4495, %v4503
        %v4506 = vadd.f32 %v4496, %v4503
        %v4507 = vadd.f32 %v4497, %v4503
        %v4508 = vadd.f32 %v4498, %v4503
        %v4509 = vpack.c.bf16 %v4506, %v4505
        %v4510 = vpack.c.bf16 %v4508, %v4507
        %v4511 = vld [vmem:[%s13] sm:$0xf]
        %v4512 = vld [vmem:[%s13 + $0x4] sm:$0xf]
        %v4513 = vld [vmem:[%s13 + $0x8] sm:$0xf]
        %v4514 = vld [vmem:[%s13 + $0xc] sm:$0xf]
        %v4515 = vld [vmem:[%s14] sm:$0x1]
        %v4517 = vlaneseq
        %v4518 = vshrl.u32 %v4517, 7
        %v4519 = vsub.s32 0, %v4518
        %v4520 = vrot.slane %v4515, %v4519
        %v4526 = vunpack.c.l.b16 %v4511
        %v4527 = vunpack.c.l.b16 %v4512
        %v4528 = vunpack.c.l.b16 %v4513
        %v4529 = vunpack.c.l.b16 %v4514
        %v4530 = vpack.c.b16 %v4527, %v4526
        %v4531 = vpack.c.b16 %v4529, %v4528
        %v4535 = vsel %vm704, %v4509, 0
        %v4538 = vsel %vm704, %v4510, 0
        %4540 = vmatprep.subr.bf16.mxu0 0
        %4541 = vmatpush1.bf16.msra.mxu0 %v4530
        %4542 = vmatprep.subr.bf16.mxu0 0
        %4543 = vmatpush1.bf16.msra.mxu0 %v4531
        %4544 = vmatprep.subr.bf16.mxu0 0
        %4545 = vmatpush1.bf16.msra.mxu0 0
        %4546 = vmatprep.subr.bf16.mxu0 0
        %4547 = vmatpush1.bf16.msra.mxu0 0
        %4548 = vmatprep.subr.bf16.mxu0 0
        %4549 = vmatpush1.bf16.msra.mxu0 0
        %4550 = vmatprep.subr.bf16.mxu0 0
        %4551 = vmatpush1.bf16.msra.mxu0 0
        %4552 = vmatprep.subr.bf16.mxu0 0
        %4553 = vmatpush1.bf16.msra.mxu0 0
        %4554 = vmatprep.subr.bf16.mxu0 0
        %4555 = vmatpush1.bf16.msra.mxu0 0
        %4556 = vmatprep.subr.bf16.mxu0 0
        %4557 = vmatpush1.bf16.msra.mxu0 0
        %4558 = vmatprep.subr.bf16.mxu0 0
        %4559 = vmatpush1.bf16.msra.mxu0 0
        %4560 = vmatprep.subr.bf16.mxu0 0
        %4561 = vmatpush1.bf16.msra.mxu0 0
        %4562 = vmatprep.subr.bf16.mxu0 0
        %4563 = vmatpush1.bf16.msra.mxu0 0
        %4564 = vmatprep.subr.bf16.mxu0 0
        %4565 = vmatpush1.bf16.msra.mxu0 0
        %4566 = vmatprep.subr.bf16.mxu0 0
        %4567 = vmatpush1.bf16.msra.mxu0 0
        %4568 = vmatprep.subr.bf16.mxu0 0
        %4569 = vmatpush1.bf16.msra.mxu0 0
        %4570 = vmatprep.subr.bf16.mxu0 0
        %4571 = vmatpush1.bf16.msra.mxu0 0
        %4572 = vmatprep.mubr.bf16.mxu0 0
        %4573 = vmatmul.mubr.bf16.gmra.mrb[0].mxu0 %v4535
        %v4574 = vpop.f32.mrb[0].mxu0
        %v4575 = vadd.f32 %v4520, %v4574
        %v4576 = vpop.f32.mrb[0].mxu0
        %v4577 = vpop.f32.mrb[0].mxu0
        %v4578 = vadd.f32 %v4520, %v4577
        %v4579 = vpop.f32.mrb[0].mxu0
        %4580 = vmatprep.mubr.bf16.mxu0 0
        %4581 = vmatmul.mubr.bf16.gmra.mrb[0].mxu0 %v4538
        %v4582 = vpop.f32.mrb[0].mxu0
        %v4583 = vadd.f32 %v4520, %v4582
        %v4584 = vpop.f32.mrb[0].mxu0
        %v4585 = vpop.f32.mrb[0].mxu0
        %v4586 = vadd.f32 %v4520, %v4585
        %v4587 = vpop.f32.mrb[0].mxu0
        %4588 = vdwg.mxu0
        %v4589 = vmul.f32 %v4575, 0.5
        %v4590 = vmul.f32 %v4578, 0.5
        %v4591 = vmul.f32 %v4583, 0.5
        %v4592 = vmul.f32 %v4586, 0.5
        %v4593 = vmul.f32 %v4575, 0.70710677
        %v4594 = vmul.f32 %v4578, 0.70710677
        %v4595 = vmul.f32 %v4583, 0.70710677
        %v4596 = vmul.f32 %v4586, 0.70710677
        %v4597 = verf.f32.pop %v4593
        %v4598 = verf.f32.pop %v4594
        %v4599 = verf.f32.pop %v4595
        %v4600 = verf.f32.pop %v4596
        %v4601 = vadd.f32 %v4597, 1.0
        %v4602 = vadd.f32 %v4598, 1.0
        %v4603 = vadd.f32 %v4599, 1.0
        %v4604 = vadd.f32 %v4600, 1.0
        %v4605 = vmul.f32 %v4589, %v4601
        %v4606 = vmul.f32 %v4590, %v4602
        %v4607 = vmul.f32 %v4591, %v4603
        %v4608 = vmul.f32 %v4592, %v4604
        %v4609 = vpack.c.bf16 %v4606, %v4605
        %v4610 = vpack.c.bf16 %v4608, %v4607
        %v4611 = vld [vmem:[%s15] sm:$0xf]
        %v4612 = vld [vmem:[%s15 + $0x4] sm:$0xf]
        %v4613 = vld [vmem:[%s15 + $0x8] sm:$0xf]
        %v4614 = vld [vmem:[%s15 + $0xc] sm:$0xf]
        %v4615 = vld [vmem:[%s15 + $0x10] sm:$0xf]
        %v4616 = vld [vmem:[%s15 + $0x14] sm:$0xf]
        %v4617 = vld [vmem:[%s15 + $0x18] sm:$0xf]
        %v4618 = vld [vmem:[%s15 + $0x1c] sm:$0xf]
        %v4619 = vld [vmem:[%s16] sm:$0x1]
        %v4621 = vlaneseq
        %v4622 = vshrl.u32 %v4621, 7
        %v4623 = vsub.s32 0, %v4622
        %v4624 = vrot.slane %v4619, %v4623
        %v4634 = vunpack.c.l.b16 %v4611
        %v4635 = vunpack.c.l.b16 %v4612
        %v4636 = vunpack.c.l.b16 %v4613
        %v4637 = vunpack.c.l.b16 %v4614
        %v4638 = vunpack.c.l.b16 %v4615
        %v4639 = vunpack.c.l.b16 %v4616
        %v4640 = vunpack.c.l.b16 %v4617
        %v4641 = vunpack.c.l.b16 %v4618
        %v4642 = vpack.c.b16 %v4635, %v4634
        %v4643 = vpack.c.b16 %v4637, %v4636
        %v4644 = vpack.c.b16 %v4639, %v4638
        %v4645 = vpack.c.b16 %v4641, %v4640
        %vm4650 = vcmask 523264
        %v4652 = vsel %vm4650, %v4609, 0
        %v4655 = vsel %vm4650, %v4610, 0
        %4657 = vmatprep.subr.bf16.mxu0 0
        %4658 = vmatpush1.bf16.msra.mxu0 %v4642
        %4659 = vmatprep.subr.bf16.mxu0 0
        %4660 = vmatpush1.bf16.msra.mxu0 %v4643
        %4661 = vmatprep.subr.bf16.mxu0 0
        %4662 = vmatpush1.bf16.msra.mxu0 %v4644
        %4663 = vmatprep.subr.bf16.mxu0 0
        %4664 = vmatpush1.bf16.msra.mxu0 %v4645
        %4665 = vmatprep.subr.bf16.mxu0 0
        %4666 = vmatpush1.bf16.msra.mxu0 0
        %4667 = vmatprep.subr.bf16.mxu0 0
        %4668 = vmatpush1.bf16.msra.mxu0 0
        %4669 = vmatprep.subr.bf16.mxu0 0
        %4670 = vmatpush1.bf16.msra.mxu0 0
        %4671 = vmatprep.subr.bf16.mxu0 0
        %4672 = vmatpush1.bf16.msra.mxu0 0
        %4673 = vmatprep.subr.bf16.mxu0 0
        %4674 = vmatpush1.bf16.msra.mxu0 0
        %4675 = vmatprep.subr.bf16.mxu0 0
        %4676 = vmatpush1.bf16.msra.mxu0 0
        %4677 = vmatprep.subr.bf16.mxu0 0
        %4678 = vmatpush1.bf16.msra.mxu0 0
        %4679 = vmatprep.subr.bf16.mxu0 0
        %4680 = vmatpush1.bf16.msra.mxu0 0
        %4681 = vmatprep.subr.bf16.mxu0 0
        %4682 = vmatpush1.bf16.msra.mxu0 0
        %4683 = vmatprep.subr.bf16.mxu0 0
        %4684 = vmatpush1.bf16.msra.mxu0 0
        %4685 = vmatprep.subr.bf16.mxu0 0
        %4686 = vmatpush1.bf16.msra.mxu0 0
        %4687 = vmatprep.subr.bf16.mxu0 0
        %4688 = vmatpush1.bf16.msra.mxu0 0
        %4689 = vmatprep.mubr.bf16.mxu0 0
        %4690 = vmatmul.mubr.bf16.gmra.mrb[0].mxu0 %v4652
        %v4691 = vpop.f32.mrb[0].mxu0
        %v4692 = vadd.f32 %v4624, %v4691
        %v4693 = vpop.f32.mrb[0].mxu0
        %v4694 = vpop.f32.mrb[0].mxu0
        %v4695 = vadd.f32 %v4624, %v4694
        %v4696 = vpop.f32.mrb[0].mxu0
        %4697 = vmatprep.mubr.bf16.mxu0 0
        %4698 = vmatmul.mubr.bf16.gmra.mrb[0].mxu0 %v4655
        %v4699 = vpop.f32.mrb[0].mxu0
        %v4700 = vadd.f32 %v4624, %v4699
        %v4701 = vpop.f32.mrb[0].mxu0
        %v4702 = vpop.f32.mrb[0].mxu0
        %v4703 = vadd.f32 %v4624, %v4702
        %v4704 = vpop.f32.mrb[0].mxu0
        %4705 = vdwg.mxu0
        %v4706 = vadd.f32 %v4431, %v4692
        %v4707 = vadd.f32 %v4432, %v4695
        %v4708 = vadd.f32 %v4433, %v4700
        %v4709 = vadd.f32 %v4434, %v4703
        %4710 = vst.msk [vmem:[%s686] sm:$0xff] %vm704, %v4706
        %4711 = vst.msk [vmem:[%s686 + $0x8] sm:$0xff] %vm704, %v4707
        %4712 = vst.msk [vmem:[%s686 + $0x10] sm:$0xff] %vm704, %v4708
        %4713 = vst.msk [vmem:[%s686 + $0x18] sm:$0xff] %vm704, %v4709
        %4714 = vst.msk [vmem:[%s693] sm:$0xff] %vm2092, %v2679
        %4715 = vst.msk [vmem:[%s693 + $0x8] sm:$0xff] %vm2092, %v2680
        %4716 = vst.msk [vmem:[%s693 + $0x10] sm:$0xff] %vm2092, %v4349
        %4717 = vst.msk [vmem:[%s693 + $0x18] sm:$0xff] %vm2092, %v4350
        %s4718 = sand.u32 %s413, 1
        %s4719 = scalar_lea.sflag [#allocation4], %s4718
        %s4720 = sand.u32 %s413, 1
        %s4721 = smul.addr %s4720, 32
        %s4722 = scalar_lea.vmem [#allocation16], %s4721
        %s4723 = sand.u32 %s439, 1
        %s4724 = scalar_lea.sflag [#allocation18], %s4723
        %s4725 = sand.u32 %s439, 1
        %s4726 = smul.addr %s4725, 32
        %s4727 = scalar_lea.vmem [#allocation17], %s4726
        // Predicated region
        $region121: #{tpu_custom_call.1} parent=87 // pred_check
          %p4728 = pneg %p423
        $region122: #{tpu_custom_call.1} parent=87 // pred_check_branch
          %4730 = sbr.rel (%p4728) target = $region124
        $region123: #{tpu_custom_call.1} parent=87 // pred_region
          %s4731 = smul.u32 2, %s43
          %s4733 = ssub.s32 512, 512
          %4734 = vsyncadd %s4719, %s4733
          %s4735 = smul.addr %s4731, 2
          %s4736 = smul.addr %s4735, 128
          %s4737 = scalar_lea.hbm %s17, %s4736
          %s4738 = sshll.u32 %s4722, 4
          %s4739 = int_to_ptr.vmem [resolvable:$true] %s4738
          %4744 = dma.vmem_to_hbm [thread:$0]  %s4739, 512, %s4737, %s4719, 128, 128, 8
        $region124: #{tpu_custom_call.1} parent=87 // pred_fallthru
          _
        // Predicated region
        $region125: #{tpu_custom_call.1} parent=87 // pred_check
          %p4745 = pneg %p449
        $region126: #{tpu_custom_call.1} parent=87 // pred_check_branch
          %4747 = sbr.rel (%p4745) target = $region128
        $region127: #{tpu_custom_call.1} parent=87 // pred_region
          %s4748 = smul.u32 2, %s43
          %s4750 = ssub.s32 512, 512
          %4751 = vsyncadd %s4724, %s4750
          %s4752 = smul.addr %s4748, 2
          %s4753 = smul.addr %s4752, 128
          %s4754 = scalar_lea.hbm %s18, %s4753
          %s4755 = sshll.u32 %s4727, 4
          %s4756 = int_to_ptr.vmem [resolvable:$true] %s4755
          %4761 = dma.vmem_to_hbm [thread:$0]  %s4756, 512, %s4754, %s4724, 128, 128, 8
        $region128: #{tpu_custom_call.1} parent=87 // pred_fallthru
          _
      $region88: #{tpu_custom_call.1} parent=5 // pred_fallthru
        _
      %p4762 = scmp.le.s32.totalorder 2, %s38
      // Predicated region
      $region129: #{tpu_custom_call.1} parent=5 // pred_check
        %p4763 = pneg %p4762
      $region130: #{tpu_custom_call.1} parent=5 // pred_check_branch
        %4765 = sbr.rel (%p4763) target = $region132
      $region131: #{tpu_custom_call.1} parent=5 // pred_region
        %s4766 = ssub.s32 %s38, 2
        // Predicated region
        $region133: #{tpu_custom_call.1} parent=131 // pred_check
          %p4767 = pneg %p429
        $region134: #{tpu_custom_call.1} parent=131 // pred_check_branch
          %4769 = sbr.rel (%p4767) target = $region136
        $region135: #{tpu_custom_call.1} parent=131 // pred_region
          %s4770 = sand.u32 %s414, 1
          %s4771 = scalar_lea.sflag [#allocation4], %s4770
          %s4772 = sand.u32 %s414, 1
          %s4773 = smul.addr %s4772, 32
          %s4774 = scalar_lea.vmem [#allocation16], %s4773
          %4775 = dma.done %s4771, 512
        $region136: #{tpu_custom_call.1} parent=131 // pred_fallthru
          _
        // Predicated region
        $region137: #{tpu_custom_call.1} parent=131 // pred_check
          %p4776 = pneg %p455
        $region138: #{tpu_custom_call.1} parent=131 // pred_check_branch
          %4778 = sbr.rel (%p4776) target = $region140
        $region139: #{tpu_custom_call.1} parent=131 // pred_region
          %s4779 = sand.u32 %s440, 1
          %s4780 = scalar_lea.sflag [#allocation18], %s4779
          %s4781 = sand.u32 %s440, 1
          %s4782 = smul.addr %s4781, 32
          %s4783 = scalar_lea.vmem [#allocation17], %s4782
          %4784 = dma.done %s4780, 512
        $region140: #{tpu_custom_call.1} parent=131 // pred_fallthru
          _
      $region132: #{tpu_custom_call.1} parent=5 // pred_fallthru
        _
    $region6: #{tpu_custom_call.1} parent=1 // loop_footer
      %s42 = sadd.s32 1, %s38
    $region7: #{tpu_custom_call.1} parent=1 // loop_footer_branch
      %37 = sbr.rel target = $region3
    $region8: #{tpu_custom_call.1} parent=1 // loop_exit
      _
    %4785 = vsyncpa [#allocation3], 1
    %s4786 = scalar_lea.sflag [#allocation3], 1
    %4787 = vsyncpa %s4786, 1
    %4788 = vsyncpa [#allocation6], 1
    %4789 = vsyncpa [#allocation9], 1
    %4790 = vsyncpa [#allocation12], 1
    %4791 = vsyncpa [#allocation15], 1
    %4792 = vsyncpa [#allocation4], 1
    %s4793 = scalar_lea.sflag [#allocation4], 1
    %4794 = vsyncpa %s4793, 1
    %4795 = vsyncpa [#allocation18], 1
    %s4796 = scalar_lea.sflag [#allocation18], 1
    %4797 = vsyncpa %s4796, 1

// kernel: tpu_custom_call.1
$region0: #{tpu_custom_call.1}
  #allocation0 [shape = 'u32[]', space=smem, size = 0x4, offset = 0x4, fixed_abs, tag = 'smem constant byte address 0x4 - core index']
  #allocation1 [shape = 'u32[144,128]{1,0:T(1,128)}', space=vmem, size = 0x12000, scoped, tag = 'internal scratch']
  %s0 = inlined_call_operand.hbm [shape: f32[4,16,32], index: 0, kind: input, shape index: {}]
  %s1 = inlined_call_operand.vmem [shape: f32[1,32], index: 1, kind: input, shape index: {}]
  %s2 = inlined_call_operand.hbm [shape: f32[1,32], index: 2, kind: input, shape index: {}]
  %s3 = inlined_call_operand.vmem [shape: bf16[32,32], index: 3, kind: input, shape index: {}]
  %s4 = inlined_call_operand.vmem [shape: bf16[32,32], index: 4, kind: input, shape index: {}]
  %s5 = inlined_call_operand.vmem [shape: bf16[32,32], index: 5, kind: input, shape index: {}]
  %s6 = inlined_call_operand.hbm [shape: f32[1,32], index: 6, kind: input, shape index: {}]
  %s7 = inlined_call_operand.hbm [shape: f32[1,32], index: 7, kind: input, shape index: {}]
  %s8 = inlined_call_operand.hbm [shape: f32[1,32], index: 8, kind: input, shape index: {}]
  %s9 = inlined_call_operand.vmem [shape: bf16[32,32], index: 9, kind: input, shape index: {}]
  %s10 = inlined_call_operand.hbm [shape: f32[1,32], index: 10, kind: input, shape index: {}]
  %s11 = inlined_call_operand.hbm [shape: f32[1,32], index: 11, kind: input, shape index: {}]
  %s12 = inlined_call_operand.hbm [shape: f32[1,32], index: 12, kind: input, shape index: {}]
  %s13 = inlined_call_operand.vmem [shape: bf16[32,64], index: 13, kind: input, shape index: {}]
  %s14 = inlined_call_operand.vmem [shape: f32[1,64], index: 14, kind: input, shape index: {}]
  %s15 = inlined_call_operand.vmem [shape: bf16[64,32], index: 15, kind: input, shape index: {}]
  %s16 = inlined_call_operand.vmem [shape: f32[1,32], index: 16, kind: input, shape index: {}]
  %s17 = inlined_call_operand.hbm [shape: f32[4,16,32], index: 17, kind: output, shape index: {0}]
  %s18 = inlined_call_operand.hbm [shape: f32[4,16,128], index: 18, kind: output, shape index: {1}]
  %19 = xla_tuple %s17, %s18
  %s20 = sld [smem:[#allocation0]]
  $region141: #{tpu_custom_call.1} parent=0
    _
  %s22 = ssub.s32 1, %s20
  %s23 = scalar_select 0, %s22, %s20
  $region1: #{tpu_custom_call.1} parent=0
    #allocation2 [shape = 'u8[32768]{0}', space=vmem, size = 0x8000, scoped, tag = 'input window, operand 0']
    #allocation3 [shape = 's32[2]{0}', space=sflag, size = 0x8, scoped, tag = 'scoped memory for tpu_custom_call.1']
    #allocation4 [shape = 's32[2]{0}', space=sflag, size = 0x8, scoped, tag = 'scoped memory for tpu_custom_call.1']
    #allocation5 [shape = 'u8[512]{0}', space=vmem, size = 0x400, scoped, tag = 'input window, operand 2, single buffered']
    #allocation6 [shape = 's32[1]{0}', space=sflag, size = 0x4, scoped, tag = 'scoped memory for tpu_custom_call.1']
    #allocation7 [shape = 'u8[512]{0}', space=vmem, size = 0x400, scoped, tag = 'input window, operand 6, single buffered']
    #allocation8 [shape = 'u8[512]{0}', space=vmem, size = 0x400, scoped, tag = 'input window, operand 7, single buffered']
    #allocation9 [shape = 's32[1]{0}', space=sflag, size = 0x4, scoped, tag = 'scoped memory for tpu_custom_call.1']
    #allocation10 [shape = 'u8[512]{0}', space=vmem, size = 0x400, scoped, tag = 'input window, operand 8, single buffered']
    #allocation11 [shape = 'u8[512]{0}', space=vmem, size = 0x400, scoped, tag = 'input window, operand 10, single buffered']
    #allocation12 [shape = 's32[1]{0}', space=sflag, size = 0x4, scoped, tag = 'scoped memory for tpu_custom_call.1']
    #allocation13 [shape = 'u8[512]{0}', space=vmem, size = 0x400, scoped, tag = 'input window, operand 11, single buffered']
    #allocation14 [shape = 'u8[512]{0}', space=vmem, size = 0x400, scoped, tag = 'input window, operand 12, single buffered']
    #allocation15 [shape = 's32[1]{0}', space=sflag, size = 0x4, scoped, tag = 'scoped memory for tpu_custom_call.1']
    #allocation16 [shape = 'u8[32768]{0}', space=vmem, size = 0x8000, scoped, tag = 'output window, operand 0']
    #allocation17 [shape = 'u8[32768]{0}', space=vmem, size = 0x8000, scoped, tag = 'output window, operand 1']
    #allocation18 [shape = 's32[2]{0}', space=sflag, size = 0x8, scoped, tag = 'scoped memory for tpu_custom_call.1']
    %24 = vsyncpa [#allocation3], 0
    %s25 = scalar_lea.sflag [#allocation3], 1
    %26 = vsyncpa %s25, 0
    %27 = vsyncpa [#allocation6], 0
    %28 = vsyncpa [#allocation9], 0
    %29 = vsyncpa [#allocation12], 0
    %30 = vsyncpa [#allocation15], 0
    %31 = vsyncpa [#allocation4], 0
    %s32 = scalar_lea.sflag [#allocation4], 1
    %33 = vsyncpa %s32, 0
    %34 = vsyncpa [#allocation18], 0
    %s35 = scalar_lea.sflag [#allocation18], 1
    %36 = vsyncpa %s35, 0
    loop: start=0, step=1, limit=4
    $region2: #{tpu_custom_call.1} parent=1 // loop_pre_header
      _
    $region3: #{tpu_custom_call.1} parent=1 // loop_header
      %s38 = sphi 0, %s42
      %p39 = scmp.ge.s32.totalorder %s38, 4
      %s48 = sphi 0, %s50
      %s51 = sphi 0, %s48
      %s52 = sphi 0, %s51
      %s68 = sphi 0, %s52
      %s72 = sphi 0, %s72
      %s74 = sphi 0, %s72
      %s75 = sphi 0, %s74
      %s89 = sphi 0, %s75
      %s93 = sphi 0, %s93
      %s95 = sphi 0, %s93
      %s96 = sphi 0, %s95
      %s110 = sphi 0, %s96
      %s114 = sphi 0, %s114
      %s116 = sphi 0, %s114
      %s117 = sphi 0, %s116
      %s131 = sphi 0, %s117
      %s135 = sphi 0, %s135
      %s137 = sphi 0, %s135
      %s138 = sphi 0, %s137
      %s152 = sphi 0, %s138
      %s156 = sphi 0, %s156
      %s158 = sphi 0, %s156
      %s159 = sphi 0, %s158
      %s173 = sphi 0, %s159
      %s177 = sphi 0, %s177
      %s179 = sphi 0, %s177
      %s180 = sphi 0, %s179
      %s194 = sphi 0, %s180
      %s198 = sphi 0, %s198
      %s200 = sphi 0, %s198
      %s201 = sphi 0, %s200
      %s215 = sphi 0, %s201
      %s219 = sphi 0, %s219
      %s221 = sphi 0, %s219
      %s222 = sphi 0, %s221
      %s236 = sphi 0, %s222
      %s240 = sphi 0, %s240
      %s242 = sphi 0, %s240
      %s243 = sphi 0, %s242
      %s257 = sphi 0, %s243
      %s261 = sphi 0, %s261
      %s263 = sphi 0, %s261
      %s264 = sphi 0, %s263
      %s278 = sphi 0, %s264
      %s282 = sphi 0, %s282
      %s284 = sphi 0, %s282
      %s285 = sphi 0, %s284
      %s299 = sphi 0, %s285
      %s303 = sphi 0, %s303
      %s305 = sphi 0, %s303
      %s306 = sphi 0, %s305
      %s320 = sphi 0, %s306
      %s324 = sphi 0, %s324
      %s326 = sphi 0, %s324
      %s327 = sphi 0, %s326
      %s341 = sphi 0, %s327
      %s345 = sphi 0, %s345
      %s347 = sphi 0, %s345
      %s348 = sphi 0, %s347
      %s362 = sphi 0, %s348
      %s366 = sphi 0, %s366
      %s368 = sphi 0, %s366
      %s369 = sphi 0, %s368
      %s383 = sphi 0, %s369
      %s387 = sphi 0, %s387
      %s389 = sphi 0, %s387
      %s390 = sphi 0, %s389
      %s404 = sphi 0, %s390
      %s410 = sphi 0, %s412
      %s413 = sphi 0, %s410
      %s414 = sphi 0, %s413
      %s430 = sphi 0, %s414
      %s436 = sphi 0, %s438
      %s439 = sphi 0, %s436
      %s440 = sphi 0, %s439
      %s456 = sphi 0, %s440
    $region4: #{tpu_custom_call.1} parent=1 // loop_header_branch
      %41 = sbr.rel (%p39) target = $region8
    $region5: #{tpu_custom_call.1} parent=1 // loop_body
      %s43 = ssub.s32 %s38, 1
      %s44 = ssub.s32 %s38, 2
      %s45 = sadd.s32 %s38, 1
      %s46 = ssub.s32 %s38, %s45
      %p47 = scmp.eq.s32.totalorder %s46, 0
      %s49 = sadd.s32 %s48, 1
      %s50 = scalar_select %p47, %s48, %s49
      %p53 = pneg %p47
      %p54 = scmp.eq.s32.totalorder %s38, 1
      %p55 = por %p53, %p54
      %p56 = scmp.ne.s32.totalorder %s48, %s51
      %p57 = scmp.eq.s32.totalorder %s38, 0
      %p58 = por %p56, %p57
      %p59 = scmp.ne.s32.totalorder %s48, %s51
      %p60 = scmp.eq.s32.totalorder %s43, 1
      %p61 = por %p59, %p60
      %p62 = scmp.ne.s32.totalorder %s51, %s52
      %p63 = scmp.eq.s32.totalorder %s43, 0
      %p64 = por %p62, %p63
      %p65 = scmp.ne.s32.totalorder %s51, %s52
      %p66 = scmp.eq.s32.totalorder %s44, 1
      %p67 = por %p65, %p66
      %p69 = scmp.ne.s32.totalorder %s52, %s68
      %p70 = scmp.eq.s32.totalorder %s44, 0
      %p71 = por %p69, %p70
      %s73 = sadd.s32 %s72, 1
      %p76 = scmp.eq.s32.totalorder %s38, 1
      %p77 = scmp.ne.s32.totalorder %s72, %s74
      %p78 = scmp.eq.s32.totalorder %s38, 0
      %p79 = por %p77, %p78
      %p80 = scmp.ne.s32.totalorder %s72, %s74
      %p81 = scmp.eq.s32.totalorder %s43, 1
      %p82 = por %p80, %p81
      %p83 = scmp.ne.s32.totalorder %s74, %s75
      %p84 = scmp.eq.s32.totalorder %s43, 0
      %p85 = por %p83, %p84
      %p86 = scmp.ne.s32.totalorder %s74, %s75
      %p87 = scmp.eq.s32.totalorder %s44, 1
      %p88 = por %p86, %p87
      %p90 = scmp.ne.s32.totalorder %s75, %s89
      %p91 = scmp.eq.s32.totalorder %s44, 0
      %p92 = por %p90, %p91
      %s94 = sadd.s32 %s93, 1
      %p97 = scmp.eq.s32.totalorder %s38, 1
      %p98 = scmp.ne.s32.totalorder %s93, %s95
      %p99 = scmp.eq.s32.totalorder %s38, 0
      %p100 = por %p98, %p99
      %p101 = scmp.ne.s32.totalorder %s93, %s95
      %p102 = scmp.eq.s32.totalorder %s43, 1
      %p103 = por %p101, %p102
      %p104 = scmp.ne.s32.totalorder %s95, %s96
      %p105 = scmp.eq.s32.totalorder %s43, 0
      %p106 = por %p104, %p105
      %p107 = scmp.ne.s32.totalorder %s95, %s96
      %p108 = scmp.eq.s32.totalorder %s44, 1
      %p109 = por %p107, %p108
      %p111 = scmp.ne.s32.totalorder %s96, %s110
      %p112 = scmp.eq.s32.totalorder %s44, 0
      %p113 = por %p111, %p112
      %s115 = sadd.s32 %s114, 1
      %p118 = scmp.eq.s32.totalorder %s38, 1
      %p119 = scmp.ne.s32.totalorder %s114, %s116
      %p120 = scmp.eq.s32.totalorder %s38, 0
      %p121 = por %p119, %p120
      %p122 = scmp.ne.s32.totalorder %s114, %s116
      %p123 = scmp.eq.s32.totalorder %s43, 1
      %p124 = por %p122, %p123
      %p125 = scmp.ne.s32.totalorder %s116, %s117
      %p126 = scmp.eq.s32.totalorder %s43, 0
      %p127 = por %p125, %p126
      %p128 = scmp.ne.s32.totalorder %s116, %s117
      %p129 = scmp.eq.s32.totalorder %s44, 1
      %p130 = por %p128, %p129
      %p132 = scmp.ne.s32.totalorder %s117, %s131
      %p133 = scmp.eq.s32.totalorder %s44, 0
      %p134 = por %p132, %p133
      %s136 = sadd.s32 %s135, 1
      %p139 = scmp.eq.s32.totalorder %s38, 1
      %p140 = scmp.ne.s32.totalorder %s135, %s137
      %p141 = scmp.eq.s32.totalorder %s38, 0
      %p142 = por %p140, %p141
      %p143 = scmp.ne.s32.totalorder %s135, %s137
      %p144 = scmp.eq.s32.totalorder %s43, 1
      %p145 = por %p143, %p144
      %p146 = scmp.ne.s32.totalorder %s137, %s138
      %p147 = scmp.eq.s32.totalorder %s43, 0
      %p148 = por %p146, %p147
      %p149 = scmp.ne.s32.totalorder %s137, %s138
      %p150 = scmp.eq.s32.totalorder %s44, 1
      %p151 = por %p149, %p150
      %p153 = scmp.ne.s32.totalorder %s138, %s152
      %p154 = scmp.eq.s32.totalorder %s44, 0
      %p155 = por %p153, %p154
      %s157 = sadd.s32 %s156, 1
      %p160 = scmp.eq.s32.totalorder %s38, 1
      %p161 = scmp.ne.s32.totalorder %s156, %s158
      %p162 = scmp.eq.s32.totalorder %s38, 0
      %p163 = por %p161, %p162
      %p164 = scmp.ne.s32.totalorder %s156, %s158
      %p165 = scmp.eq.s32.totalorder %s43, 1
      %p166 = por %p164, %p165
      %p167 = scmp.ne.s32.totalorder %s158, %s159
      %p168 = scmp.eq.s32.totalorder %s43, 0
      %p169 = por %p167, %p168
      %p170 = scmp.ne.s32.totalorder %s158, %s159
      %p171 = scmp.eq.s32.totalorder %s44, 1
      %p172 = por %p170, %p171
      %p174 = scmp.ne.s32.totalorder %s159, %s173
      %p175 = scmp.eq.s32.totalorder %s44, 0
      %p176 = por %p174, %p175
      %s178 = sadd.s32 %s177, 1
      %p181 = scmp.eq.s32.totalorder %s38, 1
      %p182 = scmp.ne.s32.totalorder %s177, %s179
      %p183 = scmp.eq.s32.totalorder %s38, 0
      %p184 = por %p182, %p183
      %p185 = scmp.ne.s32.totalorder %s177, %s179
      %p186 = scmp.eq.s32.totalorder %s43, 1
      %p187 = por %p185, %p186
      %p188 = scmp.ne.s32.totalorder %s179, %s180
      %p189 = scmp.eq.s32.totalorder %s43, 0
      %p190 = por %p188, %p189
      %p191 = scmp.ne.s32.totalorder %s179, %s180
      %p192 = scmp.eq.s32.totalorder %s44, 1
      %p193 = por %p191, %p192
      %p195 = scmp.ne.s32.totalorder %s180, %s194
      %p196 = scmp.eq.s32.totalorder %s44, 0
      %p197 = por %p195, %p196
      %s199 = sadd.s32 %s198, 1
      %p202 = scmp.eq.s32.totalorder %s38, 1
      %p203 = scmp.ne.s32.totalorder %s198, %s200
      %p204 = scmp.eq.s32.totalorder %s38, 0
      %p205 = por %p203, %p204
      %p206 = scmp.ne.s32.totalorder %s198, %s200
      %p207 = scmp.eq.s32.totalorder %s43, 1
      %p208 = por %p206, %p207
      %p209 = scmp.ne.s32.totalorder %s200, %s201
      %p210 = scmp.eq.s32.totalorder %s43, 0
      %p211 = por %p209, %p210
      %p212 = scmp.ne.s32.totalorder %s200, %s201
      %p213 = scmp.eq.s32.totalorder %s44, 1
      %p214 = por %p212, %p213
      %p216 = scmp.ne.s32.totalorder %s201, %s215
      %p217 = scmp.eq.s32.totalorder %s44, 0
      %p218 = por %p216, %p217
      %s220 = sadd.s32 %s219, 1
      %p223 = scmp.eq.s32.totalorder %s38, 1
      %p224 = scmp.ne.s32.totalorder %s219, %s221
      %p225 = scmp.eq.s32.totalorder %s38, 0
      %p226 = por %p224, %p225
      %p227 = scmp.ne.s32.totalorder %s219, %s221
      %p228 = scmp.eq.s32.totalorder %s43, 1
      %p229 = por %p227, %p228
      %p230 = scmp.ne.s32.totalorder %s221, %s222
      %p231 = scmp.eq.s32.totalorder %s43, 0
      %p232 = por %p230, %p231
      %p233 = scmp.ne.s32.totalorder %s221, %s222
      %p234 = scmp.eq.s32.totalorder %s44, 1
      %p235 = por %p233, %p234
      %p237 = scmp.ne.s32.totalorder %s222, %s236
      %p238 = scmp.eq.s32.totalorder %s44, 0
      %p239 = por %p237, %p238
      %s241 = sadd.s32 %s240, 1
      %p244 = scmp.eq.s32.totalorder %s38, 1
      %p245 = scmp.ne.s32.totalorder %s240, %s242
      %p246 = scmp.eq.s32.totalorder %s38, 0
      %p247 = por %p245, %p246
      %p248 = scmp.ne.s32.totalorder %s240, %s242
      %p249 = scmp.eq.s32.totalorder %s43, 1
      %p250 = por %p248, %p249
      %p251 = scmp.ne.s32.totalorder %s242, %s243
      %p252 = scmp.eq.s32.totalorder %s43, 0
      %p253 = por %p251, %p252
      %p254 = scmp.ne.s32.totalorder %s242, %s243
      %p255 = scmp.eq.s32.totalorder %s44, 1
      %p256 = por %p254, %p255
      %p258 = scmp.ne.s32.totalorder %s243, %s257
      %p259 = scmp.eq.s32.totalorder %s44, 0
      %p260 = por %p258, %p259
      %s262 = sadd.s32 %s261, 1
      %p265 = scmp.eq.s32.totalorder %s38, 1
      %p266 = scmp.ne.s32.totalorder %s261, %s263
      %p267 = scmp.eq.s32.totalorder %s38, 0
      %p268 = por %p266, %p267
      %p269 = scmp.ne.s32.totalorder %s261, %s263
      %p270 = scmp.eq.s32.totalorder %s43, 1
      %p271 = por %p269, %p270
      %p272 = scmp.ne.s32.totalorder %s263, %s264
      %p273 = scmp.eq.s32.totalorder %s43, 0
      %p274 = por %p272, %p273
      %p275 = scmp.ne.s32.totalorder %s263, %s264
      %p276 = scmp.eq.s32.totalorder %s44, 1
      %p277 = por %p275, %p276
      %p279 = scmp.ne.s32.totalorder %s264, %s278
      %p280 = scmp.eq.s32.totalorder %s44, 0
      %p281 = por %p279, %p280
      %s283 = sadd.s32 %s282, 1
      %p286 = scmp.eq.s32.totalorder %s38, 1
      %p287 = scmp.ne.s32.totalorder %s282, %s284
      %p288 = scmp.eq.s32.totalorder %s38, 0
      %p289 = por %p287, %p288
      %p290 = scmp.ne.s32.totalorder %s282, %s284
      %p291 = scmp.eq.s32.totalorder %s43, 1
      %p292 = por %p290, %p291
      %p293 = scmp.ne.s32.totalorder %s284, %s285
      %p294 = scmp.eq.s32.totalorder %s43, 0
      %p295 = por %p293, %p294
      %p296 = scmp.ne.s32.totalorder %s284, %s285
      %p297 = scmp.eq.s32.totalorder %s44, 1
      %p298 = por %p296, %p297
      %p300 = scmp.ne.s32.totalorder %s285, %s299
      %p301 = scmp.eq.s32.totalorder %s44, 0
      %p302 = por %p300, %p301
      %s304 = sadd.s32 %s303, 1
      %p307 = scmp.eq.s32.totalorder %s38, 1
      %p308 = scmp.ne.s32.totalorder %s303, %s305
      %p309 = scmp.eq.s32.totalorder %s38, 0
      %p310 = por %p308, %p309
      %p311 = scmp.ne.s32.totalorder %s303, %s305
      %p312 = scmp.eq.s32.totalorder %s43, 1
      %p313 = por %p311, %p312
      %p314 = scmp.ne.s32.totalorder %s305, %s306
      %p315 = scmp.eq.s32.totalorder %s43, 0
      %p316 = por %p314, %p315
      %p317 = scmp.ne.s32.totalorder %s305, %s306
      %p318 = scmp.eq.s32.totalorder %s44, 1
      %p319 = por %p317, %p318
      %p321 = scmp.ne.s32.totalorder %s306, %s320
      %p322 = scmp.eq.s32.totalorder %s44, 0
      %p323 = por %p321, %p322
      %s325 = sadd.s32 %s324, 1
      %p328 = scmp.eq.s32.totalorder %s38, 1
      %p329 = scmp.ne.s32.totalorder %s324, %s326
      %p330 = scmp.eq.s32.totalorder %s38, 0
      %p331 = por %p329, %p330
      %p332 = scmp.ne.s32.totalorder %s324, %s326
      %p333 = scmp.eq.s32.totalorder %s43, 1
      %p334 = por %p332, %p333
      %p335 = scmp.ne.s32.totalorder %s326, %s327
      %p336 = scmp.eq.s32.totalorder %s43, 0
      %p337 = por %p335, %p336
      %p338 = scmp.ne.s32.totalorder %s326, %s327
      %p339 = scmp.eq.s32.totalorder %s44, 1
      %p340 = por %p338, %p339
      %p342 = scmp.ne.s32.totalorder %s327, %s341
      %p343 = scmp.eq.s32.totalorder %s44, 0
      %p344 = por %p342, %p343
      %s346 = sadd.s32 %s345, 1
      %p349 = scmp.eq.s32.totalorder %s38, 1
      %p350 = scmp.ne.s32.totalorder %s345, %s347
      %p351 = scmp.eq.s32.totalorder %s38, 0
      %p352 = por %p350, %p351
      %p353 = scmp.ne.s32.totalorder %s345, %s347
      %p354 = scmp.eq.s32.totalorder %s43, 1
      %p355 = por %p353, %p354
      %p356 = scmp.ne.s32.totalorder %s347, %s348
      %p357 = scmp.eq.s32.totalorder %s43, 0
      %p358 = por %p356, %p357
      %p359 = scmp.ne.s32.totalorder %s347, %s348
      %p360 = scmp.eq.s32.totalorder %s44, 1
      %p361 = por %p359, %p360
      %p363 = scmp.ne.s32.totalorder %s348, %s362
      %p364 = scmp.eq.s32.totalorder %s44, 0
      %p365 = por %p363, %p364
      %s367 = sadd.s32 %s366, 1
      %p370 = scmp.eq.s32.totalorder %s38, 1
      %p371 = scmp.ne.s32.totalorder %s366, %s368
      %p372 = scmp.eq.s32.totalorder %s38, 0
      %p373 = por %p371, %p372
      %p374 = scmp.ne.s32.totalorder %s366, %s368
      %p375 = scmp.eq.s32.totalorder %s43, 1
      %p376 = por %p374, %p375
      %p377 = scmp.ne.s32.totalorder %s368, %s369
      %p378 = scmp.eq.s32.totalorder %s43, 0
      %p379 = por %p377, %p378
      %p380 = scmp.ne.s32.totalorder %s368, %s369
      %p381 = scmp.eq.s32.totalorder %s44, 1
      %p382 = por %p380, %p381
      %p384 = scmp.ne.s32.totalorder %s369, %s383
      %p385 = scmp.eq.s32.totalorder %s44, 0
      %p386 = por %p384, %p385
      %s388 = sadd.s32 %s387, 1
      %p391 = scmp.eq.s32.totalorder %s38, 1
      %p392 = scmp.ne.s32.totalorder %s387, %s389
      %p393 = scmp.eq.s32.totalorder %s38, 0
      %p394 = por %p392, %p393
      %p395 = scmp.ne.s32.totalorder %s387, %s389
      %p396 = scmp.eq.s32.totalorder %s43, 1
      %p397 = por %p395, %p396
      %p398 = scmp.ne.s32.totalorder %s389, %s390
      %p399 = scmp.eq.s32.totalorder %s43, 0
      %p400 = por %p398, %p399
      %p401 = scmp.ne.s32.totalorder %s389, %s390
      %p402 = scmp.eq.s32.totalorder %s44, 1
      %p403 = por %p401, %p402
      %p405 = scmp.ne.s32.totalorder %s390, %s404
      %p406 = scmp.eq.s32.totalorder %s44, 0
      %p407 = por %p405, %p406
      %s408 = ssub.s32 %s38, %s45
      %p409 = scmp.eq.s32.totalorder %s408, 0
      %s411 = sadd.s32 %s410, 1
      %s412 = scalar_select %p409, %s410, %s411
      %p415 = pneg %p409
      %p416 = scmp.eq.s32.totalorder %s38, 1
      %p417 = por %p415, %p416
      %p418 = scmp.ne.s32.totalorder %s410, %s413
      %p419 = scmp.eq.s32.totalorder %s38, 0
      %p420 = por %p418, %p419
      %p421 = scmp.ne.s32.totalorder %s410, %s413
      %p422 = scmp.eq.s32.totalorder %s43, 1
      %p423 = por %p421, %p422
      %p424 = scmp.ne.s32.totalorder %s413, %s414
      %p425 = scmp.eq.s32.totalorder %s43, 0
      %p426 = por %p424, %p425
      %p427 = scmp.ne.s32.totalorder %s413, %s414
      %p428 = scmp.eq.s32.totalorder %s44, 1
      %p429 = por %p427, %p428
      %p431 = scmp.ne.s32.totalorder %s414, %s430
      %p432 = scmp.eq.s32.totalorder %s44, 0
      %p433 = por %p431, %p432
      %s434 = ssub.s32 %s38, %s45
      %p435 = scmp.eq.s32.totalorder %s434, 0
      %s437 = sadd.s32 %s436, 1
      %s438 = scalar_select %p435, %s436, %s437
      %p441 = pneg %p435
      %p442 = scmp.eq.s32.totalorder %s38, 1
      %p443 = por %p441, %p442
      %p444 = scmp.ne.s32.totalorder %s436, %s439
      %p445 = scmp.eq.s32.totalorder %s38, 0
      %p446 = por %p444, %p445
      %p447 = scmp.ne.s32.totalorder %s436, %s439
      %p448 = scmp.eq.s32.totalorder %s43, 1
      %p449 = por %p447, %p448
      %p450 = scmp.ne.s32.totalorder %s439, %s440
      %p451 = scmp.eq.s32.totalorder %s43, 0
      %p452 = por %p450, %p451
      %p453 = scmp.ne.s32.totalorder %s439, %s440
      %p454 = scmp.eq.s32.totalorder %s44, 1
      %p455 = por %p453, %p454
      %p457 = scmp.ne.s32.totalorder %s440, %s456
      %p458 = scmp.eq.s32.totalorder %s44, 0
      %p459 = por %p457, %p458
      %p460 = scmp.le.s32.totalorder 1, %s38
      %p461 = scmp.lt.s32.totalorder %s38, 3
      %p462 = pnand %p460, %p461
      %p463 = pneg %p462
      // Predicated region
      $region9: #{tpu_custom_call.1} parent=5 // pred_check
        _
      $region10: #{tpu_custom_call.1} parent=5 // pred_check_branch
        %465 = sbr.rel (%p462) target = $region12
      $region11: #{tpu_custom_call.1} parent=5 // pred_region
        %s466 = ssub.s32 %s38, 1
        // Predicated region
        $region13: #{tpu_custom_call.1} parent=11 // pred_check
          %p467 = pneg %p85
        $region14: #{tpu_custom_call.1} parent=11 // pred_check_branch
          %469 = sbr.rel (%p467) target = $region16
        $region15: #{tpu_custom_call.1} parent=11 // pred_region
          _
        $region16: #{tpu_custom_call.1} parent=11 // pred_fallthru
          _
        // Predicated region
        $region17: #{tpu_custom_call.1} parent=11 // pred_check
          %p470 = pneg %p106
        $region18: #{tpu_custom_call.1} parent=11 // pred_check_branch
          %472 = sbr.rel (%p470) target = $region20
        $region19: #{tpu_custom_call.1} parent=11 // pred_region
          %s474 = ssub.s32 16, 16
          %475 = vsyncadd [#allocation6], %s474
          %s477 = sshll.u32 [#allocation5], 4
          %s478 = int_to_ptr.vmem [resolvable:$true] %s477
          %480 = dma.hbm_to_vmem [thread:$0]  %s2, 16, %s478, [#allocation6]
        $region20: #{tpu_custom_call.1} parent=11 // pred_fallthru
          _
        // Predicated region
        $region21: #{tpu_custom_call.1} parent=11 // pred_check
          %p481 = pneg %p127
        $region22: #{tpu_custom_call.1} parent=11 // pred_check_branch
          %483 = sbr.rel (%p481) target = $region24
        $region23: #{tpu_custom_call.1} parent=11 // pred_region
          _
        $region24: #{tpu_custom_call.1} parent=11 // pred_fallthru
          _
        // Predicated region
        $region25: #{tpu_custom_call.1} parent=11 // pred_check
          %p484 = pneg %p148
        $region26: #{tpu_custom_call.1} parent=11 // pred_check_branch
          %486 = sbr.rel (%p484) target = $region28
        $region27: #{tpu_custom_call.1} parent=11 // pred_region
          _
        $region28: #{tpu_custom_call.1} parent=11 // pred_fallthru
          _
        // Predicated region
        $region29: #{tpu_custom_call.1} parent=11 // pred_check
          %p487 = pneg %p169
        $region30: #{tpu_custom_call.1} parent=11 // pred_check_branch
          %489 = sbr.rel (%p487) target = $region32
        $region31: #{tpu_custom_call.1} parent=11 // pred_region
          _
        $region32: #{tpu_custom_call.1} parent=11 // pred_fallthru
          _
        // Predicated region
        $region33: #{tpu_custom_call.1} parent=11 // pred_check
          %p490 = pneg %p190
        $region34: #{tpu_custom_call.1} parent=11 // pred_check_branch
          %492 = sbr.rel (%p490) target = $region36
        $region35: #{tpu_custom_call.1} parent=11 // pred_region
          %s494 = ssub.s32 16, 16
          %495 = vsyncadd [#allocation6], %s494
          %s497 = sshll.u32 [#allocation7], 4
          %s498 = int_to_ptr.vmem [resolvable:$true] %s497
          %500 = dma.hbm_to_vmem [thread:$0]  %s6, 16, %s498, [#allocation6]
        $region36: #{tpu_custom_call.1} parent=11 // pred_fallthru
          _
        // Predicated region
        $region37: #{tpu_custom_call.1} parent=11 // pred_check
          %p501 = pneg %p211
        $region38: #{tpu_custom_call.1} parent=11 // pred_check_branch
          %503 = sbr.rel (%p501) target = $region40
        $region39: #{tpu_custom_call.1} parent=11 // pred_region
          %s505 = ssub.s32 16, 16
          %506 = vsyncadd [#allocation9], %s505
          %s508 = sshll.u32 [#allocation8], 4
          %s509 = int_to_ptr.vmem [resolvable:$true] %s508
          %511 = dma.hbm_to_vmem [thread:$0]  %s7, 16, %s509, [#allocation9]
        $region40: #{tpu_custom_call.1} parent=11 // pred_fallthru
          _
        // Predicated region
        $region41: #{tpu_custom_call.1} parent=11 // pred_check
          %p512 = pneg %p232
        $region42: #{tpu_custom_call.1} parent=11 // pred_check_branch
          %514 = sbr.rel (%p512) target = $region44
        $region43: #{tpu_custom_call.1} parent=11 // pred_region
          %s516 = ssub.s32 16, 16
          %517 = vsyncadd [#allocation9], %s516
          %s519 = sshll.u32 [#allocation10], 4
          %s520 = int_to_ptr.vmem [resolvable:$true] %s519
          %522 = dma.hbm_to_vmem [thread:$0]  %s8, 16, %s520, [#allocation9]
        $region44: #{tpu_custom_call.1} parent=11 // pred_fallthru
          _
        // Predicated region
        $region45: #{tpu_custom_call.1} parent=11 // pred_check
          %p523 = pneg %p253
        $region46: #{tpu_custom_call.1} parent=11 // pred_check_branch
          %525 = sbr.rel (%p523) target = $region48
        $region47: #{tpu_custom_call.1} parent=11 // pred_region
          _
        $region48: #{tpu_custom_call.1} parent=11 // pred_fallthru
          _
        // Predicated region
        $region49: #{tpu_custom_call.1} parent=11 // pred_check
          %p526 = pneg %p274
        $region50: #{tpu_custom_call.1} parent=11 // pred_check_branch
          %528 = sbr.rel (%p526) target = $region52
        $region51: #{tpu_custom_call.1} parent=11 // pred_region
          %s530 = ssub.s32 16, 16
          %531 = vsyncadd [#allocation12], %s530
          %s533 = sshll.u32 [#allocation11], 4
          %s534 = int_to_ptr.vmem [resolvable:$true] %s533
          %536 = dma.hbm_to_vmem [thread:$0]  %s10, 16, %s534, [#allocation12]
        $region52: #{tpu_custom_call.1} parent=11 // pred_fallthru
          _
        // Predicated region
        $region53: #{tpu_custom_call.1} parent=11 // pred_check
          %p537 = pneg %p295
        $region54: #{tpu_custom_call.1} parent=11 // pred_check_branch
          %539 = sbr.rel (%p537) target = $region56
        $region55: #{tpu_custom_call.1} parent=11 // pred_region
          %s541 = ssub.s32 16, 16
          %542 = vsyncadd [#allocation12], %s541
          %s544 = sshll.u32 [#allocation13], 4
          %s545 = int_to_ptr.vmem [resolvable:$true] %s544
          %547 = dma.hbm_to_vmem [thread:$0]  %s11, 16, %s545, [#allocation12]
        $region56: #{tpu_custom_call.1} parent=11 // pred_fallthru
          _
        // Predicated region
        $region57: #{tpu_custom_call.1} parent=11 // pred_check
          %p548 = pneg %p316
        $region58: #{tpu_custom_call.1} parent=11 // pred_check_branch
          %550 = sbr.rel (%p548) target = $region60
        $region59: #{tpu_custom_call.1} parent=11 // pred_region
          %s552 = ssub.s32 16, 16
          %553 = vsyncadd [#allocation15], %s552
          %s555 = sshll.u32 [#allocation14], 4
          %s556 = int_to_ptr.vmem [resolvable:$true] %s555
          %558 = dma.hbm_to_vmem [thread:$0]  %s12, 16, %s556, [#allocation15]
        $region60: #{tpu_custom_call.1} parent=11 // pred_fallthru
          _
        // Predicated region
        $region61: #{tpu_custom_call.1} parent=11 // pred_check
          %p559 = pneg %p337
        $region62: #{tpu_custom_call.1} parent=11 // pred_check_branch
          %561 = sbr.rel (%p559) target = $region64
        $region63: #{tpu_custom_call.1} parent=11 // pred_region
          _
        $region64: #{tpu_custom_call.1} parent=11 // pred_fallthru
          _
        // Predicated region
        $region65: #{tpu_custom_call.1} parent=11 // pred_check
          %p562 = pneg %p358
        $region66: #{tpu_custom_call.1} parent=11 // pred_check_branch
          %564 = sbr.rel (%p562) target = $region68
        $region67: #{tpu_custom_call.1} parent=11 // pred_region
          _
        $region68: #{tpu_custom_call.1} parent=11 // pred_fallthru
          _
        // Predicated region
        $region69: #{tpu_custom_call.1} parent=11 // pred_check
          %p565 = pneg %p379
        $region70: #{tpu_custom_call.1} parent=11 // pred_check_branch
          %567 = sbr.rel (%p565) target = $region72
        $region71: #{tpu_custom_call.1} parent=11 // pred_region
          _
        $region72: #{tpu_custom_call.1} parent=11 // pred_fallthru
          _
        // Predicated region
        $region73: #{tpu_custom_call.1} parent=11 // pred_check
          %p568 = pneg %p400
        $region74: #{tpu_custom_call.1} parent=11 // pred_check_branch
          %570 = sbr.rel (%p568) target = $region76
        $region75: #{tpu_custom_call.1} parent=11 // pred_region
          _
        $region76: #{tpu_custom_call.1} parent=11 // pred_fallthru
          _
      $region12: #{tpu_custom_call.1} parent=5 // pred_fallthru
        _
      %p571 = scmp.lt.s32.totalorder %s38, 2
      // Predicated region
      $region77: #{tpu_custom_call.1} parent=5 // pred_check
        %p572 = pneg %p571
      $region78: #{tpu_custom_call.1} parent=5 // pred_check_branch
        %574 = sbr.rel (%p572) target = $region80
      $region79: #{tpu_custom_call.1} parent=5 // pred_region
        // Predicated region
        $region81: #{tpu_custom_call.1} parent=79 // pred_check
          %p575 = pneg %p58
        $region82: #{tpu_custom_call.1} parent=79 // pred_check_branch
          %577 = sbr.rel (%p575) target = $region84
        $region83: #{tpu_custom_call.1} parent=79 // pred_region
          %s578 = sand.u32 %s48, 1
          %s579 = scalar_lea.sflag [#allocation3], %s578
          %s580 = sand.u32 %s48, 1
          %s581 = smul.addr %s580, 32
          %s582 = scalar_lea.vmem [#allocation2], %s581
          %s583 = smul.u32 2, %s38
          %s585 = ssub.s32 512, 512
          %586 = vsyncadd %s579, %s585
          %s587 = smul.addr %s583, 2
          %s588 = smul.addr %s587, 128
          %s589 = scalar_lea.hbm %s0, %s588
          %s590 = sshll.u32 %s582, 4
          %s591 = int_to_ptr.vmem [resolvable:$true] %s590
          %596 = dma.hbm_to_vmem [thread:$0]  %s589, 512, %s591, %s579, 128, 128, 8
        $region84: #{tpu_custom_call.1} parent=79 // pred_fallthru
          _
      $region80: #{tpu_custom_call.1} parent=5 // pred_fallthru
        _
      %p597 = scmp.le.s32.totalorder 1, %s38
      %p598 = scmp.lt.s32.totalorder %s38, 3
      %p599 = pnand %p597, %p598
      %p600 = pneg %p599
      // Predicated region
      $region85: #{tpu_custom_call.1} parent=5 // pred_check
        _
      $region86: #{tpu_custom_call.1} parent=5 // pred_check_branch
        %602 = sbr.rel (%p599) target = $region88
      $region87: #{tpu_custom_call.1} parent=5 // pred_region
        %s603 = ssub.s32 %s38, 1
        %s604 = sand.u32 %s51, 1
        %s605 = scalar_lea.sflag [#allocation3], %s604
        %s606 = sand.u32 %s51, 1
        %s607 = smul.addr %s606, 32
        %s608 = scalar_lea.vmem [#allocation2], %s607
        // Predicated region
        $region89: #{tpu_custom_call.1} parent=87 // pred_check
          %p609 = pneg %p64
        $region90: #{tpu_custom_call.1} parent=87 // pred_check_branch
          %611 = sbr.rel (%p609) target = $region92
        $region91: #{tpu_custom_call.1} parent=87 // pred_region
          %612 = dma.done %s605, 512
        $region92: #{tpu_custom_call.1} parent=87 // pred_fallthru
          _
        // Predicated region
        $region93: #{tpu_custom_call.1} parent=87 // pred_check
          %p613 = pneg %p106
        $region94: #{tpu_custom_call.1} parent=87 // pred_check_branch
          %615 = sbr.rel (%p613) target = $region96
        $region95: #{tpu_custom_call.1} parent=87 // pred_region
          %616 = dma.done [#allocation6], 16
        $region96: #{tpu_custom_call.1} parent=87 // pred_fallthru
          _
        // Predicated region
        $region97: #{tpu_custom_call.1} parent=87 // pred_check
          %p617 = pneg %p190
        $region98: #{tpu_custom_call.1} parent=87 // pred_check_branch
          %619 = sbr.rel (%p617) target = $region100
        $region99: #{tpu_custom_call.1} parent=87 // pred_region
          %620 = dma.done [#allocation6], 16
        $region100: #{tpu_custom_call.1} parent=87 // pred_fallthru
          _
        // Predicated region
        $region101: #{tpu_custom_call.1} parent=87 // pred_check
          %p621 = pneg %p211
        $region102: #{tpu_custom_call.1} parent=87 // pred_check_branch
          %623 = sbr.rel (%p621) target = $region104
        $region103: #{tpu_custom_call.1} parent=87 // pred_region
          %624 = dma.done [#allocation9], 16
        $region104: #{tpu_custom_call.1} parent=87 // pred_fallthru
          _
        // Predicated region
        $region105: #{tpu_custom_call.1} parent=87 // pred_check
          %p625 = pneg %p232
        $region106: #{tpu_custom_call.1} parent=87 // pred_check_branch
          %627 = sbr.rel (%p625) target = $region108
        $region107: #{tpu_custom_call.1} parent=87 // pred_region
          %628 = dma.done [#allocation9], 16
        $region108: #{tpu_custom_call.1} parent=87 // pred_fallthru
          _
        // Predicated region
        $region109: #{tpu_custom_call.1} parent=87 // pred_check
          %p629 = pneg %p274
        $region110: #{tpu_custom_call.1} parent=87 // pred_check_branch
          %631 = sbr.rel (%p629) target = $region112
        $region111: #{tpu_custom_call.1} parent=87 // pred_region
          %632 = dma.done [#allocation12], 16
        $region112: #{tpu_custom_call.1} parent=87 // pred_fallthru
          _
        // Predicated region
        $region113: #{tpu_custom_call.1} parent=87 // pred_check
          %p633 = pneg %p295
        $region114: #{tpu_custom_call.1} parent=87 // pred_check_branch
          %635 = sbr.rel (%p633) target = $region116
        $region115: #{tpu_custom_call.1} parent=87 // pred_region
          %636 = dma.done [#allocation12], 16
        $region116: #{tpu_custom_call.1} parent=87 // pred_fallthru
          _
        // Predicated region
        $region117: #{tpu_custom_call.1} parent=87 // pred_check
          %p637 = pneg %p316
        $region118: #{tpu_custom_call.1} parent=87 // pred_check_branch
          %639 = sbr.rel (%p637) target = $region120
        $region119: #{tpu_custom_call.1} parent=87 // pred_region
          %640 = dma.done [#allocation15], 16
        $region120: #{tpu_custom_call.1} parent=87 // pred_fallthru
          _
        %s641 = sand.u32 %s51, 1
        %s642 = scalar_lea.sflag [#allocation3], %s641
        %s643 = sand.u32 %s51, 1
        %s644 = smul.addr %s643, 32
        %s645 = scalar_lea.vmem [#allocation2], %s644
        %p646 = pneg %p64
        %p647 = pneg %p61
        %p648 = pneg %p85
        %p649 = pneg %p82
        %p650 = pneg %p106
        %p651 = pneg %p103
        %p652 = pneg %p127
        %p653 = pneg %p124
        %p654 = pneg %p148
        %p655 = pneg %p145
        %p656 = pneg %p169
        %p657 = pneg %p166
        %p658 = pneg %p190
        %p659 = pneg %p187
        %p660 = pneg %p211
        %p661 = pneg %p208
        %p662 = pneg %p232
        %p663 = pneg %p229
        %p664 = pneg %p253
        %p665 = pneg %p250
        %p666 = pneg %p274
        %p667 = pneg %p271
        %p668 = pneg %p295
        %p669 = pneg %p292
        %p670 = pneg %p316
        %p671 = pneg %p313
        %p672 = pneg %p337
        %p673 = pneg %p334
        %p674 = pneg %p358
        %p675 = pneg %p355
        %p676 = pneg %p379
        %p677 = pneg %p376
        %p678 = pneg %p400
        %p679 = pneg %p397
        %p680 = pneg %p426
        %p681 = pneg %p423
        %s682 = sand.u32 %s413, 1
        %s683 = scalar_lea.sflag [#allocation4], %s682
        %s684 = sand.u32 %s413, 1
        %s685 = smul.addr %s684, 32
        %s686 = scalar_lea.vmem [#allocation16], %s685
        %p687 = pneg %p452
        %p688 = pneg %p449
        %s689 = sand.u32 %s439, 1
        %s690 = scalar_lea.sflag [#allocation18], %s689
        %s691 = sand.u32 %s439, 1
        %s692 = smul.addr %s691, 32
        %s693 = scalar_lea.vmem [#allocation17], %s692
        %s694 = smul.u32 2, %s43
        %s695 = smul.u32 2, %s43
        %s696 = smul.u32 2, %s43
        %v698 = vld [vmem:[%s608] sm:$0xff]
        %v699 = vld [vmem:[%s608 + $0x8] sm:$0xff]
        %v700 = vld [vmem:[%s608 + $0x10] sm:$0xff]
        %v701 = vld [vmem:[%s608 + $0x18] sm:$0xff]
        %v702 = vld [vmem:[%s1] sm:$0x1]
        %v703 = vld [vmem:[#allocation5] sm:$0x1]
        %vm704 = vcmask 261120
        %v705 = vsel %vm704, %v698, 0.0
        %706 = vadd.xlane.f32.xlu0 %v705
        %v707 = vpop.xlane.xlu0 %706
        %v708 = vsel %vm704, %v699, 0.0
        %709 = vadd.xlane.f32.xlu0 %v708
        %v710 = vpop.xlane.xlu0 %709
        %v711 = vsel %vm704, %v700, 0.0
        %712 = vadd.xlane.f32.xlu0 %v711
        %v713 = vpop.xlane.xlu0 %712
        %v714 = vsel %vm704, %v701, 0.0
        %715 = vadd.xlane.f32.xlu0 %v714
        %v716 = vpop.xlane.xlu0 %715
        %v717 = vrcp.pop 32.0
        %v718 = vmul.f32 %v707, %v717
        %v719 = vmul.f32 %v710, %v717
        %v720 = vmul.f32 %v713, %v717
        %v721 = vmul.f32 %v716, %v717
        %v722 = vsub.f32 %v698, %v718
        %v723 = vsub.f32 %v699, %v719
        %v724 = vsub.f32 %v700, %v720
        %v725 = vsub.f32 %v701, %v721
        %v726 = vmul.f32 %v722, %v722
        %v727 = vmul.f32 %v723, %v723
        %v728 = vmul.f32 %v724, %v724
        %v729 = vmul.f32 %v725, %v725
        %v730 = vsel %vm704, %v726, 0.0
        %731 = vadd.xlane.f32.xlu0 %v730
        %v732 = vpop.xlane.xlu0 %731
        %v733 = vsel %vm704, %v727, 0.0
        %734 = vadd.xlane.f32.xlu0 %v733
        %v735 = vpop.xlane.xlu0 %734
        %v736 = vsel %vm704, %v728, 0.0
        %737 = vadd.xlane.f32.xlu0 %v736
        %v738 = vpop.xlane.xlu0 %737
        %v739 = vsel %vm704, %v729, 0.0
        %740 = vadd.xlane.f32.xlu0 %v739
        %v741 = vpop.xlane.xlu0 %740
        %v742 = vmul.f32 %v732, %v717
        %v743 = vmul.f32 %v735, %v717
        %v744 = vmul.f32 %v738, %v717
        %v745 = vmul.f32 %v741, %v717
        %v746 = vadd.f32 %v742, 1e-06
        %v747 = vadd.f32 %v743, 1e-06
        %v748 = vadd.f32 %v744, 1e-06
        %v749 = vadd.f32 %v745, 1e-06
        %v750 = vrsqrt.pop %v746
        %v751 = vrsqrt.pop %v747
        %v752 = vrsqrt.pop %v748
        %v753 = vrsqrt.pop %v749
        %v754 = vmul.f32 %v722, %v750
        %v755 = vmul.f32 %v723, %v751
        %v756 = vmul.f32 %v724, %v752
        %v757 = vmul.f32 %v725, %v753
        %v759 = vlaneseq
        %v760 = vshrl.u32 %v759, 7
        %v761 = vsub.s32 0, %v760
        %v762 = vrot.slane %v702, %v761
        %v764 = vmul.f32 %v754, %v762
        %v765 = vmul.f32 %v755, %v762
        %v766 = vmul.f32 %v756, %v762
        %v767 = vmul.f32 %v757, %v762
        %v769 = vlaneseq
        %v770 = vshrl.u32 %v769, 7
        %v771 = vsub.s32 0, %v770
        %v772 = vrot.slane %v703, %v771
        %v774 = vadd.f32 %v764, %v772
        %v775 = vadd.f32 %v765, %v772
        %v776 = vadd.f32 %v766, %v772
        %v777 = vadd.f32 %v767, %v772
        %v778 = vpack.c.bf16 %v775, %v774
        %v779 = vpack.c.bf16 %v777, %v776
        %v780 = vld [vmem:[%s3] sm:$0xf]
        %v781 = vld [vmem:[%s3 + $0x4] sm:$0xf]
        %v782 = vld [vmem:[%s3 + $0x8] sm:$0xf]
        %v783 = vld [vmem:[%s3 + $0xc] sm:$0xf]
        %v784 = vld [vmem:[#allocation7] sm:$0x1]
        %v786 = vlaneseq
        %v787 = vshrl.u32 %v786, 7
        %v788 = vsub.s32 0, %v787
        %v789 = vrot.slane %v784, %v788
        %v795 = vunpack.c.l.b16 %v780
        %v796 = vunpack.c.l.b16 %v781
        %v797 = vunpack.c.l.b16 %v782
        %v798 = vunpack.c.l.b16 %v783
        %v799 = vpack.c.b16 %v796, %v795
        %v800 = vpack.c.b16 %v798, %v797
        %v804 = vsel %vm704, %v778, 0
        %v807 = vsel %vm704, %v779, 0
        %809 = vmatprep.subr.bf16.mxu0 0
        %810 = vmatpush1.bf16.msra.mxu0 %v799
        %811 = vmatprep.subr.bf16.mxu0 0
        %812 = vmatpush1.bf16.msra.mxu0 %v800
        %813 = vmatprep.subr.bf16.mxu0 0
        %814 = vmatpush1.bf16.msra.mxu0 0
        %815 = vmatprep.subr.bf16.mxu0 0
        %816 = vmatpush1.bf16.msra.mxu0 0
        %817 = vmatprep.subr.bf16.mxu0 0
        %818 = vmatpush1.bf16.msra.mxu0 0
        %819 = vmatprep.subr.bf16.mxu0 0
        %820 = vmatpush1.bf16.msra.mxu0 0
        %821 = vmatprep.subr.bf16.mxu0 0
        %822 = vmatpush1.bf16.msra.mxu0 0
        %823 = vmatprep.subr.bf16.mxu0 0
        %824 = vmatpush1.bf16.msra.mxu0 0
        %825 = vmatprep.subr.bf16.mxu0 0
        %826 = vmatpush1.bf16.msra.mxu0 0
        %827 = vmatprep.subr.bf16.mxu0 0
        %828 = vmatpush1.bf16.msra.mxu0 0
        %829 = vmatprep.subr.bf16.mxu0 0
        %830 = vmatpush1.bf16.msra.mxu0 0
        %831 = vmatprep.subr.bf16.mxu0 0
        %832 = vmatpush1.bf16.msra.mxu0 0
        %833 = vmatprep.subr.bf16.mxu0 0
        %834 = vmatpush1.bf16.msra.mxu0 0
        %835 = vmatprep.subr.bf16.mxu0 0
        %836 = vmatpush1.bf16.msra.mxu0 0
        %837 = vmatprep.subr.bf16.mxu0 0
        %838 = vmatpush1.bf16.msra.mxu0 0
        %839 = vmatprep.subr.bf16.mxu0 0
        %840 = vmatpush1.bf16.msra.mxu0 0
        %841 = vmatprep.mubr.bf16.mxu0 0
        %842 = vmatmul.mubr.bf16.gmra.mrb[0].mxu0 %v804
        %v843 = vpop.f32.mrb[0].mxu0
        %v844 = vadd.f32 %v789, %v843
        %v845 = vpop.f32.mrb[0].mxu0
        %v846 = vpop.f32.mrb[0].mxu0
        %v847 = vadd.f32 %v789, %v846
        %v848 = vpop.f32.mrb[0].mxu0
        %849 = vmatprep.mubr.bf16.mxu0 0
        %850 = vmatmul.mubr.bf16.gmra.mrb[0].mxu0 %v807
        %v851 = vpop.f32.mrb[0].mxu0
        %v852 = vadd.f32 %v789, %v851
        %v853 = vpop.f32.mrb[0].mxu0
        %v854 = vpop.f32.mrb[0].mxu0
        %v855 = vadd.f32 %v789, %v854
        %v856 = vpop.f32.mrb[0].mxu0
        %857 = vdwg.mxu0
        %v858 = vld [vmem:[%s4] sm:$0xf]
        %v859 = vld [vmem:[%s4 + $0x4] sm:$0xf]
        %v860 = vld [vmem:[%s4 + $0x8] sm:$0xf]
        %v861 = vld [vmem:[%s4 + $0xc] sm:$0xf]
        %v862 = vld [vmem:[#allocation8] sm:$0x1]
        %v864 = vlaneseq
        %v865 = vshrl.u32 %v864, 7
        %v866 = vsub.s32 0, %v865
        %v867 = vrot.slane %v862, %v866
        %v873 = vunpack.c.l.b16 %v858
        %v874 = vunpack.c.l.b16 %v859
        %v875 = vunpack.c.l.b16 %v860
        %v876 = vunpack.c.l.b16 %v861
        %v877 = vpack.c.b16 %v874, %v873
        %v878 = vpack.c.b16 %v876, %v875
        %881 = vmatprep.subr.bf16.mxu0 0
        %882 = vmatpush1.bf16.msra.mxu0 %v877
        %883 = vmatprep.subr.bf16.mxu0 0
        %884 = vmatpush1.bf16.msra.mxu0 %v878
        %885 = vmatprep.subr.bf16.mxu0 0
        %886 = vmatpush1.bf16.msra.mxu0 0
        %887 = vmatprep.subr.bf16.mxu0 0
        %888 = vmatpush1.bf16.msra.mxu0 0
        %889 = vmatprep.subr.bf16.mxu0 0
        %890 = vmatpush1.bf16.msra.mxu0 0
        %891 = vmatprep.subr.bf16.mxu0 0
        %892 = vmatpush1.bf16.msra.mxu0 0
        %893 = vmatprep.subr.bf16.mxu0 0
        %894 = vmatpush1.bf16.msra.mxu0 0
        %895 = vmatprep.subr.bf16.mxu0 0
        %896 = vmatpush1.bf16.msra.mxu0 0
        %897 = vmatprep.subr.bf16.mxu0 0
        %898 = vmatpush1.bf16.msra.mxu0 0
        %899 = vmatprep.subr.bf16.mxu0 0
        %900 = vmatpush1.bf16.msra.mxu0 0
        %901 = vmatprep.subr.bf16.mxu0 0
        %902 = vmatpush1.bf16.msra.mxu0 0
        %903 = vmatprep.subr.bf16.mxu0 0
        %904 = vmatpush1.bf16.msra.mxu0 0
        %905 = vmatprep.subr.bf16.mxu0 0
        %906 = vmatpush1.bf16.msra.mxu0 0
        %907 = vmatprep.subr.bf16.mxu0 0
        %908 = vmatpush1.bf16.msra.mxu0 0
        %909 = vmatprep.subr.bf16.mxu0 0
        %910 = vmatpush1.bf16.msra.mxu0 0
        %911 = vmatprep.subr.bf16.mxu0 0
        %912 = vmatpush1.bf16.msra.mxu0 0
        %913 = vmatprep.mubr.bf16.mxu0 0
        %914 = vmatmul.mubr.bf16.gmra.mrb[0].mxu0 %v804
        %v915 = vpop.f32.mrb[0].mxu0
        %v916 = vadd.f32 %v867, %v915
        %v917 = vpop.f32.mrb[0].mxu0
        %v918 = vpop.f32.mrb[0].mxu0
        %v919 = vadd.f32 %v867, %v918
        %v920 = vpop.f32.mrb[0].mxu0
        %921 = vmatprep.mubr.bf16.mxu0 0
        %922 = vmatmul.mubr.bf16.gmra.mrb[0].mxu0 %v807
        %v923 = vpop.f32.mrb[0].mxu0
        %v924 = vadd.f32 %v867, %v923
        %v925 = vpop.f32.mrb[0].mxu0
        %v926 = vpop.f32.mrb[0].mxu0
        %v927 = vadd.f32 %v867, %v926
        %v928 = vpop.f32.mrb[0].mxu0
        %929 = vdwg.mxu0
        %v930 = vld [vmem:[%s5] sm:$0xf]
        %v931 = vld [vmem:[%s5 + $0x4] sm:$0xf]
        %v932 = vld [vmem:[%s5 + $0x8] sm:$0xf]
        %v933 = vld [vmem:[%s5 + $0xc] sm:$0xf]
        %v934 = vld [vmem:[#allocation10] sm:$0x1]
        %v936 = vlaneseq
        %v937 = vshrl.u32 %v936, 7
        %v938 = vsub.s32 0, %v937
        %v939 = vrot.slane %v934, %v938
        %v945 = vunpack.c.l.b16 %v930
        %v946 = vunpack.c.l.b16 %v931
        %v947 = vunpack.c.l.b16 %v932
        %v948 = vunpack.c.l.b16 %v933
        %v949 = vpack.c.b16 %v946, %v945
        %v950 = vpack.c.b16 %v948, %v947
        %953 = vmatprep.subr.bf16.mxu0 0
        %954 = vmatpush1.bf16.msra.mxu0 %v949
        %955 = vmatprep.subr.bf16.mxu0 0
        %956 = vmatpush1.bf16.msra.mxu0 %v950
        %957 = vmatprep.subr.bf16.mxu0 0
        %958 = vmatpush1.bf16.msra.mxu0 0
        %959 = vmatprep.subr.bf16.mxu0 0
        %960 = vmatpush1.bf16.msra.mxu0 0
        %961 = vmatprep.subr.bf16.mxu0 0
        %962 = vmatpush1.bf16.msra.mxu0 0
        %963 = vmatprep.subr.bf16.mxu0 0
        %964 = vmatpush1.bf16.msra.mxu0 0
        %965 = vmatprep.subr.bf16.mxu0 0
        %966 = vmatpush1.bf16.msra.mxu0 0
        %967 = vmatprep.subr.bf16.mxu0 0
        %968 = vmatpush1.bf16.msra.mxu0 0
        %969 = vmatprep.subr.bf16.mxu0 0
        %970 = vmatpush1.bf16.msra.mxu0 0
        %971 = vmatprep.subr.bf16.mxu0 0
        %972 = vmatpush1.bf16.msra.mxu0 0
        %973 = vmatprep.subr.bf16.mxu0 0
        %974 = vmatpush1.bf16.msra.mxu0 0
        %975 = vmatprep.subr.bf16.mxu0 0
        %976 = vmatpush1.bf16.msra.mxu0 0
        %977 = vmatprep.subr.bf16.mxu0 0
        %978 = vmatpush1.bf16.msra.mxu0 0
        %979 = vmatprep.subr.bf16.mxu0 0
        %980 = vmatpush1.bf16.msra.mxu0 0
        %981 = vmatprep.subr.bf16.mxu0 0
        %982 = vmatpush1.bf16.msra.mxu0 0
        %983 = vmatprep.subr.bf16.mxu0 0
        %984 = vmatpush1.bf16.msra.mxu0 0
        %985 = vmatprep.mubr.bf16.mxu0 0
        %986 = vmatmul.mubr.bf16.gmra.mrb[0].mxu0 %v804
        %v987 = vpop.f32.mrb[0].mxu0
        %v988 = vadd.f32 %v939, %v987
        %v989 = vpop.f32.mrb[0].mxu0
        %v990 = vpop.f32.mrb[0].mxu0
        %v991 = vadd.f32 %v939, %v990
        %v992 = vpop.f32.mrb[0].mxu0
        %993 = vmatprep.mubr.bf16.mxu0 0
        %994 = vmatmul.mubr.bf16.gmra.mrb[0].mxu0 %v807
        %v995 = vpop.f32.mrb[0].mxu0
        %v996 = vadd.f32 %v939, %v995
        %v997 = vpop.f32.mrb[0].mxu0
        %v998 = vpop.f32.mrb[0].mxu0
        %v999 = vadd.f32 %v939, %v998
        %v1000 = vpop.f32.mrb[0].mxu0
        %1001 = vdwg.mxu0
        %v1002 = vlaneseq
        %v1003 = vand.u32 %v1002, 127
        %vm1004 = vcmp.lt.s32.totalorder %v1003, 10
        %1007 = vrot.lane.b32.xlu0 %v844, 120
        %v1008 = vpop.permute.xlu0 %1007
        %1009 = vrot.lane.b32.xlu0 %v847, 120
        %v1010 = vpop.permute.xlu0 %1009
        %1013 = vrot.lane.b32.xlu0 %v844, 112
        %v1014 = vpop.permute.xlu0 %1013
        %1015 = vrot.lane.b32.xlu0 %v847, 112
        %v1016 = vpop.permute.xlu0 %1015
        %1019 = vrot.lane.b32.xlu0 %v844, 104
        %v1020 = vpop.permute.xlu0 %1019
        %1021 = vrot.lane.b32.xlu0 %v847, 104
        %v1022 = vpop.permute.xlu0 %1021
        %v1025 = vcombine.low %v844, %v1014
        %v1026 = vcombine.high %v844, %v1014
        %v1028 = vunpack.c.l.s4 1983009808
        %v1029 = vunpack.c.0.s8 %v1028
        %v1030 = vlaneseq
        %v1031 = vshrl.u32 %v1030, 7
        %v1032 = vsub.s32 %v1029, %v1031
        %v1033 = vrot.slane %v1025, %v1032
        %v1035 = vunpack.c.l.s4 1983009808
        %v1036 = vunpack.c.0.s8 %v1035
        %v1037 = vlaneseq
        %v1038 = vshrl.u32 %v1037, 7
        %v1039 = vsub.s32 %v1036, %v1038
        %v1040 = vrot.slane %v1026, %v1039
        %v1041 = vcombine.low %v1008, %v1020
        %v1042 = vcombine.high %v1008, %v1020
        %v1044 = vunpack.c.l.s4 1983009808
        %v1045 = vunpack.c.0.s8 %v1044
        %v1046 = vlaneseq
        %v1047 = vshrl.u32 %v1046, 7
        %v1048 = vsub.s32 %v1045, %v1047
        %v1049 = vrot.slane %v1041, %v1048
        %v1051 = vunpack.c.l.s4 1983009808
        %v1052 = vunpack.c.0.s8 %v1051
        %v1053 = vlaneseq
        %v1054 = vshrl.u32 %v1053, 7
        %v1055 = vsub.s32 %v1052, %v1054
        %v1056 = vrot.slane %v1042, %v1055
        %v1057 = vcombine.low %v1033, %v1049
        %v1058 = vcombine.high %v1033, %v1049
        %v1060 = vunpack.c.l.s4 1934713408
        %v1061 = vunpack.c.0.s8 %v1060
        %v1062 = vlaneseq
        %v1063 = vshrl.u32 %v1062, 7
        %v1064 = vsub.s32 %v1061, %v1063
        %v1065 = vrot.slane %v1057, %v1064
        %v1067 = vunpack.c.l.s4 1934713408
        %v1068 = vunpack.c.0.s8 %v1067
        %v1069 = vlaneseq
        %v1070 = vshrl.u32 %v1069, 7
        %v1071 = vsub.s32 %v1068, %v1070
        %v1072 = vrot.slane %v1058, %v1071
        %v1073 = vcombine.low %v1040, %v1056
        %v1074 = vcombine.high %v1040, %v1056
        %v1076 = vunpack.c.l.s4 1934713408
        %v1077 = vunpack.c.0.s8 %v1076
        %v1078 = vlaneseq
        %v1079 = vshrl.u32 %v1078, 7
        %v1080 = vsub.s32 %v1077, %v1079
        %v1081 = vrot.slane %v1073, %v1080
        %v1083 = vunpack.c.l.s4 1934713408
        %v1084 = vunpack.c.0.s8 %v1083
        %v1085 = vlaneseq
        %v1086 = vshrl.u32 %v1085, 7
        %v1087 = vsub.s32 %v1084, %v1086
        %v1088 = vrot.slane %v1074, %v1087
        %v1089 = vcombine.high %v1065, 0.0
        %v1090 = vcombine.high %v1072, 0.0
        %v1091 = vcombine.high %v1081, 0.0
        %v1092 = vcombine.high %v1088, 0.0
        %v1093 = vcombine.low %v847, %v1016
        %v1094 = vcombine.high %v847, %v1016
        %v1096 = vunpack.c.l.s4 1983009808
        %v1097 = vunpack.c.0.s8 %v1096
        %v1098 = vlaneseq
        %v1099 = vshrl.u32 %v1098, 7
        %v1100 = vsub.s32 %v1097, %v1099
        %v1101 = vrot.slane %v1093, %v1100
        %v1103 = vunpack.c.l.s4 1983009808
        %v1104 = vunpack.c.0.s8 %v1103
        %v1105 = vlaneseq
        %v1106 = vshrl.u32 %v1105, 7
        %v1107 = vsub.s32 %v1104, %v1106
        %v1108 = vrot.slane %v1094, %v1107
        %v1109 = vcombine.low %v1010, %v1022
        %v1110 = vcombine.high %v1010, %v1022
        %v1112 = vunpack.c.l.s4 1983009808
        %v1113 = vunpack.c.0.s8 %v1112
        %v1114 = vlaneseq
        %v1115 = vshrl.u32 %v1114, 7
        %v1116 = vsub.s32 %v1113, %v1115
        %v1117 = vrot.slane %v1109, %v1116
        %v1119 = vunpack.c.l.s4 1983009808
        %v1120 = vunpack.c.0.s8 %v1119
        %v1121 = vlaneseq
        %v1122 = vshrl.u32 %v1121, 7
        %v1123 = vsub.s32 %v1120, %v1122
        %v1124 = vrot.slane %v1110, %v1123
        %v1125 = vcombine.low %v1101, %v1117
        %v1126 = vcombine.high %v1101, %v1117
        %v1128 = vunpack.c.l.s4 1934713408
        %v1129 = vunpack.c.0.s8 %v1128
        %v1130 = vlaneseq
        %v1131 = vshrl.u32 %v1130, 7
        %v1132 = vsub.s32 %v1129, %v1131
        %v1133 = vrot.slane %v1125, %v1132
        %v1135 = vunpack.c.l.s4 1934713408
        %v1136 = vunpack.c.0.s8 %v1135
        %v1137 = vlaneseq
        %v1138 = vshrl.u32 %v1137, 7
        %v1139 = vsub.s32 %v1136, %v1138
        %v1140 = vrot.slane %v1126, %v1139
        %v1141 = vcombine.low %v1108, %v1124
        %v1142 = vcombine.high %v1108, %v1124
        %v1144 = vunpack.c.l.s4 1934713408
        %v1145 = vunpack.c.0.s8 %v1144
        %v1146 = vlaneseq
        %v1147 = vshrl.u32 %v1146, 7
        %v1148 = vsub.s32 %v1145, %v1147
        %v1149 = vrot.slane %v1141, %v1148
        %v1151 = vunpack.c.l.s4 1934713408
        %v1152 = vunpack.c.0.s8 %v1151
        %v1153 = vlaneseq
        %v1154 = vshrl.u32 %v1153, 7
        %v1155 = vsub.s32 %v1152, %v1154
        %v1156 = vrot.slane %v1142, %v1155
        %v1157 = vcombine.high %v1133, 0.0
        %v1158 = vcombine.high %v1140, 0.0
        %v1159 = vcombine.high %v1149, 0.0
        %v1160 = vcombine.high %v1156, 0.0
        %v1161 = vcombine.low %v1065, %v1072
        %v1163 = vunpack.c.l.s4 1983009808
        %v1164 = vunpack.c.0.s8 %v1163
        %v1165 = vlaneseq
        %v1166 = vshrl.u32 %v1165, 7
        %v1167 = vsub.s32 %v1164, %v1166
        %v1168 = vrot.slane %v1161, %v1167
        %v1169 = vcombine.low %v1089, %v1090
        %v1171 = vunpack.c.l.s4 1983009808
        %v1172 = vunpack.c.0.s8 %v1171
        %v1173 = vlaneseq
        %v1174 = vshrl.u32 %v1173, 7
        %v1175 = vsub.s32 %v1172, %v1174
        %v1176 = vrot.slane %v1169, %v1175
        %v1177 = vcombine.low %v1081, %v1088
        %v1179 = vunpack.c.l.s4 1983009808
        %v1180 = vunpack.c.0.s8 %v1179
        %v1181 = vlaneseq
        %v1182 = vshrl.u32 %v1181, 7
        %v1183 = vsub.s32 %v1180, %v1182
        %v1184 = vrot.slane %v1177, %v1183
        %v1185 = vcombine.low %v1091, %v1092
        %v1187 = vunpack.c.l.s4 1983009808
        %v1188 = vunpack.c.0.s8 %v1187
        %v1189 = vlaneseq
        %v1190 = vshrl.u32 %v1189, 7
        %v1191 = vsub.s32 %v1188, %v1190
        %v1192 = vrot.slane %v1185, %v1191
        %v1193 = vcombine.low %v1168, %v1176
        %v1194 = vcombine.high %v1168, %v1176
        %v1196 = vunpack.c.l.s4 1934713408
        %v1197 = vunpack.c.0.s8 %v1196
        %v1198 = vlaneseq
        %v1199 = vshrl.u32 %v1198, 7
        %v1200 = vsub.s32 %v1197, %v1199
        %v1201 = vrot.slane %v1193, %v1200
        %v1203 = vunpack.c.l.s4 1934713408
        %v1204 = vunpack.c.0.s8 %v1203
        %v1205 = vlaneseq
        %v1206 = vshrl.u32 %v1205, 7
        %v1207 = vsub.s32 %v1204, %v1206
        %v1208 = vrot.slane %v1194, %v1207
        %v1209 = vcombine.low %v1184, %v1192
        %v1210 = vcombine.high %v1184, %v1192
        %v1212 = vunpack.c.l.s4 1934713408
        %v1213 = vunpack.c.0.s8 %v1212
        %v1214 = vlaneseq
        %v1215 = vshrl.u32 %v1214, 7
        %v1216 = vsub.s32 %v1213, %v1215
        %v1217 = vrot.slane %v1209, %v1216
        %v1219 = vunpack.c.l.s4 1934713408
        %v1220 = vunpack.c.0.s8 %v1219
        %v1221 = vlaneseq
        %v1222 = vshrl.u32 %v1221, 7
        %v1223 = vsub.s32 %v1220, %v1222
        %v1224 = vrot.slane %v1210, %v1223
        %v1225 = vcombine.low %v1201, %v1217
        %v1226 = vcombine.high %v1201, %v1217
        %v1227 = vcombine.low %v1208, %v1224
        %v1228 = vcombine.high %v1208, %v1224
        %v1229 = vcombine.low %v1133, %v1140
        %v1231 = vunpack.c.l.s4 1983009808
        %v1232 = vunpack.c.0.s8 %v1231
        %v1233 = vlaneseq
        %v1234 = vshrl.u32 %v1233, 7
        %v1235 = vsub.s32 %v1232, %v1234
        %v1236 = vrot.slane %v1229, %v1235
        %v1237 = vcombine.low %v1157, %v1158
        %v1239 = vunpack.c.l.s4 1983009808
        %v1240 = vunpack.c.0.s8 %v1239
        %v1241 = vlaneseq
        %v1242 = vshrl.u32 %v1241, 7
        %v1243 = vsub.s32 %v1240, %v1242
        %v1244 = vrot.slane %v1237, %v1243
        %v1245 = vcombine.low %v1149, %v1156
        %v1247 = vunpack.c.l.s4 1983009808
        %v1248 = vunpack.c.0.s8 %v1247
        %v1249 = vlaneseq
        %v1250 = vshrl.u32 %v1249, 7
        %v1251 = vsub.s32 %v1248, %v1250
        %v1252 = vrot.slane %v1245, %v1251
        %v1253 = vcombine.low %v1159, %v1160
        %v1255 = vunpack.c.l.s4 1983009808
        %v1256 = vunpack.c.0.s8 %v1255
        %v1257 = vlaneseq
        %v1258 = vshrl.u32 %v1257, 7
        %v1259 = vsub.s32 %v1256, %v1258
        %v1260 = vrot.slane %v1253, %v1259
        %v1261 = vcombine.low %v1236, %v1244
        %v1262 = vcombine.high %v1236, %v1244
        %v1264 = vunpack.c.l.s4 1934713408
        %v1265 = vunpack.c.0.s8 %v1264
        %v1266 = vlaneseq
        %v1267 = vshrl.u32 %v1266, 7
        %v1268 = vsub.s32 %v1265, %v1267
        %v1269 = vrot.slane %v1261, %v1268
        %v1271 = vunpack.c.l.s4 1934713408
        %v1272 = vunpack.c.0.s8 %v1271
        %v1273 = vlaneseq
        %v1274 = vshrl.u32 %v1273, 7
        %v1275 = vsub.s32 %v1272, %v1274
        %v1276 = vrot.slane %v1262, %v1275
        %v1277 = vcombine.low %v1252, %v1260
        %v1278 = vcombine.high %v1252, %v1260
        %v1280 = vunpack.c.l.s4 1934713408
        %v1281 = vunpack.c.0.s8 %v1280
        %v1282 = vlaneseq
        %v1283 = vshrl.u32 %v1282, 7
        %v1284 = vsub.s32 %v1281, %v1283
        %v1285 = vrot.slane %v1277, %v1284
        %v1287 = vunpack.c.l.s4 1934713408
        %v1288 = vunpack.c.0.s8 %v1287
        %v1289 = vlaneseq
        %v1290 = vshrl.u32 %v1289, 7
        %v1291 = vsub.s32 %v1288, %v1290
        %v1292 = vrot.slane %v1278, %v1291
        %v1293 = vcombine.low %v1269, %v1285
        %v1294 = vcombine.high %v1269, %v1285
        %v1295 = vcombine.low %v1276, %v1292
        %v1296 = vcombine.high %v1276, %v1292
        %v1297 = vpack.c.bf16 %v1293, %v1225
        %v1298 = vpack.c.bf16 %v1294, %v1226
        %v1299 = vpack.c.bf16 %v1295, %v1227
        %v1300 = vpack.c.bf16 %v1296, %v1228
        %1303 = vrot.lane.b32.xlu0 %v916, 120
        %v1304 = vpop.permute.xlu0 %1303
        %1305 = vrot.lane.b32.xlu0 %v919, 120
        %v1306 = vpop.permute.xlu0 %1305
        %1309 = vrot.lane.b32.xlu0 %v916, 112
        %v1310 = vpop.permute.xlu0 %1309
        %1311 = vrot.lane.b32.xlu0 %v919, 112
        %v1312 = vpop.permute.xlu0 %1311
        %1315 = vrot.lane.b32.xlu0 %v916, 104
        %v1316 = vpop.permute.xlu0 %1315
        %1317 = vrot.lane.b32.xlu0 %v919, 104
        %v1318 = vpop.permute.xlu0 %1317
        %v1321 = vcombine.low %v916, %v1310
        %v1322 = vcombine.high %v916, %v1310
        %v1324 = vunpack.c.l.s4 1983009808
        %v1325 = vunpack.c.0.s8 %v1324
        %v1326 = vlaneseq
        %v1327 = vshrl.u32 %v1326, 7
        %v1328 = vsub.s32 %v1325, %v1327
        %v1329 = vrot.slane %v1321, %v1328
        %v1331 = vunpack.c.l.s4 1983009808
        %v1332 = vunpack.c.0.s8 %v1331
        %v1333 = vlaneseq
        %v1334 = vshrl.u32 %v1333, 7
        %v1335 = vsub.s32 %v1332, %v1334
        %v1336 = vrot.slane %v1322, %v1335
        %v1337 = vcombine.low %v1304, %v1316
        %v1338 = vcombine.high %v1304, %v1316
        %v1340 = vunpack.c.l.s4 1983009808
        %v1341 = vunpack.c.0.s8 %v1340
        %v1342 = vlaneseq
        %v1343 = vshrl.u32 %v1342, 7
        %v1344 = vsub.s32 %v1341, %v1343
        %v1345 = vrot.slane %v1337, %v1344
        %v1347 = vunpack.c.l.s4 1983009808
        %v1348 = vunpack.c.0.s8 %v1347
        %v1349 = vlaneseq
        %v1350 = vshrl.u32 %v1349, 7
        %v1351 = vsub.s32 %v1348, %v1350
        %v1352 = vrot.slane %v1338, %v1351
        %v1353 = vcombine.low %v1329, %v1345
        %v1354 = vcombine.high %v1329, %v1345
        %v1356 = vunpack.c.l.s4 1934713408
        %v1357 = vunpack.c.0.s8 %v1356
        %v1358 = vlaneseq
        %v1359 = vshrl.u32 %v1358, 7
        %v1360 = vsub.s32 %v1357, %v1359
        %v1361 = vrot.slane %v1353, %v1360
        %v1363 = vunpack.c.l.s4 1934713408
        %v1364 = vunpack.c.0.s8 %v1363
        %v1365 = vlaneseq
        %v1366 = vshrl.u32 %v1365, 7
        %v1367 = vsub.s32 %v1364, %v1366
        %v1368 = vrot.slane %v1354, %v1367
        %v1369 = vcombine.low %v1336, %v1352
        %v1370 = vcombine.high %v1336, %v1352
        %v1372 = vunpack.c.l.s4 1934713408
        %v1373 = vunpack.c.0.s8 %v1372
        %v1374 = vlaneseq
        %v1375 = vshrl.u32 %v1374, 7
        %v1376 = vsub.s32 %v1373, %v1375
        %v1377 = vrot.slane %v1369, %v1376
        %v1379 = vunpack.c.l.s4 1934713408
        %v1380 = vunpack.c.0.s8 %v1379
        %v1381 = vlaneseq
        %v1382 = vshrl.u32 %v1381, 7
        %v1383 = vsub.s32 %v1380, %v1382
        %v1384 = vrot.slane %v1370, %v1383
        %v1385 = vcombine.high %v1361, 0.0
        %v1386 = vcombine.high %v1368, 0.0
        %v1387 = vcombine.high %v1377, 0.0
        %v1388 = vcombine.high %v1384, 0.0
        %v1389 = vcombine.low %v919, %v1312
        %v1390 = vcombine.high %v919, %v1312
        %v1392 = vunpack.c.l.s4 1983009808
        %v1393 = vunpack.c.0.s8 %v1392
        %v1394 = vlaneseq
        %v1395 = vshrl.u32 %v1394, 7
        %v1396 = vsub.s32 %v1393, %v1395
        %v1397 = vrot.slane %v1389, %v1396
        %v1399 = vunpack.c.l.s4 1983009808
        %v1400 = vunpack.c.0.s8 %v1399
        %v1401 = vlaneseq
        %v1402 = vshrl.u32 %v1401, 7
        %v1403 = vsub.s32 %v1400, %v1402
        %v1404 = vrot.slane %v1390, %v1403
        %v1405 = vcombine.low %v1306, %v1318
        %v1406 = vcombine.high %v1306, %v1318
        %v1408 = vunpack.c.l.s4 1983009808
        %v1409 = vunpack.c.0.s8 %v1408
        %v1410 = vlaneseq
        %v1411 = vshrl.u32 %v1410, 7
        %v1412 = vsub.s32 %v1409, %v1411
        %v1413 = vrot.slane %v1405, %v1412
        %v1415 = vunpack.c.l.s4 1983009808
        %v1416 = vunpack.c.0.s8 %v1415
        %v1417 = vlaneseq
        %v1418 = vshrl.u32 %v1417, 7
        %v1419 = vsub.s32 %v1416, %v1418
        %v1420 = vrot.slane %v1406, %v1419
        %v1421 = vcombine.low %v1397, %v1413
        %v1422 = vcombine.high %v1397, %v1413
        %v1424 = vunpack.c.l.s4 1934713408
        %v1425 = vunpack.c.0.s8 %v1424
        %v1426 = vlaneseq
        %v1427 = vshrl.u32 %v1426, 7
        %v1428 = vsub.s32 %v1425, %v1427
        %v1429 = vrot.slane %v1421, %v1428
        %v1431 = vunpack.c.l.s4 1934713408
        %v1432 = vunpack.c.0.s8 %v1431
        %v1433 = vlaneseq
        %v1434 = vshrl.u32 %v1433, 7
        %v1435 = vsub.s32 %v1432, %v1434
        %v1436 = vrot.slane %v1422, %v1435
        %v1437 = vcombine.low %v1404, %v1420
        %v1438 = vcombine.high %v1404, %v1420
        %v1440 = vunpack.c.l.s4 1934713408
        %v1441 = vunpack.c.0.s8 %v1440
        %v1442 = vlaneseq
        %v1443 = vshrl.u32 %v1442, 7
        %v1444 = vsub.s32 %v1441, %v1443
        %v1445 = vrot.slane %v1437, %v1444
        %v1447 = vunpack.c.l.s4 1934713408
        %v1448 = vunpack.c.0.s8 %v1447
        %v1449 = vlaneseq
        %v1450 = vshrl.u32 %v1449, 7
        %v1451 = vsub.s32 %v1448, %v1450
        %v1452 = vrot.slane %v1438, %v1451
        %v1453 = vcombine.high %v1429, 0.0
        %v1454 = vcombine.high %v1436, 0.0
        %v1455 = vcombine.high %v1445, 0.0
        %v1456 = vcombine.high %v1452, 0.0
        %v1457 = vcombine.low %v1361, %v1368
        %v1459 = vunpack.c.l.s4 1983009808
        %v1460 = vunpack.c.0.s8 %v1459
        %v1461 = vlaneseq
        %v1462 = vshrl.u32 %v1461, 7
        %v1463 = vsub.s32 %v1460, %v1462
        %v1464 = vrot.slane %v1457, %v1463
        %v1465 = vcombine.low %v1385, %v1386
        %v1467 = vunpack.c.l.s4 1983009808
        %v1468 = vunpack.c.0.s8 %v1467
        %v1469 = vlaneseq
        %v1470 = vshrl.u32 %v1469, 7
        %v1471 = vsub.s32 %v1468, %v1470
        %v1472 = vrot.slane %v1465, %v1471
        %v1473 = vcombine.low %v1377, %v1384
        %v1475 = vunpack.c.l.s4 1983009808
        %v1476 = vunpack.c.0.s8 %v1475
        %v1477 = vlaneseq
        %v1478 = vshrl.u32 %v1477, 7
        %v1479 = vsub.s32 %v1476, %v1478
        %v1480 = vrot.slane %v1473, %v1479
        %v1481 = vcombine.low %v1387, %v1388
        %v1483 = vunpack.c.l.s4 1983009808
        %v1484 = vunpack.c.0.s8 %v1483
        %v1485 = vlaneseq
        %v1486 = vshrl.u32 %v1485, 7
        %v1487 = vsub.s32 %v1484, %v1486
        %v1488 = vrot.slane %v1481, %v1487
        %v1489 = vcombine.low %v1464, %v1472
        %v1490 = vcombine.high %v1464, %v1472
        %v1492 = vunpack.c.l.s4 1934713408
        %v1493 = vunpack.c.0.s8 %v1492
        %v1494 = vlaneseq
        %v1495 = vshrl.u32 %v1494, 7
        %v1496 = vsub.s32 %v1493, %v1495
        %v1497 = vrot.slane %v1489, %v1496
        %v1499 = vunpack.c.l.s4 1934713408
        %v1500 = vunpack.c.0.s8 %v1499
        %v1501 = vlaneseq
        %v1502 = vshrl.u32 %v1501, 7
        %v1503 = vsub.s32 %v1500, %v1502
        %v1504 = vrot.slane %v1490, %v1503
        %v1505 = vcombine.low %v1480, %v1488
        %v1506 = vcombine.high %v1480, %v1488
        %v1508 = vunpack.c.l.s4 1934713408
        %v1509 = vunpack.c.0.s8 %v1508
        %v1510 = vlaneseq
        %v1511 = vshrl.u32 %v1510, 7
        %v1512 = vsub.s32 %v1509, %v1511
        %v1513 = vrot.slane %v1505, %v1512
        %v1515 = vunpack.c.l.s4 1934713408
        %v1516 = vunpack.c.0.s8 %v1515
        %v1517 = vlaneseq
        %v1518 = vshrl.u32 %v1517, 7
        %v1519 = vsub.s32 %v1516, %v1518
        %v1520 = vrot.slane %v1506, %v1519
        %v1521 = vcombine.low %v1497, %v1513
        %v1522 = vcombine.high %v1497, %v1513
        %v1523 = vcombine.low %v1504, %v1520
        %v1524 = vcombine.high %v1504, %v1520
        %v1525 = vcombine.low %v1429, %v1436
        %v1527 = vunpack.c.l.s4 1983009808
        %v1528 = vunpack.c.0.s8 %v1527
        %v1529 = vlaneseq
        %v1530 = vshrl.u32 %v1529, 7
        %v1531 = vsub.s32 %v1528, %v1530
        %v1532 = vrot.slane %v1525, %v1531
        %v1533 = vcombine.low %v1453, %v1454
        %v1535 = vunpack.c.l.s4 1983009808
        %v1536 = vunpack.c.0.s8 %v1535
        %v1537 = vlaneseq
        %v1538 = vshrl.u32 %v1537, 7
        %v1539 = vsub.s32 %v1536, %v1538
        %v1540 = vrot.slane %v1533, %v1539
        %v1541 = vcombine.low %v1445, %v1452
        %v1543 = vunpack.c.l.s4 1983009808
        %v1544 = vunpack.c.0.s8 %v1543
        %v1545 = vlaneseq
        %v1546 = vshrl.u32 %v1545, 7
        %v1547 = vsub.s32 %v1544, %v1546
        %v1548 = vrot.slane %v1541, %v1547
        %v1549 = vcombine.low %v1455, %v1456
        %v1551 = vunpack.c.l.s4 1983009808
        %v1552 = vunpack.c.0.s8 %v1551
        %v1553 = vlaneseq
        %v1554 = vshrl.u32 %v1553, 7
        %v1555 = vsub.s32 %v1552, %v1554
        %v1556 = vrot.slane %v1549, %v1555
        %v1557 = vcombine.low %v1532, %v1540
        %v1558 = vcombine.high %v1532, %v1540
        %v1560 = vunpack.c.l.s4 1934713408
        %v1561 = vunpack.c.0.s8 %v1560
        %v1562 = vlaneseq
        %v1563 = vshrl.u32 %v1562, 7
        %v1564 = vsub.s32 %v1561, %v1563
        %v1565 = vrot.slane %v1557, %v1564
        %v1567 = vunpack.c.l.s4 1934713408
        %v1568 = vunpack.c.0.s8 %v1567
        %v1569 = vlaneseq
        %v1570 = vshrl.u32 %v1569, 7
        %v1571 = vsub.s32 %v1568, %v1570
        %v1572 = vrot.slane %v1558, %v1571
        %v1573 = vcombine.low %v1548, %v1556
        %v1574 = vcombine.high %v1548, %v1556
        %v1576 = vunpack.c.l.s4 1934713408
        %v1577 = vunpack.c.0.s8 %v1576
        %v1578 = vlaneseq
        %v1579 = vshrl.u32 %v1578, 7
        %v1580 = vsub.s32 %v1577, %v1579
        %v1581 = vrot.slane %v1573, %v1580
        %v1583 = vunpack.c.l.s4 1934713408
        %v1584 = vunpack.c.0.s8 %v1583
        %v1585 = vlaneseq
        %v1586 = vshrl.u32 %v1585, 7
        %v1587 = vsub.s32 %v1584, %v1586
        %v1588 = vrot.slane %v1574, %v1587
        %v1589 = vcombine.low %v1565, %v1581
        %v1590 = vcombine.high %v1565, %v1581
        %v1591 = vcombine.low %v1572, %v1588
        %v1592 = vcombine.high %v1572, %v1588
        %v1593 = vpack.c.bf16 %v1589, %v1521
        %v1594 = vpack.c.bf16 %v1590, %v1522
        %v1595 = vpack.c.bf16 %v1591, %v1523
        %v1596 = vpack.c.bf16 %v1592, %v1524
        %1599 = vrot.lane.b32.xlu0 %v988, 120
        %v1600 = vpop.permute.xlu0 %1599
        %1601 = vrot.lane.b32.xlu0 %v991, 120
        %v1602 = vpop.permute.xlu0 %1601
        %1605 = vrot.lane.b32.xlu0 %v988, 112
        %v1606 = vpop.permute.xlu0 %1605
        %1607 = vrot.lane.b32.xlu0 %v991, 112
        %v1608 = vpop.permute.xlu0 %1607
        %1611 = vrot.lane.b32.xlu0 %v988, 104
        %v1612 = vpop.permute.xlu0 %1611
        %1613 = vrot.lane.b32.xlu0 %v991, 104
        %v1614 = vpop.permute.xlu0 %1613
        %v1617 = vcombine.low %v988, %v1606
        %v1618 = vcombine.high %v988, %v1606
        %v1620 = vunpack.c.l.s4 1983009808
        %v1621 = vunpack.c.0.s8 %v1620
        %v1622 = vlaneseq
        %v1623 = vshrl.u32 %v1622, 7
        %v1624 = vsub.s32 %v1621, %v1623
        %v1625 = vrot.slane %v1617, %v1624
        %v1627 = vunpack.c.l.s4 1983009808
        %v1628 = vunpack.c.0.s8 %v1627
        %v1629 = vlaneseq
        %v1630 = vshrl.u32 %v1629, 7
        %v1631 = vsub.s32 %v1628, %v1630
        %v1632 = vrot.slane %v1618, %v1631
        %v1633 = vcombine.low %v1600, %v1612
        %v1634 = vcombine.high %v1600, %v1612
        %v1636 = vunpack.c.l.s4 1983009808
        %v1637 = vunpack.c.0.s8 %v1636
        %v1638 = vlaneseq
        %v1639 = vshrl.u32 %v1638, 7
        %v1640 = vsub.s32 %v1637, %v1639
        %v1641 = vrot.slane %v1633, %v1640
        %v1643 = vunpack.c.l.s4 1983009808
        %v1644 = vunpack.c.0.s8 %v1643
        %v1645 = vlaneseq
        %v1646 = vshrl.u32 %v1645, 7
        %v1647 = vsub.s32 %v1644, %v1646
        %v1648 = vrot.slane %v1634, %v1647
        %v1649 = vcombine.low %v1625, %v1641
        %v1650 = vcombine.high %v1625, %v1641
        %v1652 = vunpack.c.l.s4 1934713408
        %v1653 = vunpack.c.0.s8 %v1652
        %v1654 = vlaneseq
        %v1655 = vshrl.u32 %v1654, 7
        %v1656 = vsub.s32 %v1653, %v1655
        %v1657 = vrot.slane %v1649, %v1656
        %v1659 = vunpack.c.l.s4 1934713408
        %v1660 = vunpack.c.0.s8 %v1659
        %v1661 = vlaneseq
        %v1662 = vshrl.u32 %v1661, 7
        %v1663 = vsub.s32 %v1660, %v1662
        %v1664 = vrot.slane %v1650, %v1663
        %v1665 = vcombine.low %v1632, %v1648
        %v1666 = vcombine.high %v1632, %v1648
        %v1668 = vunpack.c.l.s4 1934713408
        %v1669 = vunpack.c.0.s8 %v1668
        %v1670 = vlaneseq
        %v1671 = vshrl.u32 %v1670, 7
        %v1672 = vsub.s32 %v1669, %v1671
        %v1673 = vrot.slane %v1665, %v1672
        %v1675 = vunpack.c.l.s4 1934713408
        %v1676 = vunpack.c.0.s8 %v1675
        %v1677 = vlaneseq
        %v1678 = vshrl.u32 %v1677, 7
        %v1679 = vsub.s32 %v1676, %v1678
        %v1680 = vrot.slane %v1666, %v1679
        %v1681 = vcombine.high %v1657, 0.0
        %v1682 = vcombine.high %v1664, 0.0
        %v1683 = vcombine.high %v1673, 0.0
        %v1684 = vcombine.high %v1680, 0.0
        %v1685 = vcombine.low %v991, %v1608
        %v1686 = vcombine.high %v991, %v1608
        %v1688 = vunpack.c.l.s4 1983009808
        %v1689 = vunpack.c.0.s8 %v1688
        %v1690 = vlaneseq
        %v1691 = vshrl.u32 %v1690, 7
        %v1692 = vsub.s32 %v1689, %v1691
        %v1693 = vrot.slane %v1685, %v1692
        %v1695 = vunpack.c.l.s4 1983009808
        %v1696 = vunpack.c.0.s8 %v1695
        %v1697 = vlaneseq
        %v1698 = vshrl.u32 %v1697, 7
        %v1699 = vsub.s32 %v1696, %v1698
        %v1700 = vrot.slane %v1686, %v1699
        %v1701 = vcombine.low %v1602, %v1614
        %v1702 = vcombine.high %v1602, %v1614
        %v1704 = vunpack.c.l.s4 1983009808
        %v1705 = vunpack.c.0.s8 %v1704
        %v1706 = vlaneseq
        %v1707 = vshrl.u32 %v1706, 7
        %v1708 = vsub.s32 %v1705, %v1707
        %v1709 = vrot.slane %v1701, %v1708
        %v1711 = vunpack.c.l.s4 1983009808
        %v1712 = vunpack.c.0.s8 %v1711
        %v1713 = vlaneseq
        %v1714 = vshrl.u32 %v1713, 7
        %v1715 = vsub.s32 %v1712, %v1714
        %v1716 = vrot.slane %v1702, %v1715
        %v1717 = vcombine.low %v1693, %v1709
        %v1718 = vcombine.high %v1693, %v1709
        %v1720 = vunpack.c.l.s4 1934713408
        %v1721 = vunpack.c.0.s8 %v1720
        %v1722 = vlaneseq
        %v1723 = vshrl.u32 %v1722, 7
        %v1724 = vsub.s32 %v1721, %v1723
        %v1725 = vrot.slane %v1717, %v1724
        %v1727 = vunpack.c.l.s4 1934713408
        %v1728 = vunpack.c.0.s8 %v1727
        %v1729 = vlaneseq
        %v1730 = vshrl.u32 %v1729, 7
        %v1731 = vsub.s32 %v1728, %v1730
        %v1732 = vrot.slane %v1718, %v1731
        %v1733 = vcombine.low %v1700, %v1716
        %v1734 = vcombine.high %v1700, %v1716
        %v1736 = vunpack.c.l.s4 1934713408
        %v1737 = vunpack.c.0.s8 %v1736
        %v1738 = vlaneseq
        %v1739 = vshrl.u32 %v1738, 7
        %v1740 = vsub.s32 %v1737, %v1739
        %v1741 = vrot.slane %v1733, %v1740
        %v1743 = vunpack.c.l.s4 1934713408
        %v1744 = vunpack.c.0.s8 %v1743
        %v1745 = vlaneseq
        %v1746 = vshrl.u32 %v1745, 7
        %v1747 = vsub.s32 %v1744, %v1746
        %v1748 = vrot.slane %v1734, %v1747
        %v1749 = vcombine.high %v1725, 0.0
        %v1750 = vcombine.high %v1732, 0.0
        %v1751 = vcombine.high %v1741, 0.0
        %v1752 = vcombine.high %v1748, 0.0
        %v1753 = vcombine.low %v1657, %v1664
        %v1755 = vunpack.c.l.s4 1983009808
        %v1756 = vunpack.c.0.s8 %v1755
        %v1757 = vlaneseq
        %v1758 = vshrl.u32 %v1757, 7
        %v1759 = vsub.s32 %v1756, %v1758
        %v1760 = vrot.slane %v1753, %v1759
        %v1761 = vcombine.low %v1681, %v1682
        %v1763 = vunpack.c.l.s4 1983009808
        %v1764 = vunpack.c.0.s8 %v1763
        %v1765 = vlaneseq
        %v1766 = vshrl.u32 %v1765, 7
        %v1767 = vsub.s32 %v1764, %v1766
        %v1768 = vrot.slane %v1761, %v1767
        %v1769 = vcombine.low %v1673, %v1680
        %v1771 = vunpack.c.l.s4 1983009808
        %v1772 = vunpack.c.0.s8 %v1771
        %v1773 = vlaneseq
        %v1774 = vshrl.u32 %v1773, 7
        %v1775 = vsub.s32 %v1772, %v1774
        %v1776 = vrot.slane %v1769, %v1775
        %v1777 = vcombine.low %v1683, %v1684
        %v1779 = vunpack.c.l.s4 1983009808
        %v1780 = vunpack.c.0.s8 %v1779
        %v1781 = vlaneseq
        %v1782 = vshrl.u32 %v1781, 7
        %v1783 = vsub.s32 %v1780, %v1782
        %v1784 = vrot.slane %v1777, %v1783
        %v1785 = vcombine.low %v1760, %v1768
        %v1786 = vcombine.high %v1760, %v1768
        %v1788 = vunpack.c.l.s4 1934713408
        %v1789 = vunpack.c.0.s8 %v1788
        %v1790 = vlaneseq
        %v1791 = vshrl.u32 %v1790, 7
        %v1792 = vsub.s32 %v1789, %v1791
        %v1793 = vrot.slane %v1785, %v1792
        %v1795 = vunpack.c.l.s4 1934713408
        %v1796 = vunpack.c.0.s8 %v1795
        %v1797 = vlaneseq
        %v1798 = vshrl.u32 %v1797, 7
        %v1799 = vsub.s32 %v1796, %v1798
        %v1800 = vrot.slane %v1786, %v1799
        %v1801 = vcombine.low %v1776, %v1784
        %v1802 = vcombine.high %v1776, %v1784
        %v1804 = vunpack.c.l.s4 1934713408
        %v1805 = vunpack.c.0.s8 %v1804
        %v1806 = vlaneseq
        %v1807 = vshrl.u32 %v1806, 7
        %v1808 = vsub.s32 %v1805, %v1807
        %v1809 = vrot.slane %v1801, %v1808
        %v1811 = vunpack.c.l.s4 1934713408
        %v1812 = vunpack.c.0.s8 %v1811
        %v1813 = vlaneseq
        %v1814 = vshrl.u32 %v1813, 7
        %v1815 = vsub.s32 %v1812, %v1814
        %v1816 = vrot.slane %v1802, %v1815
        %v1817 = vcombine.low %v1793, %v1809
        %v1818 = vcombine.high %v1793, %v1809
        %v1819 = vcombine.low %v1800, %v1816
        %v1820 = vcombine.high %v1800, %v1816
        %v1821 = vcombine.low %v1725, %v1732
        %v1823 = vunpack.c.l.s4 1983009808
        %v1824 = vunpack.c.0.s8 %v1823
        %v1825 = vlaneseq
        %v1826 = vshrl.u32 %v1825, 7
        %v1827 = vsub.s32 %v1824, %v1826
        %v1828 = vrot.slane %v1821, %v1827
        %v1829 = vcombine.low %v1749, %v1750
        %v1831 = vunpack.c.l.s4 1983009808
        %v1832 = vunpack.c.0.s8 %v1831
        %v1833 = vlaneseq
        %v1834 = vshrl.u32 %v1833, 7
        %v1835 = vsub.s32 %v1832, %v1834
        %v1836 = vrot.slane %v1829, %v1835
        %v1837 = vcombine.low %v1741, %v1748
        %v1839 = vunpack.c.l.s4 1983009808
        %v1840 = vunpack.c.0.s8 %v1839
        %v1841 = vlaneseq
        %v1842 = vshrl.u32 %v1841, 7
        %v1843 = vsub.s32 %v1840, %v1842
        %v1844 = vrot.slane %v1837, %v1843
        %v1845 = vcombine.low %v1751, %v1752
        %v1847 = vunpack.c.l.s4 1983009808
        %v1848 = vunpack.c.0.s8 %v1847
        %v1849 = vlaneseq
        %v1850 = vshrl.u32 %v1849, 7
        %v1851 = vsub.s32 %v1848, %v1850
        %v1852 = vrot.slane %v1845, %v1851
        %v1853 = vcombine.low %v1828, %v1836
        %v1854 = vcombine.high %v1828, %v1836
        %v1856 = vunpack.c.l.s4 1934713408
        %v1857 = vunpack.c.0.s8 %v1856
        %v1858 = vlaneseq
        %v1859 = vshrl.u32 %v1858, 7
        %v1860 = vsub.s32 %v1857, %v1859
        %v1861 = vrot.slane %v1853, %v1860
        %v1863 = vunpack.c.l.s4 1934713408
        %v1864 = vunpack.c.0.s8 %v1863
        %v1865 = vlaneseq
        %v1866 = vshrl.u32 %v1865, 7
        %v1867 = vsub.s32 %v1864, %v1866
        %v1868 = vrot.slane %v1854, %v1867
        %v1869 = vcombine.low %v1844, %v1852
        %v1870 = vcombine.high %v1844, %v1852
        %v1872 = vunpack.c.l.s4 1934713408
        %v1873 = vunpack.c.0.s8 %v1872
        %v1874 = vlaneseq
        %v1875 = vshrl.u32 %v1874, 7
        %v1876 = vsub.s32 %v1873, %v1875
        %v1877 = vrot.slane %v1869, %v1876
        %v1879 = vunpack.c.l.s4 1934713408
        %v1880 = vunpack.c.0.s8 %v1879
        %v1881 = vlaneseq
        %v1882 = vshrl.u32 %v1881, 7
        %v1883 = vsub.s32 %v1880, %v1882
        %v1884 = vrot.slane %v1870, %v1883
        %v1885 = vcombine.low %v1861, %v1877
        %v1886 = vcombine.high %v1861, %v1877
        %v1887 = vcombine.low %v1868, %v1884
        %v1888 = vcombine.high %v1868, %v1884
        %v1889 = vpack.c.bf16 %v1885, %v1817
        %v1890 = vpack.c.bf16 %v1886, %v1818
        %v1891 = vpack.c.bf16 %v1887, %v1819
        %v1892 = vpack.c.bf16 %v1888, %v1820
        %vm1893 = vcmask 64512
        %v1895 = vsel %vm1893, %v1297, 0
        %v1898 = vsel %vm1893, %v1593, 0
        %1900 = vmatprep.subr.bf16.mxu0 0
        %1901 = vmatpush1.bf16.xpose.msra.mxu0 %v1898
        %1902 = vmatprep.subr.bf16.mxu0 0
        %1903 = vmatpush1.bf16.xpose.msra.mxu0 0
        %1904 = vmatprep.subr.bf16.mxu0 0
        %1905 = vmatpush1.bf16.xpose.msra.mxu0 0
        %1906 = vmatprep.subr.bf16.mxu0 0
        %1907 = vmatpush1.bf16.xpose.msra.mxu0 0
        %1908 = vmatprep.subr.bf16.mxu0 0
        %1909 = vmatpush1.bf16.xpose.msra.mxu0 0
        %1910 = vmatprep.subr.bf16.mxu0 0
        %1911 = vmatpush1.bf16.xpose.msra.mxu0 0
        %1912 = vmatprep.subr.bf16.mxu0 0
        %1913 = vmatpush1.bf16.xpose.msra.mxu0 0
        %1914 = vmatprep.subr.bf16.mxu0 0
        %1915 = vmatpush1.bf16.xpose.msra.mxu0 0
        %1916 = vmatprep.subr.bf16.mxu0 0
        %1917 = vmatpush1.bf16.xpose.msra.mxu0 0
        %1918 = vmatprep.subr.bf16.mxu0 0
        %1919 = vmatpush1.bf16.xpose.msra.mxu0 0
        %1920 = vmatprep.subr.bf16.mxu0 0
        %1921 = vmatpush1.bf16.xpose.msra.mxu0 0
        %1922 = vmatprep.subr.bf16.mxu0 0
        %1923 = vmatpush1.bf16.xpose.msra.mxu0 0
        %1924 = vmatprep.subr.bf16.mxu0 0
        %1925 = vmatpush1.bf16.xpose.msra.mxu0 0
        %1926 = vmatprep.subr.bf16.mxu0 0
        %1927 = vmatpush1.bf16.xpose.msra.mxu0 0
        %1928 = vmatprep.subr.bf16.mxu0 0
        %1929 = vmatpush1.bf16.xpose.msra.mxu0 0
        %1930 = vmatprep.subr.bf16.mxu0 0
        %1931 = vmatpush1.bf16.xpose.msra.mxu0 0
        %1932 = vmatprep.mubr.bf16.mxu0 0
        %1933 = vmatmul.mubr.bf16.gmra.mrb[0].mxu0 %v1895
        %v1934 = vpop.f32.mrb[0].mxu0
        %v1935 = vadd.f32 0.0, %v1934
        %v1936 = vpop.f32.mrb[0].mxu0
        %v1937 = vpop.f32.mrb[0].mxu0
        %v1938 = vadd.f32 0.0, %v1937
        %v1939 = vpop.f32.mrb[0].mxu0
        %1940 = vdwg.mxu0
        %v1942 = vsel %vm1893, %v1298, 0
        %v1945 = vsel %vm1893, %v1594, 0
        %1947 = vmatprep.subr.bf16.mxu0 0
        %1948 = vmatpush1.bf16.xpose.msra.mxu0 %v1945
        %1949 = vmatprep.subr.bf16.mxu0 0
        %1950 = vmatpush1.bf16.xpose.msra.mxu0 0
        %1951 = vmatprep.subr.bf16.mxu0 0
        %1952 = vmatpush1.bf16.xpose.msra.mxu0 0
        %1953 = vmatprep.subr.bf16.mxu0 0
        %1954 = vmatpush1.bf16.xpose.msra.mxu0 0
        %1955 = vmatprep.subr.bf16.mxu0 0
        %1956 = vmatpush1.bf16.xpose.msra.mxu0 0
        %1957 = vmatprep.subr.bf16.mxu0 0
        %1958 = vmatpush1.bf16.xpose.msra.mxu0 0
        %1959 = vmatprep.subr.bf16.mxu0 0
        %1960 = vmatpush1.bf16.xpose.msra.mxu0 0
        %1961 = vmatprep.subr.bf16.mxu0 0
        %1962 = vmatpush1.bf16.xpose.msra.mxu0 0
        %1963 = vmatprep.subr.bf16.mxu0 0
        %1964 = vmatpush1.bf16.xpose.msra.mxu0 0
        %1965 = vmatprep.subr.bf16.mxu0 0
        %1966 = vmatpush1.bf16.xpose.msra.mxu0 0
        %1967 = vmatprep.subr.bf16.mxu0 0
        %1968 = vmatpush1.bf16.xpose.msra.mxu0 0
        %1969 = vmatprep.subr.bf16.mxu0 0
        %1970 = vmatpush1.bf16.xpose.msra.mxu0 0
        %1971 = vmatprep.subr.bf16.mxu0 0
        %1972 = vmatpush1.bf16.xpose.msra.mxu0 0
        %1973 = vmatprep.subr.bf16.mxu0 0
        %1974 = vmatpush1.bf16.xpose.msra.mxu0 0
        %1975 = vmatprep.subr.bf16.mxu0 0
        %1976 = vmatpush1.bf16.xpose.msra.mxu0 0
        %1977 = vmatprep.subr.bf16.mxu0 0
        %1978 = vmatpush1.bf16.xpose.msra.mxu0 0
        %1979 = vmatprep.mubr.bf16.mxu0 0
        %1980 = vmatmul.mubr.bf16.gmra.mrb[0].mxu0 %v1942
        %v1981 = vpop.f32.mrb[0].mxu0
        %v1982 = vadd.f32 0.0, %v1981
        %v1983 = vpop.f32.mrb[0].mxu0
        %v1984 = vpop.f32.mrb[0].mxu0
        %v1985 = vadd.f32 0.0, %v1984
        %v1986 = vpop.f32.mrb[0].mxu0
        %1987 = vdwg.mxu0
        %v1989 = vsel %vm1893, %v1299, 0
        %v1992 = vsel %vm1893, %v1595, 0
        %1994 = vmatprep.subr.bf16.mxu0 0
        %1995 = vmatpush1.bf16.xpose.msra.mxu0 %v1992
        %1996 = vmatprep.subr.bf16.mxu0 0
        %1997 = vmatpush1.bf16.xpose.msra.mxu0 0
        %1998 = vmatprep.subr.bf16.mxu0 0
        %1999 = vmatpush1.bf16.xpose.msra.mxu0 0
        %2000 = vmatprep.subr.bf16.mxu0 0
        %2001 = vmatpush1.bf16.xpose.msra.mxu0 0
        %2002 = vmatprep.subr.bf16.mxu0 0
        %2003 = vmatpush1.bf16.xpose.msra.mxu0 0
        %2004 = vmatprep.subr.bf16.mxu0 0
        %2005 = vmatpush1.bf16.xpose.msra.mxu0 0
        %2006 = vmatprep.subr.bf16.mxu0 0
        %2007 = vmatpush1.bf16.xpose.msra.mxu0 0
        %2008 = vmatprep.subr.bf16.mxu0 0
        %2009 = vmatpush1.bf16.xpose.msra.mxu0 0
        %2010 = vmatprep.subr.bf16.mxu0 0
        %2011 = vmatpush1.bf16.xpose.msra.mxu0 0
        %2012 = vmatprep.subr.bf16.mxu0 0
        %2013 = vmatpush1.bf16.xpose.msra.mxu0 0
        %2014 = vmatprep.subr.bf16.mxu0 0
        %2015 = vmatpush1.bf16.xpose.msra.mxu0 0
        %2016 = vmatprep.subr.bf16.mxu0 0
        %2017 = vmatpush1.bf16.xpose.msra.mxu0 0
        %2018 = vmatprep.subr.bf16.mxu0 0
        %2019 = vmatpush1.bf16.xpose.msra.mxu0 0
        %2020 = vmatprep.subr.bf16.mxu0 0
        %2021 = vmatpush1.bf16.xpose.msra.mxu0 0
        %2022 = vmatprep.subr.bf16.mxu0 0
        %2023 = vmatpush1.bf16.xpose.msra.mxu0 0
        %2024 = vmatprep.subr.bf16.mxu0 0
        %2025 = vmatpush1.bf16.xpose.msra.mxu0 0
        %2026 = vmatprep.mubr.bf16.mxu0 0
        %2027 = vmatmul.mubr.bf16.gmra.mrb[0].mxu0 %v1989
        %v2028 = vpop.f32.mrb[0].mxu0
        %v2029 = vadd.f32 0.0, %v2028
        %v2030 = vpop.f32.mrb[0].mxu0
        %v2031 = vpop.f32.mrb[0].mxu0
        %v2032 = vadd.f32 0.0, %v2031
        %v2033 = vpop.f32.mrb[0].mxu0
        %2034 = vdwg.mxu0
        %v2036 = vsel %vm1893, %v1300, 0
        %v2039 = vsel %vm1893, %v1596, 0
        %2041 = vmatprep.subr.bf16.mxu0 0
        %2042 = vmatpush1.bf16.xpose.msra.mxu0 %v2039
        %2043 = vmatprep.subr.bf16.mxu0 0
        %2044 = vmatpush1.bf16.xpose.msra.mxu0 0
        %2045 = vmatprep.subr.bf16.mxu0 0
        %2046 = vmatpush1.bf16.xpose.msra.mxu0 0
        %2047 = vmatprep.subr.bf16.mxu0 0
        %2048 = vmatpush1.bf16.xpose.msra.mxu0 0
        %2049 = vmatprep.subr.bf16.mxu0 0
        %2050 = vmatpush1.bf16.xpose.msra.mxu0 0
        %2051 = vmatprep.subr.bf16.mxu0 0
        %2052 = vmatpush1.bf16.xpose.msra.mxu0 0
        %2053 = vmatprep.subr.bf16.mxu0 0
        %2054 = vmatpush1.bf16.xpose.msra.mxu0 0
        %2055 = vmatprep.subr.bf16.mxu0 0
        %2056 = vmatpush1.bf16.xpose.msra.mxu0 0
        %2057 = vmatprep.subr.bf16.mxu0 0
        %2058 = vmatpush1.bf16.xpose.msra.mxu0 0
        %2059 = vmatprep.subr.bf16.mxu0 0
        %2060 = vmatpush1.bf16.xpose.msra.mxu0 0
        %2061 = vmatprep.subr.bf16.mxu0 0
        %2062 = vmatpush1.bf16.xpose.msra.mxu0 0
        %2063 = vmatprep.subr.bf16.mxu0 0
        %2064 = vmatpush1.bf16.xpose.msra.mxu0 0
        %2065 = vmatprep.subr.bf16.mxu0 0
        %2066 = vmatpush1.bf16.xpose.msra.mxu0 0
        %2067 = vmatprep.subr.bf16.mxu0 0
        %2068 = vmatpush1.bf16.xpose.msra.mxu0 0
        %2069 = vmatprep.subr.bf16.mxu0 0
        %2070 = vmatpush1.bf16.xpose.msra.mxu0 0
        %2071 = vmatprep.subr.bf16.mxu0 0
        %2072 = vmatpush1.bf16.xpose.msra.mxu0 0
        %2073 = vmatprep.mubr.bf16.mxu0 0
        %2074 = vmatmul.mubr.bf16.gmra.mrb[0].mxu0 %v2036
        %v2075 = vpop.f32.mrb[0].mxu0
        %v2076 = vadd.f32 0.0, %v2075
        %v2077 = vpop.f32.mrb[0].mxu0
        %v2078 = vpop.f32.mrb[0].mxu0
        %v2079 = vadd.f32 0.0, %v2078
        %v2080 = vpop.f32.mrb[0].mxu0
        %2081 = vdwg.mxu0
        %v2082 = vsel %vm1004, 1, 0
        %vm2083 = vcmp.eq.s32.totalorder %v2082, 1
        %v2084 = vsel %vm2083, %v1935, -1e+30
        %v2085 = vsel %vm2083, %v1938, -1e+30
        %v2086 = vsel %vm2083, %v1982, -1e+30
        %v2087 = vsel %vm2083, %v1985, -1e+30
        %v2088 = vsel %vm2083, %v2029, -1e+30
        %v2089 = vsel %vm2083, %v2032, -1e+30
        %v2090 = vsel %vm2083, %v2076, -1e+30
        %v2091 = vsel %vm2083, %v2079, -1e+30
        %vm2092 = vcmask 130048
        %v2093 = vsel %vm2092, %v2084, -inf
        %2094 = vmax.xlane.f32.xlu0 %v2093
        %v2095 = vpop.xlane.xlu0 %2094
        %v2096 = vsel %vm2092, %v2085, -inf
        %2097 = vmax.xlane.f32.xlu0 %v2096
        %v2098 = vpop.xlane.xlu0 %2097
        %v2099 = vsel %vm2092, %v2086, -inf
        %2100 = vmax.xlane.f32.xlu0 %v2099
        %v2101 = vpop.xlane.xlu0 %2100
        %v2102 = vsel %vm2092, %v2087, -inf
        %2103 = vmax.xlane.f32.xlu0 %v2102
        %v2104 = vpop.xlane.xlu0 %2103
        %v2105 = vsel %vm2092, %v2088, -inf
        %2106 = vmax.xlane.f32.xlu0 %v2105
        %v2107 = vpop.xlane.xlu0 %2106
        %v2108 = vsel %vm2092, %v2089, -inf
        %2109 = vmax.xlane.f32.xlu0 %v2108
        %v2110 = vpop.xlane.xlu0 %2109
        %v2111 = vsel %vm2092, %v2090, -inf
        %2112 = vmax.xlane.f32.xlu0 %v2111
        %v2113 = vpop.xlane.xlu0 %2112
        %v2114 = vsel %vm2092, %v2091, -inf
        %2115 = vmax.xlane.f32.xlu0 %v2114
        %v2116 = vpop.xlane.xlu0 %2115
        %v2117 = vsub.f32 %v2084, %v2095
        %v2118 = vsub.f32 %v2085, %v2098
        %v2119 = vsub.f32 %v2086, %v2101
        %v2120 = vsub.f32 %v2087, %v2104
        %v2121 = vsub.f32 %v2088, %v2107
        %v2122 = vsub.f32 %v2089, %v2110
        %v2123 = vsub.f32 %v2090, %v2113
        %v2124 = vsub.f32 %v2091, %v2116
        %v2125 = vmul.f32 %v2117, 1.442695
        %v2126 = vpow.pop %v2125
        %v2127 = vmul.f32 %v2118, 1.442695
        %v2128 = vpow.pop %v2127
        %v2129 = vmul.f32 %v2119, 1.442695
        %v2130 = vpow.pop %v2129
        %v2131 = vmul.f32 %v2120, 1.442695
        %v2132 = vpow.pop %v2131
        %v2133 = vmul.f32 %v2121, 1.442695
        %v2134 = vpow.pop %v2133
        %v2135 = vmul.f32 %v2122, 1.442695
        %v2136 = vpow.pop %v2135
        %v2137 = vmul.f32 %v2123, 1.442695
        %v2138 = vpow.pop %v2137
        %v2139 = vmul.f32 %v2124, 1.442695
        %v2140 = vpow.pop %v2139
        %v2141 = vsel %vm2092, %v2126, 0.0
        %2142 = vadd.xlane.f32.xlu0 %v2141
        %v2143 = vpop.xlane.xlu0 %2142
        %v2144 = vsel %vm2092, %v2128, 0.0
        %2145 = vadd.xlane.f32.xlu0 %v2144
        %v2146 = vpop.xlane.xlu0 %2145
        %v2147 = vsel %vm2092, %v2130, 0.0
        %2148 = vadd.xlane.f32.xlu0 %v2147
        %v2149 = vpop.xlane.xlu0 %2148
        %v2150 = vsel %vm2092, %v2132, 0.0
        %2151 = vadd.xlane.f32.xlu0 %v2150
        %v2152 = vpop.xlane.xlu0 %2151
        %v2153 = vsel %vm2092, %v2134, 0.0
        %2154 = vadd.xlane.f32.xlu0 %v2153
        %v2155 = vpop.xlane.xlu0 %2154
        %v2156 = vsel %vm2092, %v2136, 0.0
        %2157 = vadd.xlane.f32.xlu0 %v2156
        %v2158 = vpop.xlane.xlu0 %2157
        %v2159 = vsel %vm2092, %v2138, 0.0
        %2160 = vadd.xlane.f32.xlu0 %v2159
        %v2161 = vpop.xlane.xlu0 %2160
        %v2162 = vsel %vm2092, %v2140, 0.0
        %2163 = vadd.xlane.f32.xlu0 %v2162
        %v2164 = vpop.xlane.xlu0 %2163
        %v2165 = vrcp.pop %v2143
        %v2166 = vrcp.pop %v2146
        %v2167 = vrcp.pop %v2149
        %v2168 = vrcp.pop %v2152
        %v2169 = vrcp.pop %v2155
        %v2170 = vrcp.pop %v2158
        %v2171 = vrcp.pop %v2161
        %v2172 = vrcp.pop %v2164
        %v2173 = vmul.f32 %v2126, %v2165
        %v2174 = vmul.f32 %v2128, %v2166
        %v2175 = vmul.f32 %v2130, %v2167
        %v2176 = vmul.f32 %v2132, %v2168
        %v2177 = vmul.f32 %v2134, %v2169
        %v2178 = vmul.f32 %v2136, %v2170
        %v2179 = vmul.f32 %v2138, %v2171
        %v2180 = vmul.f32 %v2140, %v2172
        %v2181 = vpack.c.bf16 %v2174, %v2173
        %v2182 = vpack.c.bf16 %v2176, %v2175
        %v2183 = vpack.c.bf16 %v2178, %v2177
        %v2184 = vpack.c.bf16 %v2180, %v2179
        %v2186 = vsel %vm2092, %v2181, 0
        %2188 = vmatprep.subr.bf16.mxu0 0
        %2189 = vmatpush1.bf16.msra.mxu0 %v1889
        %2190 = vmatprep.subr.bf16.mxu0 0
        %2191 = vmatpush1.bf16.msra.mxu0 0
        %2192 = vmatprep.subr.bf16.mxu0 0
        %2193 = vmatpush1.bf16.msra.mxu0 0
        %2194 = vmatprep.subr.bf16.mxu0 0
        %2195 = vmatpush1.bf16.msra.mxu0 0
        %2196 = vmatprep.subr.bf16.mxu0 0
        %2197 = vmatpush1.bf16.msra.mxu0 0
        %2198 = vmatprep.subr.bf16.mxu0 0
        %2199 = vmatpush1.bf16.msra.mxu0 0
        %2200 = vmatprep.subr.bf16.mxu0 0
        %2201 = vmatpush1.bf16.msra.mxu0 0
        %2202 = vmatprep.subr.bf16.mxu0 0
        %2203 = vmatpush1.bf16.msra.mxu0 0
        %2204 = vmatprep.subr.bf16.mxu0 0
        %2205 = vmatpush1.bf16.msra.mxu0 0
        %2206 = vmatprep.subr.bf16.mxu0 0
        %2207 = vmatpush1.bf16.msra.mxu0 0
        %2208 = vmatprep.subr.bf16.mxu0 0
        %2209 = vmatpush1.bf16.msra.mxu0 0
        %2210 = vmatprep.subr.bf16.mxu0 0
        %2211 = vmatpush1.bf16.msra.mxu0 0
        %2212 = vmatprep.subr.bf16.mxu0 0
        %2213 = vmatpush1.bf16.msra.mxu0 0
        %2214 = vmatprep.subr.bf16.mxu0 0
        %2215 = vmatpush1.bf16.msra.mxu0 0
        %2216 = vmatprep.subr.bf16.mxu0 0
        %2217 = vmatpush1.bf16.msra.mxu0 0
        %2218 = vmatprep.subr.bf16.mxu0 0
        %2219 = vmatpush1.bf16.msra.mxu0 0
        %2220 = vmatprep.mubr.bf16.mxu0 0
        %2221 = vmatmul.mubr.bf16.gmra.mrb[0].mxu0 %v2186
        %v2222 = vpop.f32.mrb[0].mxu0
        %v2223 = vadd.f32 0.0, %v2222
        %v2224 = vpop.f32.mrb[0].mxu0
        %v2225 = vpop.f32.mrb[0].mxu0
        %v2226 = vadd.f32 0.0, %v2225
        %v2227 = vpop.f32.mrb[0].mxu0
        %2228 = vdwg.mxu0
        %v2230 = vsel %vm2092, %v2182, 0
        %2232 = vmatprep.subr.bf16.mxu0 0
        %2233 = vmatpush1.bf16.msra.mxu0 %v1890
        %2234 = vmatprep.subr.bf16.mxu0 0
        %2235 = vmatpush1.bf16.msra.mxu0 0
        %2236 = vmatprep.subr.bf16.mxu0 0
        %2237 = vmatpush1.bf16.msra.mxu0 0
        %2238 = vmatprep.subr.bf16.mxu0 0
        %2239 = vmatpush1.bf16.msra.mxu0 0
        %2240 = vmatprep.subr.bf16.mxu0 0
        %2241 = vmatpush1.bf16.msra.mxu0 0
        %2242 = vmatprep.subr.bf16.mxu0 0
        %2243 = vmatpush1.bf16.msra.mxu0 0
        %2244 = vmatprep.subr.bf16.mxu0 0
        %2245 = vmatpush1.bf16.msra.mxu0 0
        %2246 = vmatprep.subr.bf16.mxu0 0
        %2247 = vmatpush1.bf16.msra.mxu0 0
        %2248 = vmatprep.subr.bf16.mxu0 0
        %2249 = vmatpush1.bf16.msra.mxu0 0
        %2250 = vmatprep.subr.bf16.mxu0 0
        %2251 = vmatpush1.bf16.msra.mxu0 0
        %2252 = vmatprep.subr.bf16.mxu0 0
        %2253 = vmatpush1.bf16.msra.mxu0 0
        %2254 = vmatprep.subr.bf16.mxu0 0
        %2255 = vmatpush1.bf16.msra.mxu0 0
        %2256 = vmatprep.subr.bf16.mxu0 0
        %2257 = vmatpush1.bf16.msra.mxu0 0
        %2258 = vmatprep.subr.bf16.mxu0 0
        %2259 = vmatpush1.bf16.msra.mxu0 0
        %2260 = vmatprep.subr.bf16.mxu0 0
        %2261 = vmatpush1.bf16.msra.mxu0 0
        %2262 = vmatprep.subr.bf16.mxu0 0
        %2263 = vmatpush1.bf16.msra.mxu0 0
        %2264 = vmatprep.mubr.bf16.mxu0 0
        %2265 = vmatmul.mubr.bf16.gmra.mrb[0].mxu0 %v2230
        %v2266 = vpop.f32.mrb[0].mxu0
        %v2267 = vadd.f32 0.0, %v2266
        %v2268 = vpop.f32.mrb[0].mxu0
        %v2269 = vpop.f32.mrb[0].mxu0
        %v2270 = vadd.f32 0.0, %v2269
        %v2271 = vpop.f32.mrb[0].mxu0
        %2272 = vdwg.mxu0
        %v2274 = vsel %vm2092, %v2183, 0
        %2276 = vmatprep.subr.bf16.mxu0 0
        %2277 = vmatpush1.bf16.msra.mxu0 %v1891
        %2278 = vmatprep.subr.bf16.mxu0 0
        %2279 = vmatpush1.bf16.msra.mxu0 0
        %2280 = vmatprep.subr.bf16.mxu0 0
        %2281 = vmatpush1.bf16.msra.mxu0 0
        %2282 = vmatprep.subr.bf16.mxu0 0
        %2283 = vmatpush1.bf16.msra.mxu0 0
        %2284 = vmatprep.subr.bf16.mxu0 0
        %2285 = vmatpush1.bf16.msra.mxu0 0
        %2286 = vmatprep.subr.bf16.mxu0 0
        %2287 = vmatpush1.bf16.msra.mxu0 0
        %2288 = vmatprep.subr.bf16.mxu0 0
        %2289 = vmatpush1.bf16.msra.mxu0 0
        %2290 = vmatprep.subr.bf16.mxu0 0
        %2291 = vmatpush1.bf16.msra.mxu0 0
        %2292 = vmatprep.subr.bf16.mxu0 0
        %2293 = vmatpush1.bf16.msra.mxu0 0
        %2294 = vmatprep.subr.bf16.mxu0 0
        %2295 = vmatpush1.bf16.msra.mxu0 0
        %2296 = vmatprep.subr.bf16.mxu0 0
        %2297 = vmatpush1.bf16.msra.mxu0 0
        %2298 = vmatprep.subr.bf16.mxu0 0
        %2299 = vmatpush1.bf16.msra.mxu0 0
        %2300 = vmatprep.subr.bf16.mxu0 0
        %2301 = vmatpush1.bf16.msra.mxu0 0
        %2302 = vmatprep.subr.bf16.mxu0 0
        %2303 = vmatpush1.bf16.msra.mxu0 0
        %2304 = vmatprep.subr.bf16.mxu0 0
        %2305 = vmatpush1.bf16.msra.mxu0 0
        %2306 = vmatprep.subr.bf16.mxu0 0
        %2307 = vmatpush1.bf16.msra.mxu0 0
        %2308 = vmatprep.mubr.bf16.mxu0 0
        %2309 = vmatmul.mubr.bf16.gmra.mrb[0].mxu0 %v2274
        %v2310 = vpop.f32.mrb[0].mxu0
        %v2311 = vadd.f32 0.0, %v2310
        %v2312 = vpop.f32.mrb[0].mxu0
        %v2313 = vpop.f32.mrb[0].mxu0
        %v2314 = vadd.f32 0.0, %v2313
        %v2315 = vpop.f32.mrb[0].mxu0
        %2316 = vdwg.mxu0
        %v2318 = vsel %vm2092, %v2184, 0
        %2320 = vmatprep.subr.bf16.mxu0 0
        %2321 = vmatpush1.bf16.msra.mxu0 %v1892
        %2322 = vmatprep.subr.bf16.mxu0 0
        %2323 = vmatpush1.bf16.msra.mxu0 0
        %2324 = vmatprep.subr.bf16.mxu0 0
        %2325 = vmatpush1.bf16.msra.mxu0 0
        %2326 = vmatprep.subr.bf16.mxu0 0
        %2327 = vmatpush1.bf16.msra.mxu0 0
        %2328 = vmatprep.subr.bf16.mxu0 0
        %2329 = vmatpush1.bf16.msra.mxu0 0
        %2330 = vmatprep.subr.bf16.mxu0 0
        %2331 = vmatpush1.bf16.msra.mxu0 0
        %2332 = vmatprep.subr.bf16.mxu0 0
        %2333 = vmatpush1.bf16.msra.mxu0 0
        %2334 = vmatprep.subr.bf16.mxu0 0
        %2335 = vmatpush1.bf16.msra.mxu0 0
        %2336 = vmatprep.subr.bf16.mxu0 0
        %2337 = vmatpush1.bf16.msra.mxu0 0
        %2338 = vmatprep.subr.bf16.mxu0 0
        %2339 = vmatpush1.bf16.msra.mxu0 0
        %2340 = vmatprep.subr.bf16.mxu0 0
        %2341 = vmatpush1.bf16.msra.mxu0 0
        %2342 = vmatprep.subr.bf16.mxu0 0
        %2343 = vmatpush1.bf16.msra.mxu0 0
        %2344 = vmatprep.subr.bf16.mxu0 0
        %2345 = vmatpush1.bf16.msra.mxu0 0
        %2346 = vmatprep.subr.bf16.mxu0 0
        %2347 = vmatpush1.bf16.msra.mxu0 0
        %2348 = vmatprep.subr.bf16.mxu0 0
        %2349 = vmatpush1.bf16.msra.mxu0 0
        %2350 = vmatprep.subr.bf16.mxu0 0
        %2351 = vmatpush1.bf16.msra.mxu0 0
        %2352 = vmatprep.mubr.bf16.mxu0 0
        %2353 = vmatmul.mubr.bf16.gmra.mrb[0].mxu0 %v2318
        %v2354 = vpop.f32.mrb[0].mxu0
        %v2355 = vadd.f32 0.0, %v2354
        %v2356 = vpop.f32.mrb[0].mxu0
        %v2357 = vpop.f32.mrb[0].mxu0
        %v2358 = vadd.f32 0.0, %v2357
        %v2359 = vpop.f32.mrb[0].mxu0
        %2360 = vdwg.mxu0
        %v2361 = vcombine.low %v2223, %v2311
        %v2362 = vcombine.high %v2223, %v2311
        %v2364 = vunpack.c.l.s4 1983009808
        %v2365 = vunpack.c.0.s8 %v2364
        %v2366 = vlaneseq
        %v2367 = vshrl.u32 %v2366, 7
        %v2368 = vsub.s32 %v2365, %v2367
        %v2369 = vrot.slane %v2361, %v2368
        %v2371 = vunpack.c.l.s4 1983009808
        %v2372 = vunpack.c.0.s8 %v2371
        %v2373 = vlaneseq
        %v2374 = vshrl.u32 %v2373, 7
        %v2375 = vsub.s32 %v2372, %v2374
        %v2376 = vrot.slane %v2362, %v2375
        %v2377 = vcombine.low %v2267, %v2355
        %v2378 = vcombine.high %v2267, %v2355
        %v2380 = vunpack.c.l.s4 1983009808
        %v2381 = vunpack.c.0.s8 %v2380
        %v2382 = vlaneseq
        %v2383 = vshrl.u32 %v2382, 7
        %v2384 = vsub.s32 %v2381, %v2383
        %v2385 = vrot.slane %v2377, %v2384
        %v2387 = vunpack.c.l.s4 1983009808
        %v2388 = vunpack.c.0.s8 %v2387
        %v2389 = vlaneseq
        %v2390 = vshrl.u32 %v2389, 7
        %v2391 = vsub.s32 %v2388, %v2390
        %v2392 = vrot.slane %v2378, %v2391
        %v2393 = vcombine.low %v2369, %v2385
        %v2394 = vcombine.high %v2369, %v2385
        %v2396 = vunpack.c.l.s4 1934713408
        %v2397 = vunpack.c.0.s8 %v2396
        %v2398 = vlaneseq
        %v2399 = vshrl.u32 %v2398, 7
        %v2400 = vsub.s32 %v2397, %v2399
        %v2401 = vrot.slane %v2393, %v2400
        %v2403 = vunpack.c.l.s4 1934713408
        %v2404 = vunpack.c.0.s8 %v2403
        %v2405 = vlaneseq
        %v2406 = vshrl.u32 %v2405, 7
        %v2407 = vsub.s32 %v2404, %v2406
        %v2408 = vrot.slane %v2394, %v2407
        %v2409 = vcombine.low %v2376, %v2392
        %v2410 = vcombine.high %v2376, %v2392
        %v2412 = vunpack.c.l.s4 1934713408
        %v2413 = vunpack.c.0.s8 %v2412
        %v2414 = vlaneseq
        %v2415 = vshrl.u32 %v2414, 7
        %v2416 = vsub.s32 %v2413, %v2415
        %v2417 = vrot.slane %v2409, %v2416
        %v2419 = vunpack.c.l.s4 1934713408
        %v2420 = vunpack.c.0.s8 %v2419
        %v2421 = vlaneseq
        %v2422 = vshrl.u32 %v2421, 7
        %v2423 = vsub.s32 %v2420, %v2422
        %v2424 = vrot.slane %v2410, %v2423
        %v2425 = vcombine.high %v2401, 0.0
        %v2426 = vcombine.high %v2408, 0.0
        %v2427 = vcombine.high %v2417, 0.0
        %v2428 = vcombine.high %v2424, 0.0
        %v2429 = vcombine.low %v2226, %v2314
        %v2430 = vcombine.high %v2226, %v2314
        %v2432 = vunpack.c.l.s4 1983009808
        %v2433 = vunpack.c.0.s8 %v2432
        %v2434 = vlaneseq
        %v2435 = vshrl.u32 %v2434, 7
        %v2436 = vsub.s32 %v2433, %v2435
        %v2437 = vrot.slane %v2429, %v2436
        %v2439 = vunpack.c.l.s4 1983009808
        %v2440 = vunpack.c.0.s8 %v2439
        %v2441 = vlaneseq
        %v2442 = vshrl.u32 %v2441, 7
        %v2443 = vsub.s32 %v2440, %v2442
        %v2444 = vrot.slane %v2430, %v2443
        %v2445 = vcombine.low %v2270, %v2358
        %v2446 = vcombine.high %v2270, %v2358
        %v2448 = vunpack.c.l.s4 1983009808
        %v2449 = vunpack.c.0.s8 %v2448
        %v2450 = vlaneseq
        %v2451 = vshrl.u32 %v2450, 7
        %v2452 = vsub.s32 %v2449, %v2451
        %v2453 = vrot.slane %v2445, %v2452
        %v2455 = vunpack.c.l.s4 1983009808
        %v2456 = vunpack.c.0.s8 %v2455
        %v2457 = vlaneseq
        %v2458 = vshrl.u32 %v2457, 7
        %v2459 = vsub.s32 %v2456, %v2458
        %v2460 = vrot.slane %v2446, %v2459
        %v2461 = vcombine.low %v2437, %v2453
        %v2462 = vcombine.high %v2437, %v2453
        %v2464 = vunpack.c.l.s4 1934713408
        %v2465 = vunpack.c.0.s8 %v2464
        %v2466 = vlaneseq
        %v2467 = vshrl.u32 %v2466, 7
        %v2468 = vsub.s32 %v2465, %v2467
        %v2469 = vrot.slane %v2461, %v2468
        %v2471 = vunpack.c.l.s4 1934713408
        %v2472 = vunpack.c.0.s8 %v2471
        %v2473 = vlaneseq
        %v2474 = vshrl.u32 %v2473, 7
        %v2475 = vsub.s32 %v2472, %v2474
        %v2476 = vrot.slane %v2462, %v2475
        %v2477 = vcombine.low %v2444, %v2460
        %v2478 = vcombine.high %v2444, %v2460
        %v2480 = vunpack.c.l.s4 1934713408
        %v2481 = vunpack.c.0.s8 %v2480
        %v2482 = vlaneseq
        %v2483 = vshrl.u32 %v2482, 7
        %v2484 = vsub.s32 %v2481, %v2483
        %v2485 = vrot.slane %v2477, %v2484
        %v2487 = vunpack.c.l.s4 1934713408
        %v2488 = vunpack.c.0.s8 %v2487
        %v2489 = vlaneseq
        %v2490 = vshrl.u32 %v2489, 7
        %v2491 = vsub.s32 %v2488, %v2490
        %v2492 = vrot.slane %v2478, %v2491
        %v2493 = vcombine.high %v2469, 0.0
        %v2494 = vcombine.high %v2476, 0.0
        %v2495 = vcombine.high %v2485, 0.0
        %v2496 = vcombine.high %v2492, 0.0
        %v2497 = vcombine.low %v2401, %v2408
        %v2499 = vunpack.c.l.s4 1983009808
        %v2500 = vunpack.c.0.s8 %v2499
        %v2501 = vlaneseq
        %v2502 = vshrl.u32 %v2501, 7
        %v2503 = vsub.s32 %v2500, %v2502
        %v2504 = vrot.slane %v2497, %v2503
        %v2505 = vcombine.low %v2425, %v2426
        %v2507 = vunpack.c.l.s4 1983009808
        %v2508 = vunpack.c.0.s8 %v2507
        %v2509 = vlaneseq
        %v2510 = vshrl.u32 %v2509, 7
        %v2511 = vsub.s32 %v2508, %v2510
        %v2512 = vrot.slane %v2505, %v2511
        %v2513 = vcombine.low %v2417, %v2424
        %v2515 = vunpack.c.l.s4 1983009808
        %v2516 = vunpack.c.0.s8 %v2515
        %v2517 = vlaneseq
        %v2518 = vshrl.u32 %v2517, 7
        %v2519 = vsub.s32 %v2516, %v2518
        %v2520 = vrot.slane %v2513, %v2519
        %v2521 = vcombine.low %v2427, %v2428
        %v2523 = vunpack.c.l.s4 1983009808
        %v2524 = vunpack.c.0.s8 %v2523
        %v2525 = vlaneseq
        %v2526 = vshrl.u32 %v2525, 7
        %v2527 = vsub.s32 %v2524, %v2526
        %v2528 = vrot.slane %v2521, %v2527
        %v2529 = vcombine.low %v2504, %v2512
        %v2530 = vcombine.high %v2504, %v2512
        %v2532 = vunpack.c.l.s4 1934713408
        %v2533 = vunpack.c.0.s8 %v2532
        %v2534 = vlaneseq
        %v2535 = vshrl.u32 %v2534, 7
        %v2536 = vsub.s32 %v2533, %v2535
        %v2537 = vrot.slane %v2529, %v2536
        %v2539 = vunpack.c.l.s4 1934713408
        %v2540 = vunpack.c.0.s8 %v2539
        %v2541 = vlaneseq
        %v2542 = vshrl.u32 %v2541, 7
        %v2543 = vsub.s32 %v2540, %v2542
        %v2544 = vrot.slane %v2530, %v2543
        %v2545 = vcombine.low %v2520, %v2528
        %v2546 = vcombine.high %v2520, %v2528
        %v2548 = vunpack.c.l.s4 1934713408
        %v2549 = vunpack.c.0.s8 %v2548
        %v2550 = vlaneseq
        %v2551 = vshrl.u32 %v2550, 7
        %v2552 = vsub.s32 %v2549, %v2551
        %v2553 = vrot.slane %v2545, %v2552
        %v2555 = vunpack.c.l.s4 1934713408
        %v2556 = vunpack.c.0.s8 %v2555
        %v2557 = vlaneseq
        %v2558 = vshrl.u32 %v2557, 7
        %v2559 = vsub.s32 %v2556, %v2558
        %v2560 = vrot.slane %v2546, %v2559
        %v2561 = vcombine.low %v2537, %v2553
        %v2562 = vcombine.high %v2537, %v2553
        %v2563 = vcombine.low %v2544, %v2560
        %v2564 = vcombine.high %v2544, %v2560
        %v2565 = vcombine.low %v2469, %v2476
        %v2567 = vunpack.c.l.s4 1983009808
        %v2568 = vunpack.c.0.s8 %v2567
        %v2569 = vlaneseq
        %v2570 = vshrl.u32 %v2569, 7
        %v2571 = vsub.s32 %v2568, %v2570
        %v2572 = vrot.slane %v2565, %v2571
        %v2573 = vcombine.low %v2493, %v2494
        %v2575 = vunpack.c.l.s4 1983009808
        %v2576 = vunpack.c.0.s8 %v2575
        %v2577 = vlaneseq
        %v2578 = vshrl.u32 %v2577, 7
        %v2579 = vsub.s32 %v2576, %v2578
        %v2580 = vrot.slane %v2573, %v2579
        %v2581 = vcombine.low %v2485, %v2492
        %v2583 = vunpack.c.l.s4 1983009808
        %v2584 = vunpack.c.0.s8 %v2583
        %v2585 = vlaneseq
        %v2586 = vshrl.u32 %v2585, 7
        %v2587 = vsub.s32 %v2584, %v2586
        %v2588 = vrot.slane %v2581, %v2587
        %v2589 = vcombine.low %v2495, %v2496
        %v2591 = vunpack.c.l.s4 1983009808
        %v2592 = vunpack.c.0.s8 %v2591
        %v2593 = vlaneseq
        %v2594 = vshrl.u32 %v2593, 7
        %v2595 = vsub.s32 %v2592, %v2594
        %v2596 = vrot.slane %v2589, %v2595
        %v2597 = vcombine.low %v2572, %v2580
        %v2598 = vcombine.high %v2572, %v2580
        %v2600 = vunpack.c.l.s4 1934713408
        %v2601 = vunpack.c.0.s8 %v2600
        %v2602 = vlaneseq
        %v2603 = vshrl.u32 %v2602, 7
        %v2604 = vsub.s32 %v2601, %v2603
        %v2605 = vrot.slane %v2597, %v2604
        %v2607 = vunpack.c.l.s4 1934713408
        %v2608 = vunpack.c.0.s8 %v2607
        %v2609 = vlaneseq
        %v2610 = vshrl.u32 %v2609, 7
        %v2611 = vsub.s32 %v2608, %v2610
        %v2612 = vrot.slane %v2598, %v2611
        %v2613 = vcombine.low %v2588, %v2596
        %v2614 = vcombine.high %v2588, %v2596
        %v2616 = vunpack.c.l.s4 1934713408
        %v2617 = vunpack.c.0.s8 %v2616
        %v2618 = vlaneseq
        %v2619 = vshrl.u32 %v2618, 7
        %v2620 = vsub.s32 %v2617, %v2619
        %v2621 = vrot.slane %v2613, %v2620
        %v2623 = vunpack.c.l.s4 1934713408
        %v2624 = vunpack.c.0.s8 %v2623
        %v2625 = vlaneseq
        %v2626 = vshrl.u32 %v2625, 7
        %v2627 = vsub.s32 %v2624, %v2626
        %v2628 = vrot.slane %v2614, %v2627
        %v2629 = vcombine.low %v2605, %v2621
        %v2630 = vcombine.high %v2605, %v2621
        %v2631 = vcombine.low %v2612, %v2628
        %v2632 = vcombine.high %v2612, %v2628
        %2635 = vrot.lane.b32.xlu0 %v2562, 8
        %v2636 = vpop.permute.xlu0 %2635
        %2637 = vrot.lane.b32.xlu0 %v2630, 8
        %v2638 = vpop.permute.xlu0 %2637
        %2643 = vrot.lane.b32.xlu0 %v2563, 16
        %v2644 = vpop.permute.xlu0 %2643
        %2645 = vrot.lane.b32.xlu0 %v2631, 16
        %v2646 = vpop.permute.xlu0 %2645
        %2651 = vrot.lane.b32.xlu0 %v2564, 24
        %v2652 = vpop.permute.xlu0 %2651
        %2653 = vrot.lane.b32.xlu0 %v2632, 24
        %v2654 = vpop.permute.xlu0 %2653
        %v2657 = vsel %vm1893, %v2561, %v2636
        %v2658 = vsel %vm1893, %v2629, %v2638
        %v2659 = vsel %vm2092, %v2657, %v2644
        %v2660 = vsel %vm2092, %v2658, %v2646
        %vm2661 = vcmask 195584
        %v2662 = vsel %vm2661, %v2659, %v2652
        %v2663 = vsel %vm2661, %v2660, %v2654
        %v2664 = vsel %vm2092, %v2173, 0.0
        %v2665 = vsel %vm2092, %v2175, 0.0
        %v2666 = vadd.f32 %v2664, %v2665
        %v2667 = vsel %vm2092, %v2177, 0.0
        %v2668 = vadd.f32 %v2666, %v2667
        %v2669 = vsel %vm2092, %v2179, 0.0
        %v2670 = vadd.f32 %v2668, %v2669
        %v2671 = vsel %vm2092, %v2174, 0.0
        %v2672 = vsel %vm2092, %v2176, 0.0
        %v2673 = vadd.f32 %v2671, %v2672
        %v2674 = vsel %vm2092, %v2178, 0.0
        %v2675 = vadd.f32 %v2673, %v2674
        %v2676 = vsel %vm2092, %v2180, 0.0
        %v2677 = vadd.f32 %v2675, %v2676
        %v2678 = vrcp.pop 4.0
        %v2679 = vmul.f32 %v2670, %v2678
        %v2680 = vmul.f32 %v2677, %v2678
        %2683 = vrot.lane.b32.xlu0 %v852, 120
        %v2684 = vpop.permute.xlu0 %2683
        %2685 = vrot.lane.b32.xlu0 %v855, 120
        %v2686 = vpop.permute.xlu0 %2685
        %2689 = vrot.lane.b32.xlu0 %v852, 112
        %v2690 = vpop.permute.xlu0 %2689
        %2691 = vrot.lane.b32.xlu0 %v855, 112
        %v2692 = vpop.permute.xlu0 %2691
        %2695 = vrot.lane.b32.xlu0 %v852, 104
        %v2696 = vpop.permute.xlu0 %2695
        %2697 = vrot.lane.b32.xlu0 %v855, 104
        %v2698 = vpop.permute.xlu0 %2697
        %v2701 = vcombine.low %v852, %v2690
        %v2702 = vcombine.high %v852, %v2690
        %v2704 = vunpack.c.l.s4 1983009808
        %v2705 = vunpack.c.0.s8 %v2704
        %v2706 = vlaneseq
        %v2707 = vshrl.u32 %v2706, 7
        %v2708 = vsub.s32 %v2705, %v2707
        %v2709 = vrot.slane %v2701, %v2708
        %v2711 = vunpack.c.l.s4 1983009808
        %v2712 = vunpack.c.0.s8 %v2711
        %v2713 = vlaneseq
        %v2714 = vshrl.u32 %v2713, 7
        %v2715 = vsub.s32 %v2712, %v2714
        %v2716 = vrot.slane %v2702, %v2715
        %v2717 = vcombine.low %v2684, %v2696
        %v2718 = vcombine.high %v2684, %v2696
        %v2720 = vunpack.c.l.s4 1983009808
        %v2721 = vunpack.c.0.s8 %v2720
        %v2722 = vlaneseq
        %v2723 = vshrl.u32 %v2722, 7
        %v2724 = vsub.s32 %v2721, %v2723
        %v2725 = vrot.slane %v2717, %v2724
        %v2727 = vunpack.c.l.s4 1983009808
        %v2728 = vunpack.c.0.s8 %v2727
        %v2729 = vlaneseq
        %v2730 = vshrl.u32 %v2729, 7
        %v2731 = vsub.s32 %v2728, %v2730
        %v2732 = vrot.slane %v2718, %v2731
        %v2733 = vcombine.low %v2709, %v2725
        %v2734 = vcombine.high %v2709, %v2725
        %v2736 = vunpack.c.l.s4 1934713408
        %v2737 = vunpack.c.0.s8 %v2736
        %v2738 = vlaneseq
        %v2739 = vshrl.u32 %v2738, 7
        %v2740 = vsub.s32 %v2737, %v2739
        %v2741 = vrot.slane %v2733, %v2740
        %v2743 = vunpack.c.l.s4 1934713408
        %v2744 = vunpack.c.0.s8 %v2743
        %v2745 = vlaneseq
        %v2746 = vshrl.u32 %v2745, 7
        %v2747 = vsub.s32 %v2744, %v2746
        %v2748 = vrot.slane %v2734, %v2747
        %v2749 = vcombine.low %v2716, %v2732
        %v2750 = vcombine.high %v2716, %v2732
        %v2752 = vunpack.c.l.s4 1934713408
        %v2753 = vunpack.c.0.s8 %v2752
        %v2754 = vlaneseq
        %v2755 = vshrl.u32 %v2754, 7
        %v2756 = vsub.s32 %v2753, %v2755
        %v2757 = vrot.slane %v2749, %v2756
        %v2759 = vunpack.c.l.s4 1934713408
        %v2760 = vunpack.c.0.s8 %v2759
        %v2761 = vlaneseq
        %v2762 = vshrl.u32 %v2761, 7
        %v2763 = vsub.s32 %v2760, %v2762
        %v2764 = vrot.slane %v2750, %v2763
        %v2765 = vcombine.high %v2741, 0.0
        %v2766 = vcombine.high %v2748, 0.0
        %v2767 = vcombine.high %v2757, 0.0
        %v2768 = vcombine.high %v2764, 0.0
        %v2769 = vcombine.low %v855, %v2692
        %v2770 = vcombine.high %v855, %v2692
        %v2772 = vunpack.c.l.s4 1983009808
        %v2773 = vunpack.c.0.s8 %v2772
        %v2774 = vlaneseq
        %v2775 = vshrl.u32 %v2774, 7
        %v2776 = vsub.s32 %v2773, %v2775
        %v2777 = vrot.slane %v2769, %v2776
        %v2779 = vunpack.c.l.s4 1983009808
        %v2780 = vunpack.c.0.s8 %v2779
        %v2781 = vlaneseq
        %v2782 = vshrl.u32 %v2781, 7
        %v2783 = vsub.s32 %v2780, %v2782
        %v2784 = vrot.slane %v2770, %v2783
        %v2785 = vcombine.low %v2686, %v2698
        %v2786 = vcombine.high %v2686, %v2698
        %v2788 = vunpack.c.l.s4 1983009808
        %v2789 = vunpack.c.0.s8 %v2788
        %v2790 = vlaneseq
        %v2791 = vshrl.u32 %v2790, 7
        %v2792 = vsub.s32 %v2789, %v2791
        %v2793 = vrot.slane %v2785, %v2792
        %v2795 = vunpack.c.l.s4 1983009808
        %v2796 = vunpack.c.0.s8 %v2795
        %v2797 = vlaneseq
        %v2798 = vshrl.u32 %v2797, 7
        %v2799 = vsub.s32 %v2796, %v2798
        %v2800 = vrot.slane %v2786, %v2799
        %v2801 = vcombine.low %v2777, %v2793
        %v2802 = vcombine.high %v2777, %v2793
        %v2804 = vunpack.c.l.s4 1934713408
        %v2805 = vunpack.c.0.s8 %v2804
        %v2806 = vlaneseq
        %v2807 = vshrl.u32 %v2806, 7
        %v2808 = vsub.s32 %v2805, %v2807
        %v2809 = vrot.slane %v2801, %v2808
        %v2811 = vunpack.c.l.s4 1934713408
        %v2812 = vunpack.c.0.s8 %v2811
        %v2813 = vlaneseq
        %v2814 = vshrl.u32 %v2813, 7
        %v2815 = vsub.s32 %v2812, %v2814
        %v2816 = vrot.slane %v2802, %v2815
        %v2817 = vcombine.low %v2784, %v2800
        %v2818 = vcombine.high %v2784, %v2800
        %v2820 = vunpack.c.l.s4 1934713408
        %v2821 = vunpack.c.0.s8 %v2820
        %v2822 = vlaneseq
        %v2823 = vshrl.u32 %v2822, 7
        %v2824 = vsub.s32 %v2821, %v2823
        %v2825 = vrot.slane %v2817, %v2824
        %v2827 = vunpack.c.l.s4 1934713408
        %v2828 = vunpack.c.0.s8 %v2827
        %v2829 = vlaneseq
        %v2830 = vshrl.u32 %v2829, 7
        %v2831 = vsub.s32 %v2828, %v2830
        %v2832 = vrot.slane %v2818, %v2831
        %v2833 = vcombine.high %v2809, 0.0
        %v2834 = vcombine.high %v2816, 0.0
        %v2835 = vcombine.high %v2825, 0.0
        %v2836 = vcombine.high %v2832, 0.0
        %v2837 = vcombine.low %v2741, %v2748
        %v2839 = vunpack.c.l.s4 1983009808
        %v2840 = vunpack.c.0.s8 %v2839
        %v2841 = vlaneseq
        %v2842 = vshrl.u32 %v2841, 7
        %v2843 = vsub.s32 %v2840, %v2842
        %v2844 = vrot.slane %v2837, %v2843
        %v2845 = vcombine.low %v2765, %v2766
        %v2847 = vunpack.c.l.s4 1983009808
        %v2848 = vunpack.c.0.s8 %v2847
        %v2849 = vlaneseq
        %v2850 = vshrl.u32 %v2849, 7
        %v2851 = vsub.s32 %v2848, %v2850
        %v2852 = vrot.slane %v2845, %v2851
        %v2853 = vcombine.low %v2757, %v2764
        %v2855 = vunpack.c.l.s4 1983009808
        %v2856 = vunpack.c.0.s8 %v2855
        %v2857 = vlaneseq
        %v2858 = vshrl.u32 %v2857, 7
        %v2859 = vsub.s32 %v2856, %v2858
        %v2860 = vrot.slane %v2853, %v2859
        %v2861 = vcombine.low %v2767, %v2768
        %v2863 = vunpack.c.l.s4 1983009808
        %v2864 = vunpack.c.0.s8 %v2863
        %v2865 = vlaneseq
        %v2866 = vshrl.u32 %v2865, 7
        %v2867 = vsub.s32 %v2864, %v2866
        %v2868 = vrot.slane %v2861, %v2867
        %v2869 = vcombine.low %v2844, %v2852
        %v2870 = vcombine.high %v2844, %v2852
        %v2872 = vunpack.c.l.s4 1934713408
        %v2873 = vunpack.c.0.s8 %v2872
        %v2874 = vlaneseq
        %v2875 = vshrl.u32 %v2874, 7
        %v2876 = vsub.s32 %v2873, %v2875
        %v2877 = vrot.slane %v2869, %v2876
        %v2879 = vunpack.c.l.s4 1934713408
        %v2880 = vunpack.c.0.s8 %v2879
        %v2881 = vlaneseq
        %v2882 = vshrl.u32 %v2881, 7
        %v2883 = vsub.s32 %v2880, %v2882
        %v2884 = vrot.slane %v2870, %v2883
        %v2885 = vcombine.low %v2860, %v2868
        %v2886 = vcombine.high %v2860, %v2868
        %v2888 = vunpack.c.l.s4 1934713408
        %v2889 = vunpack.c.0.s8 %v2888
        %v2890 = vlaneseq
        %v2891 = vshrl.u32 %v2890, 7
        %v2892 = vsub.s32 %v2889, %v2891
        %v2893 = vrot.slane %v2885, %v2892
        %v2895 = vunpack.c.l.s4 1934713408
        %v2896 = vunpack.c.0.s8 %v2895
        %v2897 = vlaneseq
        %v2898 = vshrl.u32 %v2897, 7
        %v2899 = vsub.s32 %v2896, %v2898
        %v2900 = vrot.slane %v2886, %v2899
        %v2901 = vcombine.low %v2877, %v2893
        %v2902 = vcombine.high %v2877, %v2893
        %v2903 = vcombine.low %v2884, %v2900
        %v2904 = vcombine.high %v2884, %v2900
        %v2905 = vcombine.low %v2809, %v2816
        %v2907 = vunpack.c.l.s4 1983009808
        %v2908 = vunpack.c.0.s8 %v2907
        %v2909 = vlaneseq
        %v2910 = vshrl.u32 %v2909, 7
        %v2911 = vsub.s32 %v2908, %v2910
        %v2912 = vrot.slane %v2905, %v2911
        %v2913 = vcombine.low %v2833, %v2834
        %v2915 = vunpack.c.l.s4 1983009808
        %v2916 = vunpack.c.0.s8 %v2915
        %v2917 = vlaneseq
        %v2918 = vshrl.u32 %v2917, 7
        %v2919 = vsub.s32 %v2916, %v2918
        %v2920 = vrot.slane %v2913, %v2919
        %v2921 = vcombine.low %v2825, %v2832
        %v2923 = vunpack.c.l.s4 1983009808
        %v2924 = vunpack.c.0.s8 %v2923
        %v2925 = vlaneseq
        %v2926 = vshrl.u32 %v2925, 7
        %v2927 = vsub.s32 %v2924, %v2926
        %v2928 = vrot.slane %v2921, %v2927
        %v2929 = vcombine.low %v2835, %v2836
        %v2931 = vunpack.c.l.s4 1983009808
        %v2932 = vunpack.c.0.s8 %v2931
        %v2933 = vlaneseq
        %v2934 = vshrl.u32 %v2933, 7
        %v2935 = vsub.s32 %v2932, %v2934
        %v2936 = vrot.slane %v2929, %v2935
        %v2937 = vcombine.low %v2912, %v2920
        %v2938 = vcombine.high %v2912, %v2920
        %v2940 = vunpack.c.l.s4 1934713408
        %v2941 = vunpack.c.0.s8 %v2940
        %v2942 = vlaneseq
        %v2943 = vshrl.u32 %v2942, 7
        %v2944 = vsub.s32 %v2941, %v2943
        %v2945 = vrot.slane %v2937, %v2944
        %v2947 = vunpack.c.l.s4 1934713408
        %v2948 = vunpack.c.0.s8 %v2947
        %v2949 = vlaneseq
        %v2950 = vshrl.u32 %v2949, 7
        %v2951 = vsub.s32 %v2948, %v2950
        %v2952 = vrot.slane %v2938, %v2951
        %v2953 = vcombine.low %v2928, %v2936
        %v2954 = vcombine.high %v2928, %v2936
        %v2956 = vunpack.c.l.s4 1934713408
        %v2957 = vunpack.c.0.s8 %v2956
        %v2958 = vlaneseq
        %v2959 = vshrl.u32 %v2958, 7
        %v2960 = vsub.s32 %v2957, %v2959
        %v2961 = vrot.slane %v2953, %v2960
        %v2963 = vunpack.c.l.s4 1934713408
        %v2964 = vunpack.c.0.s8 %v2963
        %v2965 = vlaneseq
        %v2966 = vshrl.u32 %v2965, 7
        %v2967 = vsub.s32 %v2964, %v2966
        %v2968 = vrot.slane %v2954, %v2967
        %v2969 = vcombine.low %v2945, %v2961
        %v2970 = vcombine.high %v2945, %v2961
        %v2971 = vcombine.low %v2952, %v2968
        %v2972 = vcombine.high %v2952, %v2968
        %v2973 = vpack.c.bf16 %v2969, %v2901
        %v2974 = vpack.c.bf16 %v2970, %v2902
        %v2975 = vpack.c.bf16 %v2971, %v2903
        %v2976 = vpack.c.bf16 %v2972, %v2904
        %2979 = vrot.lane.b32.xlu0 %v924, 120
        %v2980 = vpop.permute.xlu0 %2979
        %2981 = vrot.lane.b32.xlu0 %v927, 120
        %v2982 = vpop.permute.xlu0 %2981
        %2985 = vrot.lane.b32.xlu0 %v924, 112
        %v2986 = vpop.permute.xlu0 %2985
        %2987 = vrot.lane.b32.xlu0 %v927, 112
        %v2988 = vpop.permute.xlu0 %2987
        %2991 = vrot.lane.b32.xlu0 %v924, 104
        %v2992 = vpop.permute.xlu0 %2991
        %2993 = vrot.lane.b32.xlu0 %v927, 104
        %v2994 = vpop.permute.xlu0 %2993
        %v2997 = vcombine.low %v924, %v2986
        %v2998 = vcombine.high %v924, %v2986
        %v3000 = vunpack.c.l.s4 1983009808
        %v3001 = vunpack.c.0.s8 %v3000
        %v3002 = vlaneseq
        %v3003 = vshrl.u32 %v3002, 7
        %v3004 = vsub.s32 %v3001, %v3003
        %v3005 = vrot.slane %v2997, %v3004
        %v3007 = vunpack.c.l.s4 1983009808
        %v3008 = vunpack.c.0.s8 %v3007
        %v3009 = vlaneseq
        %v3010 = vshrl.u32 %v3009, 7
        %v3011 = vsub.s32 %v3008, %v3010
        %v3012 = vrot.slane %v2998, %v3011
        %v3013 = vcombine.low %v2980, %v2992
        %v3014 = vcombine.high %v2980, %v2992
        %v3016 = vunpack.c.l.s4 1983009808
        %v3017 = vunpack.c.0.s8 %v3016
        %v3018 = vlaneseq
        %v3019 = vshrl.u32 %v3018, 7
        %v3020 = vsub.s32 %v3017, %v3019
        %v3021 = vrot.slane %v3013, %v3020
        %v3023 = vunpack.c.l.s4 1983009808
        %v3024 = vunpack.c.0.s8 %v3023
        %v3025 = vlaneseq
        %v3026 = vshrl.u32 %v3025, 7
        %v3027 = vsub.s32 %v3024, %v3026
        %v3028 = vrot.slane %v3014, %v3027
        %v3029 = vcombine.low %v3005, %v3021
        %v3030 = vcombine.high %v3005, %v3021
        %v3032 = vunpack.c.l.s4 1934713408
        %v3033 = vunpack.c.0.s8 %v3032
        %v3034 = vlaneseq
        %v3035 = vshrl.u32 %v3034, 7
        %v3036 = vsub.s32 %v3033, %v3035
        %v3037 = vrot.slane %v3029, %v3036
        %v3039 = vunpack.c.l.s4 1934713408
        %v3040 = vunpack.c.0.s8 %v3039
        %v3041 = vlaneseq
        %v3042 = vshrl.u32 %v3041, 7
        %v3043 = vsub.s32 %v3040, %v3042
        %v3044 = vrot.slane %v3030, %v3043
        %v3045 = vcombine.low %v3012, %v3028
        %v3046 = vcombine.high %v3012, %v3028
        %v3048 = vunpack.c.l.s4 1934713408
        %v3049 = vunpack.c.0.s8 %v3048
        %v3050 = vlaneseq
        %v3051 = vshrl.u32 %v3050, 7
        %v3052 = vsub.s32 %v3049, %v3051
        %v3053 = vrot.slane %v3045, %v3052
        %v3055 = vunpack.c.l.s4 1934713408
        %v3056 = vunpack.c.0.s8 %v3055
        %v3057 = vlaneseq
        %v3058 = vshrl.u32 %v3057, 7
        %v3059 = vsub.s32 %v3056, %v3058
        %v3060 = vrot.slane %v3046, %v3059
        %v3061 = vcombine.high %v3037, 0.0
        %v3062 = vcombine.high %v3044, 0.0
        %v3063 = vcombine.high %v3053, 0.0
        %v3064 = vcombine.high %v3060, 0.0
        %v3065 = vcombine.low %v927, %v2988
        %v3066 = vcombine.high %v927, %v2988
        %v3068 = vunpack.c.l.s4 1983009808
        %v3069 = vunpack.c.0.s8 %v3068
        %v3070 = vlaneseq
        %v3071 = vshrl.u32 %v3070, 7
        %v3072 = vsub.s32 %v3069, %v3071
        %v3073 = vrot.slane %v3065, %v3072
        %v3075 = vunpack.c.l.s4 1983009808
        %v3076 = vunpack.c.0.s8 %v3075
        %v3077 = vlaneseq
        %v3078 = vshrl.u32 %v3077, 7
        %v3079 = vsub.s32 %v3076, %v3078
        %v3080 = vrot.slane %v3066, %v3079
        %v3081 = vcombine.low %v2982, %v2994
        %v3082 = vcombine.high %v2982, %v2994
        %v3084 = vunpack.c.l.s4 1983009808
        %v3085 = vunpack.c.0.s8 %v3084
        %v3086 = vlaneseq
        %v3087 = vshrl.u32 %v3086, 7
        %v3088 = vsub.s32 %v3085, %v3087
        %v3089 = vrot.slane %v3081, %v3088
        %v3091 = vunpack.c.l.s4 1983009808
        %v3092 = vunpack.c.0.s8 %v3091
        %v3093 = vlaneseq
        %v3094 = vshrl.u32 %v3093, 7
        %v3095 = vsub.s32 %v3092, %v3094
        %v3096 = vrot.slane %v3082, %v3095
        %v3097 = vcombine.low %v3073, %v3089
        %v3098 = vcombine.high %v3073, %v3089
        %v3100 = vunpack.c.l.s4 1934713408
        %v3101 = vunpack.c.0.s8 %v3100
        %v3102 = vlaneseq
        %v3103 = vshrl.u32 %v3102, 7
        %v3104 = vsub.s32 %v3101, %v3103
        %v3105 = vrot.slane %v3097, %v3104
        %v3107 = vunpack.c.l.s4 1934713408
        %v3108 = vunpack.c.0.s8 %v3107
        %v3109 = vlaneseq
        %v3110 = vshrl.u32 %v3109, 7
        %v3111 = vsub.s32 %v3108, %v3110
        %v3112 = vrot.slane %v3098, %v3111
        %v3113 = vcombine.low %v3080, %v3096
        %v3114 = vcombine.high %v3080, %v3096
        %v3116 = vunpack.c.l.s4 1934713408
        %v3117 = vunpack.c.0.s8 %v3116
        %v3118 = vlaneseq
        %v3119 = vshrl.u32 %v3118, 7
        %v3120 = vsub.s32 %v3117, %v3119
        %v3121 = vrot.slane %v3113, %v3120
        %v3123 = vunpack.c.l.s4 1934713408
        %v3124 = vunpack.c.0.s8 %v3123
        %v3125 = vlaneseq
        %v3126 = vshrl.u32 %v3125, 7
        %v3127 = vsub.s32 %v3124, %v3126
        %v3128 = vrot.slane %v3114, %v3127
        %v3129 = vcombine.high %v3105, 0.0
        %v3130 = vcombine.high %v3112, 0.0
        %v3131 = vcombine.high %v3121, 0.0
        %v3132 = vcombine.high %v3128, 0.0
        %v3133 = vcombine.low %v3037, %v3044
        %v3135 = vunpack.c.l.s4 1983009808
        %v3136 = vunpack.c.0.s8 %v3135
        %v3137 = vlaneseq
        %v3138 = vshrl.u32 %v3137, 7
        %v3139 = vsub.s32 %v3136, %v3138
        %v3140 = vrot.slane %v3133, %v3139
        %v3141 = vcombine.low %v3061, %v3062
        %v3143 = vunpack.c.l.s4 1983009808
        %v3144 = vunpack.c.0.s8 %v3143
        %v3145 = vlaneseq
        %v3146 = vshrl.u32 %v3145, 7
        %v3147 = vsub.s32 %v3144, %v3146
        %v3148 = vrot.slane %v3141, %v3147
        %v3149 = vcombine.low %v3053, %v3060
        %v3151 = vunpack.c.l.s4 1983009808
        %v3152 = vunpack.c.0.s8 %v3151
        %v3153 = vlaneseq
        %v3154 = vshrl.u32 %v3153, 7
        %v3155 = vsub.s32 %v3152, %v3154
        %v3156 = vrot.slane %v3149, %v3155
        %v3157 = vcombine.low %v3063, %v3064
        %v3159 = vunpack.c.l.s4 1983009808
        %v3160 = vunpack.c.0.s8 %v3159
        %v3161 = vlaneseq
        %v3162 = vshrl.u32 %v3161, 7
        %v3163 = vsub.s32 %v3160, %v3162
        %v3164 = vrot.slane %v3157, %v3163
        %v3165 = vcombine.low %v3140, %v3148
        %v3166 = vcombine.high %v3140, %v3148
        %v3168 = vunpack.c.l.s4 1934713408
        %v3169 = vunpack.c.0.s8 %v3168
        %v3170 = vlaneseq
        %v3171 = vshrl.u32 %v3170, 7
        %v3172 = vsub.s32 %v3169, %v3171
        %v3173 = vrot.slane %v3165, %v3172
        %v3175 = vunpack.c.l.s4 1934713408
        %v3176 = vunpack.c.0.s8 %v3175
        %v3177 = vlaneseq
        %v3178 = vshrl.u32 %v3177, 7
        %v3179 = vsub.s32 %v3176, %v3178
        %v3180 = vrot.slane %v3166, %v3179
        %v3181 = vcombine.low %v3156, %v3164
        %v3182 = vcombine.high %v3156, %v3164
        %v3184 = vunpack.c.l.s4 1934713408
        %v3185 = vunpack.c.0.s8 %v3184
        %v3186 = vlaneseq
        %v3187 = vshrl.u32 %v3186, 7
        %v3188 = vsub.s32 %v3185, %v3187
        %v3189 = vrot.slane %v3181, %v3188
        %v3191 = vunpack.c.l.s4 1934713408
        %v3192 = vunpack.c.0.s8 %v3191
        %v3193 = vlaneseq
        %v3194 = vshrl.u32 %v3193, 7
        %v3195 = vsub.s32 %v3192, %v3194
        %v3196 = vrot.slane %v3182, %v3195
        %v3197 = vcombine.low %v3173, %v3189
        %v3198 = vcombine.high %v3173, %v3189
        %v3199 = vcombine.low %v3180, %v3196
        %v3200 = vcombine.high %v3180, %v3196
        %v3201 = vcombine.low %v3105, %v3112
        %v3203 = vunpack.c.l.s4 1983009808
        %v3204 = vunpack.c.0.s8 %v3203
        %v3205 = vlaneseq
        %v3206 = vshrl.u32 %v3205, 7
        %v3207 = vsub.s32 %v3204, %v3206
        %v3208 = vrot.slane %v3201, %v3207
        %v3209 = vcombine.low %v3129, %v3130
        %v3211 = vunpack.c.l.s4 1983009808
        %v3212 = vunpack.c.0.s8 %v3211
        %v3213 = vlaneseq
        %v3214 = vshrl.u32 %v3213, 7
        %v3215 = vsub.s32 %v3212, %v3214
        %v3216 = vrot.slane %v3209, %v3215
        %v3217 = vcombine.low %v3121, %v3128
        %v3219 = vunpack.c.l.s4 1983009808
        %v3220 = vunpack.c.0.s8 %v3219
        %v3221 = vlaneseq
        %v3222 = vshrl.u32 %v3221, 7
        %v3223 = vsub.s32 %v3220, %v3222
        %v3224 = vrot.slane %v3217, %v3223
        %v3225 = vcombine.low %v3131, %v3132
        %v3227 = vunpack.c.l.s4 1983009808
        %v3228 = vunpack.c.0.s8 %v3227
        %v3229 = vlaneseq
        %v3230 = vshrl.u32 %v3229, 7
        %v3231 = vsub.s32 %v3228, %v3230
        %v3232 = vrot.slane %v3225, %v3231
        %v3233 = vcombine.low %v3208, %v3216
        %v3234 = vcombine.high %v3208, %v3216
        %v3236 = vunpack.c.l.s4 1934713408
        %v3237 = vunpack.c.0.s8 %v3236
        %v3238 = vlaneseq
        %v3239 = vshrl.u32 %v3238, 7
        %v3240 = vsub.s32 %v3237, %v3239
        %v3241 = vrot.slane %v3233, %v3240
        %v3243 = vunpack.c.l.s4 1934713408
        %v3244 = vunpack.c.0.s8 %v3243
        %v3245 = vlaneseq
        %v3246 = vshrl.u32 %v3245, 7
        %v3247 = vsub.s32 %v3244, %v3246
        %v3248 = vrot.slane %v3234, %v3247
        %v3249 = vcombine.low %v3224, %v3232
        %v3250 = vcombine.high %v3224, %v3232
        %v3252 = vunpack.c.l.s4 1934713408
        %v3253 = vunpack.c.0.s8 %v3252
        %v3254 = vlaneseq
        %v3255 = vshrl.u32 %v3254, 7
        %v3256 = vsub.s32 %v3253, %v3255
        %v3257 = vrot.slane %v3249, %v3256
        %v3259 = vunpack.c.l.s4 1934713408
        %v3260 = vunpack.c.0.s8 %v3259
        %v3261 = vlaneseq
        %v3262 = vshrl.u32 %v3261, 7
        %v3263 = vsub.s32 %v3260, %v3262
        %v3264 = vrot.slane %v3250, %v3263
        %v3265 = vcombine.low %v3241, %v3257
        %v3266 = vcombine.high %v3241, %v3257
        %v3267 = vcombine.low %v3248, %v3264
        %v3268 = vcombine.high %v3248, %v3264
        %v3269 = vpack.c.bf16 %v3265, %v3197
        %v3270 = vpack.c.bf16 %v3266, %v3198
        %v3271 = vpack.c.bf16 %v3267, %v3199
        %v3272 = vpack.c.bf16 %v3268, %v3200
        %3275 = vrot.lane.b32.xlu0 %v996, 120
        %v3276 = vpop.permute.xlu0 %3275
        %3277 = vrot.lane.b32.xlu0 %v999, 120
        %v3278 = vpop.permute.xlu0 %3277
        %3281 = vrot.lane.b32.xlu0 %v996, 112
        %v3282 = vpop.permute.xlu0 %3281
        %3283 = vrot.lane.b32.xlu0 %v999, 112
        %v3284 = vpop.permute.xlu0 %3283
        %3287 = vrot.lane.b32.xlu0 %v996, 104
        %v3288 = vpop.permute.xlu0 %3287
        %3289 = vrot.lane.b32.xlu0 %v999, 104
        %v3290 = vpop.permute.xlu0 %3289
        %v3293 = vcombine.low %v996, %v3282
        %v3294 = vcombine.high %v996, %v3282
        %v3296 = vunpack.c.l.s4 1983009808
        %v3297 = vunpack.c.0.s8 %v3296
        %v3298 = vlaneseq
        %v3299 = vshrl.u32 %v3298, 7
        %v3300 = vsub.s32 %v3297, %v3299
        %v3301 = vrot.slane %v3293, %v3300
        %v3303 = vunpack.c.l.s4 1983009808
        %v3304 = vunpack.c.0.s8 %v3303
        %v3305 = vlaneseq
        %v3306 = vshrl.u32 %v3305, 7
        %v3307 = vsub.s32 %v3304, %v3306
        %v3308 = vrot.slane %v3294, %v3307
        %v3309 = vcombine.low %v3276, %v3288
        %v3310 = vcombine.high %v3276, %v3288
        %v3312 = vunpack.c.l.s4 1983009808
        %v3313 = vunpack.c.0.s8 %v3312
        %v3314 = vlaneseq
        %v3315 = vshrl.u32 %v3314, 7
        %v3316 = vsub.s32 %v3313, %v3315
        %v3317 = vrot.slane %v3309, %v3316
        %v3319 = vunpack.c.l.s4 1983009808
        %v3320 = vunpack.c.0.s8 %v3319
        %v3321 = vlaneseq
        %v3322 = vshrl.u32 %v3321, 7
        %v3323 = vsub.s32 %v3320, %v3322
        %v3324 = vrot.slane %v3310, %v3323
        %v3325 = vcombine.low %v3301, %v3317
        %v3326 = vcombine.high %v3301, %v3317
        %v3328 = vunpack.c.l.s4 1934713408
        %v3329 = vunpack.c.0.s8 %v3328
        %v3330 = vlaneseq
        %v3331 = vshrl.u32 %v3330, 7
        %v3332 = vsub.s32 %v3329, %v3331
        %v3333 = vrot.slane %v3325, %v3332
        %v3335 = vunpack.c.l.s4 1934713408
        %v3336 = vunpack.c.0.s8 %v3335
        %v3337 = vlaneseq
        %v3338 = vshrl.u32 %v3337, 7
        %v3339 = vsub.s32 %v3336, %v3338
        %v3340 = vrot.slane %v3326, %v3339
        %v3341 = vcombine.low %v3308, %v3324
        %v3342 = vcombine.high %v3308, %v3324
        %v3344 = vunpack.c.l.s4 1934713408
        %v3345 = vunpack.c.0.s8 %v3344
        %v3346 = vlaneseq
        %v3347 = vshrl.u32 %v3346, 7
        %v3348 = vsub.s32 %v3345, %v3347
        %v3349 = vrot.slane %v3341, %v3348
        %v3351 = vunpack.c.l.s4 1934713408
        %v3352 = vunpack.c.0.s8 %v3351
        %v3353 = vlaneseq
        %v3354 = vshrl.u32 %v3353, 7
        %v3355 = vsub.s32 %v3352, %v3354
        %v3356 = vrot.slane %v3342, %v3355
        %v3357 = vcombine.high %v3333, 0.0
        %v3358 = vcombine.high %v3340, 0.0
        %v3359 = vcombine.high %v3349, 0.0
        %v3360 = vcombine.high %v3356, 0.0
        %v3361 = vcombine.low %v999, %v3284
        %v3362 = vcombine.high %v999, %v3284
        %v3364 = vunpack.c.l.s4 1983009808
        %v3365 = vunpack.c.0.s8 %v3364
        %v3366 = vlaneseq
        %v3367 = vshrl.u32 %v3366, 7
        %v3368 = vsub.s32 %v3365, %v3367
        %v3369 = vrot.slane %v3361, %v3368
        %v3371 = vunpack.c.l.s4 1983009808
        %v3372 = vunpack.c.0.s8 %v3371
        %v3373 = vlaneseq
        %v3374 = vshrl.u32 %v3373, 7
        %v3375 = vsub.s32 %v3372, %v3374
        %v3376 = vrot.slane %v3362, %v3375
        %v3377 = vcombine.low %v3278, %v3290
        %v3378 = vcombine.high %v3278, %v3290
        %v3380 = vunpack.c.l.s4 1983009808
        %v3381 = vunpack.c.0.s8 %v3380
        %v3382 = vlaneseq
        %v3383 = vshrl.u32 %v3382, 7
        %v3384 = vsub.s32 %v3381, %v3383
        %v3385 = vrot.slane %v3377, %v3384
        %v3387 = vunpack.c.l.s4 1983009808
        %v3388 = vunpack.c.0.s8 %v3387
        %v3389 = vlaneseq
        %v3390 = vshrl.u32 %v3389, 7
        %v3391 = vsub.s32 %v3388, %v3390
        %v3392 = vrot.slane %v3378, %v3391
        %v3393 = vcombine.low %v3369, %v3385
        %v3394 = vcombine.high %v3369, %v3385
        %v3396 = vunpack.c.l.s4 1934713408
        %v3397 = vunpack.c.0.s8 %v3396
        %v3398 = vlaneseq
        %v3399 = vshrl.u32 %v3398, 7
        %v3400 = vsub.s32 %v3397, %v3399
        %v3401 = vrot.slane %v3393, %v3400
        %v3403 = vunpack.c.l.s4 1934713408
        %v3404 = vunpack.c.0.s8 %v3403
        %v3405 = vlaneseq
        %v3406 = vshrl.u32 %v3405, 7
        %v3407 = vsub.s32 %v3404, %v3406
        %v3408 = vrot.slane %v3394, %v3407
        %v3409 = vcombine.low %v3376, %v3392
        %v3410 = vcombine.high %v3376, %v3392
        %v3412 = vunpack.c.l.s4 1934713408
        %v3413 = vunpack.c.0.s8 %v3412
        %v3414 = vlaneseq
        %v3415 = vshrl.u32 %v3414, 7
        %v3416 = vsub.s32 %v3413, %v3415
        %v3417 = vrot.slane %v3409, %v3416
        %v3419 = vunpack.c.l.s4 1934713408
        %v3420 = vunpack.c.0.s8 %v3419
        %v3421 = vlaneseq
        %v3422 = vshrl.u32 %v3421, 7
        %v3423 = vsub.s32 %v3420, %v3422
        %v3424 = vrot.slane %v3410, %v3423
        %v3425 = vcombine.high %v3401, 0.0
        %v3426 = vcombine.high %v3408, 0.0
        %v3427 = vcombine.high %v3417, 0.0
        %v3428 = vcombine.high %v3424, 0.0
        %v3429 = vcombine.low %v3333, %v3340
        %v3431 = vunpack.c.l.s4 1983009808
        %v3432 = vunpack.c.0.s8 %v3431
        %v3433 = vlaneseq
        %v3434 = vshrl.u32 %v3433, 7
        %v3435 = vsub.s32 %v3432, %v3434
        %v3436 = vrot.slane %v3429, %v3435
        %v3437 = vcombine.low %v3357, %v3358
        %v3439 = vunpack.c.l.s4 1983009808
        %v3440 = vunpack.c.0.s8 %v3439
        %v3441 = vlaneseq
        %v3442 = vshrl.u32 %v3441, 7
        %v3443 = vsub.s32 %v3440, %v3442
        %v3444 = vrot.slane %v3437, %v3443
        %v3445 = vcombine.low %v3349, %v3356
        %v3447 = vunpack.c.l.s4 1983009808
        %v3448 = vunpack.c.0.s8 %v3447
        %v3449 = vlaneseq
        %v3450 = vshrl.u32 %v3449, 7
        %v3451 = vsub.s32 %v3448, %v3450
        %v3452 = vrot.slane %v3445, %v3451
        %v3453 = vcombine.low %v3359, %v3360
        %v3455 = vunpack.c.l.s4 1983009808
        %v3456 = vunpack.c.0.s8 %v3455
        %v3457 = vlaneseq
        %v3458 = vshrl.u32 %v3457, 7
        %v3459 = vsub.s32 %v3456, %v3458
        %v3460 = vrot.slane %v3453, %v3459
        %v3461 = vcombine.low %v3436, %v3444
        %v3462 = vcombine.high %v3436, %v3444
        %v3464 = vunpack.c.l.s4 1934713408
        %v3465 = vunpack.c.0.s8 %v3464
        %v3466 = vlaneseq
        %v3467 = vshrl.u32 %v3466, 7
        %v3468 = vsub.s32 %v3465, %v3467
        %v3469 = vrot.slane %v3461, %v3468
        %v3471 = vunpack.c.l.s4 1934713408
        %v3472 = vunpack.c.0.s8 %v3471
        %v3473 = vlaneseq
        %v3474 = vshrl.u32 %v3473, 7
        %v3475 = vsub.s32 %v3472, %v3474
        %v3476 = vrot.slane %v3462, %v3475
        %v3477 = vcombine.low %v3452, %v3460
        %v3478 = vcombine.high %v3452, %v3460
        %v3480 = vunpack.c.l.s4 1934713408
        %v3481 = vunpack.c.0.s8 %v3480
        %v3482 = vlaneseq
        %v3483 = vshrl.u32 %v3482, 7
        %v3484 = vsub.s32 %v3481, %v3483
        %v3485 = vrot.slane %v3477, %v3484
        %v3487 = vunpack.c.l.s4 1934713408
        %v3488 = vunpack.c.0.s8 %v3487
        %v3489 = vlaneseq
        %v3490 = vshrl.u32 %v3489, 7
        %v3491 = vsub.s32 %v3488, %v3490
        %v3492 = vrot.slane %v3478, %v3491
        %v3493 = vcombine.low %v3469, %v3485
        %v3494 = vcombine.high %v3469, %v3485
        %v3495 = vcombine.low %v3476, %v3492
        %v3496 = vcombine.high %v3476, %v3492
        %v3497 = vcombine.low %v3401, %v3408
        %v3499 = vunpack.c.l.s4 1983009808
        %v3500 = vunpack.c.0.s8 %v3499
        %v3501 = vlaneseq
        %v3502 = vshrl.u32 %v3501, 7
        %v3503 = vsub.s32 %v3500, %v3502
        %v3504 = vrot.slane %v3497, %v3503
        %v3505 = vcombine.low %v3425, %v3426
        %v3507 = vunpack.c.l.s4 1983009808
        %v3508 = vunpack.c.0.s8 %v3507
        %v3509 = vlaneseq
        %v3510 = vshrl.u32 %v3509, 7
        %v3511 = vsub.s32 %v3508, %v3510
        %v3512 = vrot.slane %v3505, %v3511
        %v3513 = vcombine.low %v3417, %v3424
        %v3515 = vunpack.c.l.s4 1983009808
        %v3516 = vunpack.c.0.s8 %v3515
        %v3517 = vlaneseq
        %v3518 = vshrl.u32 %v3517, 7
        %v3519 = vsub.s32 %v3516, %v3518
        %v3520 = vrot.slane %v3513, %v3519
        %v3521 = vcombine.low %v3427, %v3428
        %v3523 = vunpack.c.l.s4 1983009808
        %v3524 = vunpack.c.0.s8 %v3523
        %v3525 = vlaneseq
        %v3526 = vshrl.u32 %v3525, 7
        %v3527 = vsub.s32 %v3524, %v3526
        %v3528 = vrot.slane %v3521, %v3527
        %v3529 = vcombine.low %v3504, %v3512
        %v3530 = vcombine.high %v3504, %v3512
        %v3532 = vunpack.c.l.s4 1934713408
        %v3533 = vunpack.c.0.s8 %v3532
        %v3534 = vlaneseq
        %v3535 = vshrl.u32 %v3534, 7
        %v3536 = vsub.s32 %v3533, %v3535
        %v3537 = vrot.slane %v3529, %v3536
        %v3539 = vunpack.c.l.s4 1934713408
        %v3540 = vunpack.c.0.s8 %v3539
        %v3541 = vlaneseq
        %v3542 = vshrl.u32 %v3541, 7
        %v3543 = vsub.s32 %v3540, %v3542
        %v3544 = vrot.slane %v3530, %v3543
        %v3545 = vcombine.low %v3520, %v3528
        %v3546 = vcombine.high %v3520, %v3528
        %v3548 = vunpack.c.l.s4 1934713408
        %v3549 = vunpack.c.0.s8 %v3548
        %v3550 = vlaneseq
        %v3551 = vshrl.u32 %v3550, 7
        %v3552 = vsub.s32 %v3549, %v3551
        %v3553 = vrot.slane %v3545, %v3552
        %v3555 = vunpack.c.l.s4 1934713408
        %v3556 = vunpack.c.0.s8 %v3555
        %v3557 = vlaneseq
        %v3558 = vshrl.u32 %v3557, 7
        %v3559 = vsub.s32 %v3556, %v3558
        %v3560 = vrot.slane %v3546, %v3559
        %v3561 = vcombine.low %v3537, %v3553
        %v3562 = vcombine.high %v3537, %v3553
        %v3563 = vcombine.low %v3544, %v3560
        %v3564 = vcombine.high %v3544, %v3560
        %v3565 = vpack.c.bf16 %v3561, %v3493
        %v3566 = vpack.c.bf16 %v3562, %v3494
        %v3567 = vpack.c.bf16 %v3563, %v3495
        %v3568 = vpack.c.bf16 %v3564, %v3496
        %v3570 = vsel %vm1893, %v2973, 0
        %v3573 = vsel %vm1893, %v3269, 0
        %3575 = vmatprep.subr.bf16.mxu0 0
        %3576 = vmatpush1.bf16.xpose.msra.mxu0 %v3573
        %3577 = vmatprep.subr.bf16.mxu0 0
        %3578 = vmatpush1.bf16.xpose.msra.mxu0 0
        %3579 = vmatprep.subr.bf16.mxu0 0
        %3580 = vmatpush1.bf16.xpose.msra.mxu0 0
        %3581 = vmatprep.subr.bf16.mxu0 0
        %3582 = vmatpush1.bf16.xpose.msra.mxu0 0
        %3583 = vmatprep.subr.bf16.mxu0 0
        %3584 = vmatpush1.bf16.xpose.msra.mxu0 0
        %3585 = vmatprep.subr.bf16.mxu0 0
        %3586 = vmatpush1.bf16.xpose.msra.mxu0 0
        %3587 = vmatprep.subr.bf16.mxu0 0
        %3588 = vmatpush1.bf16.xpose.msra.mxu0 0
        %3589 = vmatprep.subr.bf16.mxu0 0
        %3590 = vmatpush1.bf16.xpose.msra.mxu0 0
        %3591 = vmatprep.subr.bf16.mxu0 0
        %3592 = vmatpush1.bf16.xpose.msra.mxu0 0
        %3593 = vmatprep.subr.bf16.mxu0 0
        %3594 = vmatpush1.bf16.xpose.msra.mxu0 0
        %3595 = vmatprep.subr.bf16.mxu0 0
        %3596 = vmatpush1.bf16.xpose.msra.mxu0 0
        %3597 = vmatprep.subr.bf16.mxu0 0
        %3598 = vmatpush1.bf16.xpose.msra.mxu0 0
        %3599 = vmatprep.subr.bf16.mxu0 0
        %3600 = vmatpush1.bf16.xpose.msra.mxu0 0
        %3601 = vmatprep.subr.bf16.mxu0 0
        %3602 = vmatpush1.bf16.xpose.msra.mxu0 0
        %3603 = vmatprep.subr.bf16.mxu0 0
        %3604 = vmatpush1.bf16.xpose.msra.mxu0 0
        %3605 = vmatprep.subr.bf16.mxu0 0
        %3606 = vmatpush1.bf16.xpose.msra.mxu0 0
        %3607 = vmatprep.mubr.bf16.mxu0 0
        %3608 = vmatmul.mubr.bf16.gmra.mrb[0].mxu0 %v3570
        %v3609 = vpop.f32.mrb[0].mxu0
        %v3610 = vadd.f32 0.0, %v3609
        %v3611 = vpop.f32.mrb[0].mxu0
        %v3612 = vpop.f32.mrb[0].mxu0
        %v3613 = vadd.f32 0.0, %v3612
        %v3614 = vpop.f32.mrb[0].mxu0
        %3615 = vdwg.mxu0
        %v3617 = vsel %vm1893, %v2974, 0
        %v3620 = vsel %vm1893, %v3270, 0
        %3622 = vmatprep.subr.bf16.mxu0 0
        %3623 = vmatpush1.bf16.xpose.msra.mxu0 %v3620
        %3624 = vmatprep.subr.bf16.mxu0 0
        %3625 = vmatpush1.bf16.xpose.msra.mxu0 0
        %3626 = vmatprep.subr.bf16.mxu0 0
        %3627 = vmatpush1.bf16.xpose.msra.mxu0 0
        %3628 = vmatprep.subr.bf16.mxu0 0
        %3629 = vmatpush1.bf16.xpose.msra.mxu0 0
        %3630 = vmatprep.subr.bf16.mxu0 0
        %3631 = vmatpush1.bf16.xpose.msra.mxu0 0
        %3632 = vmatprep.subr.bf16.mxu0 0
        %3633 = vmatpush1.bf16.xpose.msra.mxu0 0
        %3634 = vmatprep.subr.bf16.mxu0 0
        %3635 = vmatpush1.bf16.xpose.msra.mxu0 0
        %3636 = vmatprep.subr.bf16.mxu0 0
        %3637 = vmatpush1.bf16.xpose.msra.mxu0 0
        %3638 = vmatprep.subr.bf16.mxu0 0
        %3639 = vmatpush1.bf16.xpose.msra.mxu0 0
        %3640 = vmatprep.subr.bf16.mxu0 0
        %3641 = vmatpush1.bf16.xpose.msra.mxu0 0
        %3642 = vmatprep.subr.bf16.mxu0 0
        %3643 = vmatpush1.bf16.xpose.msra.mxu0 0
        %3644 = vmatprep.subr.bf16.mxu0 0
        %3645 = vmatpush1.bf16.xpose.msra.mxu0 0
        %3646 = vmatprep.subr.bf16.mxu0 0
        %3647 = vmatpush1.bf16.xpose.msra.mxu0 0
        %3648 = vmatprep.subr.bf16.mxu0 0
        %3649 = vmatpush1.bf16.xpose.msra.mxu0 0
        %3650 = vmatprep.subr.bf16.mxu0 0
        %3651 = vmatpush1.bf16.xpose.msra.mxu0 0
        %3652 = vmatprep.subr.bf16.mxu0 0
        %3653 = vmatpush1.bf16.xpose.msra.mxu0 0
        %3654 = vmatprep.mubr.bf16.mxu0 0
        %3655 = vmatmul.mubr.bf16.gmra.mrb[0].mxu0 %v3617
        %v3656 = vpop.f32.mrb[0].mxu0
        %v3657 = vadd.f32 0.0, %v3656
        %v3658 = vpop.f32.mrb[0].mxu0
        %v3659 = vpop.f32.mrb[0].mxu0
        %v3660 = vadd.f32 0.0, %v3659
        %v3661 = vpop.f32.mrb[0].mxu0
        %3662 = vdwg.mxu0
        %v3664 = vsel %vm1893, %v2975, 0
        %v3667 = vsel %vm1893, %v3271, 0
        %3669 = vmatprep.subr.bf16.mxu0 0
        %3670 = vmatpush1.bf16.xpose.msra.mxu0 %v3667
        %3671 = vmatprep.subr.bf16.mxu0 0
        %3672 = vmatpush1.bf16.xpose.msra.mxu0 0
        %3673 = vmatprep.subr.bf16.mxu0 0
        %3674 = vmatpush1.bf16.xpose.msra.mxu0 0
        %3675 = vmatprep.subr.bf16.mxu0 0
        %3676 = vmatpush1.bf16.xpose.msra.mxu0 0
        %3677 = vmatprep.subr.bf16.mxu0 0
        %3678 = vmatpush1.bf16.xpose.msra.mxu0 0
        %3679 = vmatprep.subr.bf16.mxu0 0
        %3680 = vmatpush1.bf16.xpose.msra.mxu0 0
        %3681 = vmatprep.subr.bf16.mxu0 0
        %3682 = vmatpush1.bf16.xpose.msra.mxu0 0
        %3683 = vmatprep.subr.bf16.mxu0 0
        %3684 = vmatpush1.bf16.xpose.msra.mxu0 0
        %3685 = vmatprep.subr.bf16.mxu0 0
        %3686 = vmatpush1.bf16.xpose.msra.mxu0 0
        %3687 = vmatprep.subr.bf16.mxu0 0
        %3688 = vmatpush1.bf16.xpose.msra.mxu0 0
        %3689 = vmatprep.subr.bf16.mxu0 0
        %3690 = vmatpush1.bf16.xpose.msra.mxu0 0
        %3691 = vmatprep.subr.bf16.mxu0 0
        %3692 = vmatpush1.bf16.xpose.msra.mxu0 0
        %3693 = vmatprep.subr.bf16.mxu0 0
        %3694 = vmatpush1.bf16.xpose.msra.mxu0 0
        %3695 = vmatprep.subr.bf16.mxu0 0
        %3696 = vmatpush1.bf16.xpose.msra.mxu0 0
        %3697 = vmatprep.subr.bf16.mxu0 0
        %3698 = vmatpush1.bf16.xpose.msra.mxu0 0
        %3699 = vmatprep.subr.bf16.mxu0 0
        %3700 = vmatpush1.bf16.xpose.msra.mxu0 0
        %3701 = vmatprep.mubr.bf16.mxu0 0
        %3702 = vmatmul.mubr.bf16.gmra.mrb[0].mxu0 %v3664
        %v3703 = vpop.f32.mrb[0].mxu0
        %v3704 = vadd.f32 0.0, %v3703
        %v3705 = vpop.f32.mrb[0].mxu0
        %v3706 = vpop.f32.mrb[0].mxu0
        %v3707 = vadd.f32 0.0, %v3706
        %v3708 = vpop.f32.mrb[0].mxu0
        %3709 = vdwg.mxu0
        %v3711 = vsel %vm1893, %v2976, 0
        %v3714 = vsel %vm1893, %v3272, 0
        %3716 = vmatprep.subr.bf16.mxu0 0
        %3717 = vmatpush1.bf16.xpose.msra.mxu0 %v3714
        %3718 = vmatprep.subr.bf16.mxu0 0
        %3719 = vmatpush1.bf16.xpose.msra.mxu0 0
        %3720 = vmatprep.subr.bf16.mxu0 0
        %3721 = vmatpush1.bf16.xpose.msra.mxu0 0
        %3722 = vmatprep.subr.bf16.mxu0 0
        %3723 = vmatpush1.bf16.xpose.msra.mxu0 0
        %3724 = vmatprep.subr.bf16.mxu0 0
        %3725 = vmatpush1.bf16.xpose.msra.mxu0 0
        %3726 = vmatprep.subr.bf16.mxu0 0
        %3727 = vmatpush1.bf16.xpose.msra.mxu0 0
        %3728 = vmatprep.subr.bf16.mxu0 0
        %3729 = vmatpush1.bf16.xpose.msra.mxu0 0
        %3730 = vmatprep.subr.bf16.mxu0 0
        %3731 = vmatpush1.bf16.xpose.msra.mxu0 0
        %3732 = vmatprep.subr.bf16.mxu0 0
        %3733 = vmatpush1.bf16.xpose.msra.mxu0 0
        %3734 = vmatprep.subr.bf16.mxu0 0
        %3735 = vmatpush1.bf16.xpose.msra.mxu0 0
        %3736 = vmatprep.subr.bf16.mxu0 0
        %3737 = vmatpush1.bf16.xpose.msra.mxu0 0
        %3738 = vmatprep.subr.bf16.mxu0 0
        %3739 = vmatpush1.bf16.xpose.msra.mxu0 0
        %3740 = vmatprep.subr.bf16.mxu0 0
        %3741 = vmatpush1.bf16.xpose.msra.mxu0 0
        %3742 = vmatprep.subr.bf16.mxu0 0
        %3743 = vmatpush1.bf16.xpose.msra.mxu0 0
        %3744 = vmatprep.subr.bf16.mxu0 0
        %3745 = vmatpush1.bf16.xpose.msra.mxu0 0
        %3746 = vmatprep.subr.bf16.mxu0 0
        %3747 = vmatpush1.bf16.xpose.msra.mxu0 0
        %3748 = vmatprep.mubr.bf16.mxu0 0
        %3749 = vmatmul.mubr.bf16.gmra.mrb[0].mxu0 %v3711
        %v3750 = vpop.f32.mrb[0].mxu0
        %v3751 = vadd.f32 0.0, %v3750
        %v3752 = vpop.f32.mrb[0].mxu0
        %v3753 = vpop.f32.mrb[0].mxu0
        %v3754 = vadd.f32 0.0, %v3753
        %v3755 = vpop.f32.mrb[0].mxu0
        %3756 = vdwg.mxu0
        %v3757 = vsel %vm2083, %v3610, -1e+30
        %v3758 = vsel %vm2083, %v3613, -1e+30
        %v3759 = vsel %vm2083, %v3657, -1e+30
        %v3760 = vsel %vm2083, %v3660, -1e+30
        %v3761 = vsel %vm2083, %v3704, -1e+30
        %v3762 = vsel %vm2083, %v3707, -1e+30
        %v3763 = vsel %vm2083, %v3751, -1e+30
        %v3764 = vsel %vm2083, %v3754, -1e+30
        %v3765 = vsel %vm2092, %v3757, -inf
        %3766 = vmax.xlane.f32.xlu0 %v3765
        %v3767 = vpop.xlane.xlu0 %3766
        %v3768 = vsel %vm2092, %v3758, -inf
        %3769 = vmax.xlane.f32.xlu0 %v3768
        %v3770 = vpop.xlane.xlu0 %3769
        %v3771 = vsel %vm2092, %v3759, -inf
        %3772 = vmax.xlane.f32.xlu0 %v3771
        %v3773 = vpop.xlane.xlu0 %3772
        %v3774 = vsel %vm2092, %v3760, -inf
        %3775 = vmax.xlane.f32.xlu0 %v3774
        %v3776 = vpop.xlane.xlu0 %3775
        %v3777 = vsel %vm2092, %v3761, -inf
        %3778 = vmax.xlane.f32.xlu0 %v3777
        %v3779 = vpop.xlane.xlu0 %3778
        %v3780 = vsel %vm2092, %v3762, -inf
        %3781 = vmax.xlane.f32.xlu0 %v3780
        %v3782 = vpop.xlane.xlu0 %3781
        %v3783 = vsel %vm2092, %v3763, -inf
        %3784 = vmax.xlane.f32.xlu0 %v3783
        %v3785 = vpop.xlane.xlu0 %3784
        %v3786 = vsel %vm2092, %v3764, -inf
        %3787 = vmax.xlane.f32.xlu0 %v3786
        %v3788 = vpop.xlane.xlu0 %3787
        %v3789 = vsub.f32 %v3757, %v3767
        %v3790 = vsub.f32 %v3758, %v3770
        %v3791 = vsub.f32 %v3759, %v3773
        %v3792 = vsub.f32 %v3760, %v3776
        %v3793 = vsub.f32 %v3761, %v3779
        %v3794 = vsub.f32 %v3762, %v3782
        %v3795 = vsub.f32 %v3763, %v3785
        %v3796 = vsub.f32 %v3764, %v3788
        %v3797 = vmul.f32 %v3789, 1.442695
        %v3798 = vpow.pop %v3797
        %v3799 = vmul.f32 %v3790, 1.442695
        %v3800 = vpow.pop %v3799
        %v3801 = vmul.f32 %v3791, 1.442695
        %v3802 = vpow.pop %v3801
        %v3803 = vmul.f32 %v3792, 1.442695
        %v3804 = vpow.pop %v3803
        %v3805 = vmul.f32 %v3793, 1.442695
        %v3806 = vpow.pop %v3805
        %v3807 = vmul.f32 %v3794, 1.442695
        %v3808 = vpow.pop %v3807
        %v3809 = vmul.f32 %v3795, 1.442695
        %v3810 = vpow.pop %v3809
        %v3811 = vmul.f32 %v3796, 1.442695
        %v3812 = vpow.pop %v3811
        %v3813 = vsel %vm2092, %v3798, 0.0
        %3814 = vadd.xlane.f32.xlu0 %v3813
        %v3815 = vpop.xlane.xlu0 %3814
        %v3816 = vsel %vm2092, %v3800, 0.0
        %3817 = vadd.xlane.f32.xlu0 %v3816
        %v3818 = vpop.xlane.xlu0 %3817
        %v3819 = vsel %vm2092, %v3802, 0.0
        %3820 = vadd.xlane.f32.xlu0 %v3819
        %v3821 = vpop.xlane.xlu0 %3820
        %v3822 = vsel %vm2092, %v3804, 0.0
        %3823 = vadd.xlane.f32.xlu0 %v3822
        %v3824 = vpop.xlane.xlu0 %3823
        %v3825 = vsel %vm2092, %v3806, 0.0
        %3826 = vadd.xlane.f32.xlu0 %v3825
        %v3827 = vpop.xlane.xlu0 %3826
        %v3828 = vsel %vm2092, %v3808, 0.0
        %3829 = vadd.xlane.f32.xlu0 %v3828
        %v3830 = vpop.xlane.xlu0 %3829
        %v3831 = vsel %vm2092, %v3810, 0.0
        %3832 = vadd.xlane.f32.xlu0 %v3831
        %v3833 = vpop.xlane.xlu0 %3832
        %v3834 = vsel %vm2092, %v3812, 0.0
        %3835 = vadd.xlane.f32.xlu0 %v3834
        %v3836 = vpop.xlane.xlu0 %3835
        %v3837 = vrcp.pop %v3815
        %v3838 = vrcp.pop %v3818
        %v3839 = vrcp.pop %v3821
        %v3840 = vrcp.pop %v3824
        %v3841 = vrcp.pop %v3827
        %v3842 = vrcp.pop %v3830
        %v3843 = vrcp.pop %v3833
        %v3844 = vrcp.pop %v3836
        %v3845 = vmul.f32 %v3798, %v3837
        %v3846 = vmul.f32 %v3800, %v3838
        %v3847 = vmul.f32 %v3802, %v3839
        %v3848 = vmul.f32 %v3804, %v3840
        %v3849 = vmul.f32 %v3806, %v3841
        %v3850 = vmul.f32 %v3808, %v3842
        %v3851 = vmul.f32 %v3810, %v3843
        %v3852 = vmul.f32 %v3812, %v3844
        %v3853 = vpack.c.bf16 %v3846, %v3845
        %v3854 = vpack.c.bf16 %v3848, %v3847
        %v3855 = vpack.c.bf16 %v3850, %v3849
        %v3856 = vpack.c.bf16 %v3852, %v3851
        %v3858 = vsel %vm2092, %v3853, 0
        %3860 = vmatprep.subr.bf16.mxu0 0
        %3861 = vmatpush1.bf16.msra.mxu0 %v3565
        %3862 = vmatprep.subr.bf16.mxu0 0
        %3863 = vmatpush1.bf16.msra.mxu0 0
        %3864 = vmatprep.subr.bf16.mxu0 0
        %3865 = vmatpush1.bf16.msra.mxu0 0
        %3866 = vmatprep.subr.bf16.mxu0 0
        %3867 = vmatpush1.bf16.msra.mxu0 0
        %3868 = vmatprep.subr.bf16.mxu0 0
        %3869 = vmatpush1.bf16.msra.mxu0 0
        %3870 = vmatprep.subr.bf16.mxu0 0
        %3871 = vmatpush1.bf16.msra.mxu0 0
        %3872 = vmatprep.subr.bf16.mxu0 0
        %3873 = vmatpush1.bf16.msra.mxu0 0
        %3874 = vmatprep.subr.bf16.mxu0 0
        %3875 = vmatpush1.bf16.msra.mxu0 0
        %3876 = vmatprep.subr.bf16.mxu0 0
        %3877 = vmatpush1.bf16.msra.mxu0 0
        %3878 = vmatprep.subr.bf16.mxu0 0
        %3879 = vmatpush1.bf16.msra.mxu0 0
        %3880 = vmatprep.subr.bf16.mxu0 0
        %3881 = vmatpush1.bf16.msra.mxu0 0
        %3882 = vmatprep.subr.bf16.mxu0 0
        %3883 = vmatpush1.bf16.msra.mxu0 0
        %3884 = vmatprep.subr.bf16.mxu0 0
        %3885 = vmatpush1.bf16.msra.mxu0 0
        %3886 = vmatprep.subr.bf16.mxu0 0
        %3887 = vmatpush1.bf16.msra.mxu0 0
        %3888 = vmatprep.subr.bf16.mxu0 0
        %3889 = vmatpush1.bf16.msra.mxu0 0
        %3890 = vmatprep.subr.bf16.mxu0 0
        %3891 = vmatpush1.bf16.msra.mxu0 0
        %3892 = vmatprep.mubr.bf16.mxu0 0
        %3893 = vmatmul.mubr.bf16.gmra.mrb[0].mxu0 %v3858
        %v3894 = vpop.f32.mrb[0].mxu0
        %v3895 = vadd.f32 0.0, %v3894
        %v3896 = vpop.f32.mrb[0].mxu0
        %v3897 = vpop.f32.mrb[0].mxu0
        %v3898 = vadd.f32 0.0, %v3897
        %v3899 = vpop.f32.mrb[0].mxu0
        %3900 = vdwg.mxu0
        %v3902 = vsel %vm2092, %v3854, 0
        %3904 = vmatprep.subr.bf16.mxu0 0
        %3905 = vmatpush1.bf16.msra.mxu0 %v3566
        %3906 = vmatprep.subr.bf16.mxu0 0
        %3907 = vmatpush1.bf16.msra.mxu0 0
        %3908 = vmatprep.subr.bf16.mxu0 0
        %3909 = vmatpush1.bf16.msra.mxu0 0
        %3910 = vmatprep.subr.bf16.mxu0 0
        %3911 = vmatpush1.bf16.msra.mxu0 0
        %3912 = vmatprep.subr.bf16.mxu0 0
        %3913 = vmatpush1.bf16.msra.mxu0 0
        %3914 = vmatprep.subr.bf16.mxu0 0
        %3915 = vmatpush1.bf16.msra.mxu0 0
        %3916 = vmatprep.subr.bf16.mxu0 0
        %3917 = vmatpush1.bf16.msra.mxu0 0
        %3918 = vmatprep.subr.bf16.mxu0 0
        %3919 = vmatpush1.bf16.msra.mxu0 0
        %3920 = vmatprep.subr.bf16.mxu0 0
        %3921 = vmatpush1.bf16.msra.mxu0 0
        %3922 = vmatprep.subr.bf16.mxu0 0
        %3923 = vmatpush1.bf16.msra.mxu0 0
        %3924 = vmatprep.subr.bf16.mxu0 0
        %3925 = vmatpush1.bf16.msra.mxu0 0
        %3926 = vmatprep.subr.bf16.mxu0 0
        %3927 = vmatpush1.bf16.msra.mxu0 0
        %3928 = vmatprep.subr.bf16.mxu0 0
        %3929 = vmatpush1.bf16.msra.mxu0 0
        %3930 = vmatprep.subr.bf16.mxu0 0
        %3931 = vmatpush1.bf16.msra.mxu0 0
        %3932 = vmatprep.subr.bf16.mxu0 0
        %3933 = vmatpush1.bf16.msra.mxu0 0
        %3934 = vmatprep.subr.bf16.mxu0 0
        %3935 = vmatpush1.bf16.msra.mxu0 0
        %3936 = vmatprep.mubr.bf16.mxu0 0
        %3937 = vmatmul.mubr.bf16.gmra.mrb[0].mxu0 %v3902
        %v3938 = vpop.f32.mrb[0].mxu0
        %v3939 = vadd.f32 0.0, %v3938
        %v3940 = vpop.f32.mrb[0].mxu0
        %v3941 = vpop.f32.mrb[0].mxu0
        %v3942 = vadd.f32 0.0, %v3941
        %v3943 = vpop.f32.mrb[0].mxu0
        %3944 = vdwg.mxu0
        %v3946 = vsel %vm2092, %v3855, 0
        %3948 = vmatprep.subr.bf16.mxu0 0
        %3949 = vmatpush1.bf16.msra.mxu0 %v3567
        %3950 = vmatprep.subr.bf16.mxu0 0
        %3951 = vmatpush1.bf16.msra.mxu0 0
        %3952 = vmatprep.subr.bf16.mxu0 0
        %3953 = vmatpush1.bf16.msra.mxu0 0
        %3954 = vmatprep.subr.bf16.mxu0 0
        %3955 = vmatpush1.bf16.msra.mxu0 0
        %3956 = vmatprep.subr.bf16.mxu0 0
        %3957 = vmatpush1.bf16.msra.mxu0 0
        %3958 = vmatprep.subr.bf16.mxu0 0
        %3959 = vmatpush1.bf16.msra.mxu0 0
        %3960 = vmatprep.subr.bf16.mxu0 0
        %3961 = vmatpush1.bf16.msra.mxu0 0
        %3962 = vmatprep.subr.bf16.mxu0 0
        %3963 = vmatpush1.bf16.msra.mxu0 0
        %3964 = vmatprep.subr.bf16.mxu0 0
        %3965 = vmatpush1.bf16.msra.mxu0 0
        %3966 = vmatprep.subr.bf16.mxu0 0
        %3967 = vmatpush1.bf16.msra.mxu0 0
        %3968 = vmatprep.subr.bf16.mxu0 0
        %3969 = vmatpush1.bf16.msra.mxu0 0
        %3970 = vmatprep.subr.bf16.mxu0 0
        %3971 = vmatpush1.bf16.msra.mxu0 0
        %3972 = vmatprep.subr.bf16.mxu0 0
        %3973 = vmatpush1.bf16.msra.mxu0 0
        %3974 = vmatprep.subr.bf16.mxu0 0
        %3975 = vmatpush1.bf16.msra.mxu0 0
        %3976 = vmatprep.subr.bf16.mxu0 0
        %3977 = vmatpush1.bf16.msra.mxu0 0
        %3978 = vmatprep.subr.bf16.mxu0 0
        %3979 = vmatpush1.bf16.msra.mxu0 0
        %3980 = vmatprep.mubr.bf16.mxu0 0
        %3981 = vmatmul.mubr.bf16.gmra.mrb[0].mxu0 %v3946
        %v3982 = vpop.f32.mrb[0].mxu0
        %v3983 = vadd.f32 0.0, %v3982
        %v3984 = vpop.f32.mrb[0].mxu0
        %v3985 = vpop.f32.mrb[0].mxu0
        %v3986 = vadd.f32 0.0, %v3985
        %v3987 = vpop.f32.mrb[0].mxu0
        %3988 = vdwg.mxu0
        %v3990 = vsel %vm2092, %v3856, 0
        %3992 = vmatprep.subr.bf16.mxu0 0
        %3993 = vmatpush1.bf16.msra.mxu0 %v3568
        %3994 = vmatprep.subr.bf16.mxu0 0
        %3995 = vmatpush1.bf16.msra.mxu0 0
        %3996 = vmatprep.subr.bf16.mxu0 0
        %3997 = vmatpush1.bf16.msra.mxu0 0
        %3998 = vmatprep.subr.bf16.mxu0 0
        %3999 = vmatpush1.bf16.msra.mxu0 0
        %4000 = vmatprep.subr.bf16.mxu0 0
        %4001 = vmatpush1.bf16.msra.mxu0 0
        %4002 = vmatprep.subr.bf16.mxu0 0
        %4003 = vmatpush1.bf16.msra.mxu0 0
        %4004 = vmatprep.subr.bf16.mxu0 0
        %4005 = vmatpush1.bf16.msra.mxu0 0
        %4006 = vmatprep.subr.bf16.mxu0 0
        %4007 = vmatpush1.bf16.msra.mxu0 0
        %4008 = vmatprep.subr.bf16.mxu0 0
        %4009 = vmatpush1.bf16.msra.mxu0 0
        %4010 = vmatprep.subr.bf16.mxu0 0
        %4011 = vmatpush1.bf16.msra.mxu0 0
        %4012 = vmatprep.subr.bf16.mxu0 0
        %4013 = vmatpush1.bf16.msra.mxu0 0
        %4014 = vmatprep.subr.bf16.mxu0 0
        %4015 = vmatpush1.bf16.msra.mxu0 0
        %4016 = vmatprep.subr.bf16.mxu0 0
        %4017 = vmatpush1.bf16.msra.mxu0 0
        %4018 = vmatprep.subr.bf16.mxu0 0
        %4019 = vmatpush1.bf16.msra.mxu0 0
        %4020 = vmatprep.subr.bf16.mxu0 0
        %4021 = vmatpush1.bf16.msra.mxu0 0
        %4022 = vmatprep.subr.bf16.mxu0 0
        %4023 = vmatpush1.bf16.msra.mxu0 0
        %4024 = vmatprep.mubr.bf16.mxu0 0
        %4025 = vmatmul.mubr.bf16.gmra.mrb[0].mxu0 %v3990
        %v4026 = vpop.f32.mrb[0].mxu0
        %v4027 = vadd.f32 0.0, %v4026
        %v4028 = vpop.f32.mrb[0].mxu0
        %v4029 = vpop.f32.mrb[0].mxu0
        %v4030 = vadd.f32 0.0, %v4029
        %v4031 = vpop.f32.mrb[0].mxu0
        %4032 = vdwg.mxu0
        %v4033 = vcombine.low %v3895, %v3983
        %v4034 = vcombine.high %v3895, %v3983
        %v4036 = vunpack.c.l.s4 1983009808
        %v4037 = vunpack.c.0.s8 %v4036
        %v4038 = vlaneseq
        %v4039 = vshrl.u32 %v4038, 7
        %v4040 = vsub.s32 %v4037, %v4039
        %v4041 = vrot.slane %v4033, %v4040
        %v4043 = vunpack.c.l.s4 1983009808
        %v4044 = vunpack.c.0.s8 %v4043
        %v4045 = vlaneseq
        %v4046 = vshrl.u32 %v4045, 7
        %v4047 = vsub.s32 %v4044, %v4046
        %v4048 = vrot.slane %v4034, %v4047
        %v4049 = vcombine.low %v3939, %v4027
        %v4050 = vcombine.high %v3939, %v4027
        %v4052 = vunpack.c.l.s4 1983009808
        %v4053 = vunpack.c.0.s8 %v4052
        %v4054 = vlaneseq
        %v4055 = vshrl.u32 %v4054, 7
        %v4056 = vsub.s32 %v4053, %v4055
        %v4057 = vrot.slane %v4049, %v4056
        %v4059 = vunpack.c.l.s4 1983009808
        %v4060 = vunpack.c.0.s8 %v4059
        %v4061 = vlaneseq
        %v4062 = vshrl.u32 %v4061, 7
        %v4063 = vsub.s32 %v4060, %v4062
        %v4064 = vrot.slane %v4050, %v4063
        %v4065 = vcombine.low %v4041, %v4057
        %v4066 = vcombine.high %v4041, %v4057
        %v4068 = vunpack.c.l.s4 1934713408
        %v4069 = vunpack.c.0.s8 %v4068
        %v4070 = vlaneseq
        %v4071 = vshrl.u32 %v4070, 7
        %v4072 = vsub.s32 %v4069, %v4071
        %v4073 = vrot.slane %v4065, %v4072
        %v4075 = vunpack.c.l.s4 1934713408
        %v4076 = vunpack.c.0.s8 %v4075
        %v4077 = vlaneseq
        %v4078 = vshrl.u32 %v4077, 7
        %v4079 = vsub.s32 %v4076, %v4078
        %v4080 = vrot.slane %v4066, %v4079
        %v4081 = vcombine.low %v4048, %v4064
        %v4082 = vcombine.high %v4048, %v4064
        %v4084 = vunpack.c.l.s4 1934713408
        %v4085 = vunpack.c.0.s8 %v4084
        %v4086 = vlaneseq
        %v4087 = vshrl.u32 %v4086, 7
        %v4088 = vsub.s32 %v4085, %v4087
        %v4089 = vrot.slane %v4081, %v4088
        %v4091 = vunpack.c.l.s4 1934713408
        %v4092 = vunpack.c.0.s8 %v4091
        %v4093 = vlaneseq
        %v4094 = vshrl.u32 %v4093, 7
        %v4095 = vsub.s32 %v4092, %v4094
        %v4096 = vrot.slane %v4082, %v4095
        %v4097 = vcombine.high %v4073, 0.0
        %v4098 = vcombine.high %v4080, 0.0
        %v4099 = vcombine.high %v4089, 0.0
        %v4100 = vcombine.high %v4096, 0.0
        %v4101 = vcombine.low %v3898, %v3986
        %v4102 = vcombine.high %v3898, %v3986
        %v4104 = vunpack.c.l.s4 1983009808
        %v4105 = vunpack.c.0.s8 %v4104
        %v4106 = vlaneseq
        %v4107 = vshrl.u32 %v4106, 7
        %v4108 = vsub.s32 %v4105, %v4107
        %v4109 = vrot.slane %v4101, %v4108
        %v4111 = vunpack.c.l.s4 1983009808
        %v4112 = vunpack.c.0.s8 %v4111
        %v4113 = vlaneseq
        %v4114 = vshrl.u32 %v4113, 7
        %v4115 = vsub.s32 %v4112, %v4114
        %v4116 = vrot.slane %v4102, %v4115
        %v4117 = vcombine.low %v3942, %v4030
        %v4118 = vcombine.high %v3942, %v4030
        %v4120 = vunpack.c.l.s4 1983009808
        %v4121 = vunpack.c.0.s8 %v4120
        %v4122 = vlaneseq
        %v4123 = vshrl.u32 %v4122, 7
        %v4124 = vsub.s32 %v4121, %v4123
        %v4125 = vrot.slane %v4117, %v4124
        %v4127 = vunpack.c.l.s4 1983009808
        %v4128 = vunpack.c.0.s8 %v4127
        %v4129 = vlaneseq
        %v4130 = vshrl.u32 %v4129, 7
        %v4131 = vsub.s32 %v4128, %v4130
        %v4132 = vrot.slane %v4118, %v4131
        %v4133 = vcombine.low %v4109, %v4125
        %v4134 = vcombine.high %v4109, %v4125
        %v4136 = vunpack.c.l.s4 1934713408
        %v4137 = vunpack.c.0.s8 %v4136
        %v4138 = vlaneseq
        %v4139 = vshrl.u32 %v4138, 7
        %v4140 = vsub.s32 %v4137, %v4139
        %v4141 = vrot.slane %v4133, %v4140
        %v4143 = vunpack.c.l.s4 1934713408
        %v4144 = vunpack.c.0.s8 %v4143
        %v4145 = vlaneseq
        %v4146 = vshrl.u32 %v4145, 7
        %v4147 = vsub.s32 %v4144, %v4146
        %v4148 = vrot.slane %v4134, %v4147
        %v4149 = vcombine.low %v4116, %v4132
        %v4150 = vcombine.high %v4116, %v4132
        %v4152 = vunpack.c.l.s4 1934713408
        %v4153 = vunpack.c.0.s8 %v4152
        %v4154 = vlaneseq
        %v4155 = vshrl.u32 %v4154, 7
        %v4156 = vsub.s32 %v4153, %v4155
        %v4157 = vrot.slane %v4149, %v4156
        %v4159 = vunpack.c.l.s4 1934713408
        %v4160 = vunpack.c.0.s8 %v4159
        %v4161 = vlaneseq
        %v4162 = vshrl.u32 %v4161, 7
        %v4163 = vsub.s32 %v4160, %v4162
        %v4164 = vrot.slane %v4150, %v4163
        %v4165 = vcombine.high %v4141, 0.0
        %v4166 = vcombine.high %v4148, 0.0
        %v4167 = vcombine.high %v4157, 0.0
        %v4168 = vcombine.high %v4164, 0.0
        %v4169 = vcombine.low %v4073, %v4080
        %v4171 = vunpack.c.l.s4 1983009808
        %v4172 = vunpack.c.0.s8 %v4171
        %v4173 = vlaneseq
        %v4174 = vshrl.u32 %v4173, 7
        %v4175 = vsub.s32 %v4172, %v4174
        %v4176 = vrot.slane %v4169, %v4175
        %v4177 = vcombine.low %v4097, %v4098
        %v4179 = vunpack.c.l.s4 1983009808
        %v4180 = vunpack.c.0.s8 %v4179
        %v4181 = vlaneseq
        %v4182 = vshrl.u32 %v4181, 7
        %v4183 = vsub.s32 %v4180, %v4182
        %v4184 = vrot.slane %v4177, %v4183
        %v4185 = vcombine.low %v4089, %v4096
        %v4187 = vunpack.c.l.s4 1983009808
        %v4188 = vunpack.c.0.s8 %v4187
        %v4189 = vlaneseq
        %v4190 = vshrl.u32 %v4189, 7
        %v4191 = vsub.s32 %v4188, %v4190
        %v4192 = vrot.slane %v4185, %v4191
        %v4193 = vcombine.low %v4099, %v4100
        %v4195 = vunpack.c.l.s4 1983009808
        %v4196 = vunpack.c.0.s8 %v4195
        %v4197 = vlaneseq
        %v4198 = vshrl.u32 %v4197, 7
        %v4199 = vsub.s32 %v4196, %v4198
        %v4200 = vrot.slane %v4193, %v4199
        %v4201 = vcombine.low %v4176, %v4184
        %v4202 = vcombine.high %v4176, %v4184
        %v4204 = vunpack.c.l.s4 1934713408
        %v4205 = vunpack.c.0.s8 %v4204
        %v4206 = vlaneseq
        %v4207 = vshrl.u32 %v4206, 7
        %v4208 = vsub.s32 %v4205, %v4207
        %v4209 = vrot.slane %v4201, %v4208
        %v4211 = vunpack.c.l.s4 1934713408
        %v4212 = vunpack.c.0.s8 %v4211
        %v4213 = vlaneseq
        %v4214 = vshrl.u32 %v4213, 7
        %v4215 = vsub.s32 %v4212, %v4214
        %v4216 = vrot.slane %v4202, %v4215
        %v4217 = vcombine.low %v4192, %v4200
        %v4218 = vcombine.high %v4192, %v4200
        %v4220 = vunpack.c.l.s4 1934713408
        %v4221 = vunpack.c.0.s8 %v4220
        %v4222 = vlaneseq
        %v4223 = vshrl.u32 %v4222, 7
        %v4224 = vsub.s32 %v4221, %v4223
        %v4225 = vrot.slane %v4217, %v4224
        %v4227 = vunpack.c.l.s4 1934713408
        %v4228 = vunpack.c.0.s8 %v4227
        %v4229 = vlaneseq
        %v4230 = vshrl.u32 %v4229, 7
        %v4231 = vsub.s32 %v4228, %v4230
        %v4232 = vrot.slane %v4218, %v4231
        %v4233 = vcombine.low %v4209, %v4225
        %v4234 = vcombine.high %v4209, %v4225
        %v4235 = vcombine.low %v4216, %v4232
        %v4236 = vcombine.high %v4216, %v4232
        %v4237 = vcombine.low %v4141, %v4148
        %v4239 = vunpack.c.l.s4 1983009808
        %v4240 = vunpack.c.0.s8 %v4239
        %v4241 = vlaneseq
        %v4242 = vshrl.u32 %v4241, 7
        %v4243 = vsub.s32 %v4240, %v4242
        %v4244 = vrot.slane %v4237, %v4243
        %v4245 = vcombine.low %v4165, %v4166
        %v4247 = vunpack.c.l.s4 1983009808
        %v4248 = vunpack.c.0.s8 %v4247
        %v4249 = vlaneseq
        %v4250 = vshrl.u32 %v4249, 7
        %v4251 = vsub.s32 %v4248, %v4250
        %v4252 = vrot.slane %v4245, %v4251
        %v4253 = vcombine.low %v4157, %v4164
        %v4255 = vunpack.c.l.s4 1983009808
        %v4256 = vunpack.c.0.s8 %v4255
        %v4257 = vlaneseq
        %v4258 = vshrl.u32 %v4257, 7
        %v4259 = vsub.s32 %v4256, %v4258
        %v4260 = vrot.slane %v4253, %v4259
        %v4261 = vcombine.low %v4167, %v4168
        %v4263 = vunpack.c.l.s4 1983009808
        %v4264 = vunpack.c.0.s8 %v4263
        %v4265 = vlaneseq
        %v4266 = vshrl.u32 %v4265, 7
        %v4267 = vsub.s32 %v4264, %v4266
        %v4268 = vrot.slane %v4261, %v4267
        %v4269 = vcombine.low %v4244, %v4252
        %v4270 = vcombine.high %v4244, %v4252
        %v4272 = vunpack.c.l.s4 1934713408
        %v4273 = vunpack.c.0.s8 %v4272
        %v4274 = vlaneseq
        %v4275 = vshrl.u32 %v4274, 7
        %v4276 = vsub.s32 %v4273, %v4275
        %v4277 = vrot.slane %v4269, %v4276
        %v4279 = vunpack.c.l.s4 1934713408
        %v4280 = vunpack.c.0.s8 %v4279
        %v4281 = vlaneseq
        %v4282 = vshrl.u32 %v4281, 7
        %v4283 = vsub.s32 %v4280, %v4282
        %v4284 = vrot.slane %v4270, %v4283
        %v4285 = vcombine.low %v4260, %v4268
        %v4286 = vcombine.high %v4260, %v4268
        %v4288 = vunpack.c.l.s4 1934713408
        %v4289 = vunpack.c.0.s8 %v4288
        %v4290 = vlaneseq
        %v4291 = vshrl.u32 %v4290, 7
        %v4292 = vsub.s32 %v4289, %v4291
        %v4293 = vrot.slane %v4285, %v4292
        %v4295 = vunpack.c.l.s4 1934713408
        %v4296 = vunpack.c.0.s8 %v4295
        %v4297 = vlaneseq
        %v4298 = vshrl.u32 %v4297, 7
        %v4299 = vsub.s32 %v4296, %v4298
        %v4300 = vrot.slane %v4286, %v4299
        %v4301 = vcombine.low %v4277, %v4293
        %v4302 = vcombine.high %v4277, %v4293
        %v4303 = vcombine.low %v4284, %v4300
        %v4304 = vcombine.high %v4284, %v4300
        %4307 = vrot.lane.b32.xlu0 %v4234, 8
        %v4308 = vpop.permute.xlu0 %4307
        %4309 = vrot.lane.b32.xlu0 %v4302, 8
        %v4310 = vpop.permute.xlu0 %4309
        %4315 = vrot.lane.b32.xlu0 %v4235, 16
        %v4316 = vpop.permute.xlu0 %4315
        %4317 = vrot.lane.b32.xlu0 %v4303, 16
        %v4318 = vpop.permute.xlu0 %4317
        %4323 = vrot.lane.b32.xlu0 %v4236, 24
        %v4324 = vpop.permute.xlu0 %4323
        %4325 = vrot.lane.b32.xlu0 %v4304, 24
        %v4326 = vpop.permute.xlu0 %4325
        %v4329 = vsel %vm1893, %v4233, %v4308
        %v4330 = vsel %vm1893, %v4301, %v4310
        %v4331 = vsel %vm2092, %v4329, %v4316
        %v4332 = vsel %vm2092, %v4330, %v4318
        %v4333 = vsel %vm2661, %v4331, %v4324
        %v4334 = vsel %vm2661, %v4332, %v4326
        %v4335 = vsel %vm2092, %v3845, 0.0
        %v4336 = vsel %vm2092, %v3847, 0.0
        %v4337 = vadd.f32 %v4335, %v4336
        %v4338 = vsel %vm2092, %v3849, 0.0
        %v4339 = vadd.f32 %v4337, %v4338
        %v4340 = vsel %vm2092, %v3851, 0.0
        %v4341 = vadd.f32 %v4339, %v4340
        %v4342 = vsel %vm2092, %v3846, 0.0
        %v4343 = vsel %vm2092, %v3848, 0.0
        %v4344 = vadd.f32 %v4342, %v4343
        %v4345 = vsel %vm2092, %v3850, 0.0
        %v4346 = vadd.f32 %v4344, %v4345
        %v4347 = vsel %vm2092, %v3852, 0.0
        %v4348 = vadd.f32 %v4346, %v4347
        %v4349 = vmul.f32 %v4341, %v2678
        %v4350 = vmul.f32 %v4348, %v2678
        %v4351 = vpack.c.bf16 %v2663, %v2662
        %v4352 = vpack.c.bf16 %v4334, %v4333
        %v4353 = vld [vmem:[%s9] sm:$0xf]
        %v4354 = vld [vmem:[%s9 + $0x4] sm:$0xf]
        %v4355 = vld [vmem:[%s9 + $0x8] sm:$0xf]
        %v4356 = vld [vmem:[%s9 + $0xc] sm:$0xf]
        %v4357 = vld [vmem:[#allocation11] sm:$0x1]
        %v4359 = vlaneseq
        %v4360 = vshrl.u32 %v4359, 7
        %v4361 = vsub.s32 0, %v4360
        %v4362 = vrot.slane %v4357, %v4361
        %v4368 = vunpack.c.l.b16 %v4353
        %v4369 = vunpack.c.l.b16 %v4354
        %v4370 = vunpack.c.l.b16 %v4355
        %v4371 = vunpack.c.l.b16 %v4356
        %v4372 = vpack.c.b16 %v4369, %v4368
        %v4373 = vpack.c.b16 %v4371, %v4370
        %v4377 = vsel %vm704, %v4351, 0
        %v4380 = vsel %vm704, %v4352, 0
        %4382 = vmatprep.subr.bf16.mxu0 0
        %4383 = vmatpush1.bf16.msra.mxu0 %v4372
        %4384 = vmatprep.subr.bf16.mxu0 0
        %4385 = vmatpush1.bf16.msra.mxu0 %v4373
        %4386 = vmatprep.subr.bf16.mxu0 0
        %4387 = vmatpush1.bf16.msra.mxu0 0
        %4388 = vmatprep.subr.bf16.mxu0 0
        %4389 = vmatpush1.bf16.msra.mxu0 0
        %4390 = vmatprep.subr.bf16.mxu0 0
        %4391 = vmatpush1.bf16.msra.mxu0 0
        %4392 = vmatprep.subr.bf16.mxu0 0
        %4393 = vmatpush1.bf16.msra.mxu0 0
        %4394 = vmatprep.subr.bf16.mxu0 0
        %4395 = vmatpush1.bf16.msra.mxu0 0
        %4396 = vmatprep.subr.bf16.mxu0 0
        %4397 = vmatpush1.bf16.msra.mxu0 0
        %4398 = vmatprep.subr.bf16.mxu0 0
        %4399 = vmatpush1.bf16.msra.mxu0 0
        %4400 = vmatprep.subr.bf16.mxu0 0
        %4401 = vmatpush1.bf16.msra.mxu0 0
        %4402 = vmatprep.subr.bf16.mxu0 0
        %4403 = vmatpush1.bf16.msra.mxu0 0
        %4404 = vmatprep.subr.bf16.mxu0 0
        %4405 = vmatpush1.bf16.msra.mxu0 0
        %4406 = vmatprep.subr.bf16.mxu0 0
        %4407 = vmatpush1.bf16.msra.mxu0 0
        %4408 = vmatprep.subr.bf16.mxu0 0
        %4409 = vmatpush1.bf16.msra.mxu0 0
        %4410 = vmatprep.subr.bf16.mxu0 0
        %4411 = vmatpush1.bf16.msra.mxu0 0
        %4412 = vmatprep.subr.bf16.mxu0 0
        %4413 = vmatpush1.bf16.msra.mxu0 0
        %4414 = vmatprep.mubr.bf16.mxu0 0
        %4415 = vmatmul.mubr.bf16.gmra.mrb[0].mxu0 %v4377
        %v4416 = vpop.f32.mrb[0].mxu0
        %v4417 = vadd.f32 %v4362, %v4416
        %v4418 = vpop.f32.mrb[0].mxu0
        %v4419 = vpop.f32.mrb[0].mxu0
        %v4420 = vadd.f32 %v4362, %v4419
        %v4421 = vpop.f32.mrb[0].mxu0
        %4422 = vmatprep.mubr.bf16.mxu0 0
        %4423 = vmatmul.mubr.bf16.gmra.mrb[0].mxu0 %v4380
        %v4424 = vpop.f32.mrb[0].mxu0
        %v4425 = vadd.f32 %v4362, %v4424
        %v4426 = vpop.f32.mrb[0].mxu0
        %v4427 = vpop.f32.mrb[0].mxu0
        %v4428 = vadd.f32 %v4362, %v4427
        %v4429 = vpop.f32.mrb[0].mxu0
        %4430 = vdwg.mxu0
        %v4431 = vadd.f32 %v698, %v4417
        %v4432 = vadd.f32 %v699, %v4420
        %v4433 = vadd.f32 %v700, %v4425
        %v4434 = vadd.f32 %v701, %v4428
        %v4435 = vld [vmem:[#allocation13] sm:$0x1]
        %v4436 = vld [vmem:[#allocation14] sm:$0x1]
        %v4437 = vsel %vm704, %v4431, 0.0
        %4438 = vadd.xlane.f32.xlu0 %v4437
        %v4439 = vpop.xlane.xlu0 %4438
        %v4440 = vsel %vm704, %v4432, 0.0
        %4441 = vadd.xlane.f32.xlu0 %v4440
        %v4442 = vpop.xlane.xlu0 %4441
        %v4443 = vsel %vm704, %v4433, 0.0
        %4444 = vadd.xlane.f32.xlu0 %v4443
        %v4445 = vpop.xlane.xlu0 %4444
        %v4446 = vsel %vm704, %v4434, 0.0
        %4447 = vadd.xlane.f32.xlu0 %v4446
        %v4448 = vpop.xlane.xlu0 %4447
        %v4449 = vmul.f32 %v4439, %v717
        %v4450 = vmul.f32 %v4442, %v717
        %v4451 = vmul.f32 %v4445, %v717
        %v4452 = vmul.f32 %v4448, %v717
        %v4453 = vsub.f32 %v4431, %v4449
        %v4454 = vsub.f32 %v4432, %v4450
        %v4455 = vsub.f32 %v4433, %v4451
        %v4456 = vsub.f32 %v4434, %v4452
        %v4457 = vmul.f32 %v4453, %v4453
        %v4458 = vmul.f32 %v4454, %v4454
        %v4459 = vmul.f32 %v4455, %v4455
        %v4460 = vmul.f32 %v4456, %v4456
        %v4461 = vsel %vm704, %v4457, 0.0
        %4462 = vadd.xlane.f32.xlu0 %v4461
        %v4463 = vpop.xlane.xlu0 %4462
        %v4464 = vsel %vm704, %v4458, 0.0
        %4465 = vadd.xlane.f32.xlu0 %v4464
        %v4466 = vpop.xlane.xlu0 %4465
        %v4467 = vsel %vm704, %v4459, 0.0
        %4468 = vadd.xlane.f32.xlu0 %v4467
        %v4469 = vpop.xlane.xlu0 %4468
        %v4470 = vsel %vm704, %v4460, 0.0
        %4471 = vadd.xlane.f32.xlu0 %v4470
        %v4472 = vpop.xlane.xlu0 %4471
        %v4473 = vmul.f32 %v4463, %v717
        %v4474 = vmul.f32 %v4466, %v717
        %v4475 = vmul.f32 %v4469, %v717
        %v4476 = vmul.f32 %v4472, %v717
        %v4477 = vadd.f32 %v4473, 1e-06
        %v4478 = vadd.f32 %v4474, 1e-06
        %v4479 = vadd.f32 %v4475, 1e-06
        %v4480 = vadd.f32 %v4476, 1e-06
        %v4481 = vrsqrt.pop %v4477
        %v4482 = vrsqrt.pop %v4478
        %v4483 = vrsqrt.pop %v4479
        %v4484 = vrsqrt.pop %v4480
        %v4485 = vmul.f32 %v4453, %v4481
        %v4486 = vmul.f32 %v4454, %v4482
        %v4487 = vmul.f32 %v4455, %v4483
        %v4488 = vmul.f32 %v4456, %v4484
        %v4490 = vlaneseq
        %v4491 = vshrl.u32 %v4490, 7
        %v4492 = vsub.s32 0, %v4491
        %v4493 = vrot.slane %v4435, %v4492
        %v4495 = vmul.f32 %v4485, %v4493
        %v4496 = vmul.f32 %v4486, %v4493
        %v4497 = vmul.f32 %v4487, %v4493
        %v4498 = vmul.f32 %v4488, %v4493
        %v4500 = vlaneseq
        %v4501 = vshrl.u32 %v4500, 7
        %v4502 = vsub.s32 0, %v4501
        %v4503 = vrot.slane %v4436, %v4502
        %v4505 = vadd.f32 %v4495, %v4503
        %v4506 = vadd.f32 %v4496, %v4503
        %v4507 = vadd.f32 %v4497, %v4503
        %v4508 = vadd.f32 %v4498, %v4503
        %v4509 = vpack.c.bf16 %v4506, %v4505
        %v4510 = vpack.c.bf16 %v4508, %v4507
        %v4511 = vld [vmem:[%s13] sm:$0xf]
        %v4512 = vld [vmem:[%s13 + $0x4] sm:$0xf]
        %v4513 = vld [vmem:[%s13 + $0x8] sm:$0xf]
        %v4514 = vld [vmem:[%s13 + $0xc] sm:$0xf]
        %v4515 = vld [vmem:[%s14] sm:$0x1]
        %v4517 = vlaneseq
        %v4518 = vshrl.u32 %v4517, 7
        %v4519 = vsub.s32 0, %v4518
        %v4520 = vrot.slane %v4515, %v4519
        %v4526 = vunpack.c.l.b16 %v4511
        %v4527 = vunpack.c.l.b16 %v4512
        %v4528 = vunpack.c.l.b16 %v4513
        %v4529 = vunpack.c.l.b16 %v4514
        %v4530 = vpack.c.b16 %v4527, %v4526
        %v4531 = vpack.c.b16 %v4529, %v4528
        %v4535 = vsel %vm704, %v4509, 0
        %v4538 = vsel %vm704, %v4510, 0
        %4540 = vmatprep.subr.bf16.mxu0 0
        %4541 = vmatpush1.bf16.msra.mxu0 %v4530
        %4542 = vmatprep.subr.bf16.mxu0 0
        %4543 = vmatpush1.bf16.msra.mxu0 %v4531
        %4544 = vmatprep.subr.bf16.mxu0 0
        %4545 = vmatpush1.bf16.msra.mxu0 0
        %4546 = vmatprep.subr.bf16.mxu0 0
        %4547 = vmatpush1.bf16.msra.mxu0 0
        %4548 = vmatprep.subr.bf16.mxu0 0
        %4549 = vmatpush1.bf16.msra.mxu0 0
        %4550 = vmatprep.subr.bf16.mxu0 0
        %4551 = vmatpush1.bf16.msra.mxu0 0
        %4552 = vmatprep.subr.bf16.mxu0 0
        %4553 = vmatpush1.bf16.msra.mxu0 0
        %4554 = vmatprep.subr.bf16.mxu0 0
        %4555 = vmatpush1.bf16.msra.mxu0 0
        %4556 = vmatprep.subr.bf16.mxu0 0
        %4557 = vmatpush1.bf16.msra.mxu0 0
        %4558 = vmatprep.subr.bf16.mxu0 0
        %4559 = vmatpush1.bf16.msra.mxu0 0
        %4560 = vmatprep.subr.bf16.mxu0 0
        %4561 = vmatpush1.bf16.msra.mxu0 0
        %4562 = vmatprep.subr.bf16.mxu0 0
        %4563 = vmatpush1.bf16.msra.mxu0 0
        %4564 = vmatprep.subr.bf16.mxu0 0
        %4565 = vmatpush1.bf16.msra.mxu0 0
        %4566 = vmatprep.subr.bf16.mxu0 0
        %4567 = vmatpush1.bf16.msra.mxu0 0
        %4568 = vmatprep.subr.bf16.mxu0 0
        %4569 = vmatpush1.bf16.msra.mxu0 0
        %4570 = vmatprep.subr.bf16.mxu0 0
        %4571 = vmatpush1.bf16.msra.mxu0 0
        %4572 = vmatprep.mubr.bf16.mxu0 0
        %4573 = vmatmul.mubr.bf16.gmra.mrb[0].mxu0 %v4535
        %v4574 = vpop.f32.mrb[0].mxu0
        %v4575 = vadd.f32 %v4520, %v4574
        %v4576 = vpop.f32.mrb[0].mxu0
        %v4577 = vpop.f32.mrb[0].mxu0
        %v4578 = vadd.f32 %v4520, %v4577
        %v4579 = vpop.f32.mrb[0].mxu0
        %4580 = vmatprep.mubr.bf16.mxu0 0
        %4581 = vmatmul.mubr.bf16.gmra.mrb[0].mxu0 %v4538
        %v4582 = vpop.f32.mrb[0].mxu0
        %v4583 = vadd.f32 %v4520, %v4582
        %v4584 = vpop.f32.mrb[0].mxu0
        %v4585 = vpop.f32.mrb[0].mxu0
        %v4586 = vadd.f32 %v4520, %v4585
        %v4587 = vpop.f32.mrb[0].mxu0
        %4588 = vdwg.mxu0
        %v4589 = vmul.f32 %v4575, 0.5
        %v4590 = vmul.f32 %v4578, 0.5
        %v4591 = vmul.f32 %v4583, 0.5
        %v4592 = vmul.f32 %v4586, 0.5
        %v4593 = vmul.f32 %v4575, 0.70710677
        %v4594 = vmul.f32 %v4578, 0.70710677
        %v4595 = vmul.f32 %v4583, 0.70710677
        %v4596 = vmul.f32 %v4586, 0.70710677
        %v4597 = verf.f32.pop %v4593
        %v4598 = verf.f32.pop %v4594
        %v4599 = verf.f32.pop %v4595
        %v4600 = verf.f32.pop %v4596
        %v4601 = vadd.f32 %v4597, 1.0
        %v4602 = vadd.f32 %v4598, 1.0
        %v4603 = vadd.f32 %v4599, 1.0
        %v4604 = vadd.f32 %v4600, 1.0
        %v4605 = vmul.f32 %v4589, %v4601
        %v4606 = vmul.f32 %v4590, %v4602
        %v4607 = vmul.f32 %v4591, %v4603
        %v4608 = vmul.f32 %v4592, %v4604
        %v4609 = vpack.c.bf16 %v4606, %v4605
        %v4610 = vpack.c.bf16 %v4608, %v4607
        %v4611 = vld [vmem:[%s15] sm:$0xf]
        %v4612 = vld [vmem:[%s15 + $0x4] sm:$0xf]
        %v4613 = vld [vmem:[%s15 + $0x8] sm:$0xf]
        %v4614 = vld [vmem:[%s15 + $0xc] sm:$0xf]
        %v4615 = vld [vmem:[%s15 + $0x10] sm:$0xf]
        %v4616 = vld [vmem:[%s15 + $0x14] sm:$0xf]
        %v4617 = vld [vmem:[%s15 + $0x18] sm:$0xf]
        %v4618 = vld [vmem:[%s15 + $0x1c] sm:$0xf]
        %v4619 = vld [vmem:[%s16] sm:$0x1]
        %v4621 = vlaneseq
        %v4622 = vshrl.u32 %v4621, 7
        %v4623 = vsub.s32 0, %v4622
        %v4624 = vrot.slane %v4619, %v4623
        %v4634 = vunpack.c.l.b16 %v4611
        %v4635 = vunpack.c.l.b16 %v4612
        %v4636 = vunpack.c.l.b16 %v4613
        %v4637 = vunpack.c.l.b16 %v4614
        %v4638 = vunpack.c.l.b16 %v4615
        %v4639 = vunpack.c.l.b16 %v4616
        %v4640 = vunpack.c.l.b16 %v4617
        %v4641 = vunpack.c.l.b16 %v4618
        %v4642 = vpack.c.b16 %v4635, %v4634
        %v4643 = vpack.c.b16 %v4637, %v4636
        %v4644 = vpack.c.b16 %v4639, %v4638
        %v4645 = vpack.c.b16 %v4641, %v4640
        %vm4650 = vcmask 523264
        %v4652 = vsel %vm4650, %v4609, 0
        %v4655 = vsel %vm4650, %v4610, 0
        %4657 = vmatprep.subr.bf16.mxu0 0
        %4658 = vmatpush1.bf16.msra.mxu0 %v4642
        %4659 = vmatprep.subr.bf16.mxu0 0
        %4660 = vmatpush1.bf16.msra.mxu0 %v4643
        %4661 = vmatprep.subr.bf16.mxu0 0
        %4662 = vmatpush1.bf16.msra.mxu0 %v4644
        %4663 = vmatprep.subr.bf16.mxu0 0
        %4664 = vmatpush1.bf16.msra.mxu0 %v4645
        %4665 = vmatprep.subr.bf16.mxu0 0
        %4666 = vmatpush1.bf16.msra.mxu0 0
        %4667 = vmatprep.subr.bf16.mxu0 0
        %4668 = vmatpush1.bf16.msra.mxu0 0
        %4669 = vmatprep.subr.bf16.mxu0 0
        %4670 = vmatpush1.bf16.msra.mxu0 0
        %4671 = vmatprep.subr.bf16.mxu0 0
        %4672 = vmatpush1.bf16.msra.mxu0 0
        %4673 = vmatprep.subr.bf16.mxu0 0
        %4674 = vmatpush1.bf16.msra.mxu0 0
        %4675 = vmatprep.subr.bf16.mxu0 0
        %4676 = vmatpush1.bf16.msra.mxu0 0
        %4677 = vmatprep.subr.bf16.mxu0 0
        %4678 = vmatpush1.bf16.msra.mxu0 0
        %4679 = vmatprep.subr.bf16.mxu0 0
        %4680 = vmatpush1.bf16.msra.mxu0 0
        %4681 = vmatprep.subr.bf16.mxu0 0
        %4682 = vmatpush1.bf16.msra.mxu0 0
        %4683 = vmatprep.subr.bf16.mxu0 0
        %4684 = vmatpush1.bf16.msra.mxu0 0
        %4685 = vmatprep.subr.bf16.mxu0 0
        %4686 = vmatpush1.bf16.msra.mxu0 0
        %4687 = vmatprep.subr.bf16.mxu0 0
        %4688 = vmatpush1.bf16.msra.mxu0 0
        %4689 = vmatprep.mubr.bf16.mxu0 0
        %4690 = vmatmul.mubr.bf16.gmra.mrb[0].mxu0 %v4652
        %v4691 = vpop.f32.mrb[0].mxu0
        %v4692 = vadd.f32 %v4624, %v4691
        %v4693 = vpop.f32.mrb[0].mxu0
        %v4694 = vpop.f32.mrb[0].mxu0
        %v4695 = vadd.f32 %v4624, %v4694
        %v4696 = vpop.f32.mrb[0].mxu0
        %4697 = vmatprep.mubr.bf16.mxu0 0
        %4698 = vmatmul.mubr.bf16.gmra.mrb[0].mxu0 %v4655
        %v4699 = vpop.f32.mrb[0].mxu0
        %v4700 = vadd.f32 %v4624, %v4699
        %v4701 = vpop.f32.mrb[0].mxu0
        %v4702 = vpop.f32.mrb[0].mxu0
        %v4703 = vadd.f32 %v4624, %v4702
        %v4704 = vpop.f32.mrb[0].mxu0
        %4705 = vdwg.mxu0
        %v4706 = vadd.f32 %v4431, %v4692
        %v4707 = vadd.f32 %v4432, %v4695
        %v4708 = vadd.f32 %v4433, %v4700
        %v4709 = vadd.f32 %v4434, %v4703
        %4710 = vst.msk [vmem:[%s686] sm:$0xff] %vm704, %v4706
        %4711 = vst.msk [vmem:[%s686 + $0x8] sm:$0xff] %vm704, %v4707
        %4712 = vst.msk [vmem:[%s686 + $0x10] sm:$0xff] %vm704, %v4708
        %4713 = vst.msk [vmem:[%s686 + $0x18] sm:$0xff] %vm704, %v4709
        %v4714 = vsel %vm2092, %v2679, 0.0
        %v4715 = vsel %vm2092, %v2680, 0.0
        %v4716 = vsel %vm2092, %v4349, 0.0
        %v4717 = vsel %vm2092, %v4350, 0.0
        %4718 = vst [vmem:[%s693] sm:$0xff] %v4714
        %4719 = vst [vmem:[%s693 + $0x8] sm:$0xff] %v4715
        %4720 = vst [vmem:[%s693 + $0x10] sm:$0xff] %v4716
        %4721 = vst [vmem:[%s693 + $0x18] sm:$0xff] %v4717
        %s4722 = sand.u32 %s413, 1
        %s4723 = scalar_lea.sflag [#allocation4], %s4722
        %s4724 = sand.u32 %s413, 1
        %s4725 = smul.addr %s4724, 32
        %s4726 = scalar_lea.vmem [#allocation16], %s4725
        %s4727 = sand.u32 %s439, 1
        %s4728 = scalar_lea.sflag [#allocation18], %s4727
        %s4729 = sand.u32 %s439, 1
        %s4730 = smul.addr %s4729, 32
        %s4731 = scalar_lea.vmem [#allocation17], %s4730
        // Predicated region
        $region121: #{tpu_custom_call.1} parent=87 // pred_check
          %p4732 = pneg %p423
        $region122: #{tpu_custom_call.1} parent=87 // pred_check_branch
          %4734 = sbr.rel (%p4732) target = $region124
        $region123: #{tpu_custom_call.1} parent=87 // pred_region
          %s4735 = smul.u32 2, %s43
          %s4737 = ssub.s32 512, 512
          %4738 = vsyncadd %s4723, %s4737
          %s4739 = smul.addr %s4735, 2
          %s4740 = smul.addr %s4739, 128
          %s4741 = scalar_lea.hbm %s17, %s4740
          %s4742 = sshll.u32 %s4726, 4
          %s4743 = int_to_ptr.vmem [resolvable:$true] %s4742
          %4748 = dma.vmem_to_hbm [thread:$0]  %s4743, 512, %s4741, %s4723, 128, 128, 8
        $region124: #{tpu_custom_call.1} parent=87 // pred_fallthru
          _
        // Predicated region
        $region125: #{tpu_custom_call.1} parent=87 // pred_check
          %p4749 = pneg %p449
        $region126: #{tpu_custom_call.1} parent=87 // pred_check_branch
          %4751 = sbr.rel (%p4749) target = $region128
        $region127: #{tpu_custom_call.1} parent=87 // pred_region
          %s4752 = smul.u32 2, %s43
          %s4754 = ssub.s32 512, 512
          %4755 = vsyncadd %s4728, %s4754
          %s4756 = smul.addr %s4752, 2
          %s4757 = smul.addr %s4756, 128
          %s4758 = scalar_lea.hbm %s18, %s4757
          %s4759 = sshll.u32 %s4731, 4
          %s4760 = int_to_ptr.vmem [resolvable:$true] %s4759
          %4765 = dma.vmem_to_hbm [thread:$0]  %s4760, 512, %s4758, %s4728, 128, 128, 8
        $region128: #{tpu_custom_call.1} parent=87 // pred_fallthru
          _
      $region88: #{tpu_custom_call.1} parent=5 // pred_fallthru
        _
      %p4766 = scmp.le.s32.totalorder 2, %s38
      // Predicated region
      $region129: #{tpu_custom_call.1} parent=5 // pred_check
        %p4767 = pneg %p4766
      $region130: #{tpu_custom_call.1} parent=5 // pred_check_branch
        %4769 = sbr.rel (%p4767) target = $region132
      $region131: #{tpu_custom_call.1} parent=5 // pred_region
        %s4770 = ssub.s32 %s38, 2
        // Predicated region
        $region133: #{tpu_custom_call.1} parent=131 // pred_check
          %p4771 = pneg %p429
        $region134: #{tpu_custom_call.1} parent=131 // pred_check_branch
          %4773 = sbr.rel (%p4771) target = $region136
        $region135: #{tpu_custom_call.1} parent=131 // pred_region
          %s4774 = sand.u32 %s414, 1
          %s4775 = scalar_lea.sflag [#allocation4], %s4774
          %s4776 = sand.u32 %s414, 1
          %s4777 = smul.addr %s4776, 32
          %s4778 = scalar_lea.vmem [#allocation16], %s4777
          %4779 = dma.done %s4775, 512
        $region136: #{tpu_custom_call.1} parent=131 // pred_fallthru
          _
        // Predicated region
        $region137: #{tpu_custom_call.1} parent=131 // pred_check
          %p4780 = pneg %p455
        $region138: #{tpu_custom_call.1} parent=131 // pred_check_branch
          %4782 = sbr.rel (%p4780) target = $region140
        $region139: #{tpu_custom_call.1} parent=131 // pred_region
          %s4783 = sand.u32 %s440, 1
          %s4784 = scalar_lea.sflag [#allocation18], %s4783
          %s4785 = sand.u32 %s440, 1
          %s4786 = smul.addr %s4785, 32
          %s4787 = scalar_lea.vmem [#allocation17], %s4786
          %4788 = dma.done %s4784, 512
        $region140: #{tpu_custom_call.1} parent=131 // pred_fallthru
          _
      $region132: #{tpu_custom_call.1} parent=5 // pred_fallthru
        _
    $region6: #{tpu_custom_call.1} parent=1 // loop_footer
      %s42 = sadd.s32 1, %s38
    $region7: #{tpu_custom_call.1} parent=1 // loop_footer_branch
      %37 = sbr.rel target = $region3
    $region8: #{tpu_custom_call.1} parent=1 // loop_exit
      _
    %4789 = vsyncpa [#allocation3], 1
    %s4790 = scalar_lea.sflag [#allocation3], 1
    %4791 = vsyncpa %s4790, 1
    %4792 = vsyncpa [#allocation6], 1
    %4793 = vsyncpa [#allocation9], 1
    %4794 = vsyncpa [#allocation12], 1
    %4795 = vsyncpa [#allocation15], 1
    %4796 = vsyncpa [#allocation4], 1
    %s4797 = scalar_lea.sflag [#allocation4], 1
    %4798 = vsyncpa %s4797, 1
    %4799 = vsyncpa [#allocation18], 1
    %s4800 = scalar_lea.sflag [#allocation18], 1
    %4801 = vsyncpa %s4800, 1

</llo_original>
